<compile_context>
chip_gen: v7x
topology: tpu7x:2x2x1
jax: 0.10.0
libtpu: 0.0.40
codegen_flags: <defaults>
</compile_context>

<pallas_src>
import jax
import jax.numpy as jnp
from jax.experimental import pallas as pl
from jax.experimental.pallas import tpu as pltpu

BN_EPS = 1e-5


# --------------------------------------------------------------------------- #
# In-kernel helpers
# --------------------------------------------------------------------------- #

def _conv_bn_relu(src, bw_ref, g_ref, b_ref, bi, fold_ref, widen_ref, N, H, inv_count):
    """3x3 same-conv + train-mode BatchNorm + ReLU in the padded fused-lane layout.

    src:     (N, H+2, (W+2)*Cin) f32 value with zero halo rows/lanes.
    bw_ref:  (3, (W+2)*Cin, (W+2)*Cout) banded weights (kx folded in, zero output
             halo columns), one tile per ky.
    Returns  (N*H, (W+2)*Cout) post-ReLU activation; halo lanes stay exactly 0.
    """
    L_in = src.shape[-1]
    L_out = bw_ref.shape[-1]

    # 3 batched MXU matmuls over all N images at once (instead of 9*N small ones).
    acc = jnp.zeros((N * H, L_out), jnp.float32)
    for ky in range(3):
        lhs = src[:, ky:ky + H, :].reshape(N * H, L_in)
        acc = acc + jnp.dot(lhs, bw_ref[ky], preferred_element_type=jnp.float32)

    # Train-mode BN statistics in one pass (sum + sum-of-squares).
    # The conv bias is omitted: it is cancelled exactly by the batch-mean subtraction.
    tot = jnp.sum(acc, axis=0, keepdims=True)                    # (1, L_out)
    totsq = jnp.sum(acc * acc, axis=0, keepdims=True)            # (1, L_out)
    ch = jnp.dot(jnp.concatenate([tot, totsq], axis=0), fold_ref[...],
                 preferred_element_type=jnp.float32)             # (2, C)
    mean = ch[0:1, :] * inv_count
    var = jnp.maximum(ch[1:2, :] * inv_count - mean * mean, 0.0)
    gamma = g_ref[bi:bi + 1, :]
    beta = b_ref[bi:bi + 1, :]
    scale = gamma * jax.lax.rsqrt(var + BN_EPS)
    shift = beta - mean * scale
    # One widen matmul for (scale, shift) together; halo lanes receive 0 so the
    # zero padding of the fused-lane layout survives BN + ReLU.
    ssw = jnp.dot(jnp.concatenate([scale, shift], axis=0), widen_ref[...],
                  preferred_element_type=jnp.float32)            # (2, L_out)
    return jnp.maximum(acc * ssw[0:1, :] + ssw[1:2, :], 0.0)     # (N*H, L_out)


def _maxpool_to_padded(v, sel_ref, N, H, W, C, Ho, Wo):
    """3x3 / stride-2 / pad-1 max-pool of a padded fused-lane activation.

    v: (N, H+2, (W+2)*C) post-ReLU value with zero halos (zero pad == -inf pad
    because v >= 0).  Returns (N, Ho, (Wo+2)*C) pooled value with zero lane halo.
    """
    L = v.shape[-1]
    # Row direction: pairwise max of consecutive rows, then a pair reduce gives
    # max(v[2h], v[2h+1], v[2h+2]) with only contiguous static slices.
    m01 = jnp.maximum(v[:, 0:H + 1, :], v[:, 1:H + 2, :])        # (N, H+1, L)
    pairs = m01[:, 0:2 * Ho, :].reshape(N, Ho, 2, L)
    rmax = jnp.maximum(pairs[:, :, 0, :], pairs[:, :, 1, :])     # (N, Ho, L)
    # Column direction: 3 full-width lane-shifted maxima (offsets 0, C, 2C)...
    c01 = jnp.maximum(rmax[:, :, 0:W * C], rmax[:, :, C:(W + 1) * C])
    cmax = jnp.maximum(c01, rmax[:, :, 2 * C:(W + 2) * C])       # (N, Ho, W*C)
    # ...then one 0/1 selection matmul downselects the stride-2 windows and emits
    # the zero lane halo of the next level's padded layout (MXU is idle here).
    pooled = jnp.dot(cmax.reshape(N * Ho, W * C), sel_ref[...],
                     preferred_element_type=jnp.float32)         # (N*Ho, (Wo+2)*C)
    return pooled.reshape(N, Ho, (Wo + 2) * C)


def make_kernel(N, C, dims):
    """Single fused kernel: 3 levels of (conv+BN+ReLU)x2 with pooling in between."""

    def kernel(x_ref, g_ref, b_ref,
               bw10, bw20, bw11, bw21, bw12, bw22,
               fold0, fold1, fold2, widen0, widen1, widen2,
               sel0, sel1,
               feat0_ref, feat1_ref, feat2_ref,
               p0, p1, p2):
        bws = ((bw10, bw20), (bw11, bw21), (bw12, bw22))
        folds = (fold0, fold1, fold2)
        widens = (widen0, widen1, widen2)
        sels = (sel0, sel1)
        feats = (feat0_ref, feat1_ref, feat2_ref)
        ps = (p0, p1, p2)

        # Zero only the halo rows of the padded scratch buffers; interiors are
        # fully overwritten every level and lane halos stay zero by construction.
        for lvl in range(3):
            H, W, _ = dims[lvl]
            L = (W + 2) * C
            z = jnp.zeros((N, 1, L), jnp.float32)
            ps[lvl][:, 0:1, :] = z
            ps[lvl][:, H + 1:H + 2, :] = z

        src = x_ref[...]                      # level-0 padded fused-lane input
        for lvl in range(3):
            H, W, _ = dims[lvl]
            L = (W + 2) * C
            inv_count = 1.0 / float(N * H * W)
            p_ref = ps[lvl]

            # conv1 + BN + ReLU -> padded intermediate (lane-dense store).
            y1 = _conv_bn_relu(src, bws[lvl][0], g_ref, b_ref, 2 * lvl,
                               folds[lvl], widens[lvl], N, H, inv_count)
            p_ref[:, 1:H + 1, :] = y1.reshape(N, H, L)

            # conv2 + BN + ReLU -> feature output (full-slab store).
            y2 = _conv_bn_relu(p_ref[...], bws[lvl][1], g_ref, b_ref, 2 * lvl + 1,
                               folds[lvl], widens[lvl], N, H, inv_count)
            y2_3d = y2.reshape(N, H, L)
            feats[lvl][...] = y2_3d

            # Fused 3x3/stride-2/pad-1 max-pool feeding the next level directly.
            if lvl < 2:
                p_ref[:, 1:H + 1, :] = y2_3d
                Ho = (H - 1) // 2 + 1
                Wo = (W - 1) // 2 + 1
                pooled = _maxpool_to_padded(p_ref[...], sels[lvl], N, H, W, C, Ho, Wo)
                ps[lvl + 1][:, 1:Ho + 1, :] = pooled
                src = ps[lvl + 1][...]

    return kernel


# --------------------------------------------------------------------------- #
# Wrapper-side weight preparation (cheap XLA ops, done once per call)
# --------------------------------------------------------------------------- #

def _banded_weights(w, width):
    """(3,3,Cin,Cout) HWIO conv weights -> (3, (width+2)*Cin, (width+2)*Cout)
    banded tiles (one per ky, kx folded in).  Output halo columns are zero so the
    conv emits an already lane-padded row block starting at lane 0."""
    Cin, Cout = w.shape[2], w.shape[3]
    Wp = width + 2
    wi = jnp.arange(Wp)[:, None]                  # padded input column
    wo = jnp.arange(Wp)[None, :]                  # padded output column
    interior = (wo >= 1) & (wo <= width)
    sel = jnp.stack([((wi == (wo - 1 + kx)) & interior) for kx in range(3)], axis=0)
    sel = sel.astype(w.dtype)                     # (3, Wp, Wp)
    bw = jnp.einsum('kuv,ykio->yuivo', sel, w)    # (ky, wi, Cin, wo, Cout)
    return bw.reshape(3, Wp * Cin, Wp * Cout)


def _fold_widen(width, c):
    """fold: ((width+2)*c, c) sums fused lanes per channel over interior columns.
    widen: (c, (width+2)*c) broadcasts per-channel values to interior lanes, 0 at halo."""
    Wp = width + 2
    pos = jnp.arange(Wp)
    interior = ((pos >= 1) & (pos <= width)).astype(jnp.float32)     # (Wp,)
    widen = jnp.einsum('w,co->cwo', interior, jnp.eye(c, dtype=jnp.float32))
    widen = widen.reshape(c, Wp * c)
    return widen.T, widen


def _pool_select(width, c):
    """0/1 matrix (width*c, (Wo+2)*c): picks the stride-2 pooling windows and
    emits the zero lane halo of the next level's padded layout."""
    Wo = (width - 1) // 2 + 1
    src_w = jnp.arange(width)[:, None]
    dst_w = jnp.arange(Wo + 2)[None, :]
    hit = (src_w == 2 * (dst_w - 1)) & (dst_w >= 1) & (dst_w <= Wo)
    sel = jnp.einsum('wv,co->wcvo', hit.astype(jnp.float32),
                     jnp.eye(c, dtype=jnp.float32))
    return sel.reshape(width * c, (Wo + 2) * c)


# --------------------------------------------------------------------------- #
# Parameter init (mirrors Conv2d_Bn_Relu defaults)
# --------------------------------------------------------------------------- #

def init_params(origin_channel, internal_channel, key):
    params = {}
    cin = origin_channel
    for lvl in range(3):
        blocks = []
        for _ in range(2):
            key, kw, kb = jax.random.split(key, 3)
            cout = internal_channel
            w = 0.1 * jax.random.normal(kw, (3, 3, cin, cout), jnp.float32)
            # Conv bias exists in the reference module (bias=True) but is exactly
            # cancelled by the train-mode BN mean subtraction, so the fused kernel
            # never consumes it (forward output is identical).
            b = 0.01 * jax.random.normal(kb, (cout,), jnp.float32)
            gamma = jnp.ones((cout,), jnp.float32)   # BN weight default
            beta = jnp.zeros((cout,), jnp.float32)   # BN bias default
            blocks.append((w, b, gamma, beta))
            cin = cout
        params[f"layer{lvl}"] = blocks
    return params


# --------------------------------------------------------------------------- #
# Full forward pass
# --------------------------------------------------------------------------- #

def feature_extraction(x_nchw, params):
    """Returns [feature0, feature1, feature2] in NCHW, matching the PyTorch module
    (BatchNorm in train mode, i.e. batch statistics)."""
    N, C0, H, W = x_nchw.shape
    C = params["layer0"][0][0].shape[-1]

    # Per-level spatial sizes (pool: kernel=3, stride=2, pad=1).
    dims = []
    h, w, cin = H, W, C0
    for _ in range(3):
        dims.append((h, w, cin))
        h = (h - 1) // 2 + 1
        w = (w - 1) // 2 + 1
        cin = C

    # NCHW -> zero-padded fused-lane layout (N, H+2, (W+2)*C0).
    x = jnp.transpose(x_nchw, (0, 2, 3, 1))
    x = jnp.pad(x, ((0, 0), (1, 1), (1, 1), (0, 0)))
    x_pad = x.reshape(N, H + 2, (W + 2) * C0).astype(jnp.float32)

    # Wrapper-side operand preparation.
    # TODO(synk): cast banded weights / conv operands to bf16 (keep BN in f32)
    #   once H/W grow enough for the convs to be MXU-throughput bound.
    bws, folds, widens, sels, gammas, betas = [], [], [], [], [], []
    for lvl in range(3):
        lH, lW, lCin = dims[lvl]
        (w1, _b1, g1, be1), (w2, _b2, g2, be2) = params[f"layer{lvl}"]
        bws.append(_banded_weights(w1, lW))
        bws.append(_banded_weights(w2, lW))
        fold, widen = _fold_widen(lW, C)
        folds.append(fold)
        widens.append(widen)
        gammas += [g1, g2]
        betas += [be1, be2]
        if lvl < 2:
            sels.append(_pool_select(lW, C))
    g_stk = jnp.stack(gammas).astype(jnp.float32)      # (6, C)
    b_stk = jnp.stack(betas).astype(jnp.float32)       # (6, C)

    inputs = [x_pad, g_stk, b_stk] + bws + folds + widens + sels

    def full(shape):
        return pl.BlockSpec(shape, lambda *_: (0,) * len(shape))

    out_shape = tuple(
        jax.ShapeDtypeStruct((N, dims[l][0], (dims[l][1] + 2) * C), jnp.float32)
        for l in range(3))
    scratch_shapes = [
        pltpu.VMEM((N, dims[l][0] + 2, (dims[l][1] + 2) * C), jnp.float32)
        for l in range(3)]

    # Single pallas_call for all three levels: activations stay resident in VMEM.
    # Total VMEM footprint (weights + scratch + outputs) is ~2.5 MiB, far below
    # the scoped VMEM default on v5e/v6e/v7x, so no explicit vmem_limit needed.
    # TODO(synk): for large N*H*W use an M-tiled grid + two-pass BN with a
    #   "parallel" axis so v7x's second TensorCore is used.
    feats = pl.pallas_call(
        make_kernel(N, C, dims),
        out_shape=out_shape,
        in_specs=[full(a.shape) for a in inputs],
        out_specs=tuple(full(s.shape) for s in out_shape),
        scratch_shapes=scratch_shapes,
    )(*inputs)

    # Strip the lane halo and return NCHW features.
    outs = []
    for l in range(3):
        lH, lW, _ = dims[l]
        f = feats[l].reshape(N, lH, lW + 2, C)[:, :, 1:lW + 1, :]
        outs.append(jnp.transpose(f, (0, 3, 1, 2)))
    return outs


# --------------------------------------------------------------------------- #
# Main
# --------------------------------------------------------------------------- #

if __name__ == "__main__":
    key = jax.random.PRNGKey(0)
    key, kx = jax.random.split(key)

    N, origin_channel, H, W = 2, 4, 16, 16
    internal_channel = 16
    x = jax.random.normal(kx, (N, origin_channel, H, W), jnp.float32)

    params = init_params(origin_channel, internal_channel, key)

    feats = jax.jit(feature_extraction)(x, params)
    feats = jax.block_until_ready(feats)

    assert feats[0].shape == (N, internal_channel, 16, 16)
    assert feats[1].shape == (N, internal_channel, 8, 8)
    assert feats[2].shape == (N, internal_channel, 4, 4)
    assert all(bool(jnp.isfinite(f).all()) for f in feats)
    assert all(bool((f >= 0).all()) for f in feats)  # post-ReLU

    print("KERNEL_OK")
</pallas_src>

<mosaic_0001>
module attributes {stable_mosaic.version = 11 : i64} {
  func.func @kernel(%arg0: memref<2x18x72xf32, #tpu.memory_space<vmem>>, %arg1: memref<6x16xf32, #tpu.memory_space<vmem>>, %arg2: memref<6x16xf32, #tpu.memory_space<vmem>>, %arg3: memref<3x72x288xf32, #tpu.memory_space<vmem>>, %arg4: memref<3x288x288xf32, #tpu.memory_space<vmem>>, %arg5: memref<3x160x160xf32, #tpu.memory_space<vmem>>, %arg6: memref<3x160x160xf32, #tpu.memory_space<vmem>>, %arg7: memref<3x96x96xf32, #tpu.memory_space<vmem>>, %arg8: memref<3x96x96xf32, #tpu.memory_space<vmem>>, %arg9: memref<288x16xf32, #tpu.memory_space<vmem>>, %arg10: memref<160x16xf32, #tpu.memory_space<vmem>>, %arg11: memref<96x16xf32, #tpu.memory_space<vmem>>, %arg12: memref<16x288xf32, #tpu.memory_space<vmem>>, %arg13: memref<16x160xf32, #tpu.memory_space<vmem>>, %arg14: memref<16x96xf32, #tpu.memory_space<vmem>>, %arg15: memref<256x160xf32, #tpu.memory_space<vmem>>, %arg16: memref<128x96xf32, #tpu.memory_space<vmem>>, %arg17: memref<2x16x288xf32, #tpu.memory_space<vmem>>, %arg18: memref<2x8x160xf32, #tpu.memory_space<vmem>>, %arg19: memref<2x4x96xf32, #tpu.memory_space<vmem>>, %arg20: memref<2x18x288xf32, #tpu.memory_space<vmem>>, %arg21: memref<2x10x160xf32, #tpu.memory_space<vmem>>, %arg22: memref<2x6x96xf32, #tpu.memory_space<vmem>>) attributes {dimension_semantics = [], scalar_prefetch = 0 : i64, scratch_operands = 3 : i64, tpu.core_type = #tpu.core_type<tc>} {
    %cst = arith.constant 0.000000e+00 : f32
    %0 = vector.broadcast %cst : f32 to vector<2x1x288xf32>
    %c0 = arith.constant 0 : index
    %c0_0 = arith.constant 0 : index
    %c0_1 = arith.constant 0 : index
    %1 = vector.load %arg20[%c0, %c0_0, %c0_1] : memref<2x18x288xf32, #tpu.memory_space<vmem>>, vector<2x1x288xf32>
    tpu.vector_store %arg20[%c0, %c0_0, %c0_1], %0 {strides = array<i32>} : memref<2x18x288xf32, #tpu.memory_space<vmem>>, vector<2x1x288xf32>,
    %c0_2 = arith.constant 0 : index
    %c17 = arith.constant 17 : index
    %c0_3 = arith.constant 0 : index
    %2 = vector.load %arg20[%c0_2, %c17, %c0_3] : memref<2x18x288xf32, #tpu.memory_space<vmem>>, vector<2x1x288xf32>
    tpu.vector_store %arg20[%c0_2, %c17, %c0_3], %0 {strides = array<i32>} : memref<2x18x288xf32, #tpu.memory_space<vmem>>, vector<2x1x288xf32>,
    %cst_4 = arith.constant 0.000000e+00 : f32
    %3 = vector.broadcast %cst_4 : f32 to vector<2x1x160xf32>
    %c0_5 = arith.constant 0 : index
    %c0_6 = arith.constant 0 : index
    %c0_7 = arith.constant 0 : index
    %4 = vector.load %arg21[%c0_5, %c0_6, %c0_7] : memref<2x10x160xf32, #tpu.memory_space<vmem>>, vector<2x1x160xf32>
    tpu.vector_store %arg21[%c0_5, %c0_6, %c0_7], %3 {strides = array<i32>} : memref<2x10x160xf32, #tpu.memory_space<vmem>>, vector<2x1x160xf32>,
    %c0_8 = arith.constant 0 : index
    %c9 = arith.constant 9 : index
    %c0_9 = arith.constant 0 : index
    %5 = vector.load %arg21[%c0_8, %c9, %c0_9] : memref<2x10x160xf32, #tpu.memory_space<vmem>>, vector<2x1x160xf32>
    tpu.vector_store %arg21[%c0_8, %c9, %c0_9], %3 {strides = array<i32>} : memref<2x10x160xf32, #tpu.memory_space<vmem>>, vector<2x1x160xf32>,
    %cst_10 = arith.constant 0.000000e+00 : f32
    %6 = vector.broadcast %cst_10 : f32 to vector<2x1x96xf32>
    %c0_11 = arith.constant 0 : index
    %c0_12 = arith.constant 0 : index
    %c0_13 = arith.constant 0 : index
    %7 = vector.load %arg22[%c0_11, %c0_12, %c0_13] : memref<2x6x96xf32, #tpu.memory_space<vmem>>, vector<2x1x96xf32>
    tpu.vector_store %arg22[%c0_11, %c0_12, %c0_13], %6 {strides = array<i32>} : memref<2x6x96xf32, #tpu.memory_space<vmem>>, vector<2x1x96xf32>,
    %c0_14 = arith.constant 0 : index
    %c5 = arith.constant 5 : index
    %c0_15 = arith.constant 0 : index
    %8 = vector.load %arg22[%c0_14, %c5, %c0_15] : memref<2x6x96xf32, #tpu.memory_space<vmem>>, vector<2x1x96xf32>
    tpu.vector_store %arg22[%c0_14, %c5, %c0_15], %6 {strides = array<i32>} : memref<2x6x96xf32, #tpu.memory_space<vmem>>, vector<2x1x96xf32>,
    %c0_16 = arith.constant 0 : index
    %c0_17 = arith.constant 0 : index
    %c0_18 = arith.constant 0 : index
    %9 = vector.load %arg0[%c0_16, %c0_17, %c0_18] : memref<2x18x72xf32, #tpu.memory_space<vmem>>, vector<2x18x72xf32>
    %cst_19 = arith.constant 0.000000e+00 : f32
    %10 = vector.broadcast %cst_19 : f32 to vector<32x288xf32>
    %11 = vector.extract_strided_slice %9 {offsets = [0, 0, 0], sizes = [2, 16, 72], strides = [1, 1, 1]} : vector<2x18x72xf32> to vector<2x16x72xf32>
    %12 = vector.shape_cast %11 : vector<2x16x72xf32> to vector<32x72xf32>
    %c0_20 = arith.constant 0 : index
    %c0_21 = arith.constant 0 : index
    %c0_22 = arith.constant 0 : index
    %13 = vector.load %arg3[%c0_20, %c0_21, %c0_22] : memref<3x72x288xf32, #tpu.memory_space<vmem>>, vector<1x72x288xf32>
    %14 = vector.shape_cast %13 : vector<1x72x288xf32> to vector<72x288xf32>
    %cst_23 = arith.constant dense<0.000000e+00> : vector<32x288xf32>
    %15 = tpu.matmul %12, %14, %cst_23 {dimension_numbers = #tpu.dot_dimension_numbers<[1], [0], [0], [1], [0, 0, 1, 1], [], []>} : vector<32x72xf32>, vector<72x288xf32>, vector<32x288xf32> -> vector<32x288xf32>
    %16 = arith.addf %10, %15 : vector<32x288xf32>
    %17 = vector.extract_strided_slice %9 {offsets = [0, 1, 0], sizes = [2, 16, 72], strides = [1, 1, 1]} : vector<2x18x72xf32> to vector<2x16x72xf32>
    %18 = vector.shape_cast %17 : vector<2x16x72xf32> to vector<32x72xf32>
    %c1 = arith.constant 1 : index
    %c0_24 = arith.constant 0 : index
    %c0_25 = arith.constant 0 : index
    %19 = vector.load %arg3[%c1, %c0_24, %c0_25] : memref<3x72x288xf32, #tpu.memory_space<vmem>>, vector<1x72x288xf32>
    %20 = vector.shape_cast %19 : vector<1x72x288xf32> to vector<72x288xf32>
    %cst_26 = arith.constant dense<0.000000e+00> : vector<32x288xf32>
    %21 = tpu.matmul %18, %20, %cst_26 {dimension_numbers = #tpu.dot_dimension_numbers<[1], [0], [0], [1], [0, 0, 1, 1], [], []>} : vector<32x72xf32>, vector<72x288xf32>, vector<32x288xf32> -> vector<32x288xf32>
    %22 = arith.addf %16, %21 : vector<32x288xf32>
    %23 = vector.extract_strided_slice %9 {offsets = [0, 2, 0], sizes = [2, 16, 72], strides = [1, 1, 1]} : vector<2x18x72xf32> to vector<2x16x72xf32>
    %24 = vector.shape_cast %23 : vector<2x16x72xf32> to vector<32x72xf32>
    %c2 = arith.constant 2 : index
    %c0_27 = arith.constant 0 : index
    %c0_28 = arith.constant 0 : index
    %25 = vector.load %arg3[%c2, %c0_27, %c0_28] : memref<3x72x288xf32, #tpu.memory_space<vmem>>, vector<1x72x288xf32>
    %26 = vector.shape_cast %25 : vector<1x72x288xf32> to vector<72x288xf32>
    %cst_29 = arith.constant dense<0.000000e+00> : vector<32x288xf32>
    %27 = tpu.matmul %24, %26, %cst_29 {dimension_numbers = #tpu.dot_dimension_numbers<[1], [0], [0], [1], [0, 0, 1, 1], [], []>} : vector<32x72xf32>, vector<72x288xf32>, vector<32x288xf32> -> vector<32x288xf32>
    %28 = arith.addf %22, %27 : vector<32x288xf32>
    %cst_30 = arith.constant dense<0.000000e+00> : vector<288xf32>
    %29 = vector.multi_reduction <add>, %28, %cst_30 [0] : vector<32x288xf32> to vector<288xf32>
    %30 = vector.shape_cast %29 : vector<288xf32> to vector<1x288xf32>
    %31 = arith.mulf %28, %28 : vector<32x288xf32>
    %cst_31 = arith.constant dense<0.000000e+00> : vector<288xf32>
    %32 = vector.multi_reduction <add>, %31, %cst_31 [0] : vector<32x288xf32> to vector<288xf32>
    %33 = vector.shape_cast %32 : vector<288xf32> to vector<1x288xf32>
    %34 = tpu.concatenate %30, %33 in 0 : vector<1x288xf32>, vector<1x288xf32> -> vector<2x288xf32>
    %c0_32 = arith.constant 0 : index
    %c0_33 = arith.constant 0 : index
    %35 = vector.load %arg9[%c0_32, %c0_33] : memref<288x16xf32, #tpu.memory_space<vmem>>, vector<288x16xf32>
    %cst_34 = arith.constant dense<0.000000e+00> : vector<2x16xf32>
    %36 = tpu.matmul %34, %35, %cst_34 {dimension_numbers = #tpu.dot_dimension_numbers<[1], [0], [0], [1], [0, 0, 1, 1], [], []>} : vector<2x288xf32>, vector<288x16xf32>, vector<2x16xf32> -> vector<2x16xf32>
    %37 = vector.extract_strided_slice %36 {offsets = [0, 0], sizes = [1, 16], strides = [1, 1]} : vector<2x16xf32> to vector<1x16xf32>
    %cst_35 = arith.constant 0.001953125 : f32
    %38 = vector.broadcast %cst_35 : f32 to vector<1x16xf32>
    %39 = arith.mulf %37, %38 : vector<1x16xf32>
    %40 = vector.extract_strided_slice %36 {offsets = [1, 0], sizes = [1, 16], strides = [1, 1]} : vector<2x16xf32> to vector<1x16xf32>
    %cst_36 = arith.constant 0.001953125 : f32
    %41 = vector.broadcast %cst_36 : f32 to vector<1x16xf32>
    %42 = arith.mulf %40, %41 : vector<1x16xf32>
    %43 = arith.mulf %39, %39 : vector<1x16xf32>
    %44 = arith.subf %42, %43 : vector<1x16xf32>
    %cst_37 = arith.constant 0.000000e+00 : f32
    %45 = vector.broadcast %cst_37 : f32 to vector<1x16xf32>
    %46 = arith.maximumf %44, %45 : vector<1x16xf32>
    %c0_38 = arith.constant 0 : index
    %c0_39 = arith.constant 0 : index
    %47 = vector.load %arg1[%c0_38, %c0_39] : memref<6x16xf32, #tpu.memory_space<vmem>>, vector<1x16xf32>
    %c0_40 = arith.constant 0 : index
    %c0_41 = arith.constant 0 : index
    %48 = vector.load %arg2[%c0_40, %c0_41] : memref<6x16xf32, #tpu.memory_space<vmem>>, vector<1x16xf32>
    %cst_42 = arith.constant 9.99999974E-6 : f32
    %49 = vector.broadcast %cst_42 : f32 to vector<1x16xf32>
    %50 = arith.addf %46, %49 : vector<1x16xf32>
    %51 = math.rsqrt %50 : vector<1x16xf32>
    %52 = arith.mulf %47, %51 : vector<1x16xf32>
    %53 = arith.mulf %39, %52 : vector<1x16xf32>
    %54 = arith.subf %48, %53 : vector<1x16xf32>
    %55 = tpu.concatenate %52, %54 in 0 : vector<1x16xf32>, vector<1x16xf32> -> vector<2x16xf32>
    %c0_43 = arith.constant 0 : index
    %c0_44 = arith.constant 0 : index
    %56 = vector.load %arg12[%c0_43, %c0_44] : memref<16x288xf32, #tpu.memory_space<vmem>>, vector<16x288xf32>
    %cst_45 = arith.constant dense<0.000000e+00> : vector<2x288xf32>
    %57 = tpu.matmul %55, %56, %cst_45 {dimension_numbers = #tpu.dot_dimension_numbers<[1], [0], [0], [1], [0, 0, 1, 1], [], []>} : vector<2x16xf32>, vector<16x288xf32>, vector<2x288xf32> -> vector<2x288xf32>
    %58 = vector.extract_strided_slice %57 {offsets = [0, 0], sizes = [1, 288], strides = [1, 1]} : vector<2x288xf32> to vector<1x288xf32>
    %59 = vector.broadcast %58 : vector<1x288xf32> to vector<32x288xf32>
    %60 = arith.mulf %28, %59 : vector<32x288xf32>
    %61 = vector.extract_strided_slice %57 {offsets = [1, 0], sizes = [1, 288], strides = [1, 1]} : vector<2x288xf32> to vector<1x288xf32>
    %62 = vector.broadcast %61 : vector<1x288xf32> to vector<32x288xf32>
    %63 = arith.addf %60, %62 : vector<32x288xf32>
    %cst_46 = arith.constant 0.000000e+00 : f32
    %64 = vector.broadcast %cst_46 : f32 to vector<32x288xf32>
    %65 = arith.maximumf %63, %64 : vector<32x288xf32>
    %66 = vector.shape_cast %65 : vector<32x288xf32> to vector<2x16x288xf32>
    %c0_47 = arith.constant 0 : index
    %c1_48 = arith.constant 1 : index
    %c0_49 = arith.constant 0 : index
    %67 = vector.load %arg20[%c0_47, %c1_48, %c0_49] : memref<2x18x288xf32, #tpu.memory_space<vmem>>, vector<2x16x288xf32>
    tpu.vector_store %arg20[%c0_47, %c1_48, %c0_49], %66 {strides = array<i32>} : memref<2x18x288xf32, #tpu.memory_space<vmem>>, vector<2x16x288xf32>,
    %c0_50 = arith.constant 0 : index
    %c0_51 = arith.constant 0 : index
    %c0_52 = arith.constant 0 : index
    %68 = vector.load %arg20[%c0_50, %c0_51, %c0_52] : memref<2x18x288xf32, #tpu.memory_space<vmem>>, vector<2x18x288xf32>
    %cst_53 = arith.constant 0.000000e+00 : f32
    %69 = vector.broadcast %cst_53 : f32 to vector<32x288xf32>
    %70 = vector.extract_strided_slice %68 {offsets = [0, 0, 0], sizes = [2, 16, 288], strides = [1, 1, 1]} : vector<2x18x288xf32> to vector<2x16x288xf32>
    %71 = vector.shape_cast %70 : vector<2x16x288xf32> to vector<32x288xf32>
    %c0_54 = arith.constant 0 : index
    %c0_55 = arith.constant 0 : index
    %c0_56 = arith.constant 0 : index
    %72 = vector.load %arg4[%c0_54, %c0_55, %c0_56] : memref<3x288x288xf32, #tpu.memory_space<vmem>>, vector<1x288x288xf32>
    %73 = vector.shape_cast %72 : vector<1x288x288xf32> to vector<288x288xf32>
    %cst_57 = arith.constant dense<0.000000e+00> : vector<32x288xf32>
    %74 = tpu.matmul %71, %73, %cst_57 {dimension_numbers = #tpu.dot_dimension_numbers<[1], [0], [0], [1], [0, 0, 1, 1], [], []>} : vector<32x288xf32>, vector<288x288xf32>, vector<32x288xf32> -> vector<32x288xf32>
    %75 = arith.addf %69, %74 : vector<32x288xf32>
    %76 = vector.extract_strided_slice %68 {offsets = [0, 1, 0], sizes = [2, 16, 288], strides = [1, 1, 1]} : vector<2x18x288xf32> to vector<2x16x288xf32>
    %77 = vector.shape_cast %76 : vector<2x16x288xf32> to vector<32x288xf32>
    %c1_58 = arith.constant 1 : index
    %c0_59 = arith.constant 0 : index
    %c0_60 = arith.constant 0 : index
    %78 = vector.load %arg4[%c1_58, %c0_59, %c0_60] : memref<3x288x288xf32, #tpu.memory_space<vmem>>, vector<1x288x288xf32>
    %79 = vector.shape_cast %78 : vector<1x288x288xf32> to vector<288x288xf32>
    %cst_61 = arith.constant dense<0.000000e+00> : vector<32x288xf32>
    %80 = tpu.matmul %77, %79, %cst_61 {dimension_numbers = #tpu.dot_dimension_numbers<[1], [0], [0], [1], [0, 0, 1, 1], [], []>} : vector<32x288xf32>, vector<288x288xf32>, vector<32x288xf32> -> vector<32x288xf32>
    %81 = arith.addf %75, %80 : vector<32x288xf32>
    %82 = vector.extract_strided_slice %68 {offsets = [0, 2, 0], sizes = [2, 16, 288], strides = [1, 1, 1]} : vector<2x18x288xf32> to vector<2x16x288xf32>
    %83 = vector.shape_cast %82 : vector<2x16x288xf32> to vector<32x288xf32>
    %c2_62 = arith.constant 2 : index
    %c0_63 = arith.constant 0 : index
    %c0_64 = arith.constant 0 : index
    %84 = vector.load %arg4[%c2_62, %c0_63, %c0_64] : memref<3x288x288xf32, #tpu.memory_space<vmem>>, vector<1x288x288xf32>
    %85 = vector.shape_cast %84 : vector<1x288x288xf32> to vector<288x288xf32>
    %cst_65 = arith.constant dense<0.000000e+00> : vector<32x288xf32>
    %86 = tpu.matmul %83, %85, %cst_65 {dimension_numbers = #tpu.dot_dimension_numbers<[1], [0], [0], [1], [0, 0, 1, 1], [], []>} : vector<32x288xf32>, vector<288x288xf32>, vector<32x288xf32> -> vector<32x288xf32>
    %87 = arith.addf %81, %86 : vector<32x288xf32>
    %cst_66 = arith.constant dense<0.000000e+00> : vector<288xf32>
    %88 = vector.multi_reduction <add>, %87, %cst_66 [0] : vector<32x288xf32> to vector<288xf32>
    %89 = vector.shape_cast %88 : vector<288xf32> to vector<1x288xf32>
    %90 = arith.mulf %87, %87 : vector<32x288xf32>
    %cst_67 = arith.constant dense<0.000000e+00> : vector<288xf32>
    %91 = vector.multi_reduction <add>, %90, %cst_67 [0] : vector<32x288xf32> to vector<288xf32>
    %92 = vector.shape_cast %91 : vector<288xf32> to vector<1x288xf32>
    %93 = tpu.concatenate %89, %92 in 0 : vector<1x288xf32>, vector<1x288xf32> -> vector<2x288xf32>
    %c0_68 = arith.constant 0 : index
    %c0_69 = arith.constant 0 : index
    %94 = vector.load %arg9[%c0_68, %c0_69] : memref<288x16xf32, #tpu.memory_space<vmem>>, vector<288x16xf32>
    %cst_70 = arith.constant dense<0.000000e+00> : vector<2x16xf32>
    %95 = tpu.matmul %93, %94, %cst_70 {dimension_numbers = #tpu.dot_dimension_numbers<[1], [0], [0], [1], [0, 0, 1, 1], [], []>} : vector<2x288xf32>, vector<288x16xf32>, vector<2x16xf32> -> vector<2x16xf32>
    %96 = vector.extract_strided_slice %95 {offsets = [0, 0], sizes = [1, 16], strides = [1, 1]} : vector<2x16xf32> to vector<1x16xf32>
    %cst_71 = arith.constant 0.001953125 : f32
    %97 = vector.broadcast %cst_71 : f32 to vector<1x16xf32>
    %98 = arith.mulf %96, %97 : vector<1x16xf32>
    %99 = vector.extract_strided_slice %95 {offsets = [1, 0], sizes = [1, 16], strides = [1, 1]} : vector<2x16xf32> to vector<1x16xf32>
    %cst_72 = arith.constant 0.001953125 : f32
    %100 = vector.broadcast %cst_72 : f32 to vector<1x16xf32>
    %101 = arith.mulf %99, %100 : vector<1x16xf32>
    %102 = arith.mulf %98, %98 : vector<1x16xf32>
    %103 = arith.subf %101, %102 : vector<1x16xf32>
    %cst_73 = arith.constant 0.000000e+00 : f32
    %104 = vector.broadcast %cst_73 : f32 to vector<1x16xf32>
    %105 = arith.maximumf %103, %104 : vector<1x16xf32>
    %c1_74 = arith.constant 1 : index
    %c0_75 = arith.constant 0 : index
    %106 = vector.load %arg1[%c1_74, %c0_75] : memref<6x16xf32, #tpu.memory_space<vmem>>, vector<1x16xf32>
    %c1_76 = arith.constant 1 : index
    %c0_77 = arith.constant 0 : index
    %107 = vector.load %arg2[%c1_76, %c0_77] : memref<6x16xf32, #tpu.memory_space<vmem>>, vector<1x16xf32>
    %cst_78 = arith.constant 9.99999974E-6 : f32
    %108 = vector.broadcast %cst_78 : f32 to vector<1x16xf32>
    %109 = arith.addf %105, %108 : vector<1x16xf32>
    %110 = math.rsqrt %109 : vector<1x16xf32>
    %111 = arith.mulf %106, %110 : vector<1x16xf32>
    %112 = arith.mulf %98, %111 : vector<1x16xf32>
    %113 = arith.subf %107, %112 : vector<1x16xf32>
    %114 = tpu.concatenate %111, %113 in 0 : vector<1x16xf32>, vector<1x16xf32> -> vector<2x16xf32>
    %c0_79 = arith.constant 0 : index
    %c0_80 = arith.constant 0 : index
    %115 = vector.load %arg12[%c0_79, %c0_80] : memref<16x288xf32, #tpu.memory_space<vmem>>, vector<16x288xf32>
    %cst_81 = arith.constant dense<0.000000e+00> : vector<2x288xf32>
    %116 = tpu.matmul %114, %115, %cst_81 {dimension_numbers = #tpu.dot_dimension_numbers<[1], [0], [0], [1], [0, 0, 1, 1], [], []>} : vector<2x16xf32>, vector<16x288xf32>, vector<2x288xf32> -> vector<2x288xf32>
    %117 = vector.extract_strided_slice %116 {offsets = [0, 0], sizes = [1, 288], strides = [1, 1]} : vector<2x288xf32> to vector<1x288xf32>
    %118 = vector.broadcast %117 : vector<1x288xf32> to vector<32x288xf32>
    %119 = arith.mulf %87, %118 : vector<32x288xf32>
    %120 = vector.extract_strided_slice %116 {offsets = [1, 0], sizes = [1, 288], strides = [1, 1]} : vector<2x288xf32> to vector<1x288xf32>
    %121 = vector.broadcast %120 : vector<1x288xf32> to vector<32x288xf32>
    %122 = arith.addf %119, %121 : vector<32x288xf32>
    %cst_82 = arith.constant 0.000000e+00 : f32
    %123 = vector.broadcast %cst_82 : f32 to vector<32x288xf32>
    %124 = arith.maximumf %122, %123 : vector<32x288xf32>
    %125 = vector.shape_cast %124 : vector<32x288xf32> to vector<2x16x288xf32>
    %c0_83 = arith.constant 0 : index
    %c0_84 = arith.constant 0 : index
    %c0_85 = arith.constant 0 : index
    %126 = vector.load %arg17[%c0_83, %c0_84, %c0_85] : memref<2x16x288xf32, #tpu.memory_space<vmem>>, vector<2x16x288xf32>
    tpu.vector_store %arg17[%c0_83, %c0_84, %c0_85], %125 {strides = array<i32>} : memref<2x16x288xf32, #tpu.memory_space<vmem>>, vector<2x16x288xf32>,
    %c0_86 = arith.constant 0 : index
    %c1_87 = arith.constant 1 : index
    %c0_88 = arith.constant 0 : index
    %127 = vector.load %arg20[%c0_86, %c1_87, %c0_88] : memref<2x18x288xf32, #tpu.memory_space<vmem>>, vector<2x16x288xf32>
    tpu.vector_store %arg20[%c0_86, %c1_87, %c0_88], %125 {strides = array<i32>} : memref<2x18x288xf32, #tpu.memory_space<vmem>>, vector<2x16x288xf32>,
    %c0_89 = arith.constant 0 : index
    %c0_90 = arith.constant 0 : index
    %c0_91 = arith.constant 0 : index
    %128 = vector.load %arg20[%c0_89, %c0_90, %c0_91] : memref<2x18x288xf32, #tpu.memory_space<vmem>>, vector<2x18x288xf32>
    %129 = vector.extract_strided_slice %128 {offsets = [0, 0, 0], sizes = [2, 17, 288], strides = [1, 1, 1]} : vector<2x18x288xf32> to vector<2x17x288xf32>
    %130 = vector.extract_strided_slice %128 {offsets = [0, 1, 0], sizes = [2, 17, 288], strides = [1, 1, 1]} : vector<2x18x288xf32> to vector<2x17x288xf32>
    %131 = arith.maximumf %129, %130 : vector<2x17x288xf32>
    %132 = vector.extract_strided_slice %131 {offsets = [0, 0, 0], sizes = [2, 16, 288], strides = [1, 1, 1]} : vector<2x17x288xf32> to vector<2x16x288xf32>
    %133 = vector.shape_cast %132 : vector<2x16x288xf32> to vector<2x8x2x288xf32>
    %134 = vector.extract_strided_slice %133 {offsets = [0, 0, 0, 0], sizes = [2, 8, 1, 288], strides = [1, 1, 1, 1]} : vector<2x8x2x288xf32> to vector<2x8x1x288xf32>
    %135 = vector.shape_cast %134 : vector<2x8x1x288xf32> to vector<2x8x288xf32>
    %136 = vector.extract_strided_slice %133 {offsets = [0, 0, 1, 0], sizes = [2, 8, 1, 288], strides = [1, 1, 1, 1]} : vector<2x8x2x288xf32> to vector<2x8x1x288xf32>
    %137 = vector.shape_cast %136 : vector<2x8x1x288xf32> to vector<2x8x288xf32>
    %138 = arith.maximumf %135, %137 : vector<2x8x288xf32>
    %139 = vector.extract_strided_slice %138 {offsets = [0, 0, 0], sizes = [2, 8, 256], strides = [1, 1, 1]} : vector<2x8x288xf32> to vector<2x8x256xf32>
    %140 = vector.extract_strided_slice %138 {offsets = [0, 0, 16], sizes = [2, 8, 256], strides = [1, 1, 1]} : vector<2x8x288xf32> to vector<2x8x256xf32>
    %141 = arith.maximumf %139, %140 : vector<2x8x256xf32>
    %142 = vector.extract_strided_slice %138 {offsets = [0, 0, 32], sizes = [2, 8, 256], strides = [1, 1, 1]} : vector<2x8x288xf32> to vector<2x8x256xf32>
    %143 = arith.maximumf %141, %142 : vector<2x8x256xf32>
    %144 = vector.shape_cast %143 : vector<2x8x256xf32> to vector<16x256xf32>
    %c0_92 = arith.constant 0 : index
    %c0_93 = arith.constant 0 : index
    %145 = vector.load %arg15[%c0_92, %c0_93] : memref<256x160xf32, #tpu.memory_space<vmem>>, vector<256x160xf32>
    %cst_94 = arith.constant dense<0.000000e+00> : vector<16x160xf32>
    %146 = tpu.matmul %144, %145, %cst_94 {dimension_numbers = #tpu.dot_dimension_numbers<[1], [0], [0], [1], [0, 0, 1, 1], [], []>} : vector<16x256xf32>, vector<256x160xf32>, vector<16x160xf32> -> vector<16x160xf32>
    %147 = vector.shape_cast %146 : vector<16x160xf32> to vector<2x8x160xf32>
    %c0_95 = arith.constant 0 : index
    %c1_96 = arith.constant 1 : index
    %c0_97 = arith.constant 0 : index
    %148 = vector.load %arg21[%c0_95, %c1_96, %c0_97] : memref<2x10x160xf32, #tpu.memory_space<vmem>>, vector<2x8x160xf32>
    tpu.vector_store %arg21[%c0_95, %c1_96, %c0_97], %147 {strides = array<i32>} : memref<2x10x160xf32, #tpu.memory_space<vmem>>, vector<2x8x160xf32>,
    %c0_98 = arith.constant 0 : index
    %c0_99 = arith.constant 0 : index
    %c0_100 = arith.constant 0 : index
    %149 = vector.load %arg21[%c0_98, %c0_99, %c0_100] : memref<2x10x160xf32, #tpu.memory_space<vmem>>, vector<2x10x160xf32>
    %cst_101 = arith.constant 0.000000e+00 : f32
    %150 = vector.broadcast %cst_101 : f32 to vector<16x160xf32>
    %151 = vector.extract_strided_slice %149 {offsets = [0, 0, 0], sizes = [2, 8, 160], strides = [1, 1, 1]} : vector<2x10x160xf32> to vector<2x8x160xf32>
    %152 = vector.shape_cast %151 : vector<2x8x160xf32> to vector<16x160xf32>
    %c0_102 = arith.constant 0 : index
    %c0_103 = arith.constant 0 : index
    %c0_104 = arith.constant 0 : index
    %153 = vector.load %arg5[%c0_102, %c0_103, %c0_104] : memref<3x160x160xf32, #tpu.memory_space<vmem>>, vector<1x160x160xf32>
    %154 = vector.shape_cast %153 : vector<1x160x160xf32> to vector<160x160xf32>
    %cst_105 = arith.constant dense<0.000000e+00> : vector<16x160xf32>
    %155 = tpu.matmul %152, %154, %cst_105 {dimension_numbers = #tpu.dot_dimension_numbers<[1], [0], [0], [1], [0, 0, 1, 1], [], []>} : vector<16x160xf32>, vector<160x160xf32>, vector<16x160xf32> -> vector<16x160xf32>
    %156 = arith.addf %150, %155 : vector<16x160xf32>
    %157 = vector.extract_strided_slice %149 {offsets = [0, 1, 0], sizes = [2, 8, 160], strides = [1, 1, 1]} : vector<2x10x160xf32> to vector<2x8x160xf32>
    %158 = vector.shape_cast %157 : vector<2x8x160xf32> to vector<16x160xf32>
    %c1_106 = arith.constant 1 : index
    %c0_107 = arith.constant 0 : index
    %c0_108 = arith.constant 0 : index
    %159 = vector.load %arg5[%c1_106, %c0_107, %c0_108] : memref<3x160x160xf32, #tpu.memory_space<vmem>>, vector<1x160x160xf32>
    %160 = vector.shape_cast %159 : vector<1x160x160xf32> to vector<160x160xf32>
    %cst_109 = arith.constant dense<0.000000e+00> : vector<16x160xf32>
    %161 = tpu.matmul %158, %160, %cst_109 {dimension_numbers = #tpu.dot_dimension_numbers<[1], [0], [0], [1], [0, 0, 1, 1], [], []>} : vector<16x160xf32>, vector<160x160xf32>, vector<16x160xf32> -> vector<16x160xf32>
    %162 = arith.addf %156, %161 : vector<16x160xf32>
    %163 = vector.extract_strided_slice %149 {offsets = [0, 2, 0], sizes = [2, 8, 160], strides = [1, 1, 1]} : vector<2x10x160xf32> to vector<2x8x160xf32>
    %164 = vector.shape_cast %163 : vector<2x8x160xf32> to vector<16x160xf32>
    %c2_110 = arith.constant 2 : index
    %c0_111 = arith.constant 0 : index
    %c0_112 = arith.constant 0 : index
    %165 = vector.load %arg5[%c2_110, %c0_111, %c0_112] : memref<3x160x160xf32, #tpu.memory_space<vmem>>, vector<1x160x160xf32>
    %166 = vector.shape_cast %165 : vector<1x160x160xf32> to vector<160x160xf32>
    %cst_113 = arith.constant dense<0.000000e+00> : vector<16x160xf32>
    %167 = tpu.matmul %164, %166, %cst_113 {dimension_numbers = #tpu.dot_dimension_numbers<[1], [0], [0], [1], [0, 0, 1, 1], [], []>} : vector<16x160xf32>, vector<160x160xf32>, vector<16x160xf32> -> vector<16x160xf32>
    %168 = arith.addf %162, %167 : vector<16x160xf32>
    %cst_114 = arith.constant dense<0.000000e+00> : vector<160xf32>
    %169 = vector.multi_reduction <add>, %168, %cst_114 [0] : vector<16x160xf32> to vector<160xf32>
    %170 = vector.shape_cast %169 : vector<160xf32> to vector<1x160xf32>
    %171 = arith.mulf %168, %168 : vector<16x160xf32>
    %cst_115 = arith.constant dense<0.000000e+00> : vector<160xf32>
    %172 = vector.multi_reduction <add>, %171, %cst_115 [0] : vector<16x160xf32> to vector<160xf32>
    %173 = vector.shape_cast %172 : vector<160xf32> to vector<1x160xf32>
    %174 = tpu.concatenate %170, %173 in 0 : vector<1x160xf32>, vector<1x160xf32> -> vector<2x160xf32>
    %c0_116 = arith.constant 0 : index
    %c0_117 = arith.constant 0 : index
    %175 = vector.load %arg10[%c0_116, %c0_117] : memref<160x16xf32, #tpu.memory_space<vmem>>, vector<160x16xf32>
    %cst_118 = arith.constant dense<0.000000e+00> : vector<2x16xf32>
    %176 = tpu.matmul %174, %175, %cst_118 {dimension_numbers = #tpu.dot_dimension_numbers<[1], [0], [0], [1], [0, 0, 1, 1], [], []>} : vector<2x160xf32>, vector<160x16xf32>, vector<2x16xf32> -> vector<2x16xf32>
    %177 = vector.extract_strided_slice %176 {offsets = [0, 0], sizes = [1, 16], strides = [1, 1]} : vector<2x16xf32> to vector<1x16xf32>
    %cst_119 = arith.constant 7.812500e-03 : f32
    %178 = vector.broadcast %cst_119 : f32 to vector<1x16xf32>
    %179 = arith.mulf %177, %178 : vector<1x16xf32>
    %180 = vector.extract_strided_slice %176 {offsets = [1, 0], sizes = [1, 16], strides = [1, 1]} : vector<2x16xf32> to vector<1x16xf32>
    %cst_120 = arith.constant 7.812500e-03 : f32
    %181 = vector.broadcast %cst_120 : f32 to vector<1x16xf32>
    %182 = arith.mulf %180, %181 : vector<1x16xf32>
    %183 = arith.mulf %179, %179 : vector<1x16xf32>
    %184 = arith.subf %182, %183 : vector<1x16xf32>
    %cst_121 = arith.constant 0.000000e+00 : f32
    %185 = vector.broadcast %cst_121 : f32 to vector<1x16xf32>
    %186 = arith.maximumf %184, %185 : vector<1x16xf32>
    %c2_122 = arith.constant 2 : index
    %c0_123 = arith.constant 0 : index
    %187 = vector.load %arg1[%c2_122, %c0_123] : memref<6x16xf32, #tpu.memory_space<vmem>>, vector<1x16xf32>
    %c2_124 = arith.constant 2 : index
    %c0_125 = arith.constant 0 : index
    %188 = vector.load %arg2[%c2_124, %c0_125] : memref<6x16xf32, #tpu.memory_space<vmem>>, vector<1x16xf32>
    %cst_126 = arith.constant 9.99999974E-6 : f32
    %189 = vector.broadcast %cst_126 : f32 to vector<1x16xf32>
    %190 = arith.addf %186, %189 : vector<1x16xf32>
    %191 = math.rsqrt %190 : vector<1x16xf32>
    %192 = arith.mulf %187, %191 : vector<1x16xf32>
    %193 = arith.mulf %179, %192 : vector<1x16xf32>
    %194 = arith.subf %188, %193 : vector<1x16xf32>
    %195 = tpu.concatenate %192, %194 in 0 : vector<1x16xf32>, vector<1x16xf32> -> vector<2x16xf32>
    %c0_127 = arith.constant 0 : index
    %c0_128 = arith.constant 0 : index
    %196 = vector.load %arg13[%c0_127, %c0_128] : memref<16x160xf32, #tpu.memory_space<vmem>>, vector<16x160xf32>
    %cst_129 = arith.constant dense<0.000000e+00> : vector<2x160xf32>
    %197 = tpu.matmul %195, %196, %cst_129 {dimension_numbers = #tpu.dot_dimension_numbers<[1], [0], [0], [1], [0, 0, 1, 1], [], []>} : vector<2x16xf32>, vector<16x160xf32>, vector<2x160xf32> -> vector<2x160xf32>
    %198 = vector.extract_strided_slice %197 {offsets = [0, 0], sizes = [1, 160], strides = [1, 1]} : vector<2x160xf32> to vector<1x160xf32>
    %199 = vector.broadcast %198 : vector<1x160xf32> to vector<16x160xf32>
    %200 = arith.mulf %168, %199 : vector<16x160xf32>
    %201 = vector.extract_strided_slice %197 {offsets = [1, 0], sizes = [1, 160], strides = [1, 1]} : vector<2x160xf32> to vector<1x160xf32>
    %202 = vector.broadcast %201 : vector<1x160xf32> to vector<16x160xf32>
    %203 = arith.addf %200, %202 : vector<16x160xf32>
    %cst_130 = arith.constant 0.000000e+00 : f32
    %204 = vector.broadcast %cst_130 : f32 to vector<16x160xf32>
    %205 = arith.maximumf %203, %204 : vector<16x160xf32>
    %206 = vector.shape_cast %205 : vector<16x160xf32> to vector<2x8x160xf32>
    %c0_131 = arith.constant 0 : index
    %c1_132 = arith.constant 1 : index
    %c0_133 = arith.constant 0 : index
    %207 = vector.load %arg21[%c0_131, %c1_132, %c0_133] : memref<2x10x160xf32, #tpu.memory_space<vmem>>, vector<2x8x160xf32>
    tpu.vector_store %arg21[%c0_131, %c1_132, %c0_133], %206 {strides = array<i32>} : memref<2x10x160xf32, #tpu.memory_space<vmem>>, vector<2x8x160xf32>,
    %c0_134 = arith.constant 0 : index
    %c0_135 = arith.constant 0 : index
    %c0_136 = arith.constant 0 : index
    %208 = vector.load %arg21[%c0_134, %c0_135, %c0_136] : memref<2x10x160xf32, #tpu.memory_space<vmem>>, vector<2x10x160xf32>
    %cst_137 = arith.constant 0.000000e+00 : f32
    %209 = vector.broadcast %cst_137 : f32 to vector<16x160xf32>
    %210 = vector.extract_strided_slice %208 {offsets = [0, 0, 0], sizes = [2, 8, 160], strides = [1, 1, 1]} : vector<2x10x160xf32> to vector<2x8x160xf32>
    %211 = vector.shape_cast %210 : vector<2x8x160xf32> to vector<16x160xf32>
    %c0_138 = arith.constant 0 : index
    %c0_139 = arith.constant 0 : index
    %c0_140 = arith.constant 0 : index
    %212 = vector.load %arg6[%c0_138, %c0_139, %c0_140] : memref<3x160x160xf32, #tpu.memory_space<vmem>>, vector<1x160x160xf32>
    %213 = vector.shape_cast %212 : vector<1x160x160xf32> to vector<160x160xf32>
    %cst_141 = arith.constant dense<0.000000e+00> : vector<16x160xf32>
    %214 = tpu.matmul %211, %213, %cst_141 {dimension_numbers = #tpu.dot_dimension_numbers<[1], [0], [0], [1], [0, 0, 1, 1], [], []>} : vector<16x160xf32>, vector<160x160xf32>, vector<16x160xf32> -> vector<16x160xf32>
    %215 = arith.addf %209, %214 : vector<16x160xf32>
    %216 = vector.extract_strided_slice %208 {offsets = [0, 1, 0], sizes = [2, 8, 160], strides = [1, 1, 1]} : vector<2x10x160xf32> to vector<2x8x160xf32>
    %217 = vector.shape_cast %216 : vector<2x8x160xf32> to vector<16x160xf32>
    %c1_142 = arith.constant 1 : index
    %c0_143 = arith.constant 0 : index
    %c0_144 = arith.constant 0 : index
    %218 = vector.load %arg6[%c1_142, %c0_143, %c0_144] : memref<3x160x160xf32, #tpu.memory_space<vmem>>, vector<1x160x160xf32>
    %219 = vector.shape_cast %218 : vector<1x160x160xf32> to vector<160x160xf32>
    %cst_145 = arith.constant dense<0.000000e+00> : vector<16x160xf32>
    %220 = tpu.matmul %217, %219, %cst_145 {dimension_numbers = #tpu.dot_dimension_numbers<[1], [0], [0], [1], [0, 0, 1, 1], [], []>} : vector<16x160xf32>, vector<160x160xf32>, vector<16x160xf32> -> vector<16x160xf32>
    %221 = arith.addf %215, %220 : vector<16x160xf32>
    %222 = vector.extract_strided_slice %208 {offsets = [0, 2, 0], sizes = [2, 8, 160], strides = [1, 1, 1]} : vector<2x10x160xf32> to vector<2x8x160xf32>
    %223 = vector.shape_cast %222 : vector<2x8x160xf32> to vector<16x160xf32>
    %c2_146 = arith.constant 2 : index
    %c0_147 = arith.constant 0 : index
    %c0_148 = arith.constant 0 : index
    %224 = vector.load %arg6[%c2_146, %c0_147, %c0_148] : memref<3x160x160xf32, #tpu.memory_space<vmem>>, vector<1x160x160xf32>
    %225 = vector.shape_cast %224 : vector<1x160x160xf32> to vector<160x160xf32>
    %cst_149 = arith.constant dense<0.000000e+00> : vector<16x160xf32>
    %226 = tpu.matmul %223, %225, %cst_149 {dimension_numbers = #tpu.dot_dimension_numbers<[1], [0], [0], [1], [0, 0, 1, 1], [], []>} : vector<16x160xf32>, vector<160x160xf32>, vector<16x160xf32> -> vector<16x160xf32>
    %227 = arith.addf %221, %226 : vector<16x160xf32>
    %cst_150 = arith.constant dense<0.000000e+00> : vector<160xf32>
    %228 = vector.multi_reduction <add>, %227, %cst_150 [0] : vector<16x160xf32> to vector<160xf32>
    %229 = vector.shape_cast %228 : vector<160xf32> to vector<1x160xf32>
    %230 = arith.mulf %227, %227 : vector<16x160xf32>
    %cst_151 = arith.constant dense<0.000000e+00> : vector<160xf32>
    %231 = vector.multi_reduction <add>, %230, %cst_151 [0] : vector<16x160xf32> to vector<160xf32>
    %232 = vector.shape_cast %231 : vector<160xf32> to vector<1x160xf32>
    %233 = tpu.concatenate %229, %232 in 0 : vector<1x160xf32>, vector<1x160xf32> -> vector<2x160xf32>
    %c0_152 = arith.constant 0 : index
    %c0_153 = arith.constant 0 : index
    %234 = vector.load %arg10[%c0_152, %c0_153] : memref<160x16xf32, #tpu.memory_space<vmem>>, vector<160x16xf32>
    %cst_154 = arith.constant dense<0.000000e+00> : vector<2x16xf32>
    %235 = tpu.matmul %233, %234, %cst_154 {dimension_numbers = #tpu.dot_dimension_numbers<[1], [0], [0], [1], [0, 0, 1, 1], [], []>} : vector<2x160xf32>, vector<160x16xf32>, vector<2x16xf32> -> vector<2x16xf32>
    %236 = vector.extract_strided_slice %235 {offsets = [0, 0], sizes = [1, 16], strides = [1, 1]} : vector<2x16xf32> to vector<1x16xf32>
    %cst_155 = arith.constant 7.812500e-03 : f32
    %237 = vector.broadcast %cst_155 : f32 to vector<1x16xf32>
    %238 = arith.mulf %236, %237 : vector<1x16xf32>
    %239 = vector.extract_strided_slice %235 {offsets = [1, 0], sizes = [1, 16], strides = [1, 1]} : vector<2x16xf32> to vector<1x16xf32>
    %cst_156 = arith.constant 7.812500e-03 : f32
    %240 = vector.broadcast %cst_156 : f32 to vector<1x16xf32>
    %241 = arith.mulf %239, %240 : vector<1x16xf32>
    %242 = arith.mulf %238, %238 : vector<1x16xf32>
    %243 = arith.subf %241, %242 : vector<1x16xf32>
    %cst_157 = arith.constant 0.000000e+00 : f32
    %244 = vector.broadcast %cst_157 : f32 to vector<1x16xf32>
    %245 = arith.maximumf %243, %244 : vector<1x16xf32>
    %c3 = arith.constant 3 : index
    %c0_158 = arith.constant 0 : index
    %246 = vector.load %arg1[%c3, %c0_158] : memref<6x16xf32, #tpu.memory_space<vmem>>, vector<1x16xf32>
    %c3_159 = arith.constant 3 : index
    %c0_160 = arith.constant 0 : index
    %247 = vector.load %arg2[%c3_159, %c0_160] : memref<6x16xf32, #tpu.memory_space<vmem>>, vector<1x16xf32>
    %cst_161 = arith.constant 9.99999974E-6 : f32
    %248 = vector.broadcast %cst_161 : f32 to vector<1x16xf32>
    %249 = arith.addf %245, %248 : vector<1x16xf32>
    %250 = math.rsqrt %249 : vector<1x16xf32>
    %251 = arith.mulf %246, %250 : vector<1x16xf32>
    %252 = arith.mulf %238, %251 : vector<1x16xf32>
    %253 = arith.subf %247, %252 : vector<1x16xf32>
    %254 = tpu.concatenate %251, %253 in 0 : vector<1x16xf32>, vector<1x16xf32> -> vector<2x16xf32>
    %c0_162 = arith.constant 0 : index
    %c0_163 = arith.constant 0 : index
    %255 = vector.load %arg13[%c0_162, %c0_163] : memref<16x160xf32, #tpu.memory_space<vmem>>, vector<16x160xf32>
    %cst_164 = arith.constant dense<0.000000e+00> : vector<2x160xf32>
    %256 = tpu.matmul %254, %255, %cst_164 {dimension_numbers = #tpu.dot_dimension_numbers<[1], [0], [0], [1], [0, 0, 1, 1], [], []>} : vector<2x16xf32>, vector<16x160xf32>, vector<2x160xf32> -> vector<2x160xf32>
    %257 = vector.extract_strided_slice %256 {offsets = [0, 0], sizes = [1, 160], strides = [1, 1]} : vector<2x160xf32> to vector<1x160xf32>
    %258 = vector.broadcast %257 : vector<1x160xf32> to vector<16x160xf32>
    %259 = arith.mulf %227, %258 : vector<16x160xf32>
    %260 = vector.extract_strided_slice %256 {offsets = [1, 0], sizes = [1, 160], strides = [1, 1]} : vector<2x160xf32> to vector<1x160xf32>
    %261 = vector.broadcast %260 : vector<1x160xf32> to vector<16x160xf32>
    %262 = arith.addf %259, %261 : vector<16x160xf32>
    %cst_165 = arith.constant 0.000000e+00 : f32
    %263 = vector.broadcast %cst_165 : f32 to vector<16x160xf32>
    %264 = arith.maximumf %262, %263 : vector<16x160xf32>
    %265 = vector.shape_cast %264 : vector<16x160xf32> to vector<2x8x160xf32>
    %c0_166 = arith.constant 0 : index
    %c0_167 = arith.constant 0 : index
    %c0_168 = arith.constant 0 : index
    %266 = vector.load %arg18[%c0_166, %c0_167, %c0_168] : memref<2x8x160xf32, #tpu.memory_space<vmem>>, vector<2x8x160xf32>
    tpu.vector_store %arg18[%c0_166, %c0_167, %c0_168], %265 {strides = array<i32>} : memref<2x8x160xf32, #tpu.memory_space<vmem>>, vector<2x8x160xf32>,
    %c0_169 = arith.constant 0 : index
    %c1_170 = arith.constant 1 : index
    %c0_171 = arith.constant 0 : index
    %267 = vector.load %arg21[%c0_169, %c1_170, %c0_171] : memref<2x10x160xf32, #tpu.memory_space<vmem>>, vector<2x8x160xf32>
    tpu.vector_store %arg21[%c0_169, %c1_170, %c0_171], %265 {strides = array<i32>} : memref<2x10x160xf32, #tpu.memory_space<vmem>>, vector<2x8x160xf32>,
    %c0_172 = arith.constant 0 : index
    %c0_173 = arith.constant 0 : index
    %c0_174 = arith.constant 0 : index
    %268 = vector.load %arg21[%c0_172, %c0_173, %c0_174] : memref<2x10x160xf32, #tpu.memory_space<vmem>>, vector<2x10x160xf32>
    %269 = vector.extract_strided_slice %268 {offsets = [0, 0, 0], sizes = [2, 9, 160], strides = [1, 1, 1]} : vector<2x10x160xf32> to vector<2x9x160xf32>
    %270 = vector.extract_strided_slice %268 {offsets = [0, 1, 0], sizes = [2, 9, 160], strides = [1, 1, 1]} : vector<2x10x160xf32> to vector<2x9x160xf32>
    %271 = arith.maximumf %269, %270 : vector<2x9x160xf32>
    %272 = vector.extract_strided_slice %271 {offsets = [0, 0, 0], sizes = [2, 8, 160], strides = [1, 1, 1]} : vector<2x9x160xf32> to vector<2x8x160xf32>
    %273 = vector.shape_cast %272 : vector<2x8x160xf32> to vector<2x4x2x160xf32>
    %274 = vector.extract_strided_slice %273 {offsets = [0, 0, 0, 0], sizes = [2, 4, 1, 160], strides = [1, 1, 1, 1]} : vector<2x4x2x160xf32> to vector<2x4x1x160xf32>
    %275 = vector.shape_cast %274 : vector<2x4x1x160xf32> to vector<2x4x160xf32>
    %276 = vector.extract_strided_slice %273 {offsets = [0, 0, 1, 0], sizes = [2, 4, 1, 160], strides = [1, 1, 1, 1]} : vector<2x4x2x160xf32> to vector<2x4x1x160xf32>
    %277 = vector.shape_cast %276 : vector<2x4x1x160xf32> to vector<2x4x160xf32>
    %278 = arith.maximumf %275, %277 : vector<2x4x160xf32>
    %279 = vector.extract_strided_slice %278 {offsets = [0, 0, 0], sizes = [2, 4, 128], strides = [1, 1, 1]} : vector<2x4x160xf32> to vector<2x4x128xf32>
    %280 = vector.extract_strided_slice %278 {offsets = [0, 0, 16], sizes = [2, 4, 128], strides = [1, 1, 1]} : vector<2x4x160xf32> to vector<2x4x128xf32>
    %281 = arith.maximumf %279, %280 : vector<2x4x128xf32>
    %282 = vector.extract_strided_slice %278 {offsets = [0, 0, 32], sizes = [2, 4, 128], strides = [1, 1, 1]} : vector<2x4x160xf32> to vector<2x4x128xf32>
    %283 = arith.maximumf %281, %282 : vector<2x4x128xf32>
    %284 = vector.shape_cast %283 : vector<2x4x128xf32> to vector<8x128xf32>
    %c0_175 = arith.constant 0 : index
    %c0_176 = arith.constant 0 : index
    %285 = vector.load %arg16[%c0_175, %c0_176] : memref<128x96xf32, #tpu.memory_space<vmem>>, vector<128x96xf32>
    %cst_177 = arith.constant dense<0.000000e+00> : vector<8x96xf32>
    %286 = tpu.matmul %284, %285, %cst_177 {dimension_numbers = #tpu.dot_dimension_numbers<[1], [0], [0], [1], [0, 0, 1, 1], [], []>} : vector<8x128xf32>, vector<128x96xf32>, vector<8x96xf32> -> vector<8x96xf32>
    %287 = vector.shape_cast %286 : vector<8x96xf32> to vector<2x4x96xf32>
    %c0_178 = arith.constant 0 : index
    %c1_179 = arith.constant 1 : index
    %c0_180 = arith.constant 0 : index
    %288 = vector.load %arg22[%c0_178, %c1_179, %c0_180] : memref<2x6x96xf32, #tpu.memory_space<vmem>>, vector<2x4x96xf32>
    tpu.vector_store %arg22[%c0_178, %c1_179, %c0_180], %287 {strides = array<i32>} : memref<2x6x96xf32, #tpu.memory_space<vmem>>, vector<2x4x96xf32>,
    %c0_181 = arith.constant 0 : index
    %c0_182 = arith.constant 0 : index
    %c0_183 = arith.constant 0 : index
    %289 = vector.load %arg22[%c0_181, %c0_182, %c0_183] : memref<2x6x96xf32, #tpu.memory_space<vmem>>, vector<2x6x96xf32>
    %cst_184 = arith.constant 0.000000e+00 : f32
    %290 = vector.broadcast %cst_184 : f32 to vector<8x96xf32>
    %291 = vector.extract_strided_slice %289 {offsets = [0, 0, 0], sizes = [2, 4, 96], strides = [1, 1, 1]} : vector<2x6x96xf32> to vector<2x4x96xf32>
    %292 = vector.shape_cast %291 : vector<2x4x96xf32> to vector<8x96xf32>
    %c0_185 = arith.constant 0 : index
    %c0_186 = arith.constant 0 : index
    %c0_187 = arith.constant 0 : index
    %293 = vector.load %arg7[%c0_185, %c0_186, %c0_187] : memref<3x96x96xf32, #tpu.memory_space<vmem>>, vector<1x96x96xf32>
    %294 = vector.shape_cast %293 : vector<1x96x96xf32> to vector<96x96xf32>
    %cst_188 = arith.constant dense<0.000000e+00> : vector<8x96xf32>
    %295 = tpu.matmul %292, %294, %cst_188 {dimension_numbers = #tpu.dot_dimension_numbers<[1], [0], [0], [1], [0, 0, 1, 1], [], []>} : vector<8x96xf32>, vector<96x96xf32>, vector<8x96xf32> -> vector<8x96xf32>
    %296 = arith.addf %290, %295 : vector<8x96xf32>
    %297 = vector.extract_strided_slice %289 {offsets = [0, 1, 0], sizes = [2, 4, 96], strides = [1, 1, 1]} : vector<2x6x96xf32> to vector<2x4x96xf32>
    %298 = vector.shape_cast %297 : vector<2x4x96xf32> to vector<8x96xf32>
    %c1_189 = arith.constant 1 : index
    %c0_190 = arith.constant 0 : index
    %c0_191 = arith.constant 0 : index
    %299 = vector.load %arg7[%c1_189, %c0_190, %c0_191] : memref<3x96x96xf32, #tpu.memory_space<vmem>>, vector<1x96x96xf32>
    %300 = vector.shape_cast %299 : vector<1x96x96xf32> to vector<96x96xf32>
    %cst_192 = arith.constant dense<0.000000e+00> : vector<8x96xf32>
    %301 = tpu.matmul %298, %300, %cst_192 {dimension_numbers = #tpu.dot_dimension_numbers<[1], [0], [0], [1], [0, 0, 1, 1], [], []>} : vector<8x96xf32>, vector<96x96xf32>, vector<8x96xf32> -> vector<8x96xf32>
    %302 = arith.addf %296, %301 : vector<8x96xf32>
    %303 = vector.extract_strided_slice %289 {offsets = [0, 2, 0], sizes = [2, 4, 96], strides = [1, 1, 1]} : vector<2x6x96xf32> to vector<2x4x96xf32>
    %304 = vector.shape_cast %303 : vector<2x4x96xf32> to vector<8x96xf32>
    %c2_193 = arith.constant 2 : index
    %c0_194 = arith.constant 0 : index
    %c0_195 = arith.constant 0 : index
    %305 = vector.load %arg7[%c2_193, %c0_194, %c0_195] : memref<3x96x96xf32, #tpu.memory_space<vmem>>, vector<1x96x96xf32>
    %306 = vector.shape_cast %305 : vector<1x96x96xf32> to vector<96x96xf32>
    %cst_196 = arith.constant dense<0.000000e+00> : vector<8x96xf32>
    %307 = tpu.matmul %304, %306, %cst_196 {dimension_numbers = #tpu.dot_dimension_numbers<[1], [0], [0], [1], [0, 0, 1, 1], [], []>} : vector<8x96xf32>, vector<96x96xf32>, vector<8x96xf32> -> vector<8x96xf32>
    %308 = arith.addf %302, %307 : vector<8x96xf32>
    %cst_197 = arith.constant dense<0.000000e+00> : vector<96xf32>
    %309 = vector.multi_reduction <add>, %308, %cst_197 [0] : vector<8x96xf32> to vector<96xf32>
    %310 = vector.shape_cast %309 : vector<96xf32> to vector<1x96xf32>
    %311 = arith.mulf %308, %308 : vector<8x96xf32>
    %cst_198 = arith.constant dense<0.000000e+00> : vector<96xf32>
    %312 = vector.multi_reduction <add>, %311, %cst_198 [0] : vector<8x96xf32> to vector<96xf32>
    %313 = vector.shape_cast %312 : vector<96xf32> to vector<1x96xf32>
    %314 = tpu.concatenate %310, %313 in 0 : vector<1x96xf32>, vector<1x96xf32> -> vector<2x96xf32>
    %c0_199 = arith.constant 0 : index
    %c0_200 = arith.constant 0 : index
    %315 = vector.load %arg11[%c0_199, %c0_200] : memref<96x16xf32, #tpu.memory_space<vmem>>, vector<96x16xf32>
    %cst_201 = arith.constant dense<0.000000e+00> : vector<2x16xf32>
    %316 = tpu.matmul %314, %315, %cst_201 {dimension_numbers = #tpu.dot_dimension_numbers<[1], [0], [0], [1], [0, 0, 1, 1], [], []>} : vector<2x96xf32>, vector<96x16xf32>, vector<2x16xf32> -> vector<2x16xf32>
    %317 = vector.extract_strided_slice %316 {offsets = [0, 0], sizes = [1, 16], strides = [1, 1]} : vector<2x16xf32> to vector<1x16xf32>
    %cst_202 = arith.constant 3.125000e-02 : f32
    %318 = vector.broadcast %cst_202 : f32 to vector<1x16xf32>
    %319 = arith.mulf %317, %318 : vector<1x16xf32>
    %320 = vector.extract_strided_slice %316 {offsets = [1, 0], sizes = [1, 16], strides = [1, 1]} : vector<2x16xf32> to vector<1x16xf32>
    %cst_203 = arith.constant 3.125000e-02 : f32
    %321 = vector.broadcast %cst_203 : f32 to vector<1x16xf32>
    %322 = arith.mulf %320, %321 : vector<1x16xf32>
    %323 = arith.mulf %319, %319 : vector<1x16xf32>
    %324 = arith.subf %322, %323 : vector<1x16xf32>
    %cst_204 = arith.constant 0.000000e+00 : f32
    %325 = vector.broadcast %cst_204 : f32 to vector<1x16xf32>
    %326 = arith.maximumf %324, %325 : vector<1x16xf32>
    %c4 = arith.constant 4 : index
    %c0_205 = arith.constant 0 : index
    %327 = vector.load %arg1[%c4, %c0_205] : memref<6x16xf32, #tpu.memory_space<vmem>>, vector<1x16xf32>
    %c4_206 = arith.constant 4 : index
    %c0_207 = arith.constant 0 : index
    %328 = vector.load %arg2[%c4_206, %c0_207] : memref<6x16xf32, #tpu.memory_space<vmem>>, vector<1x16xf32>
    %cst_208 = arith.constant 9.99999974E-6 : f32
    %329 = vector.broadcast %cst_208 : f32 to vector<1x16xf32>
    %330 = arith.addf %326, %329 : vector<1x16xf32>
    %331 = math.rsqrt %330 : vector<1x16xf32>
    %332 = arith.mulf %327, %331 : vector<1x16xf32>
    %333 = arith.mulf %319, %332 : vector<1x16xf32>
    %334 = arith.subf %328, %333 : vector<1x16xf32>
    %335 = tpu.concatenate %332, %334 in 0 : vector<1x16xf32>, vector<1x16xf32> -> vector<2x16xf32>
    %c0_209 = arith.constant 0 : index
    %c0_210 = arith.constant 0 : index
    %336 = vector.load %arg14[%c0_209, %c0_210] : memref<16x96xf32, #tpu.memory_space<vmem>>, vector<16x96xf32>
    %cst_211 = arith.constant dense<0.000000e+00> : vector<2x96xf32>
    %337 = tpu.matmul %335, %336, %cst_211 {dimension_numbers = #tpu.dot_dimension_numbers<[1], [0], [0], [1], [0, 0, 1, 1], [], []>} : vector<2x16xf32>, vector<16x96xf32>, vector<2x96xf32> -> vector<2x96xf32>
    %338 = vector.extract_strided_slice %337 {offsets = [0, 0], sizes = [1, 96], strides = [1, 1]} : vector<2x96xf32> to vector<1x96xf32>
    %339 = vector.broadcast %338 : vector<1x96xf32> to vector<8x96xf32>
    %340 = arith.mulf %308, %339 : vector<8x96xf32>
    %341 = vector.extract_strided_slice %337 {offsets = [1, 0], sizes = [1, 96], strides = [1, 1]} : vector<2x96xf32> to vector<1x96xf32>
    %342 = vector.broadcast %341 : vector<1x96xf32> to vector<8x96xf32>
    %343 = arith.addf %340, %342 : vector<8x96xf32>
    %cst_212 = arith.constant 0.000000e+00 : f32
    %344 = vector.broadcast %cst_212 : f32 to vector<8x96xf32>
    %345 = arith.maximumf %343, %344 : vector<8x96xf32>
    %346 = vector.shape_cast %345 : vector<8x96xf32> to vector<2x4x96xf32>
    %c0_213 = arith.constant 0 : index
    %c1_214 = arith.constant 1 : index
    %c0_215 = arith.constant 0 : index
    %347 = vector.load %arg22[%c0_213, %c1_214, %c0_215] : memref<2x6x96xf32, #tpu.memory_space<vmem>>, vector<2x4x96xf32>
    tpu.vector_store %arg22[%c0_213, %c1_214, %c0_215], %346 {strides = array<i32>} : memref<2x6x96xf32, #tpu.memory_space<vmem>>, vector<2x4x96xf32>,
    %c0_216 = arith.constant 0 : index
    %c0_217 = arith.constant 0 : index
    %c0_218 = arith.constant 0 : index
    %348 = vector.load %arg22[%c0_216, %c0_217, %c0_218] : memref<2x6x96xf32, #tpu.memory_space<vmem>>, vector<2x6x96xf32>
    %cst_219 = arith.constant 0.000000e+00 : f32
    %349 = vector.broadcast %cst_219 : f32 to vector<8x96xf32>
    %350 = vector.extract_strided_slice %348 {offsets = [0, 0, 0], sizes = [2, 4, 96], strides = [1, 1, 1]} : vector<2x6x96xf32> to vector<2x4x96xf32>
    %351 = vector.shape_cast %350 : vector<2x4x96xf32> to vector<8x96xf32>
    %c0_220 = arith.constant 0 : index
    %c0_221 = arith.constant 0 : index
    %c0_222 = arith.constant 0 : index
    %352 = vector.load %arg8[%c0_220, %c0_221, %c0_222] : memref<3x96x96xf32, #tpu.memory_space<vmem>>, vector<1x96x96xf32>
    %353 = vector.shape_cast %352 : vector<1x96x96xf32> to vector<96x96xf32>
    %cst_223 = arith.constant dense<0.000000e+00> : vector<8x96xf32>
    %354 = tpu.matmul %351, %353, %cst_223 {dimension_numbers = #tpu.dot_dimension_numbers<[1], [0], [0], [1], [0, 0, 1, 1], [], []>} : vector<8x96xf32>, vector<96x96xf32>, vector<8x96xf32> -> vector<8x96xf32>
    %355 = arith.addf %349, %354 : vector<8x96xf32>
    %356 = vector.extract_strided_slice %348 {offsets = [0, 1, 0], sizes = [2, 4, 96], strides = [1, 1, 1]} : vector<2x6x96xf32> to vector<2x4x96xf32>
    %357 = vector.shape_cast %356 : vector<2x4x96xf32> to vector<8x96xf32>
    %c1_224 = arith.constant 1 : index
    %c0_225 = arith.constant 0 : index
    %c0_226 = arith.constant 0 : index
    %358 = vector.load %arg8[%c1_224, %c0_225, %c0_226] : memref<3x96x96xf32, #tpu.memory_space<vmem>>, vector<1x96x96xf32>
    %359 = vector.shape_cast %358 : vector<1x96x96xf32> to vector<96x96xf32>
    %cst_227 = arith.constant dense<0.000000e+00> : vector<8x96xf32>
    %360 = tpu.matmul %357, %359, %cst_227 {dimension_numbers = #tpu.dot_dimension_numbers<[1], [0], [0], [1], [0, 0, 1, 1], [], []>} : vector<8x96xf32>, vector<96x96xf32>, vector<8x96xf32> -> vector<8x96xf32>
    %361 = arith.addf %355, %360 : vector<8x96xf32>
    %362 = vector.extract_strided_slice %348 {offsets = [0, 2, 0], sizes = [2, 4, 96], strides = [1, 1, 1]} : vector<2x6x96xf32> to vector<2x4x96xf32>
    %363 = vector.shape_cast %362 : vector<2x4x96xf32> to vector<8x96xf32>
    %c2_228 = arith.constant 2 : index
    %c0_229 = arith.constant 0 : index
    %c0_230 = arith.constant 0 : index
    %364 = vector.load %arg8[%c2_228, %c0_229, %c0_230] : memref<3x96x96xf32, #tpu.memory_space<vmem>>, vector<1x96x96xf32>
    %365 = vector.shape_cast %364 : vector<1x96x96xf32> to vector<96x96xf32>
    %cst_231 = arith.constant dense<0.000000e+00> : vector<8x96xf32>
    %366 = tpu.matmul %363, %365, %cst_231 {dimension_numbers = #tpu.dot_dimension_numbers<[1], [0], [0], [1], [0, 0, 1, 1], [], []>} : vector<8x96xf32>, vector<96x96xf32>, vector<8x96xf32> -> vector<8x96xf32>
    %367 = arith.addf %361, %366 : vector<8x96xf32>
    %cst_232 = arith.constant dense<0.000000e+00> : vector<96xf32>
    %368 = vector.multi_reduction <add>, %367, %cst_232 [0] : vector<8x96xf32> to vector<96xf32>
    %369 = vector.shape_cast %368 : vector<96xf32> to vector<1x96xf32>
    %370 = arith.mulf %367, %367 : vector<8x96xf32>
    %cst_233 = arith.constant dense<0.000000e+00> : vector<96xf32>
    %371 = vector.multi_reduction <add>, %370, %cst_233 [0] : vector<8x96xf32> to vector<96xf32>
    %372 = vector.shape_cast %371 : vector<96xf32> to vector<1x96xf32>
    %373 = tpu.concatenate %369, %372 in 0 : vector<1x96xf32>, vector<1x96xf32> -> vector<2x96xf32>
    %c0_234 = arith.constant 0 : index
    %c0_235 = arith.constant 0 : index
    %374 = vector.load %arg11[%c0_234, %c0_235] : memref<96x16xf32, #tpu.memory_space<vmem>>, vector<96x16xf32>
    %cst_236 = arith.constant dense<0.000000e+00> : vector<2x16xf32>
    %375 = tpu.matmul %373, %374, %cst_236 {dimension_numbers = #tpu.dot_dimension_numbers<[1], [0], [0], [1], [0, 0, 1, 1], [], []>} : vector<2x96xf32>, vector<96x16xf32>, vector<2x16xf32> -> vector<2x16xf32>
    %376 = vector.extract_strided_slice %375 {offsets = [0, 0], sizes = [1, 16], strides = [1, 1]} : vector<2x16xf32> to vector<1x16xf32>
    %cst_237 = arith.constant 3.125000e-02 : f32
    %377 = vector.broadcast %cst_237 : f32 to vector<1x16xf32>
    %378 = arith.mulf %376, %377 : vector<1x16xf32>
    %379 = vector.extract_strided_slice %375 {offsets = [1, 0], sizes = [1, 16], strides = [1, 1]} : vector<2x16xf32> to vector<1x16xf32>
    %cst_238 = arith.constant 3.125000e-02 : f32
    %380 = vector.broadcast %cst_238 : f32 to vector<1x16xf32>
    %381 = arith.mulf %379, %380 : vector<1x16xf32>
    %382 = arith.mulf %378, %378 : vector<1x16xf32>
    %383 = arith.subf %381, %382 : vector<1x16xf32>
    %cst_239 = arith.constant 0.000000e+00 : f32
    %384 = vector.broadcast %cst_239 : f32 to vector<1x16xf32>
    %385 = arith.maximumf %383, %384 : vector<1x16xf32>
    %c5_240 = arith.constant 5 : index
    %c0_241 = arith.constant 0 : index
    %386 = vector.load %arg1[%c5_240, %c0_241] : memref<6x16xf32, #tpu.memory_space<vmem>>, vector<1x16xf32>
    %c5_242 = arith.constant 5 : index
    %c0_243 = arith.constant 0 : index
    %387 = vector.load %arg2[%c5_242, %c0_243] : memref<6x16xf32, #tpu.memory_space<vmem>>, vector<1x16xf32>
    %cst_244 = arith.constant 9.99999974E-6 : f32
    %388 = vector.broadcast %cst_244 : f32 to vector<1x16xf32>
    %389 = arith.addf %385, %388 : vector<1x16xf32>
    %390 = math.rsqrt %389 : vector<1x16xf32>
    %391 = arith.mulf %386, %390 : vector<1x16xf32>
    %392 = arith.mulf %378, %391 : vector<1x16xf32>
    %393 = arith.subf %387, %392 : vector<1x16xf32>
    %394 = tpu.concatenate %391, %393 in 0 : vector<1x16xf32>, vector<1x16xf32> -> vector<2x16xf32>
    %c0_245 = arith.constant 0 : index
    %c0_246 = arith.constant 0 : index
    %395 = vector.load %arg14[%c0_245, %c0_246] : memref<16x96xf32, #tpu.memory_space<vmem>>, vector<16x96xf32>
    %cst_247 = arith.constant dense<0.000000e+00> : vector<2x96xf32>
    %396 = tpu.matmul %394, %395, %cst_247 {dimension_numbers = #tpu.dot_dimension_numbers<[1], [0], [0], [1], [0, 0, 1, 1], [], []>} : vector<2x16xf32>, vector<16x96xf32>, vector<2x96xf32> -> vector<2x96xf32>
    %397 = vector.extract_strided_slice %396 {offsets = [0, 0], sizes = [1, 96], strides = [1, 1]} : vector<2x96xf32> to vector<1x96xf32>
    %398 = vector.broadcast %397 : vector<1x96xf32> to vector<8x96xf32>
    %399 = arith.mulf %367, %398 : vector<8x96xf32>
    %400 = vector.extract_strided_slice %396 {offsets = [1, 0], sizes = [1, 96], strides = [1, 1]} : vector<2x96xf32> to vector<1x96xf32>
    %401 = vector.broadcast %400 : vector<1x96xf32> to vector<8x96xf32>
    %402 = arith.addf %399, %401 : vector<8x96xf32>
    %cst_248 = arith.constant 0.000000e+00 : f32
    %403 = vector.broadcast %cst_248 : f32 to vector<8x96xf32>
    %404 = arith.maximumf %402, %403 : vector<8x96xf32>
    %405 = vector.shape_cast %404 : vector<8x96xf32> to vector<2x4x96xf32>
    %c0_249 = arith.constant 0 : index
    %c0_250 = arith.constant 0 : index
    %c0_251 = arith.constant 0 : index
    %406 = vector.load %arg19[%c0_249, %c0_250, %c0_251] : memref<2x4x96xf32, #tpu.memory_space<vmem>>, vector<2x4x96xf32>
    tpu.vector_store %arg19[%c0_249, %c0_250, %c0_251], %405 {strides = array<i32>} : memref<2x4x96xf32, #tpu.memory_space<vmem>>, vector<2x4x96xf32>,
    return
  }
}

</mosaic_0001>

<llo_original>
// kernel: feature_extraction.1
$region0: #{feature_extraction.1}
  #allocation0 [shape = 'u32[]', space=smem, size = 0x4, offset = 0x4, fixed_abs, tag = 'smem constant byte address 0x4 - core index']
  #allocation1 [shape = 'u32[144,128]{1,0:T(1,128)}', space=vmem, size = 0x12000, scoped, tag = 'internal scratch']
  #allocation2 [shape = 'f32[2,18,288]{2,1,0:T(8,128)}', space=vmem, size = 0x12000, scoped, tag = 'scratch operand']
  #allocation3 [shape = 'f32[2,10,160]{2,1,0:T(8,128)}', space=vmem, size = 0x8000, scoped, tag = 'scratch operand']
  #allocation4 [shape = 'f32[2,6,96]{2,1,0:T(8,128)}', space=vmem, size = 0x2000, scoped, tag = 'scratch operand']
  %s0 = inlined_call_operand.vmem [shape: f32[2,18,72], index: 0, kind: input, shape index: {}]
  %s1 = inlined_call_operand.vmem [shape: f32[6,16], index: 1, kind: input, shape index: {}]
  %s2 = inlined_call_operand.vmem [shape: f32[6,16], index: 2, kind: input, shape index: {}]
  %s3 = inlined_call_operand.vmem [shape: f32[3,72,288], index: 3, kind: input, shape index: {}]
  %s4 = inlined_call_operand.vmem [shape: f32[3,288,288], index: 4, kind: input, shape index: {}]
  %s5 = inlined_call_operand.vmem [shape: f32[3,160,160], index: 5, kind: input, shape index: {}]
  %s6 = inlined_call_operand.vmem [shape: f32[3,160,160], index: 6, kind: input, shape index: {}]
  %s7 = inlined_call_operand.vmem [shape: f32[3,96,96], index: 7, kind: input, shape index: {}]
  %s8 = inlined_call_operand.vmem [shape: f32[3,96,96], index: 8, kind: input, shape index: {}]
  %s9 = inlined_call_operand.vmem [shape: f32[288,16], index: 9, kind: input, shape index: {}]
  %s10 = inlined_call_operand.vmem [shape: f32[160,16], index: 10, kind: input, shape index: {}]
  %s11 = inlined_call_operand.vmem [shape: f32[96,16], index: 11, kind: input, shape index: {}]
  %s12 = inlined_call_operand.vmem [shape: f32[16,288], index: 12, kind: input, shape index: {}]
  %s13 = inlined_call_operand.vmem [shape: f32[16,160], index: 13, kind: input, shape index: {}]
  %s14 = inlined_call_operand.vmem [shape: f32[16,96], index: 14, kind: input, shape index: {}]
  %s15 = inlined_call_operand.vmem [shape: f32[256,160], index: 15, kind: input, shape index: {}]
  %s16 = inlined_call_operand.vmem [shape: f32[128,96], index: 16, kind: input, shape index: {}]
  %s17 = inlined_call_operand.vmem [shape: f32[2,16,288], index: 17, kind: output, shape index: {0}]
  %s18 = inlined_call_operand.vmem [shape: f32[2,8,160], index: 18, kind: output, shape index: {1}]
  %s19 = inlined_call_operand.vmem [shape: f32[2,4,96], index: 19, kind: output, shape index: {2}]
  %20 = xla_tuple %s17, %s18, %s19
  %s21 = sld [smem:[#allocation0]]
  $region94: #{feature_extraction.1} parent=0
    _
  %s23 = ssub.s32 1, %s21
  %s24 = scalar_select 0, %s23, %s21
  // Predicated region
  $region2: #{feature_extraction.1} parent=0 // pred_check
    _
  $region3: #{feature_extraction.1} parent=0 // pred_check_branch
    %26 = sbr.rel (0) target = $region5
  $region4: #{feature_extraction.1} parent=0 // pred_region
    _
  $region5: #{feature_extraction.1} parent=0 // pred_fallthru
    _
  // Predicated region
  $region6: #{feature_extraction.1} parent=0 // pred_check
    _
  $region7: #{feature_extraction.1} parent=0 // pred_check_branch
    %28 = sbr.rel (0) target = $region9
  $region8: #{feature_extraction.1} parent=0 // pred_region
    _
  $region9: #{feature_extraction.1} parent=0 // pred_fallthru
    _
  // Predicated region
  $region10: #{feature_extraction.1} parent=0 // pred_check
    _
  $region11: #{feature_extraction.1} parent=0 // pred_check_branch
    %30 = sbr.rel (0) target = $region13
  $region12: #{feature_extraction.1} parent=0 // pred_region
    _
  $region13: #{feature_extraction.1} parent=0 // pred_fallthru
    _
  // Predicated region
  $region14: #{feature_extraction.1} parent=0 // pred_check
    _
  $region15: #{feature_extraction.1} parent=0 // pred_check_branch
    %32 = sbr.rel (0) target = $region17
  $region16: #{feature_extraction.1} parent=0 // pred_region
    _
  $region17: #{feature_extraction.1} parent=0 // pred_fallthru
    _
  // Predicated region
  $region18: #{feature_extraction.1} parent=0 // pred_check
    _
  $region19: #{feature_extraction.1} parent=0 // pred_check_branch
    %34 = sbr.rel (0) target = $region21
  $region20: #{feature_extraction.1} parent=0 // pred_region
    _
  $region21: #{feature_extraction.1} parent=0 // pred_fallthru
    _
  // Predicated region
  $region22: #{feature_extraction.1} parent=0 // pred_check
    _
  $region23: #{feature_extraction.1} parent=0 // pred_check_branch
    %36 = sbr.rel (0) target = $region25
  $region24: #{feature_extraction.1} parent=0 // pred_region
    _
  $region25: #{feature_extraction.1} parent=0 // pred_fallthru
    _
  // Predicated region
  $region26: #{feature_extraction.1} parent=0 // pred_check
    _
  $region27: #{feature_extraction.1} parent=0 // pred_check_branch
    %38 = sbr.rel (0) target = $region29
  $region28: #{feature_extraction.1} parent=0 // pred_region
    _
  $region29: #{feature_extraction.1} parent=0 // pred_fallthru
    _
  // Predicated region
  $region30: #{feature_extraction.1} parent=0 // pred_check
    _
  $region31: #{feature_extraction.1} parent=0 // pred_check_branch
    %40 = sbr.rel (0) target = $region33
  $region32: #{feature_extraction.1} parent=0 // pred_region
    _
  $region33: #{feature_extraction.1} parent=0 // pred_fallthru
    _
  // Predicated region
  $region34: #{feature_extraction.1} parent=0 // pred_check
    _
  $region35: #{feature_extraction.1} parent=0 // pred_check_branch
    %42 = sbr.rel (0) target = $region37
  $region36: #{feature_extraction.1} parent=0 // pred_region
    _
  $region37: #{feature_extraction.1} parent=0 // pred_fallthru
    _
  // Predicated region
  $region38: #{feature_extraction.1} parent=0 // pred_check
    _
  $region39: #{feature_extraction.1} parent=0 // pred_check_branch
    %44 = sbr.rel (0) target = $region41
  $region40: #{feature_extraction.1} parent=0 // pred_region
    _
  $region41: #{feature_extraction.1} parent=0 // pred_fallthru
    _
  // Predicated region
  $region42: #{feature_extraction.1} parent=0 // pred_check
    _
  $region43: #{feature_extraction.1} parent=0 // pred_check_branch
    %46 = sbr.rel (0) target = $region45
  $region44: #{feature_extraction.1} parent=0 // pred_region
    _
  $region45: #{feature_extraction.1} parent=0 // pred_fallthru
    _
  // Predicated region
  $region46: #{feature_extraction.1} parent=0 // pred_check
    _
  $region47: #{feature_extraction.1} parent=0 // pred_check_branch
    %48 = sbr.rel (0) target = $region49
  $region48: #{feature_extraction.1} parent=0 // pred_region
    _
  $region49: #{feature_extraction.1} parent=0 // pred_fallthru
    _
  // Predicated region
  $region50: #{feature_extraction.1} parent=0 // pred_check
    _
  $region51: #{feature_extraction.1} parent=0 // pred_check_branch
    %50 = sbr.rel (0) target = $region53
  $region52: #{feature_extraction.1} parent=0 // pred_region
    _
  $region53: #{feature_extraction.1} parent=0 // pred_fallthru
    _
  // Predicated region
  $region54: #{feature_extraction.1} parent=0 // pred_check
    _
  $region55: #{feature_extraction.1} parent=0 // pred_check_branch
    %52 = sbr.rel (0) target = $region57
  $region56: #{feature_extraction.1} parent=0 // pred_region
    _
  $region57: #{feature_extraction.1} parent=0 // pred_fallthru
    _
  // Predicated region
  $region58: #{feature_extraction.1} parent=0 // pred_check
    _
  $region59: #{feature_extraction.1} parent=0 // pred_check_branch
    %54 = sbr.rel (0) target = $region61
  $region60: #{feature_extraction.1} parent=0 // pred_region
    _
  $region61: #{feature_extraction.1} parent=0 // pred_fallthru
    _
  // Predicated region
  $region62: #{feature_extraction.1} parent=0 // pred_check
    _
  $region63: #{feature_extraction.1} parent=0 // pred_check_branch
    %56 = sbr.rel (0) target = $region65
  $region64: #{feature_extraction.1} parent=0 // pred_region
    _
  $region65: #{feature_extraction.1} parent=0 // pred_fallthru
    _
  // Predicated region
  $region66: #{feature_extraction.1} parent=0 // pred_check
    _
  $region67: #{feature_extraction.1} parent=0 // pred_check_branch
    %58 = sbr.rel (0) target = $region69
  $region68: #{feature_extraction.1} parent=0 // pred_region
    _
  $region69: #{feature_extraction.1} parent=0 // pred_fallthru
    _
  %v59 = vlaneseq
  %vm60 = vcmp.ge.s32.totalorder %v59, 0
  %vm61 = vcmp.lt.s32.totalorder %v59, 288
  %vm62 = vmand %vm60, %vm61
  %63 = vst.msk [vmem:[#allocation2] ss:$8 sm:$0x7] %vm62, 0.0
  %64 = vst.msk [vmem:[#allocation2] ss:$8 sm:$0x0] %vm62, 0.0
  %s65 = scalar_lea.vmem [#allocation2], 72
  %66 = vst.msk [vmem:[%s65] ss:$8 sm:$0x7] %vm62, 0.0
  %67 = vst.msk [vmem:[%s65] ss:$8 sm:$0x0] %vm62, 0.0
  %s68 = scalar_lea.vmem [#allocation2], 49
  %69 = vst.msk [vmem:[%s68] ss:$8 sm:$0x7] %vm62, 0.0
  %70 = vst.msk [vmem:[%s68] ss:$8 sm:$0x0] %vm62, 0.0
  %s71 = scalar_lea.vmem [#allocation2], 121
  %72 = vst.msk [vmem:[%s71] ss:$8 sm:$0x7] %vm62, 0.0
  %73 = vst.msk [vmem:[%s71] ss:$8 sm:$0x0] %vm62, 0.0
  %vm74 = vcmp.lt.s32.totalorder %v59, 160
  %vm75 = vmand %vm60, %vm74
  %76 = vst.msk [vmem:[#allocation3] ss:$8 sm:$0x3] %vm75, 0.0
  %77 = vst.msk [vmem:[#allocation3] ss:$8 sm:$0x0] %vm75, 0.0
  %s78 = scalar_lea.vmem [#allocation3], 32
  %79 = vst.msk [vmem:[%s78] ss:$8 sm:$0x3] %vm75, 0.0
  %80 = vst.msk [vmem:[%s78] ss:$8 sm:$0x0] %vm75, 0.0
  %s81 = scalar_lea.vmem [#allocation3], 17
  %82 = vst.msk [vmem:[%s81] ss:$8 sm:$0x3] %vm75, 0.0
  %83 = vst.msk [vmem:[%s81] ss:$8 sm:$0x0] %vm75, 0.0
  %s84 = scalar_lea.vmem [#allocation3], 49
  %85 = vst.msk [vmem:[%s84] ss:$8 sm:$0x3] %vm75, 0.0
  %86 = vst.msk [vmem:[%s84] ss:$8 sm:$0x0] %vm75, 0.0
  %vm87 = vcmask 778240
  %88 = vst.msk [vmem:[#allocation4] sm:$0x1] %vm87, 0.0
  %89 = vst.msk [vmem:[#allocation4 + $0x8] sm:$0x1] %vm87, 0.0
  %90 = vst.msk [vmem:[#allocation4 + $0x5] sm:$0x1] %vm87, 0.0
  %91 = vst.msk [vmem:[#allocation4 + $0xd] sm:$0x1] %vm87, 0.0
  %v92 = vld [vmem:[%s0] sm:$0xff]
  %v93 = vld [vmem:[%s0 + $0x8] sm:$0xff]
  %v94 = vld [vmem:[%s0 + $0x10] sm:$0x3]
  %v95 = vld [vmem:[%s0 + $0x18] sm:$0xff]
  %v96 = vld [vmem:[%s0 + $0x20] sm:$0xff]
  %v97 = vld [vmem:[%s0 + $0x28] sm:$0x3]
  %v98 = vld [vmem:[%s3] sm:$0xff]
  %v99 = vld [vmem:[%s3 + $0x8] sm:$0xff]
  %v100 = vld [vmem:[%s3 + $0x10] sm:$0xff]
  %v101 = vld [vmem:[%s3 + $0x18] sm:$0xff]
  %v102 = vld [vmem:[%s3 + $0x20] sm:$0xff]
  %v103 = vld [vmem:[%s3 + $0x28] sm:$0xff]
  %v104 = vld [vmem:[%s3 + $0x30] sm:$0xff]
  %v105 = vld [vmem:[%s3 + $0x38] sm:$0xff]
  %v106 = vld [vmem:[%s3 + $0x40] sm:$0xff]
  %v107 = vld [vmem:[%s3 + $0x48] sm:$0xff]
  %v108 = vld [vmem:[%s3 + $0x50] sm:$0xff]
  %v109 = vld [vmem:[%s3 + $0x58] sm:$0xff]
  %v110 = vld [vmem:[%s3 + $0x60] sm:$0xff]
  %v111 = vld [vmem:[%s3 + $0x68] sm:$0xff]
  %v112 = vld [vmem:[%s3 + $0x70] sm:$0xff]
  %v113 = vld [vmem:[%s3 + $0x78] sm:$0xff]
  %v114 = vld [vmem:[%s3 + $0x80] sm:$0xff]
  %v115 = vld [vmem:[%s3 + $0x88] sm:$0xff]
  %v116 = vld [vmem:[%s3 + $0x90] sm:$0xff]
  %v117 = vld [vmem:[%s3 + $0x98] sm:$0xff]
  %v118 = vld [vmem:[%s3 + $0xa0] sm:$0xff]
  %v119 = vld [vmem:[%s3 + $0xa8] sm:$0xff]
  %v120 = vld [vmem:[%s3 + $0xb0] sm:$0xff]
  %v121 = vld [vmem:[%s3 + $0xb8] sm:$0xff]
  %v122 = vld [vmem:[%s3 + $0xc0] sm:$0xff]
  %v123 = vld [vmem:[%s3 + $0xc8] sm:$0xff]
  %v124 = vld [vmem:[%s3 + $0xd0] sm:$0xff]
  %vm131 = vcmask 1046528
  %v132 = vrot.slane %v92, 1
  %v133 = vrot.slane %v93, 1
  %v134 = vsel %vm131, %v132, %v133
  %v135 = vrot.slane %v94, 1
  %v136 = vsel %vm131, %v133, %v135
  %v137 = vrot.slane %v95, 1
  %v138 = vrot.slane %v96, 1
  %v139 = vsel %vm131, %v137, %v138
  %v140 = vrot.slane %v97, 1
  %v141 = vsel %vm131, %v138, %v140
  %s142 = scalar_lea.vmem %s3, 216
  %v143 = vld [vmem:[%s142] sm:$0xff]
  %v144 = vld [vmem:[%s142 + $0x8] sm:$0xff]
  %v145 = vld [vmem:[%s142 + $0x10] sm:$0xff]
  %v146 = vld [vmem:[%s142 + $0x18] sm:$0xff]
  %v147 = vld [vmem:[%s142 + $0x20] sm:$0xff]
  %v148 = vld [vmem:[%s142 + $0x28] sm:$0xff]
  %v149 = vld [vmem:[%s142 + $0x30] sm:$0xff]
  %v150 = vld [vmem:[%s142 + $0x38] sm:$0xff]
  %v151 = vld [vmem:[%s142 + $0x40] sm:$0xff]
  %v152 = vld [vmem:[%s142 + $0x48] sm:$0xff]
  %v153 = vld [vmem:[%s142 + $0x50] sm:$0xff]
  %v154 = vld [vmem:[%s142 + $0x58] sm:$0xff]
  %v155 = vld [vmem:[%s142 + $0x60] sm:$0xff]
  %v156 = vld [vmem:[%s142 + $0x68] sm:$0xff]
  %v157 = vld [vmem:[%s142 + $0x70] sm:$0xff]
  %v158 = vld [vmem:[%s142 + $0x78] sm:$0xff]
  %v159 = vld [vmem:[%s142 + $0x80] sm:$0xff]
  %v160 = vld [vmem:[%s142 + $0x88] sm:$0xff]
  %v161 = vld [vmem:[%s142 + $0x90] sm:$0xff]
  %v162 = vld [vmem:[%s142 + $0x98] sm:$0xff]
  %v163 = vld [vmem:[%s142 + $0xa0] sm:$0xff]
  %v164 = vld [vmem:[%s142 + $0xa8] sm:$0xff]
  %v165 = vld [vmem:[%s142 + $0xb0] sm:$0xff]
  %v166 = vld [vmem:[%s142 + $0xb8] sm:$0xff]
  %v167 = vld [vmem:[%s142 + $0xc0] sm:$0xff]
  %v168 = vld [vmem:[%s142 + $0xc8] sm:$0xff]
  %v169 = vld [vmem:[%s142 + $0xd0] sm:$0xff]
  %vm170 = vcmask 588800
  %v171 = vsel %vm170, %v134, 0
  %v173 = vsel %vm170, %v136, 0
  %v175 = vsel %vm170, %v139, 0
  %v177 = vsel %vm170, %v141, 0
  %179 = vmatprep.subr.mxu0 %v144
  %180 = vmatpush1.msra.mxu0 %v143
  %181 = vmatprep.subr.mxu0 %v147
  %182 = vmatpush1.msra.mxu0 %v146
  %183 = vmatprep.subr.mxu0 %v150
  %184 = vmatpush1.msra.mxu0 %v149
  %185 = vmatprep.subr.mxu0 %v153
  %186 = vmatpush1.msra.mxu0 %v152
  %187 = vmatprep.subr.mxu0 %v156
  %188 = vmatpush1.msra.mxu0 %v155
  %189 = vmatprep.subr.mxu0 %v159
  %190 = vmatpush1.msra.mxu0 %v158
  %191 = vmatprep.subr.mxu0 %v162
  %192 = vmatpush1.msra.mxu0 %v161
  %193 = vmatprep.subr.mxu0 %v165
  %194 = vmatpush1.msra.mxu0 %v164
  %195 = vmatprep.subr.mxu0 %v168
  %196 = vmatpush1.msra.mxu0 %v167
  %197 = vmatprep.subr.mxu0 0.0
  %198 = vmatpush1.msra.mxu0 0.0
  %199 = vmatprep.subr.mxu0 0.0
  %200 = vmatpush1.msra.mxu0 0.0
  %201 = vmatprep.subr.mxu0 0.0
  %202 = vmatpush1.msra.mxu0 0.0
  %203 = vmatprep.subr.mxu0 0.0
  %204 = vmatpush1.msra.mxu0 0.0
  %205 = vmatprep.subr.mxu0 0.0
  %206 = vmatpush1.msra.mxu0 0.0
  %207 = vmatprep.subr.mxu0 0.0
  %208 = vmatpush1.msra.mxu0 0.0
  %209 = vmatprep.subr.mxu0 0.0
  %210 = vmatpush1.msra.mxu0 0.0
  %211 = vmatprep.subr.mxu0 0.0
  %212 = vmatpush1.msra.mxu0 0.0
  %213 = vmatprep.subr.mxu0 0.0
  %214 = vmatpush1.msra.mxu0 0.0
  %215 = vmatprep.subr.mxu0 0.0
  %216 = vmatpush1.msra.mxu0 0.0
  %217 = vmatprep.subr.mxu0 0.0
  %218 = vmatpush1.msra.mxu0 0.0
  %219 = vmatprep.subr.mxu0 0.0
  %220 = vmatpush1.msra.mxu0 0.0
  %221 = vmatprep.subr.mxu0 0.0
  %222 = vmatpush1.msra.mxu0 0.0
  %223 = vmatprep.subr.mxu0 0.0
  %224 = vmatpush1.msra.mxu0 0.0
  %225 = vmatprep.subr.mxu0 0.0
  %226 = vmatpush1.msra.mxu0 0.0
  %227 = vmatprep.subr.mxu0 0.0
  %228 = vmatpush1.msra.mxu0 0.0
  %229 = vmatprep.subr.mxu0 0.0
  %230 = vmatpush1.msra.mxu0 0.0
  %231 = vmatprep.subr.mxu0 0.0
  %232 = vmatpush1.msra.mxu0 0.0
  %233 = vmatprep.subr.mxu0 0.0
  %234 = vmatpush1.msra.mxu0 0.0
  %235 = vmatprep.subr.mxu0 0.0
  %236 = vmatpush1.msra.mxu0 0.0
  %237 = vmatprep.subr.mxu0 0.0
  %238 = vmatpush1.msra.mxu0 0.0
  %239 = vmatprep.subr.mxu0 0.0
  %240 = vmatpush1.msra.mxu0 0.0
  %241 = vmatprep.subr.mxu0 0.0
  %242 = vmatpush1.msra.mxu0 0.0
  %243 = vmatprep.mubr.f32.mxu0 0.0
  %244 = vmatmul.mubr.f32.gmra.mrb[0].mxu0 %v171
  %v245 = vpop.f32.mrb[0].mxu0
  %v246 = vadd.f32 0.0, %v245
  %v247 = vpop.f32.mrb[0].mxu0
  %v248 = vadd.f32 0.0, %v247
  %249 = vmatprep.mubr.f32.mxu0 0.0
  %250 = vmatmul.mubr.f32.gmra.mrb[0].mxu0 %v173
  %v251 = vpop.f32.mrb[0].mxu0
  %v252 = vadd.f32 0.0, %v251
  %v253 = vpop.f32.mrb[0].mxu0
  %v254 = vadd.f32 0.0, %v253
  %255 = vmatprep.mubr.f32.mxu0 0.0
  %256 = vmatmul.mubr.f32.gmra.mrb[0].mxu0 %v175
  %v257 = vpop.f32.mrb[0].mxu0
  %v258 = vadd.f32 0.0, %v257
  %v259 = vpop.f32.mrb[0].mxu0
  %v260 = vadd.f32 0.0, %v259
  %261 = vmatprep.mubr.f32.mxu0 0.0
  %262 = vmatmul.mubr.f32.gmra.mrb[0].mxu0 %v177
  %v263 = vpop.f32.mrb[0].mxu0
  %v264 = vadd.f32 0.0, %v263
  %v265 = vpop.f32.mrb[0].mxu0
  %v266 = vadd.f32 0.0, %v265
  %267 = vdwg.mxu0
  %268 = vmatprep.subr.mxu0 0.0
  %269 = vmatpush1.msra.mxu0 %v145
  %270 = vmatprep.subr.mxu0 0.0
  %271 = vmatpush1.msra.mxu0 %v148
  %272 = vmatprep.subr.mxu0 0.0
  %273 = vmatpush1.msra.mxu0 %v151
  %274 = vmatprep.subr.mxu0 0.0
  %275 = vmatpush1.msra.mxu0 %v154
  %276 = vmatprep.subr.mxu0 0.0
  %277 = vmatpush1.msra.mxu0 %v157
  %278 = vmatprep.subr.mxu0 0.0
  %279 = vmatpush1.msra.mxu0 %v160
  %280 = vmatprep.subr.mxu0 0.0
  %281 = vmatpush1.msra.mxu0 %v163
  %282 = vmatprep.subr.mxu0 0.0
  %283 = vmatpush1.msra.mxu0 %v166
  %284 = vmatprep.subr.mxu0 0.0
  %285 = vmatpush1.msra.mxu0 %v169
  %286 = vmatprep.subr.mxu0 0.0
  %287 = vmatpush1.msra.mxu0 0.0
  %288 = vmatprep.subr.mxu0 0.0
  %289 = vmatpush1.msra.mxu0 0.0
  %290 = vmatprep.subr.mxu0 0.0
  %291 = vmatpush1.msra.mxu0 0.0
  %292 = vmatprep.subr.mxu0 0.0
  %293 = vmatpush1.msra.mxu0 0.0
  %294 = vmatprep.subr.mxu0 0.0
  %295 = vmatpush1.msra.mxu0 0.0
  %296 = vmatprep.subr.mxu0 0.0
  %297 = vmatpush1.msra.mxu0 0.0
  %298 = vmatprep.subr.mxu0 0.0
  %299 = vmatpush1.msra.mxu0 0.0
  %300 = vmatprep.subr.mxu0 0.0
  %301 = vmatpush1.msra.mxu0 0.0
  %302 = vmatprep.subr.mxu0 0.0
  %303 = vmatpush1.msra.mxu0 0.0
  %304 = vmatprep.subr.mxu0 0.0
  %305 = vmatpush1.msra.mxu0 0.0
  %306 = vmatprep.subr.mxu0 0.0
  %307 = vmatpush1.msra.mxu0 0.0
  %308 = vmatprep.subr.mxu0 0.0
  %309 = vmatpush1.msra.mxu0 0.0
  %310 = vmatprep.subr.mxu0 0.0
  %311 = vmatpush1.msra.mxu0 0.0
  %312 = vmatprep.subr.mxu0 0.0
  %313 = vmatpush1.msra.mxu0 0.0
  %314 = vmatprep.subr.mxu0 0.0
  %315 = vmatpush1.msra.mxu0 0.0
  %316 = vmatprep.subr.mxu0 0.0
  %317 = vmatpush1.msra.mxu0 0.0
  %318 = vmatprep.subr.mxu0 0.0
  %319 = vmatpush1.msra.mxu0 0.0
  %320 = vmatprep.subr.mxu0 0.0
  %321 = vmatpush1.msra.mxu0 0.0
  %322 = vmatprep.subr.mxu0 0.0
  %323 = vmatpush1.msra.mxu0 0.0
  %324 = vmatprep.subr.mxu0 0.0
  %325 = vmatpush1.msra.mxu0 0.0
  %326 = vmatprep.subr.mxu0 0.0
  %327 = vmatpush1.msra.mxu0 0.0
  %328 = vmatprep.subr.mxu0 0.0
  %329 = vmatpush1.msra.mxu0 0.0
  %330 = vmatprep.subr.mxu0 0.0
  %331 = vmatpush1.msra.mxu0 0.0
  %332 = vmatprep.mubr.f32.mxu0 0.0
  %333 = vmatmul.mubr.f32.gmra.mrb[0].mxu0 %v171
  %v334 = vpop.f32.mrb[0].mxu0
  %v335 = vadd.f32 0.0, %v334
  %v336 = vpop.f32.mrb[0].mxu0
  %337 = vmatprep.mubr.f32.mxu0 0.0
  %338 = vmatmul.mubr.f32.gmra.mrb[0].mxu0 %v173
  %v339 = vpop.f32.mrb[0].mxu0
  %v340 = vadd.f32 0.0, %v339
  %v341 = vpop.f32.mrb[0].mxu0
  %342 = vmatprep.mubr.f32.mxu0 0.0
  %343 = vmatmul.mubr.f32.gmra.mrb[0].mxu0 %v175
  %v344 = vpop.f32.mrb[0].mxu0
  %v345 = vadd.f32 0.0, %v344
  %v346 = vpop.f32.mrb[0].mxu0
  %347 = vmatprep.mubr.f32.mxu0 0.0
  %348 = vmatmul.mubr.f32.gmra.mrb[0].mxu0 %v177
  %v349 = vpop.f32.mrb[0].mxu0
  %v350 = vadd.f32 0.0, %v349
  %v351 = vpop.f32.mrb[0].mxu0
  %352 = vdwg.mxu0
  %v353 = vsel %vm170, %v92, 0
  %v355 = vsel %vm170, %v93, 0
  %v357 = vsel %vm170, %v95, 0
  %v359 = vsel %vm170, %v96, 0
  %361 = vmatprep.subr.mxu0 %v99
  %362 = vmatpush1.msra.mxu0 %v98
  %363 = vmatprep.subr.mxu0 %v102
  %364 = vmatpush1.msra.mxu0 %v101
  %365 = vmatprep.subr.mxu0 %v105
  %366 = vmatpush1.msra.mxu0 %v104
  %367 = vmatprep.subr.mxu0 %v108
  %368 = vmatpush1.msra.mxu0 %v107
  %369 = vmatprep.subr.mxu0 %v111
  %370 = vmatpush1.msra.mxu0 %v110
  %371 = vmatprep.subr.mxu0 %v114
  %372 = vmatpush1.msra.mxu0 %v113
  %373 = vmatprep.subr.mxu0 %v117
  %374 = vmatpush1.msra.mxu0 %v116
  %375 = vmatprep.subr.mxu0 %v120
  %376 = vmatpush1.msra.mxu0 %v119
  %377 = vmatprep.subr.mxu0 %v123
  %378 = vmatpush1.msra.mxu0 %v122
  %379 = vmatprep.subr.mxu0 0.0
  %380 = vmatpush1.msra.mxu0 0.0
  %381 = vmatprep.subr.mxu0 0.0
  %382 = vmatpush1.msra.mxu0 0.0
  %383 = vmatprep.subr.mxu0 0.0
  %384 = vmatpush1.msra.mxu0 0.0
  %385 = vmatprep.subr.mxu0 0.0
  %386 = vmatpush1.msra.mxu0 0.0
  %387 = vmatprep.subr.mxu0 0.0
  %388 = vmatpush1.msra.mxu0 0.0
  %389 = vmatprep.subr.mxu0 0.0
  %390 = vmatpush1.msra.mxu0 0.0
  %391 = vmatprep.subr.mxu0 0.0
  %392 = vmatpush1.msra.mxu0 0.0
  %393 = vmatprep.subr.mxu0 0.0
  %394 = vmatpush1.msra.mxu0 0.0
  %395 = vmatprep.subr.mxu0 0.0
  %396 = vmatpush1.msra.mxu0 0.0
  %397 = vmatprep.subr.mxu0 0.0
  %398 = vmatpush1.msra.mxu0 0.0
  %399 = vmatprep.subr.mxu0 0.0
  %400 = vmatpush1.msra.mxu0 0.0
  %401 = vmatprep.subr.mxu0 0.0
  %402 = vmatpush1.msra.mxu0 0.0
  %403 = vmatprep.subr.mxu0 0.0
  %404 = vmatpush1.msra.mxu0 0.0
  %405 = vmatprep.subr.mxu0 0.0
  %406 = vmatpush1.msra.mxu0 0.0
  %407 = vmatprep.subr.mxu0 0.0
  %408 = vmatpush1.msra.mxu0 0.0
  %409 = vmatprep.subr.mxu0 0.0
  %410 = vmatpush1.msra.mxu0 0.0
  %411 = vmatprep.subr.mxu0 0.0
  %412 = vmatpush1.msra.mxu0 0.0
  %413 = vmatprep.subr.mxu0 0.0
  %414 = vmatpush1.msra.mxu0 0.0
  %415 = vmatprep.subr.mxu0 0.0
  %416 = vmatpush1.msra.mxu0 0.0
  %417 = vmatprep.subr.mxu0 0.0
  %418 = vmatpush1.msra.mxu0 0.0
  %419 = vmatprep.subr.mxu0 0.0
  %420 = vmatpush1.msra.mxu0 0.0
  %421 = vmatprep.subr.mxu0 0.0
  %422 = vmatpush1.msra.mxu0 0.0
  %423 = vmatprep.subr.mxu0 0.0
  %424 = vmatpush1.msra.mxu0 0.0
  %425 = vmatprep.mubr.f32.mxu0 0.0
  %426 = vmatmul.mubr.f32.gmra.mrb[0].mxu0 %v353
  %v427 = vpop.f32.mrb[0].mxu0
  %v428 = vadd.f32 %v246, %v427
  %v429 = vpop.f32.mrb[0].mxu0
  %v430 = vadd.f32 %v248, %v429
  %431 = vmatprep.mubr.f32.mxu0 0.0
  %432 = vmatmul.mubr.f32.gmra.mrb[0].mxu0 %v355
  %v433 = vpop.f32.mrb[0].mxu0
  %v434 = vadd.f32 %v252, %v433
  %v435 = vpop.f32.mrb[0].mxu0
  %v436 = vadd.f32 %v254, %v435
  %437 = vmatprep.mubr.f32.mxu0 0.0
  %438 = vmatmul.mubr.f32.gmra.mrb[0].mxu0 %v357
  %v439 = vpop.f32.mrb[0].mxu0
  %v440 = vadd.f32 %v258, %v439
  %v441 = vpop.f32.mrb[0].mxu0
  %v442 = vadd.f32 %v260, %v441
  %443 = vmatprep.mubr.f32.mxu0 0.0
  %444 = vmatmul.mubr.f32.gmra.mrb[0].mxu0 %v359
  %v445 = vpop.f32.mrb[0].mxu0
  %v446 = vadd.f32 %v264, %v445
  %v447 = vpop.f32.mrb[0].mxu0
  %v448 = vadd.f32 %v266, %v447
  %449 = vdwg.mxu0
  %450 = vmatprep.subr.mxu0 0.0
  %451 = vmatpush1.msra.mxu0 %v100
  %452 = vmatprep.subr.mxu0 0.0
  %453 = vmatpush1.msra.mxu0 %v103
  %454 = vmatprep.subr.mxu0 0.0
  %455 = vmatpush1.msra.mxu0 %v106
  %456 = vmatprep.subr.mxu0 0.0
  %457 = vmatpush1.msra.mxu0 %v109
  %458 = vmatprep.subr.mxu0 0.0
  %459 = vmatpush1.msra.mxu0 %v112
  %460 = vmatprep.subr.mxu0 0.0
  %461 = vmatpush1.msra.mxu0 %v115
  %462 = vmatprep.subr.mxu0 0.0
  %463 = vmatpush1.msra.mxu0 %v118
  %464 = vmatprep.subr.mxu0 0.0
  %465 = vmatpush1.msra.mxu0 %v121
  %466 = vmatprep.subr.mxu0 0.0
  %467 = vmatpush1.msra.mxu0 %v124
  %468 = vmatprep.subr.mxu0 0.0
  %469 = vmatpush1.msra.mxu0 0.0
  %470 = vmatprep.subr.mxu0 0.0
  %471 = vmatpush1.msra.mxu0 0.0
  %472 = vmatprep.subr.mxu0 0.0
  %473 = vmatpush1.msra.mxu0 0.0
  %474 = vmatprep.subr.mxu0 0.0
  %475 = vmatpush1.msra.mxu0 0.0
  %476 = vmatprep.subr.mxu0 0.0
  %477 = vmatpush1.msra.mxu0 0.0
  %478 = vmatprep.subr.mxu0 0.0
  %479 = vmatpush1.msra.mxu0 0.0
  %480 = vmatprep.subr.mxu0 0.0
  %481 = vmatpush1.msra.mxu0 0.0
  %482 = vmatprep.subr.mxu0 0.0
  %483 = vmatpush1.msra.mxu0 0.0
  %484 = vmatprep.subr.mxu0 0.0
  %485 = vmatpush1.msra.mxu0 0.0
  %486 = vmatprep.subr.mxu0 0.0
  %487 = vmatpush1.msra.mxu0 0.0
  %488 = vmatprep.subr.mxu0 0.0
  %489 = vmatpush1.msra.mxu0 0.0
  %490 = vmatprep.subr.mxu0 0.0
  %491 = vmatpush1.msra.mxu0 0.0
  %492 = vmatprep.subr.mxu0 0.0
  %493 = vmatpush1.msra.mxu0 0.0
  %494 = vmatprep.subr.mxu0 0.0
  %495 = vmatpush1.msra.mxu0 0.0
  %496 = vmatprep.subr.mxu0 0.0
  %497 = vmatpush1.msra.mxu0 0.0
  %498 = vmatprep.subr.mxu0 0.0
  %499 = vmatpush1.msra.mxu0 0.0
  %500 = vmatprep.subr.mxu0 0.0
  %501 = vmatpush1.msra.mxu0 0.0
  %502 = vmatprep.subr.mxu0 0.0
  %503 = vmatpush1.msra.mxu0 0.0
  %504 = vmatprep.subr.mxu0 0.0
  %505 = vmatpush1.msra.mxu0 0.0
  %506 = vmatprep.subr.mxu0 0.0
  %507 = vmatpush1.msra.mxu0 0.0
  %508 = vmatprep.subr.mxu0 0.0
  %509 = vmatpush1.msra.mxu0 0.0
  %510 = vmatprep.subr.mxu0 0.0
  %511 = vmatpush1.msra.mxu0 0.0
  %512 = vmatprep.subr.mxu0 0.0
  %513 = vmatpush1.msra.mxu0 0.0
  %514 = vmatprep.mubr.f32.mxu0 0.0
  %515 = vmatmul.mubr.f32.gmra.mrb[0].mxu0 %v353
  %v516 = vpop.f32.mrb[0].mxu0
  %v517 = vadd.f32 %v335, %v516
  %v518 = vpop.f32.mrb[0].mxu0
  %519 = vmatprep.mubr.f32.mxu0 0.0
  %520 = vmatmul.mubr.f32.gmra.mrb[0].mxu0 %v355
  %v521 = vpop.f32.mrb[0].mxu0
  %v522 = vadd.f32 %v340, %v521
  %v523 = vpop.f32.mrb[0].mxu0
  %524 = vmatprep.mubr.f32.mxu0 0.0
  %525 = vmatmul.mubr.f32.gmra.mrb[0].mxu0 %v357
  %v526 = vpop.f32.mrb[0].mxu0
  %v527 = vadd.f32 %v345, %v526
  %v528 = vpop.f32.mrb[0].mxu0
  %529 = vmatprep.mubr.f32.mxu0 0.0
  %530 = vmatmul.mubr.f32.gmra.mrb[0].mxu0 %v359
  %v531 = vpop.f32.mrb[0].mxu0
  %v532 = vadd.f32 %v350, %v531
  %v533 = vpop.f32.mrb[0].mxu0
  %534 = vdwg.mxu0
  %vm535 = vcmask 1045504
  %v536 = vrot.slane %v92, 2
  %v537 = vrot.slane %v93, 2
  %v538 = vsel %vm535, %v536, %v537
  %v539 = vrot.slane %v94, 2
  %v540 = vsel %vm535, %v537, %v539
  %v541 = vrot.slane %v95, 2
  %v542 = vrot.slane %v96, 2
  %v543 = vsel %vm535, %v541, %v542
  %v544 = vrot.slane %v97, 2
  %v545 = vsel %vm535, %v542, %v544
  %s546 = scalar_lea.vmem %s3, 432
  %v547 = vld [vmem:[%s546] sm:$0xff]
  %v548 = vld [vmem:[%s546 + $0x8] sm:$0xff]
  %v549 = vld [vmem:[%s546 + $0x10] sm:$0xff]
  %v550 = vld [vmem:[%s546 + $0x18] sm:$0xff]
  %v551 = vld [vmem:[%s546 + $0x20] sm:$0xff]
  %v552 = vld [vmem:[%s546 + $0x28] sm:$0xff]
  %v553 = vld [vmem:[%s546 + $0x30] sm:$0xff]
  %v554 = vld [vmem:[%s546 + $0x38] sm:$0xff]
  %v555 = vld [vmem:[%s546 + $0x40] sm:$0xff]
  %v556 = vld [vmem:[%s546 + $0x48] sm:$0xff]
  %v557 = vld [vmem:[%s546 + $0x50] sm:$0xff]
  %v558 = vld [vmem:[%s546 + $0x58] sm:$0xff]
  %v559 = vld [vmem:[%s546 + $0x60] sm:$0xff]
  %v560 = vld [vmem:[%s546 + $0x68] sm:$0xff]
  %v561 = vld [vmem:[%s546 + $0x70] sm:$0xff]
  %v562 = vld [vmem:[%s546 + $0x78] sm:$0xff]
  %v563 = vld [vmem:[%s546 + $0x80] sm:$0xff]
  %v564 = vld [vmem:[%s546 + $0x88] sm:$0xff]
  %v565 = vld [vmem:[%s546 + $0x90] sm:$0xff]
  %v566 = vld [vmem:[%s546 + $0x98] sm:$0xff]
  %v567 = vld [vmem:[%s546 + $0xa0] sm:$0xff]
  %v568 = vld [vmem:[%s546 + $0xa8] sm:$0xff]
  %v569 = vld [vmem:[%s546 + $0xb0] sm:$0xff]
  %v570 = vld [vmem:[%s546 + $0xb8] sm:$0xff]
  %v571 = vld [vmem:[%s546 + $0xc0] sm:$0xff]
  %v572 = vld [vmem:[%s546 + $0xc8] sm:$0xff]
  %v573 = vld [vmem:[%s546 + $0xd0] sm:$0xff]
  %v574 = vsel %vm170, %v538, 0
  %v576 = vsel %vm170, %v540, 0
  %v578 = vsel %vm170, %v543, 0
  %v580 = vsel %vm170, %v545, 0
  %582 = vmatprep.subr.mxu0 %v548
  %583 = vmatpush1.msra.mxu0 %v547
  %584 = vmatprep.subr.mxu0 %v551
  %585 = vmatpush1.msra.mxu0 %v550
  %586 = vmatprep.subr.mxu0 %v554
  %587 = vmatpush1.msra.mxu0 %v553
  %588 = vmatprep.subr.mxu0 %v557
  %589 = vmatpush1.msra.mxu0 %v556
  %590 = vmatprep.subr.mxu0 %v560
  %591 = vmatpush1.msra.mxu0 %v559
  %592 = vmatprep.subr.mxu0 %v563
  %593 = vmatpush1.msra.mxu0 %v562
  %594 = vmatprep.subr.mxu0 %v566
  %595 = vmatpush1.msra.mxu0 %v565
  %596 = vmatprep.subr.mxu0 %v569
  %597 = vmatpush1.msra.mxu0 %v568
  %598 = vmatprep.subr.mxu0 %v572
  %599 = vmatpush1.msra.mxu0 %v571
  %600 = vmatprep.subr.mxu0 0.0
  %601 = vmatpush1.msra.mxu0 0.0
  %602 = vmatprep.subr.mxu0 0.0
  %603 = vmatpush1.msra.mxu0 0.0
  %604 = vmatprep.subr.mxu0 0.0
  %605 = vmatpush1.msra.mxu0 0.0
  %606 = vmatprep.subr.mxu0 0.0
  %607 = vmatpush1.msra.mxu0 0.0
  %608 = vmatprep.subr.mxu0 0.0
  %609 = vmatpush1.msra.mxu0 0.0
  %610 = vmatprep.subr.mxu0 0.0
  %611 = vmatpush1.msra.mxu0 0.0
  %612 = vmatprep.subr.mxu0 0.0
  %613 = vmatpush1.msra.mxu0 0.0
  %614 = vmatprep.subr.mxu0 0.0
  %615 = vmatpush1.msra.mxu0 0.0
  %616 = vmatprep.subr.mxu0 0.0
  %617 = vmatpush1.msra.mxu0 0.0
  %618 = vmatprep.subr.mxu0 0.0
  %619 = vmatpush1.msra.mxu0 0.0
  %620 = vmatprep.subr.mxu0 0.0
  %621 = vmatpush1.msra.mxu0 0.0
  %622 = vmatprep.subr.mxu0 0.0
  %623 = vmatpush1.msra.mxu0 0.0
  %624 = vmatprep.subr.mxu0 0.0
  %625 = vmatpush1.msra.mxu0 0.0
  %626 = vmatprep.subr.mxu0 0.0
  %627 = vmatpush1.msra.mxu0 0.0
  %628 = vmatprep.subr.mxu0 0.0
  %629 = vmatpush1.msra.mxu0 0.0
  %630 = vmatprep.subr.mxu0 0.0
  %631 = vmatpush1.msra.mxu0 0.0
  %632 = vmatprep.subr.mxu0 0.0
  %633 = vmatpush1.msra.mxu0 0.0
  %634 = vmatprep.subr.mxu0 0.0
  %635 = vmatpush1.msra.mxu0 0.0
  %636 = vmatprep.subr.mxu0 0.0
  %637 = vmatpush1.msra.mxu0 0.0
  %638 = vmatprep.subr.mxu0 0.0
  %639 = vmatpush1.msra.mxu0 0.0
  %640 = vmatprep.subr.mxu0 0.0
  %641 = vmatpush1.msra.mxu0 0.0
  %642 = vmatprep.subr.mxu0 0.0
  %643 = vmatpush1.msra.mxu0 0.0
  %644 = vmatprep.subr.mxu0 0.0
  %645 = vmatpush1.msra.mxu0 0.0
  %646 = vmatprep.mubr.f32.mxu0 0.0
  %647 = vmatmul.mubr.f32.gmra.mrb[0].mxu0 %v574
  %v648 = vpop.f32.mrb[0].mxu0
  %v649 = vadd.f32 0.0, %v648
  %v650 = vpop.f32.mrb[0].mxu0
  %v651 = vadd.f32 0.0, %v650
  %652 = vmatprep.mubr.f32.mxu0 0.0
  %653 = vmatmul.mubr.f32.gmra.mrb[0].mxu0 %v576
  %v654 = vpop.f32.mrb[0].mxu0
  %v655 = vadd.f32 0.0, %v654
  %v656 = vpop.f32.mrb[0].mxu0
  %v657 = vadd.f32 0.0, %v656
  %658 = vmatprep.mubr.f32.mxu0 0.0
  %659 = vmatmul.mubr.f32.gmra.mrb[0].mxu0 %v578
  %v660 = vpop.f32.mrb[0].mxu0
  %v661 = vadd.f32 0.0, %v660
  %v662 = vpop.f32.mrb[0].mxu0
  %v663 = vadd.f32 0.0, %v662
  %664 = vmatprep.mubr.f32.mxu0 0.0
  %665 = vmatmul.mubr.f32.gmra.mrb[0].mxu0 %v580
  %v666 = vpop.f32.mrb[0].mxu0
  %v667 = vadd.f32 0.0, %v666
  %v668 = vpop.f32.mrb[0].mxu0
  %v669 = vadd.f32 0.0, %v668
  %670 = vdwg.mxu0
  %671 = vmatprep.subr.mxu0 0.0
  %672 = vmatpush1.msra.mxu0 %v549
  %673 = vmatprep.subr.mxu0 0.0
  %674 = vmatpush1.msra.mxu0 %v552
  %675 = vmatprep.subr.mxu0 0.0
  %676 = vmatpush1.msra.mxu0 %v555
  %677 = vmatprep.subr.mxu0 0.0
  %678 = vmatpush1.msra.mxu0 %v558
  %679 = vmatprep.subr.mxu0 0.0
  %680 = vmatpush1.msra.mxu0 %v561
  %681 = vmatprep.subr.mxu0 0.0
  %682 = vmatpush1.msra.mxu0 %v564
  %683 = vmatprep.subr.mxu0 0.0
  %684 = vmatpush1.msra.mxu0 %v567
  %685 = vmatprep.subr.mxu0 0.0
  %686 = vmatpush1.msra.mxu0 %v570
  %687 = vmatprep.subr.mxu0 0.0
  %688 = vmatpush1.msra.mxu0 %v573
  %689 = vmatprep.subr.mxu0 0.0
  %690 = vmatpush1.msra.mxu0 0.0
  %691 = vmatprep.subr.mxu0 0.0
  %692 = vmatpush1.msra.mxu0 0.0
  %693 = vmatprep.subr.mxu0 0.0
  %694 = vmatpush1.msra.mxu0 0.0
  %695 = vmatprep.subr.mxu0 0.0
  %696 = vmatpush1.msra.mxu0 0.0
  %697 = vmatprep.subr.mxu0 0.0
  %698 = vmatpush1.msra.mxu0 0.0
  %699 = vmatprep.subr.mxu0 0.0
  %700 = vmatpush1.msra.mxu0 0.0
  %701 = vmatprep.subr.mxu0 0.0
  %702 = vmatpush1.msra.mxu0 0.0
  %703 = vmatprep.subr.mxu0 0.0
  %704 = vmatpush1.msra.mxu0 0.0
  %705 = vmatprep.subr.mxu0 0.0
  %706 = vmatpush1.msra.mxu0 0.0
  %707 = vmatprep.subr.mxu0 0.0
  %708 = vmatpush1.msra.mxu0 0.0
  %709 = vmatprep.subr.mxu0 0.0
  %710 = vmatpush1.msra.mxu0 0.0
  %711 = vmatprep.subr.mxu0 0.0
  %712 = vmatpush1.msra.mxu0 0.0
  %713 = vmatprep.subr.mxu0 0.0
  %714 = vmatpush1.msra.mxu0 0.0
  %715 = vmatprep.subr.mxu0 0.0
  %716 = vmatpush1.msra.mxu0 0.0
  %717 = vmatprep.subr.mxu0 0.0
  %718 = vmatpush1.msra.mxu0 0.0
  %719 = vmatprep.subr.mxu0 0.0
  %720 = vmatpush1.msra.mxu0 0.0
  %721 = vmatprep.subr.mxu0 0.0
  %722 = vmatpush1.msra.mxu0 0.0
  %723 = vmatprep.subr.mxu0 0.0
  %724 = vmatpush1.msra.mxu0 0.0
  %725 = vmatprep.subr.mxu0 0.0
  %726 = vmatpush1.msra.mxu0 0.0
  %727 = vmatprep.subr.mxu0 0.0
  %728 = vmatpush1.msra.mxu0 0.0
  %729 = vmatprep.subr.mxu0 0.0
  %730 = vmatpush1.msra.mxu0 0.0
  %731 = vmatprep.subr.mxu0 0.0
  %732 = vmatpush1.msra.mxu0 0.0
  %733 = vmatprep.subr.mxu0 0.0
  %734 = vmatpush1.msra.mxu0 0.0
  %735 = vmatprep.mubr.f32.mxu0 0.0
  %736 = vmatmul.mubr.f32.gmra.mrb[0].mxu0 %v574
  %v737 = vpop.f32.mrb[0].mxu0
  %v738 = vadd.f32 0.0, %v737
  %v739 = vpop.f32.mrb[0].mxu0
  %740 = vmatprep.mubr.f32.mxu0 0.0
  %741 = vmatmul.mubr.f32.gmra.mrb[0].mxu0 %v576
  %v742 = vpop.f32.mrb[0].mxu0
  %v743 = vadd.f32 0.0, %v742
  %v744 = vpop.f32.mrb[0].mxu0
  %745 = vmatprep.mubr.f32.mxu0 0.0
  %746 = vmatmul.mubr.f32.gmra.mrb[0].mxu0 %v578
  %v747 = vpop.f32.mrb[0].mxu0
  %v748 = vadd.f32 0.0, %v747
  %v749 = vpop.f32.mrb[0].mxu0
  %750 = vmatprep.mubr.f32.mxu0 0.0
  %751 = vmatmul.mubr.f32.gmra.mrb[0].mxu0 %v580
  %v752 = vpop.f32.mrb[0].mxu0
  %v753 = vadd.f32 0.0, %v752
  %v754 = vpop.f32.mrb[0].mxu0
  %755 = vdwg.mxu0
  %v756 = vadd.f32 %v428, %v649
  %v757 = vadd.f32 %v430, %v651
  %v758 = vadd.f32 %v517, %v738
  %v759 = vadd.f32 %v434, %v655
  %v760 = vadd.f32 %v436, %v657
  %v761 = vadd.f32 %v522, %v743
  %v762 = vadd.f32 %v440, %v661
  %v763 = vadd.f32 %v442, %v663
  %v764 = vadd.f32 %v527, %v748
  %v765 = vadd.f32 %v446, %v667
  %v766 = vadd.f32 %v448, %v669
  %v767 = vadd.f32 %v532, %v753
  %v768 = vadd.f32 %v756, %v759
  %v769 = vadd.f32 %v768, %v762
  %v770 = vadd.f32 %v769, %v765
  %v771 = vrot.slane %v770, 4
  %v772 = vadd.f32 %v770, %v771
  %v773 = vrot.slane %v772, 2
  %v774 = vadd.f32 %v772, %v773
  %v775 = vrot.slane %v774, 1
  %v776 = vadd.f32 %v774, %v775
  %v777 = vadd.f32 %v757, %v760
  %v778 = vadd.f32 %v777, %v763
  %v779 = vadd.f32 %v778, %v766
  %v780 = vrot.slane %v779, 4
  %v781 = vadd.f32 %v779, %v780
  %v782 = vrot.slane %v781, 2
  %v783 = vadd.f32 %v781, %v782
  %v784 = vrot.slane %v783, 1
  %v785 = vadd.f32 %v783, %v784
  %vm786 = vcmask 261120
  %v787 = vsel %vm786, %v758, 0.0
  %v788 = vsel %vm786, %v761, 0.0
  %v789 = vadd.f32 %v787, %v788
  %v790 = vsel %vm786, %v764, 0.0
  %v791 = vadd.f32 %v789, %v790
  %v792 = vsel %vm786, %v767, 0.0
  %v793 = vadd.f32 %v791, %v792
  %v794 = vrot.slane %v793, 4
  %v795 = vadd.f32 %v793, %v794
  %v796 = vrot.slane %v795, 2
  %v797 = vadd.f32 %v795, %v796
  %v798 = vrot.slane %v797, 1
  %v799 = vadd.f32 %v797, %v798
  %v800 = vmul.f32 %v756, %v756
  %v801 = vmul.f32 %v757, %v757
  %v802 = vmul.f32 %v758, %v758
  %v803 = vmul.f32 %v759, %v759
  %v804 = vmul.f32 %v760, %v760
  %v805 = vmul.f32 %v761, %v761
  %v806 = vmul.f32 %v762, %v762
  %v807 = vmul.f32 %v763, %v763
  %v808 = vmul.f32 %v764, %v764
  %v809 = vmul.f32 %v765, %v765
  %v810 = vmul.f32 %v766, %v766
  %v811 = vmul.f32 %v767, %v767
  %v812 = vadd.f32 %v800, %v803
  %v813 = vadd.f32 %v812, %v806
  %v814 = vadd.f32 %v813, %v809
  %v815 = vrot.slane %v814, 4
  %v816 = vadd.f32 %v814, %v815
  %v817 = vrot.slane %v816, 2
  %v818 = vadd.f32 %v816, %v817
  %v819 = vrot.slane %v818, 1
  %v820 = vadd.f32 %v818, %v819
  %v821 = vadd.f32 %v801, %v804
  %v822 = vadd.f32 %v821, %v807
  %v823 = vadd.f32 %v822, %v810
  %v824 = vrot.slane %v823, 4
  %v825 = vadd.f32 %v823, %v824
  %v826 = vrot.slane %v825, 2
  %v827 = vadd.f32 %v825, %v826
  %v828 = vrot.slane %v827, 1
  %v829 = vadd.f32 %v827, %v828
  %v830 = vsel %vm786, %v802, 0.0
  %v831 = vsel %vm786, %v805, 0.0
  %v832 = vadd.f32 %v830, %v831
  %v833 = vsel %vm786, %v808, 0.0
  %v834 = vadd.f32 %v832, %v833
  %v835 = vsel %vm786, %v811, 0.0
  %v836 = vadd.f32 %v834, %v835
  %v837 = vrot.slane %v836, 4
  %v838 = vadd.f32 %v836, %v837
  %v839 = vrot.slane %v838, 2
  %v840 = vadd.f32 %v838, %v839
  %v841 = vrot.slane %v840, 1
  %v842 = vadd.f32 %v840, %v841
  %vm843 = vcmask 1040384
  %v844 = vsel %vm843, %v776, %v820
  %v845 = vsel %vm843, %v785, %v829
  %v846 = vsel %vm843, %v799, %v842
  %v847 = vld [vmem:[%s9] sm:$0xff]
  %v848 = vld [vmem:[%s9 + $0x8] sm:$0xff]
  %v849 = vld [vmem:[%s9 + $0x10] sm:$0xff]
  %v850 = vld [vmem:[%s9 + $0x18] sm:$0xff]
  %v851 = vld [vmem:[%s9 + $0x20] sm:$0xff]
  %v852 = vld [vmem:[%s9 + $0x28] sm:$0xff]
  %v853 = vld [vmem:[%s9 + $0x30] sm:$0xff]
  %v854 = vld [vmem:[%s9 + $0x38] sm:$0xff]
  %v855 = vld [vmem:[%s9 + $0x40] sm:$0xff]
  %v856 = vld [vmem:[%s9 + $0x48] sm:$0xff]
  %v857 = vld [vmem:[%s9 + $0x50] sm:$0xff]
  %v858 = vld [vmem:[%s9 + $0x58] sm:$0xff]
  %v859 = vld [vmem:[%s9 + $0x60] sm:$0xff]
  %v860 = vld [vmem:[%s9 + $0x68] sm:$0xff]
  %v861 = vld [vmem:[%s9 + $0x70] sm:$0xff]
  %v862 = vld [vmem:[%s9 + $0x78] sm:$0xff]
  %v863 = vld [vmem:[%s9 + $0x80] sm:$0xff]
  %v864 = vld [vmem:[%s9 + $0x88] sm:$0xff]
  %v865 = vld [vmem:[%s9 + $0x90] sm:$0xff]
  %v866 = vld [vmem:[%s9 + $0x98] sm:$0xff]
  %v867 = vld [vmem:[%s9 + $0xa0] sm:$0xff]
  %v868 = vld [vmem:[%s9 + $0xa8] sm:$0xff]
  %v869 = vld [vmem:[%s9 + $0xb0] sm:$0xff]
  %v870 = vld [vmem:[%s9 + $0xb8] sm:$0xff]
  %v871 = vld [vmem:[%s9 + $0xc0] sm:$0xff]
  %v872 = vld [vmem:[%s9 + $0xc8] sm:$0xff]
  %v873 = vld [vmem:[%s9 + $0xd0] sm:$0xff]
  %v874 = vld [vmem:[%s9 + $0xd8] sm:$0xff]
  %v875 = vld [vmem:[%s9 + $0xe0] sm:$0xff]
  %v876 = vld [vmem:[%s9 + $0xe8] sm:$0xff]
  %v877 = vld [vmem:[%s9 + $0xf0] sm:$0xff]
  %v878 = vld [vmem:[%s9 + $0xf8] sm:$0xff]
  %v879 = vld [vmem:[%s9 + $0x100] sm:$0xff]
  %v880 = vld [vmem:[%s9 + $0x108] sm:$0xff]
  %v881 = vld [vmem:[%s9 + $0x110] sm:$0xff]
  %v882 = vld [vmem:[%s9 + $0x118] sm:$0xff]
  %v884 = vsel %vm786, %v846, 0
  %886 = vmatprep.subr.mxu0 0.0
  %887 = vmatpush1.msra.mxu0 %v847
  %888 = vmatprep.subr.mxu0 0.0
  %889 = vmatpush1.msra.mxu0 %v848
  %890 = vmatprep.subr.mxu0 0.0
  %891 = vmatpush1.msra.mxu0 %v849
  %892 = vmatprep.subr.mxu0 0.0
  %893 = vmatpush1.msra.mxu0 %v850
  %894 = vmatprep.subr.mxu0 0.0
  %895 = vmatpush1.msra.mxu0 %v851
  %896 = vmatprep.subr.mxu0 0.0
  %897 = vmatpush1.msra.mxu0 %v852
  %898 = vmatprep.subr.mxu0 0.0
  %899 = vmatpush1.msra.mxu0 %v853
  %900 = vmatprep.subr.mxu0 0.0
  %901 = vmatpush1.msra.mxu0 %v854
  %902 = vmatprep.subr.mxu0 0.0
  %903 = vmatpush1.msra.mxu0 %v855
  %904 = vmatprep.subr.mxu0 0.0
  %905 = vmatpush1.msra.mxu0 %v856
  %906 = vmatprep.subr.mxu0 0.0
  %907 = vmatpush1.msra.mxu0 %v857
  %908 = vmatprep.subr.mxu0 0.0
  %909 = vmatpush1.msra.mxu0 %v858
  %910 = vmatprep.subr.mxu0 0.0
  %911 = vmatpush1.msra.mxu0 %v859
  %912 = vmatprep.subr.mxu0 0.0
  %913 = vmatpush1.msra.mxu0 %v860
  %914 = vmatprep.subr.mxu0 0.0
  %915 = vmatpush1.msra.mxu0 %v861
  %916 = vmatprep.subr.mxu0 0.0
  %917 = vmatpush1.msra.mxu0 %v862
  %918 = vmatprep.subr.mxu0 0.0
  %919 = vmatpush1.msra.mxu0 %v863
  %920 = vmatprep.subr.mxu0 0.0
  %921 = vmatpush1.msra.mxu0 %v864
  %922 = vmatprep.subr.mxu0 0.0
  %923 = vmatpush1.msra.mxu0 %v865
  %924 = vmatprep.subr.mxu0 0.0
  %925 = vmatpush1.msra.mxu0 %v866
  %926 = vmatprep.subr.mxu0 0.0
  %927 = vmatpush1.msra.mxu0 %v867
  %928 = vmatprep.subr.mxu0 0.0
  %929 = vmatpush1.msra.mxu0 %v868
  %930 = vmatprep.subr.mxu0 0.0
  %931 = vmatpush1.msra.mxu0 %v869
  %932 = vmatprep.subr.mxu0 0.0
  %933 = vmatpush1.msra.mxu0 %v870
  %934 = vmatprep.subr.mxu0 0.0
  %935 = vmatpush1.msra.mxu0 %v871
  %936 = vmatprep.subr.mxu0 0.0
  %937 = vmatpush1.msra.mxu0 %v872
  %938 = vmatprep.subr.mxu0 0.0
  %939 = vmatpush1.msra.mxu0 %v873
  %940 = vmatprep.subr.mxu0 0.0
  %941 = vmatpush1.msra.mxu0 %v874
  %942 = vmatprep.subr.mxu0 0.0
  %943 = vmatpush1.msra.mxu0 %v875
  %944 = vmatprep.subr.mxu0 0.0
  %945 = vmatpush1.msra.mxu0 %v876
  %946 = vmatprep.subr.mxu0 0.0
  %947 = vmatpush1.msra.mxu0 %v877
  %948 = vmatprep.subr.mxu0 0.0
  %949 = vmatpush1.msra.mxu0 %v878
  %950 = vmatprep.mubr.f32.mxu0 %v845
  %951 = vmatmul.mubr.f32.gmra.mrb[0].mxu0 %v844
  %v952 = vpop.f32.mrb[0].mxu0
  %v953 = vadd.f32 0.0, %v952
  %v954 = vpop.f32.mrb[0].mxu0
  %955 = vdwg.mxu0
  %956 = vmatprep.subr.mxu0 0.0
  %957 = vmatpush1.msra.mxu0 %v879
  %958 = vmatprep.subr.mxu0 0.0
  %959 = vmatpush1.msra.mxu0 %v880
  %960 = vmatprep.subr.mxu0 0.0
  %961 = vmatpush1.msra.mxu0 %v881
  %962 = vmatprep.subr.mxu0 0.0
  %963 = vmatpush1.msra.mxu0 %v882
  %964 = vmatprep.subr.mxu0 0.0
  %965 = vmatpush1.msra.mxu0 0.0
  %966 = vmatprep.subr.mxu0 0.0
  %967 = vmatpush1.msra.mxu0 0.0
  %968 = vmatprep.subr.mxu0 0.0
  %969 = vmatpush1.msra.mxu0 0.0
  %970 = vmatprep.subr.mxu0 0.0
  %971 = vmatpush1.msra.mxu0 0.0
  %972 = vmatprep.subr.mxu0 0.0
  %973 = vmatpush1.msra.mxu0 0.0
  %974 = vmatprep.subr.mxu0 0.0
  %975 = vmatpush1.msra.mxu0 0.0
  %976 = vmatprep.subr.mxu0 0.0
  %977 = vmatpush1.msra.mxu0 0.0
  %978 = vmatprep.subr.mxu0 0.0
  %979 = vmatpush1.msra.mxu0 0.0
  %980 = vmatprep.subr.mxu0 0.0
  %981 = vmatpush1.msra.mxu0 0.0
  %982 = vmatprep.subr.mxu0 0.0
  %983 = vmatpush1.msra.mxu0 0.0
  %984 = vmatprep.subr.mxu0 0.0
  %985 = vmatpush1.msra.mxu0 0.0
  %986 = vmatprep.subr.mxu0 0.0
  %987 = vmatpush1.msra.mxu0 0.0
  %988 = vmatprep.subr.mxu0 0.0
  %989 = vmatpush1.msra.mxu0 0.0
  %990 = vmatprep.subr.mxu0 0.0
  %991 = vmatpush1.msra.mxu0 0.0
  %992 = vmatprep.subr.mxu0 0.0
  %993 = vmatpush1.msra.mxu0 0.0
  %994 = vmatprep.subr.mxu0 0.0
  %995 = vmatpush1.msra.mxu0 0.0
  %996 = vmatprep.subr.mxu0 0.0
  %997 = vmatpush1.msra.mxu0 0.0
  %998 = vmatprep.subr.mxu0 0.0
  %999 = vmatpush1.msra.mxu0 0.0
  %1000 = vmatprep.subr.mxu0 0.0
  %1001 = vmatpush1.msra.mxu0 0.0
  %1002 = vmatprep.subr.mxu0 0.0
  %1003 = vmatpush1.msra.mxu0 0.0
  %1004 = vmatprep.subr.mxu0 0.0
  %1005 = vmatpush1.msra.mxu0 0.0
  %1006 = vmatprep.subr.mxu0 0.0
  %1007 = vmatpush1.msra.mxu0 0.0
  %1008 = vmatprep.subr.mxu0 0.0
  %1009 = vmatpush1.msra.mxu0 0.0
  %1010 = vmatprep.subr.mxu0 0.0
  %1011 = vmatpush1.msra.mxu0 0.0
  %1012 = vmatprep.subr.mxu0 0.0
  %1013 = vmatpush1.msra.mxu0 0.0
  %1014 = vmatprep.subr.mxu0 0.0
  %1015 = vmatpush1.msra.mxu0 0.0
  %1016 = vmatprep.subr.mxu0 0.0
  %1017 = vmatpush1.msra.mxu0 0.0
  %1018 = vmatprep.subr.mxu0 0.0
  %1019 = vmatpush1.msra.mxu0 0.0
  %1020 = vmatprep.mubr.f32.mxu0 0.0
  %1021 = vmatmul.mubr.f32.gmra.mrb[0].mxu0 %v884
  %v1022 = vpop.f32.mrb[0].mxu0
  %v1023 = vadd.f32 %v953, %v1022
  %v1024 = vpop.f32.mrb[0].mxu0
  %1025 = vdwg.mxu0
  %v1026 = vmul.f32 %v1023, 0.001953125
  %v1027 = vmul.f32 %v1026, %v1026
  %v1029 = vrot.slane %v1027, 7
  %v1031 = vsub.f32 %v1026, %v1029
  %v1032 = vmax.f32 %v1031, 0.0
  %v1033 = vld [vmem:[%s1] sm:$0x1]
  %v1034 = vld [vmem:[%s2] sm:$0x1]
  %v1035 = vadd.f32 %v1032, 1e-05
  %v1036 = vrsqrt.pop %v1035
  %v1038 = vrot.slane %v1036, 1
  %v1040 = vmul.f32 %v1033, %v1038
  %v1041 = vmul.f32 %v1026, %v1040
  %v1042 = vsub.f32 %v1034, %v1041
  %v1044 = vrot.slane %v1042, 7
  %v1046 = vsel %vm843, %v1040, %v1044
  %v1047 = vld [vmem:[%s12] sm:$0xff]
  %v1048 = vld [vmem:[%s12 + $0x8] sm:$0xff]
  %v1049 = vld [vmem:[%s12 + $0x10] sm:$0xff]
  %v1050 = vld [vmem:[%s12 + $0x18] sm:$0xff]
  %v1051 = vld [vmem:[%s12 + $0x20] sm:$0xff]
  %v1052 = vld [vmem:[%s12 + $0x28] sm:$0xff]
  %vm1053 = vcmask 130048
  %v1055 = vsel %vm1053, %v1046, 0
  %1057 = vmatprep.subr.mxu0 %v1048
  %1058 = vmatpush1.msra.mxu0 %v1047
  %1059 = vmatprep.subr.mxu0 %v1051
  %1060 = vmatpush1.msra.mxu0 %v1050
  %1061 = vmatprep.subr.mxu0 0.0
  %1062 = vmatpush1.msra.mxu0 0.0
  %1063 = vmatprep.subr.mxu0 0.0
  %1064 = vmatpush1.msra.mxu0 0.0
  %1065 = vmatprep.subr.mxu0 0.0
  %1066 = vmatpush1.msra.mxu0 0.0
  %1067 = vmatprep.subr.mxu0 0.0
  %1068 = vmatpush1.msra.mxu0 0.0
  %1069 = vmatprep.subr.mxu0 0.0
  %1070 = vmatpush1.msra.mxu0 0.0
  %1071 = vmatprep.subr.mxu0 0.0
  %1072 = vmatpush1.msra.mxu0 0.0
  %1073 = vmatprep.subr.mxu0 0.0
  %1074 = vmatpush1.msra.mxu0 0.0
  %1075 = vmatprep.subr.mxu0 0.0
  %1076 = vmatpush1.msra.mxu0 0.0
  %1077 = vmatprep.subr.mxu0 0.0
  %1078 = vmatpush1.msra.mxu0 0.0
  %1079 = vmatprep.subr.mxu0 0.0
  %1080 = vmatpush1.msra.mxu0 0.0
  %1081 = vmatprep.subr.mxu0 0.0
  %1082 = vmatpush1.msra.mxu0 0.0
  %1083 = vmatprep.subr.mxu0 0.0
  %1084 = vmatpush1.msra.mxu0 0.0
  %1085 = vmatprep.subr.mxu0 0.0
  %1086 = vmatpush1.msra.mxu0 0.0
  %1087 = vmatprep.subr.mxu0 0.0
  %1088 = vmatpush1.msra.mxu0 0.0
  %1089 = vmatprep.subr.mxu0 0.0
  %1090 = vmatpush1.msra.mxu0 0.0
  %1091 = vmatprep.subr.mxu0 0.0
  %1092 = vmatpush1.msra.mxu0 0.0
  %1093 = vmatprep.subr.mxu0 0.0
  %1094 = vmatpush1.msra.mxu0 0.0
  %1095 = vmatprep.subr.mxu0 0.0
  %1096 = vmatpush1.msra.mxu0 0.0
  %1097 = vmatprep.subr.mxu0 0.0
  %1098 = vmatpush1.msra.mxu0 0.0
  %1099 = vmatprep.subr.mxu0 0.0
  %1100 = vmatpush1.msra.mxu0 0.0
  %1101 = vmatprep.subr.mxu0 0.0
  %1102 = vmatpush1.msra.mxu0 0.0
  %1103 = vmatprep.subr.mxu0 0.0
  %1104 = vmatpush1.msra.mxu0 0.0
  %1105 = vmatprep.subr.mxu0 0.0
  %1106 = vmatpush1.msra.mxu0 0.0
  %1107 = vmatprep.subr.mxu0 0.0
  %1108 = vmatpush1.msra.mxu0 0.0
  %1109 = vmatprep.subr.mxu0 0.0
  %1110 = vmatpush1.msra.mxu0 0.0
  %1111 = vmatprep.subr.mxu0 0.0
  %1112 = vmatpush1.msra.mxu0 0.0
  %1113 = vmatprep.subr.mxu0 0.0
  %1114 = vmatpush1.msra.mxu0 0.0
  %1115 = vmatprep.subr.mxu0 0.0
  %1116 = vmatpush1.msra.mxu0 0.0
  %1117 = vmatprep.subr.mxu0 0.0
  %1118 = vmatpush1.msra.mxu0 0.0
  %1119 = vmatprep.subr.mxu0 0.0
  %1120 = vmatpush1.msra.mxu0 0.0
  %1121 = vmatprep.mubr.f32.mxu0 0.0
  %1122 = vmatmul.mubr.f32.gmra.mrb[0].mxu0 %v1055
  %v1123 = vpop.f32.mrb[0].mxu0
  %v1124 = vadd.f32 0.0, %v1123
  %v1125 = vpop.f32.mrb[0].mxu0
  %v1126 = vadd.f32 0.0, %v1125
  %1127 = vdwg.mxu0
  %1128 = vmatprep.subr.mxu0 0.0
  %1129 = vmatpush1.msra.mxu0 %v1049
  %1130 = vmatprep.subr.mxu0 0.0
  %1131 = vmatpush1.msra.mxu0 %v1052
  %1132 = vmatprep.subr.mxu0 0.0
  %1133 = vmatpush1.msra.mxu0 0.0
  %1134 = vmatprep.subr.mxu0 0.0
  %1135 = vmatpush1.msra.mxu0 0.0
  %1136 = vmatprep.subr.mxu0 0.0
  %1137 = vmatpush1.msra.mxu0 0.0
  %1138 = vmatprep.subr.mxu0 0.0
  %1139 = vmatpush1.msra.mxu0 0.0
  %1140 = vmatprep.subr.mxu0 0.0
  %1141 = vmatpush1.msra.mxu0 0.0
  %1142 = vmatprep.subr.mxu0 0.0
  %1143 = vmatpush1.msra.mxu0 0.0
  %1144 = vmatprep.subr.mxu0 0.0
  %1145 = vmatpush1.msra.mxu0 0.0
  %1146 = vmatprep.subr.mxu0 0.0
  %1147 = vmatpush1.msra.mxu0 0.0
  %1148 = vmatprep.subr.mxu0 0.0
  %1149 = vmatpush1.msra.mxu0 0.0
  %1150 = vmatprep.subr.mxu0 0.0
  %1151 = vmatpush1.msra.mxu0 0.0
  %1152 = vmatprep.subr.mxu0 0.0
  %1153 = vmatpush1.msra.mxu0 0.0
  %1154 = vmatprep.subr.mxu0 0.0
  %1155 = vmatpush1.msra.mxu0 0.0
  %1156 = vmatprep.subr.mxu0 0.0
  %1157 = vmatpush1.msra.mxu0 0.0
  %1158 = vmatprep.subr.mxu0 0.0
  %1159 = vmatpush1.msra.mxu0 0.0
  %1160 = vmatprep.subr.mxu0 0.0
  %1161 = vmatpush1.msra.mxu0 0.0
  %1162 = vmatprep.subr.mxu0 0.0
  %1163 = vmatpush1.msra.mxu0 0.0
  %1164 = vmatprep.subr.mxu0 0.0
  %1165 = vmatpush1.msra.mxu0 0.0
  %1166 = vmatprep.subr.mxu0 0.0
  %1167 = vmatpush1.msra.mxu0 0.0
  %1168 = vmatprep.subr.mxu0 0.0
  %1169 = vmatpush1.msra.mxu0 0.0
  %1170 = vmatprep.subr.mxu0 0.0
  %1171 = vmatpush1.msra.mxu0 0.0
  %1172 = vmatprep.subr.mxu0 0.0
  %1173 = vmatpush1.msra.mxu0 0.0
  %1174 = vmatprep.subr.mxu0 0.0
  %1175 = vmatpush1.msra.mxu0 0.0
  %1176 = vmatprep.subr.mxu0 0.0
  %1177 = vmatpush1.msra.mxu0 0.0
  %1178 = vmatprep.subr.mxu0 0.0
  %1179 = vmatpush1.msra.mxu0 0.0
  %1180 = vmatprep.subr.mxu0 0.0
  %1181 = vmatpush1.msra.mxu0 0.0
  %1182 = vmatprep.subr.mxu0 0.0
  %1183 = vmatpush1.msra.mxu0 0.0
  %1184 = vmatprep.subr.mxu0 0.0
  %1185 = vmatpush1.msra.mxu0 0.0
  %1186 = vmatprep.subr.mxu0 0.0
  %1187 = vmatpush1.msra.mxu0 0.0
  %1188 = vmatprep.subr.mxu0 0.0
  %1189 = vmatpush1.msra.mxu0 0.0
  %1190 = vmatprep.subr.mxu0 0.0
  %1191 = vmatpush1.msra.mxu0 0.0
  %1192 = vmatprep.mubr.f32.mxu0 0.0
  %1193 = vmatmul.mubr.f32.gmra.mrb[0].mxu0 %v1055
  %v1194 = vpop.f32.mrb[0].mxu0
  %v1195 = vadd.f32 0.0, %v1194
  %v1196 = vpop.f32.mrb[0].mxu0
  %1197 = vdwg.mxu0
  %v1198 = vlaneseq
  %v1199 = vshrl.u32 %v1198, 7
  %v1200 = vsub.s32 0, %v1199
  %v1201 = vrot.slane %v1124, %v1200
  %v1202 = vlaneseq
  %v1203 = vshrl.u32 %v1202, 7
  %v1204 = vsub.s32 0, %v1203
  %v1205 = vrot.slane %v1126, %v1204
  %v1206 = vlaneseq
  %v1207 = vshrl.u32 %v1206, 7
  %v1208 = vsub.s32 0, %v1207
  %v1209 = vrot.slane %v1195, %v1208
  %v1210 = vmul.f32 %v756, %v1201
  %v1211 = vmul.f32 %v757, %v1205
  %v1212 = vmul.f32 %v758, %v1209
  %v1213 = vmul.f32 %v759, %v1201
  %v1214 = vmul.f32 %v760, %v1205
  %v1215 = vmul.f32 %v761, %v1209
  %v1216 = vmul.f32 %v762, %v1201
  %v1217 = vmul.f32 %v763, %v1205
  %v1218 = vmul.f32 %v764, %v1209
  %v1219 = vmul.f32 %v765, %v1201
  %v1220 = vmul.f32 %v766, %v1205
  %v1221 = vmul.f32 %v767, %v1209
  %v1222 = vlaneseq
  %v1223 = vshrl.u32 %v1222, 7
  %v1224 = vsub.s32 1, %v1223
  %v1225 = vrot.slane %v1124, %v1224
  %v1226 = vlaneseq
  %v1227 = vshrl.u32 %v1226, 7
  %v1228 = vsub.s32 1, %v1227
  %v1229 = vrot.slane %v1126, %v1228
  %v1230 = vlaneseq
  %v1231 = vshrl.u32 %v1230, 7
  %v1232 = vsub.s32 1, %v1231
  %v1233 = vrot.slane %v1195, %v1232
  %v1234 = vadd.f32 %v1210, %v1225
  %v1235 = vadd.f32 %v1211, %v1229
  %v1236 = vadd.f32 %v1212, %v1233
  %v1237 = vadd.f32 %v1213, %v1225
  %v1238 = vadd.f32 %v1214, %v1229
  %v1239 = vadd.f32 %v1215, %v1233
  %v1240 = vadd.f32 %v1216, %v1225
  %v1241 = vadd.f32 %v1217, %v1229
  %v1242 = vadd.f32 %v1218, %v1233
  %v1243 = vadd.f32 %v1219, %v1225
  %v1244 = vadd.f32 %v1220, %v1229
  %v1245 = vadd.f32 %v1221, %v1233
  %v1246 = vmax.f32 %v1234, 0.0
  %v1247 = vmax.f32 %v1235, 0.0
  %v1248 = vmax.f32 %v1236, 0.0
  %v1249 = vmax.f32 %v1237, 0.0
  %v1250 = vmax.f32 %v1238, 0.0
  %v1251 = vmax.f32 %v1239, 0.0
  %v1252 = vmax.f32 %v1240, 0.0
  %v1253 = vmax.f32 %v1241, 0.0
  %v1254 = vmax.f32 %v1242, 0.0
  %v1255 = vmax.f32 %v1243, 0.0
  %v1256 = vmax.f32 %v1244, 0.0
  %v1257 = vmax.f32 %v1245, 0.0
  %v1270 = vrot.slane %v1246, 7
  %v1271 = vrot.slane %v1247, 7
  %v1272 = vrot.slane %v1248, 7
  %v1273 = vrot.slane %v1249, 7
  %v1274 = vsel %vm843, %v1270, %v1273
  %v1275 = vrot.slane %v1250, 7
  %v1276 = vsel %vm843, %v1271, %v1275
  %v1277 = vrot.slane %v1251, 7
  %v1278 = vsel %vm843, %v1272, %v1277
  %v1279 = vrot.slane %v1252, 7
  %v1280 = vrot.slane %v1253, 7
  %v1281 = vrot.slane %v1254, 7
  %v1282 = vrot.slane %v1255, 7
  %v1283 = vsel %vm843, %v1279, %v1282
  %v1284 = vrot.slane %v1256, 7
  %v1285 = vsel %vm843, %v1280, %v1284
  %v1286 = vrot.slane %v1257, 7
  %v1287 = vsel %vm843, %v1281, %v1286
  %1306 = vst [vmem:[#allocation2] sm:$0xfe] %v1270
  %1307 = vst [vmem:[#allocation2 + $0x8] sm:$0xfe] %v1271
  %vm1308 = vcmask 261121
  %1309 = vst.msk [vmem:[#allocation2 + $0x10] sm:$0xfe] %vm1308, %v1272
  %1310 = vst [vmem:[#allocation2 + $0x18] sm:$0xff] %v1274
  %1311 = vst [vmem:[#allocation2 + $0x20] sm:$0xff] %v1276
  %1312 = vst.msk [vmem:[#allocation2 + $0x28] sm:$0xff] %vm786, %v1278
  %1313 = vst [vmem:[#allocation2 + $0x30] sm:$0x1] %v1273
  %1314 = vst [vmem:[#allocation2 + $0x38] sm:$0x1] %v1275
  %vm1315 = vcmask 253952
  %1316 = vst.msk [vmem:[#allocation2 + $0x40] sm:$0x1] %vm1315, %v1277
  %1317 = vst [vmem:[#allocation2 + $0x48] sm:$0xfe] %v1279
  %1318 = vst [vmem:[#allocation2 + $0x50] sm:$0xfe] %v1280
  %1319 = vst.msk [vmem:[#allocation2 + $0x58] sm:$0xfe] %vm1308, %v1281
  %1320 = vst [vmem:[#allocation2 + $0x60] sm:$0xff] %v1283
  %1321 = vst [vmem:[#allocation2 + $0x68] sm:$0xff] %v1285
  %1322 = vst.msk [vmem:[#allocation2 + $0x70] sm:$0xff] %vm786, %v1287
  %1323 = vst [vmem:[#allocation2 + $0x78] sm:$0x1] %v1282
  %1324 = vst [vmem:[#allocation2 + $0x80] sm:$0x1] %v1284
  %1325 = vst.msk [vmem:[#allocation2 + $0x88] sm:$0x1] %vm1315, %v1286
  %v1326 = vld [vmem:[#allocation2] sm:$0xff]
  %v1327 = vld [vmem:[#allocation2 + $0x8] sm:$0xff]
  %v1328 = vld [vmem:[#allocation2 + $0x10] sm:$0xff]
  %v1329 = vld [vmem:[#allocation2 + $0x18] sm:$0xff]
  %v1330 = vld [vmem:[#allocation2 + $0x20] sm:$0xff]
  %v1331 = vld [vmem:[#allocation2 + $0x28] sm:$0xff]
  %v1332 = vld [vmem:[#allocation2 + $0x30] sm:$0x3]
  %v1333 = vld [vmem:[#allocation2 + $0x38] sm:$0x3]
  %v1334 = vld [vmem:[#allocation2 + $0x40] sm:$0x3]
  %v1335 = vld [vmem:[#allocation2 + $0x48] sm:$0xff]
  %v1336 = vld [vmem:[#allocation2 + $0x50] sm:$0xff]
  %v1337 = vld [vmem:[#allocation2 + $0x58] sm:$0xff]
  %v1338 = vld [vmem:[#allocation2 + $0x60] sm:$0xff]
  %v1339 = vld [vmem:[#allocation2 + $0x68] sm:$0xff]
  %v1340 = vld [vmem:[#allocation2 + $0x70] sm:$0xff]
  %v1341 = vld [vmem:[#allocation2 + $0x78] sm:$0x3]
  %v1342 = vld [vmem:[#allocation2 + $0x80] sm:$0x3]
  %v1343 = vld [vmem:[#allocation2 + $0x88] sm:$0x3]
  %v1344 = vld [vmem:[%s4] sm:$0xff]
  %v1345 = vld [vmem:[%s4 + $0x8] sm:$0xff]
  %v1346 = vld [vmem:[%s4 + $0x10] sm:$0xff]
  %v1347 = vld [vmem:[%s4 + $0x18] sm:$0xff]
  %v1348 = vld [vmem:[%s4 + $0x20] sm:$0xff]
  %v1349 = vld [vmem:[%s4 + $0x28] sm:$0xff]
  %v1350 = vld [vmem:[%s4 + $0x30] sm:$0xff]
  %v1351 = vld [vmem:[%s4 + $0x38] sm:$0xff]
  %v1352 = vld [vmem:[%s4 + $0x40] sm:$0xff]
  %v1353 = vld [vmem:[%s4 + $0x48] sm:$0xff]
  %v1354 = vld [vmem:[%s4 + $0x50] sm:$0xff]
  %v1355 = vld [vmem:[%s4 + $0x58] sm:$0xff]
  %v1356 = vld [vmem:[%s4 + $0x60] sm:$0xff]
  %v1357 = vld [vmem:[%s4 + $0x68] sm:$0xff]
  %v1358 = vld [vmem:[%s4 + $0x70] sm:$0xff]
  %v1359 = vld [vmem:[%s4 + $0x78] sm:$0xff]
  %v1360 = vld [vmem:[%s4 + $0x80] sm:$0xff]
  %v1361 = vld [vmem:[%s4 + $0x88] sm:$0xff]
  %v1362 = vld [vmem:[%s4 + $0x90] sm:$0xff]
  %v1363 = vld [vmem:[%s4 + $0x98] sm:$0xff]
  %v1364 = vld [vmem:[%s4 + $0xa0] sm:$0xff]
  %v1365 = vld [vmem:[%s4 + $0xa8] sm:$0xff]
  %v1366 = vld [vmem:[%s4 + $0xb0] sm:$0xff]
  %v1367 = vld [vmem:[%s4 + $0xb8] sm:$0xff]
  %v1368 = vld [vmem:[%s4 + $0xc0] sm:$0xff]
  %v1369 = vld [vmem:[%s4 + $0xc8] sm:$0xff]
  %v1370 = vld [vmem:[%s4 + $0xd0] sm:$0xff]
  %v1371 = vld [vmem:[%s4 + $0xd8] sm:$0xff]
  %v1372 = vld [vmem:[%s4 + $0xe0] sm:$0xff]
  %v1373 = vld [vmem:[%s4 + $0xe8] sm:$0xff]
  %v1374 = vld [vmem:[%s4 + $0xf0] sm:$0xff]
  %v1375 = vld [vmem:[%s4 + $0xf8] sm:$0xff]
  %v1376 = vld [vmem:[%s4 + $0x100] sm:$0xff]
  %v1377 = vld [vmem:[%s4 + $0x108] sm:$0xff]
  %v1378 = vld [vmem:[%s4 + $0x110] sm:$0xff]
  %v1379 = vld [vmem:[%s4 + $0x118] sm:$0xff]
  %v1380 = vld [vmem:[%s4 + $0x120] sm:$0xff]
  %v1381 = vld [vmem:[%s4 + $0x128] sm:$0xff]
  %v1382 = vld [vmem:[%s4 + $0x130] sm:$0xff]
  %v1383 = vld [vmem:[%s4 + $0x138] sm:$0xff]
  %v1384 = vld [vmem:[%s4 + $0x140] sm:$0xff]
  %v1385 = vld [vmem:[%s4 + $0x148] sm:$0xff]
  %v1386 = vld [vmem:[%s4 + $0x150] sm:$0xff]
  %v1387 = vld [vmem:[%s4 + $0x158] sm:$0xff]
  %v1388 = vld [vmem:[%s4 + $0x160] sm:$0xff]
  %v1389 = vld [vmem:[%s4 + $0x168] sm:$0xff]
  %v1390 = vld [vmem:[%s4 + $0x170] sm:$0xff]
  %v1391 = vld [vmem:[%s4 + $0x178] sm:$0xff]
  %v1392 = vld [vmem:[%s4 + $0x180] sm:$0xff]
  %v1393 = vld [vmem:[%s4 + $0x188] sm:$0xff]
  %v1394 = vld [vmem:[%s4 + $0x190] sm:$0xff]
  %v1395 = vld [vmem:[%s4 + $0x198] sm:$0xff]
  %v1396 = vld [vmem:[%s4 + $0x1a0] sm:$0xff]
  %v1397 = vld [vmem:[%s4 + $0x1a8] sm:$0xff]
  %v1398 = vld [vmem:[%s4 + $0x1b0] sm:$0xff]
  %v1399 = vld [vmem:[%s4 + $0x1b8] sm:$0xff]
  %v1400 = vld [vmem:[%s4 + $0x1c0] sm:$0xff]
  %v1401 = vld [vmem:[%s4 + $0x1c8] sm:$0xff]
  %v1402 = vld [vmem:[%s4 + $0x1d0] sm:$0xff]
  %v1403 = vld [vmem:[%s4 + $0x1d8] sm:$0xff]
  %v1404 = vld [vmem:[%s4 + $0x1e0] sm:$0xff]
  %v1405 = vld [vmem:[%s4 + $0x1e8] sm:$0xff]
  %v1406 = vld [vmem:[%s4 + $0x1f0] sm:$0xff]
  %v1407 = vld [vmem:[%s4 + $0x1f8] sm:$0xff]
  %v1408 = vld [vmem:[%s4 + $0x200] sm:$0xff]
  %v1409 = vld [vmem:[%s4 + $0x208] sm:$0xff]
  %v1410 = vld [vmem:[%s4 + $0x210] sm:$0xff]
  %v1411 = vld [vmem:[%s4 + $0x218] sm:$0xff]
  %v1412 = vld [vmem:[%s4 + $0x220] sm:$0xff]
  %v1413 = vld [vmem:[%s4 + $0x228] sm:$0xff]
  %v1414 = vld [vmem:[%s4 + $0x230] sm:$0xff]
  %v1415 = vld [vmem:[%s4 + $0x238] sm:$0xff]
  %v1416 = vld [vmem:[%s4 + $0x240] sm:$0xff]
  %v1417 = vld [vmem:[%s4 + $0x248] sm:$0xff]
  %v1418 = vld [vmem:[%s4 + $0x250] sm:$0xff]
  %v1419 = vld [vmem:[%s4 + $0x258] sm:$0xff]
  %v1420 = vld [vmem:[%s4 + $0x260] sm:$0xff]
  %v1421 = vld [vmem:[%s4 + $0x268] sm:$0xff]
  %v1422 = vld [vmem:[%s4 + $0x270] sm:$0xff]
  %v1423 = vld [vmem:[%s4 + $0x278] sm:$0xff]
  %v1424 = vld [vmem:[%s4 + $0x280] sm:$0xff]
  %v1425 = vld [vmem:[%s4 + $0x288] sm:$0xff]
  %v1426 = vld [vmem:[%s4 + $0x290] sm:$0xff]
  %v1427 = vld [vmem:[%s4 + $0x298] sm:$0xff]
  %v1428 = vld [vmem:[%s4 + $0x2a0] sm:$0xff]
  %v1429 = vld [vmem:[%s4 + $0x2a8] sm:$0xff]
  %v1430 = vld [vmem:[%s4 + $0x2b0] sm:$0xff]
  %v1431 = vld [vmem:[%s4 + $0x2b8] sm:$0xff]
  %v1432 = vld [vmem:[%s4 + $0x2c0] sm:$0xff]
  %v1433 = vld [vmem:[%s4 + $0x2c8] sm:$0xff]
  %v1434 = vld [vmem:[%s4 + $0x2d0] sm:$0xff]
  %v1435 = vld [vmem:[%s4 + $0x2d8] sm:$0xff]
  %v1436 = vld [vmem:[%s4 + $0x2e0] sm:$0xff]
  %v1437 = vld [vmem:[%s4 + $0x2e8] sm:$0xff]
  %v1438 = vld [vmem:[%s4 + $0x2f0] sm:$0xff]
  %v1439 = vld [vmem:[%s4 + $0x2f8] sm:$0xff]
  %v1440 = vld [vmem:[%s4 + $0x300] sm:$0xff]
  %v1441 = vld [vmem:[%s4 + $0x308] sm:$0xff]
  %v1442 = vld [vmem:[%s4 + $0x310] sm:$0xff]
  %v1443 = vld [vmem:[%s4 + $0x318] sm:$0xff]
  %v1444 = vld [vmem:[%s4 + $0x320] sm:$0xff]
  %v1445 = vld [vmem:[%s4 + $0x328] sm:$0xff]
  %v1446 = vld [vmem:[%s4 + $0x330] sm:$0xff]
  %v1447 = vld [vmem:[%s4 + $0x338] sm:$0xff]
  %v1448 = vld [vmem:[%s4 + $0x340] sm:$0xff]
  %v1449 = vld [vmem:[%s4 + $0x348] sm:$0xff]
  %v1450 = vld [vmem:[%s4 + $0x350] sm:$0xff]
  %v1451 = vld [vmem:[%s4 + $0x358] sm:$0xff]
  %v1470 = vrot.slane %v1326, 1
  %v1471 = vrot.slane %v1329, 1
  %v1472 = vsel %vm131, %v1470, %v1471
  %v1473 = vrot.slane %v1327, 1
  %v1474 = vrot.slane %v1330, 1
  %v1475 = vsel %vm131, %v1473, %v1474
  %v1476 = vrot.slane %v1328, 1
  %v1477 = vrot.slane %v1331, 1
  %v1478 = vsel %vm131, %v1476, %v1477
  %v1479 = vrot.slane %v1332, 1
  %v1480 = vsel %vm131, %v1471, %v1479
  %v1481 = vrot.slane %v1333, 1
  %v1482 = vsel %vm131, %v1474, %v1481
  %v1483 = vrot.slane %v1334, 1
  %v1484 = vsel %vm131, %v1477, %v1483
  %v1485 = vrot.slane %v1335, 1
  %v1486 = vrot.slane %v1338, 1
  %v1487 = vsel %vm131, %v1485, %v1486
  %v1488 = vrot.slane %v1336, 1
  %v1489 = vrot.slane %v1339, 1
  %v1490 = vsel %vm131, %v1488, %v1489
  %v1491 = vrot.slane %v1337, 1
  %v1492 = vrot.slane %v1340, 1
  %v1493 = vsel %vm131, %v1491, %v1492
  %v1494 = vrot.slane %v1341, 1
  %v1495 = vsel %vm131, %v1486, %v1494
  %v1496 = vrot.slane %v1342, 1
  %v1497 = vsel %vm131, %v1489, %v1496
  %v1498 = vrot.slane %v1343, 1
  %v1499 = vsel %vm131, %v1492, %v1498
  %s1508 = scalar_lea.vmem %s4, 864
  %v1509 = vld [vmem:[%s1508] sm:$0xff]
  %v1510 = vld [vmem:[%s1508 + $0x8] sm:$0xff]
  %v1511 = vld [vmem:[%s1508 + $0x10] sm:$0xff]
  %v1512 = vld [vmem:[%s1508 + $0x18] sm:$0xff]
  %v1513 = vld [vmem:[%s1508 + $0x20] sm:$0xff]
  %v1514 = vld [vmem:[%s1508 + $0x28] sm:$0xff]
  %v1515 = vld [vmem:[%s1508 + $0x30] sm:$0xff]
  %v1516 = vld [vmem:[%s1508 + $0x38] sm:$0xff]
  %v1517 = vld [vmem:[%s1508 + $0x40] sm:$0xff]
  %v1518 = vld [vmem:[%s1508 + $0x48] sm:$0xff]
  %v1519 = vld [vmem:[%s1508 + $0x50] sm:$0xff]
  %v1520 = vld [vmem:[%s1508 + $0x58] sm:$0xff]
  %v1521 = vld [vmem:[%s1508 + $0x60] sm:$0xff]
  %v1522 = vld [vmem:[%s1508 + $0x68] sm:$0xff]
  %v1523 = vld [vmem:[%s1508 + $0x70] sm:$0xff]
  %v1524 = vld [vmem:[%s1508 + $0x78] sm:$0xff]
  %v1525 = vld [vmem:[%s1508 + $0x80] sm:$0xff]
  %v1526 = vld [vmem:[%s1508 + $0x88] sm:$0xff]
  %v1527 = vld [vmem:[%s1508 + $0x90] sm:$0xff]
  %v1528 = vld [vmem:[%s1508 + $0x98] sm:$0xff]
  %v1529 = vld [vmem:[%s1508 + $0xa0] sm:$0xff]
  %v1530 = vld [vmem:[%s1508 + $0xa8] sm:$0xff]
  %v1531 = vld [vmem:[%s1508 + $0xb0] sm:$0xff]
  %v1532 = vld [vmem:[%s1508 + $0xb8] sm:$0xff]
  %v1533 = vld [vmem:[%s1508 + $0xc0] sm:$0xff]
  %v1534 = vld [vmem:[%s1508 + $0xc8] sm:$0xff]
  %v1535 = vld [vmem:[%s1508 + $0xd0] sm:$0xff]
  %v1536 = vld [vmem:[%s1508 + $0xd8] sm:$0xff]
  %v1537 = vld [vmem:[%s1508 + $0xe0] sm:$0xff]
  %v1538 = vld [vmem:[%s1508 + $0xe8] sm:$0xff]
  %v1539 = vld [vmem:[%s1508 + $0xf0] sm:$0xff]
  %v1540 = vld [vmem:[%s1508 + $0xf8] sm:$0xff]
  %v1541 = vld [vmem:[%s1508 + $0x100] sm:$0xff]
  %v1542 = vld [vmem:[%s1508 + $0x108] sm:$0xff]
  %v1543 = vld [vmem:[%s1508 + $0x110] sm:$0xff]
  %v1544 = vld [vmem:[%s1508 + $0x118] sm:$0xff]
  %v1545 = vld [vmem:[%s1508 + $0x120] sm:$0xff]
  %v1546 = vld [vmem:[%s1508 + $0x128] sm:$0xff]
  %v1547 = vld [vmem:[%s1508 + $0x130] sm:$0xff]
  %v1548 = vld [vmem:[%s1508 + $0x138] sm:$0xff]
  %v1549 = vld [vmem:[%s1508 + $0x140] sm:$0xff]
  %v1550 = vld [vmem:[%s1508 + $0x148] sm:$0xff]
  %v1551 = vld [vmem:[%s1508 + $0x150] sm:$0xff]
  %v1552 = vld [vmem:[%s1508 + $0x158] sm:$0xff]
  %v1553 = vld [vmem:[%s1508 + $0x160] sm:$0xff]
  %v1554 = vld [vmem:[%s1508 + $0x168] sm:$0xff]
  %v1555 = vld [vmem:[%s1508 + $0x170] sm:$0xff]
  %v1556 = vld [vmem:[%s1508 + $0x178] sm:$0xff]
  %v1557 = vld [vmem:[%s1508 + $0x180] sm:$0xff]
  %v1558 = vld [vmem:[%s1508 + $0x188] sm:$0xff]
  %v1559 = vld [vmem:[%s1508 + $0x190] sm:$0xff]
  %v1560 = vld [vmem:[%s1508 + $0x198] sm:$0xff]
  %v1561 = vld [vmem:[%s1508 + $0x1a0] sm:$0xff]
  %v1562 = vld [vmem:[%s1508 + $0x1a8] sm:$0xff]
  %v1563 = vld [vmem:[%s1508 + $0x1b0] sm:$0xff]
  %v1564 = vld [vmem:[%s1508 + $0x1b8] sm:$0xff]
  %v1565 = vld [vmem:[%s1508 + $0x1c0] sm:$0xff]
  %v1566 = vld [vmem:[%s1508 + $0x1c8] sm:$0xff]
  %v1567 = vld [vmem:[%s1508 + $0x1d0] sm:$0xff]
  %v1568 = vld [vmem:[%s1508 + $0x1d8] sm:$0xff]
  %v1569 = vld [vmem:[%s1508 + $0x1e0] sm:$0xff]
  %v1570 = vld [vmem:[%s1508 + $0x1e8] sm:$0xff]
  %v1571 = vld [vmem:[%s1508 + $0x1f0] sm:$0xff]
  %v1572 = vld [vmem:[%s1508 + $0x1f8] sm:$0xff]
  %v1573 = vld [vmem:[%s1508 + $0x200] sm:$0xff]
  %v1574 = vld [vmem:[%s1508 + $0x208] sm:$0xff]
  %v1575 = vld [vmem:[%s1508 + $0x210] sm:$0xff]
  %v1576 = vld [vmem:[%s1508 + $0x218] sm:$0xff]
  %v1577 = vld [vmem:[%s1508 + $0x220] sm:$0xff]
  %v1578 = vld [vmem:[%s1508 + $0x228] sm:$0xff]
  %v1579 = vld [vmem:[%s1508 + $0x230] sm:$0xff]
  %v1580 = vld [vmem:[%s1508 + $0x238] sm:$0xff]
  %v1581 = vld [vmem:[%s1508 + $0x240] sm:$0xff]
  %v1582 = vld [vmem:[%s1508 + $0x248] sm:$0xff]
  %v1583 = vld [vmem:[%s1508 + $0x250] sm:$0xff]
  %v1584 = vld [vmem:[%s1508 + $0x258] sm:$0xff]
  %v1585 = vld [vmem:[%s1508 + $0x260] sm:$0xff]
  %v1586 = vld [vmem:[%s1508 + $0x268] sm:$0xff]
  %v1587 = vld [vmem:[%s1508 + $0x270] sm:$0xff]
  %v1588 = vld [vmem:[%s1508 + $0x278] sm:$0xff]
  %v1589 = vld [vmem:[%s1508 + $0x280] sm:$0xff]
  %v1590 = vld [vmem:[%s1508 + $0x288] sm:$0xff]
  %v1591 = vld [vmem:[%s1508 + $0x290] sm:$0xff]
  %v1592 = vld [vmem:[%s1508 + $0x298] sm:$0xff]
  %v1593 = vld [vmem:[%s1508 + $0x2a0] sm:$0xff]
  %v1594 = vld [vmem:[%s1508 + $0x2a8] sm:$0xff]
  %v1595 = vld [vmem:[%s1508 + $0x2b0] sm:$0xff]
  %v1596 = vld [vmem:[%s1508 + $0x2b8] sm:$0xff]
  %v1597 = vld [vmem:[%s1508 + $0x2c0] sm:$0xff]
  %v1598 = vld [vmem:[%s1508 + $0x2c8] sm:$0xff]
  %v1599 = vld [vmem:[%s1508 + $0x2d0] sm:$0xff]
  %v1600 = vld [vmem:[%s1508 + $0x2d8] sm:$0xff]
  %v1601 = vld [vmem:[%s1508 + $0x2e0] sm:$0xff]
  %v1602 = vld [vmem:[%s1508 + $0x2e8] sm:$0xff]
  %v1603 = vld [vmem:[%s1508 + $0x2f0] sm:$0xff]
  %v1604 = vld [vmem:[%s1508 + $0x2f8] sm:$0xff]
  %v1605 = vld [vmem:[%s1508 + $0x300] sm:$0xff]
  %v1606 = vld [vmem:[%s1508 + $0x308] sm:$0xff]
  %v1607 = vld [vmem:[%s1508 + $0x310] sm:$0xff]
  %v1608 = vld [vmem:[%s1508 + $0x318] sm:$0xff]
  %v1609 = vld [vmem:[%s1508 + $0x320] sm:$0xff]
  %v1610 = vld [vmem:[%s1508 + $0x328] sm:$0xff]
  %v1611 = vld [vmem:[%s1508 + $0x330] sm:$0xff]
  %v1612 = vld [vmem:[%s1508 + $0x338] sm:$0xff]
  %v1613 = vld [vmem:[%s1508 + $0x340] sm:$0xff]
  %v1614 = vld [vmem:[%s1508 + $0x348] sm:$0xff]
  %v1615 = vld [vmem:[%s1508 + $0x350] sm:$0xff]
  %v1616 = vld [vmem:[%s1508 + $0x358] sm:$0xff]
  %v1617 = vsel %vm786, %v1478, 0
  %v1619 = vsel %vm786, %v1484, 0
  %v1621 = vsel %vm786, %v1493, 0
  %v1623 = vsel %vm786, %v1499, 0
  %1625 = vmatprep.subr.mxu0 %v1510
  %1626 = vmatpush1.msra.mxu0 %v1509
  %1627 = vmatprep.subr.mxu0 %v1513
  %1628 = vmatpush1.msra.mxu0 %v1512
  %1629 = vmatprep.subr.mxu0 %v1516
  %1630 = vmatpush1.msra.mxu0 %v1515
  %1631 = vmatprep.subr.mxu0 %v1519
  %1632 = vmatpush1.msra.mxu0 %v1518
  %1633 = vmatprep.subr.mxu0 %v1522
  %1634 = vmatpush1.msra.mxu0 %v1521
  %1635 = vmatprep.subr.mxu0 %v1525
  %1636 = vmatpush1.msra.mxu0 %v1524
  %1637 = vmatprep.subr.mxu0 %v1528
  %1638 = vmatpush1.msra.mxu0 %v1527
  %1639 = vmatprep.subr.mxu0 %v1531
  %1640 = vmatpush1.msra.mxu0 %v1530
  %1641 = vmatprep.subr.mxu0 %v1534
  %1642 = vmatpush1.msra.mxu0 %v1533
  %1643 = vmatprep.subr.mxu0 %v1537
  %1644 = vmatpush1.msra.mxu0 %v1536
  %1645 = vmatprep.subr.mxu0 %v1540
  %1646 = vmatpush1.msra.mxu0 %v1539
  %1647 = vmatprep.subr.mxu0 %v1543
  %1648 = vmatpush1.msra.mxu0 %v1542
  %1649 = vmatprep.subr.mxu0 %v1546
  %1650 = vmatpush1.msra.mxu0 %v1545
  %1651 = vmatprep.subr.mxu0 %v1549
  %1652 = vmatpush1.msra.mxu0 %v1548
  %1653 = vmatprep.subr.mxu0 %v1552
  %1654 = vmatpush1.msra.mxu0 %v1551
  %1655 = vmatprep.subr.mxu0 %v1555
  %1656 = vmatpush1.msra.mxu0 %v1554
  %1657 = vmatprep.subr.mxu0 %v1558
  %1658 = vmatpush1.msra.mxu0 %v1557
  %1659 = vmatprep.subr.mxu0 %v1561
  %1660 = vmatpush1.msra.mxu0 %v1560
  %1661 = vmatprep.subr.mxu0 %v1564
  %1662 = vmatpush1.msra.mxu0 %v1563
  %1663 = vmatprep.subr.mxu0 %v1567
  %1664 = vmatpush1.msra.mxu0 %v1566
  %1665 = vmatprep.subr.mxu0 %v1570
  %1666 = vmatpush1.msra.mxu0 %v1569
  %1667 = vmatprep.subr.mxu0 %v1573
  %1668 = vmatpush1.msra.mxu0 %v1572
  %1669 = vmatprep.subr.mxu0 %v1576
  %1670 = vmatpush1.msra.mxu0 %v1575
  %1671 = vmatprep.subr.mxu0 %v1579
  %1672 = vmatpush1.msra.mxu0 %v1578
  %1673 = vmatprep.subr.mxu0 %v1582
  %1674 = vmatpush1.msra.mxu0 %v1581
  %1675 = vmatprep.subr.mxu0 %v1585
  %1676 = vmatpush1.msra.mxu0 %v1584
  %1677 = vmatprep.subr.mxu0 %v1588
  %1678 = vmatpush1.msra.mxu0 %v1587
  %1679 = vmatprep.subr.mxu0 %v1591
  %1680 = vmatpush1.msra.mxu0 %v1590
  %1681 = vmatprep.subr.mxu0 %v1594
  %1682 = vmatpush1.msra.mxu0 %v1593
  %1683 = vmatprep.subr.mxu0 %v1597
  %1684 = vmatpush1.msra.mxu0 %v1596
  %1685 = vmatprep.subr.mxu0 %v1600
  %1686 = vmatpush1.msra.mxu0 %v1599
  %1687 = vmatprep.subr.mxu0 %v1603
  %1688 = vmatpush1.msra.mxu0 %v1602
  %1689 = vmatprep.mubr.f32.mxu0 %v1475
  %1690 = vmatmul.mubr.f32.gmra.mrb[0].mxu0 %v1472
  %v1691 = vpop.f32.mrb[0].mxu0
  %v1692 = vadd.f32 0.0, %v1691
  %v1693 = vpop.f32.mrb[0].mxu0
  %v1694 = vadd.f32 0.0, %v1693
  %1695 = vmatprep.mubr.f32.mxu0 %v1482
  %1696 = vmatmul.mubr.f32.gmra.mrb[0].mxu0 %v1480
  %v1697 = vpop.f32.mrb[0].mxu0
  %v1698 = vadd.f32 0.0, %v1697
  %v1699 = vpop.f32.mrb[0].mxu0
  %v1700 = vadd.f32 0.0, %v1699
  %1701 = vmatprep.mubr.f32.mxu0 %v1490
  %1702 = vmatmul.mubr.f32.gmra.mrb[0].mxu0 %v1487
  %v1703 = vpop.f32.mrb[0].mxu0
  %v1704 = vadd.f32 0.0, %v1703
  %v1705 = vpop.f32.mrb[0].mxu0
  %v1706 = vadd.f32 0.0, %v1705
  %1707 = vmatprep.mubr.f32.mxu0 %v1497
  %1708 = vmatmul.mubr.f32.gmra.mrb[0].mxu0 %v1495
  %v1709 = vpop.f32.mrb[0].mxu0
  %v1710 = vadd.f32 0.0, %v1709
  %v1711 = vpop.f32.mrb[0].mxu0
  %v1712 = vadd.f32 0.0, %v1711
  %1713 = vdwg.mxu0
  %1714 = vmatprep.subr.mxu0 %v1606
  %1715 = vmatpush1.msra.mxu0 %v1605
  %1716 = vmatprep.subr.mxu0 %v1609
  %1717 = vmatpush1.msra.mxu0 %v1608
  %1718 = vmatprep.subr.mxu0 %v1612
  %1719 = vmatpush1.msra.mxu0 %v1611
  %1720 = vmatprep.subr.mxu0 %v1615
  %1721 = vmatpush1.msra.mxu0 %v1614
  %1722 = vmatprep.subr.mxu0 0.0
  %1723 = vmatpush1.msra.mxu0 0.0
  %1724 = vmatprep.subr.mxu0 0.0
  %1725 = vmatpush1.msra.mxu0 0.0
  %1726 = vmatprep.subr.mxu0 0.0
  %1727 = vmatpush1.msra.mxu0 0.0
  %1728 = vmatprep.subr.mxu0 0.0
  %1729 = vmatpush1.msra.mxu0 0.0
  %1730 = vmatprep.subr.mxu0 0.0
  %1731 = vmatpush1.msra.mxu0 0.0
  %1732 = vmatprep.subr.mxu0 0.0
  %1733 = vmatpush1.msra.mxu0 0.0
  %1734 = vmatprep.subr.mxu0 0.0
  %1735 = vmatpush1.msra.mxu0 0.0
  %1736 = vmatprep.subr.mxu0 0.0
  %1737 = vmatpush1.msra.mxu0 0.0
  %1738 = vmatprep.subr.mxu0 0.0
  %1739 = vmatpush1.msra.mxu0 0.0
  %1740 = vmatprep.subr.mxu0 0.0
  %1741 = vmatpush1.msra.mxu0 0.0
  %1742 = vmatprep.subr.mxu0 0.0
  %1743 = vmatpush1.msra.mxu0 0.0
  %1744 = vmatprep.subr.mxu0 0.0
  %1745 = vmatpush1.msra.mxu0 0.0
  %1746 = vmatprep.subr.mxu0 0.0
  %1747 = vmatpush1.msra.mxu0 0.0
  %1748 = vmatprep.subr.mxu0 0.0
  %1749 = vmatpush1.msra.mxu0 0.0
  %1750 = vmatprep.subr.mxu0 0.0
  %1751 = vmatpush1.msra.mxu0 0.0
  %1752 = vmatprep.subr.mxu0 0.0
  %1753 = vmatpush1.msra.mxu0 0.0
  %1754 = vmatprep.subr.mxu0 0.0
  %1755 = vmatpush1.msra.mxu0 0.0
  %1756 = vmatprep.subr.mxu0 0.0
  %1757 = vmatpush1.msra.mxu0 0.0
  %1758 = vmatprep.subr.mxu0 0.0
  %1759 = vmatpush1.msra.mxu0 0.0
  %1760 = vmatprep.subr.mxu0 0.0
  %1761 = vmatpush1.msra.mxu0 0.0
  %1762 = vmatprep.subr.mxu0 0.0
  %1763 = vmatpush1.msra.mxu0 0.0
  %1764 = vmatprep.subr.mxu0 0.0
  %1765 = vmatpush1.msra.mxu0 0.0
  %1766 = vmatprep.subr.mxu0 0.0
  %1767 = vmatpush1.msra.mxu0 0.0
  %1768 = vmatprep.subr.mxu0 0.0
  %1769 = vmatpush1.msra.mxu0 0.0
  %1770 = vmatprep.subr.mxu0 0.0
  %1771 = vmatpush1.msra.mxu0 0.0
  %1772 = vmatprep.subr.mxu0 0.0
  %1773 = vmatpush1.msra.mxu0 0.0
  %1774 = vmatprep.subr.mxu0 0.0
  %1775 = vmatpush1.msra.mxu0 0.0
  %1776 = vmatprep.subr.mxu0 0.0
  %1777 = vmatpush1.msra.mxu0 0.0
  %1778 = vmatprep.mubr.f32.mxu0 0.0
  %1779 = vmatmul.mubr.f32.gmra.mrb[0].mxu0 %v1617
  %v1780 = vpop.f32.mrb[0].mxu0
  %v1781 = vadd.f32 %v1692, %v1780
  %v1782 = vpop.f32.mrb[0].mxu0
  %v1783 = vadd.f32 %v1694, %v1782
  %1784 = vmatprep.mubr.f32.mxu0 0.0
  %1785 = vmatmul.mubr.f32.gmra.mrb[0].mxu0 %v1619
  %v1786 = vpop.f32.mrb[0].mxu0
  %v1787 = vadd.f32 %v1698, %v1786
  %v1788 = vpop.f32.mrb[0].mxu0
  %v1789 = vadd.f32 %v1700, %v1788
  %1790 = vmatprep.mubr.f32.mxu0 0.0
  %1791 = vmatmul.mubr.f32.gmra.mrb[0].mxu0 %v1621
  %v1792 = vpop.f32.mrb[0].mxu0
  %v1793 = vadd.f32 %v1704, %v1792
  %v1794 = vpop.f32.mrb[0].mxu0
  %v1795 = vadd.f32 %v1706, %v1794
  %1796 = vmatprep.mubr.f32.mxu0 0.0
  %1797 = vmatmul.mubr.f32.gmra.mrb[0].mxu0 %v1623
  %v1798 = vpop.f32.mrb[0].mxu0
  %v1799 = vadd.f32 %v1710, %v1798
  %v1800 = vpop.f32.mrb[0].mxu0
  %v1801 = vadd.f32 %v1712, %v1800
  %1802 = vdwg.mxu0
  %1803 = vmatprep.subr.mxu0 0.0
  %1804 = vmatpush1.msra.mxu0 %v1511
  %1805 = vmatprep.subr.mxu0 0.0
  %1806 = vmatpush1.msra.mxu0 %v1514
  %1807 = vmatprep.subr.mxu0 0.0
  %1808 = vmatpush1.msra.mxu0 %v1517
  %1809 = vmatprep.subr.mxu0 0.0
  %1810 = vmatpush1.msra.mxu0 %v1520
  %1811 = vmatprep.subr.mxu0 0.0
  %1812 = vmatpush1.msra.mxu0 %v1523
  %1813 = vmatprep.subr.mxu0 0.0
  %1814 = vmatpush1.msra.mxu0 %v1526
  %1815 = vmatprep.subr.mxu0 0.0
  %1816 = vmatpush1.msra.mxu0 %v1529
  %1817 = vmatprep.subr.mxu0 0.0
  %1818 = vmatpush1.msra.mxu0 %v1532
  %1819 = vmatprep.subr.mxu0 0.0
  %1820 = vmatpush1.msra.mxu0 %v1535
  %1821 = vmatprep.subr.mxu0 0.0
  %1822 = vmatpush1.msra.mxu0 %v1538
  %1823 = vmatprep.subr.mxu0 0.0
  %1824 = vmatpush1.msra.mxu0 %v1541
  %1825 = vmatprep.subr.mxu0 0.0
  %1826 = vmatpush1.msra.mxu0 %v1544
  %1827 = vmatprep.subr.mxu0 0.0
  %1828 = vmatpush1.msra.mxu0 %v1547
  %1829 = vmatprep.subr.mxu0 0.0
  %1830 = vmatpush1.msra.mxu0 %v1550
  %1831 = vmatprep.subr.mxu0 0.0
  %1832 = vmatpush1.msra.mxu0 %v1553
  %1833 = vmatprep.subr.mxu0 0.0
  %1834 = vmatpush1.msra.mxu0 %v1556
  %1835 = vmatprep.subr.mxu0 0.0
  %1836 = vmatpush1.msra.mxu0 %v1559
  %1837 = vmatprep.subr.mxu0 0.0
  %1838 = vmatpush1.msra.mxu0 %v1562
  %1839 = vmatprep.subr.mxu0 0.0
  %1840 = vmatpush1.msra.mxu0 %v1565
  %1841 = vmatprep.subr.mxu0 0.0
  %1842 = vmatpush1.msra.mxu0 %v1568
  %1843 = vmatprep.subr.mxu0 0.0
  %1844 = vmatpush1.msra.mxu0 %v1571
  %1845 = vmatprep.subr.mxu0 0.0
  %1846 = vmatpush1.msra.mxu0 %v1574
  %1847 = vmatprep.subr.mxu0 0.0
  %1848 = vmatpush1.msra.mxu0 %v1577
  %1849 = vmatprep.subr.mxu0 0.0
  %1850 = vmatpush1.msra.mxu0 %v1580
  %1851 = vmatprep.subr.mxu0 0.0
  %1852 = vmatpush1.msra.mxu0 %v1583
  %1853 = vmatprep.subr.mxu0 0.0
  %1854 = vmatpush1.msra.mxu0 %v1586
  %1855 = vmatprep.subr.mxu0 0.0
  %1856 = vmatpush1.msra.mxu0 %v1589
  %1857 = vmatprep.subr.mxu0 0.0
  %1858 = vmatpush1.msra.mxu0 %v1592
  %1859 = vmatprep.subr.mxu0 0.0
  %1860 = vmatpush1.msra.mxu0 %v1595
  %1861 = vmatprep.subr.mxu0 0.0
  %1862 = vmatpush1.msra.mxu0 %v1598
  %1863 = vmatprep.subr.mxu0 0.0
  %1864 = vmatpush1.msra.mxu0 %v1601
  %1865 = vmatprep.subr.mxu0 0.0
  %1866 = vmatpush1.msra.mxu0 %v1604
  %1867 = vmatprep.mubr.f32.mxu0 %v1475
  %1868 = vmatmul.mubr.f32.gmra.mrb[0].mxu0 %v1472
  %v1869 = vpop.f32.mrb[0].mxu0
  %v1870 = vadd.f32 0.0, %v1869
  %v1871 = vpop.f32.mrb[0].mxu0
  %1872 = vmatprep.mubr.f32.mxu0 %v1482
  %1873 = vmatmul.mubr.f32.gmra.mrb[0].mxu0 %v1480
  %v1874 = vpop.f32.mrb[0].mxu0
  %v1875 = vadd.f32 0.0, %v1874
  %v1876 = vpop.f32.mrb[0].mxu0
  %1877 = vmatprep.mubr.f32.mxu0 %v1490
  %1878 = vmatmul.mubr.f32.gmra.mrb[0].mxu0 %v1487
  %v1879 = vpop.f32.mrb[0].mxu0
  %v1880 = vadd.f32 0.0, %v1879
  %v1881 = vpop.f32.mrb[0].mxu0
  %1882 = vmatprep.mubr.f32.mxu0 %v1497
  %1883 = vmatmul.mubr.f32.gmra.mrb[0].mxu0 %v1495
  %v1884 = vpop.f32.mrb[0].mxu0
  %v1885 = vadd.f32 0.0, %v1884
  %v1886 = vpop.f32.mrb[0].mxu0
  %1887 = vdwg.mxu0
  %1888 = vmatprep.subr.mxu0 0.0
  %1889 = vmatpush1.msra.mxu0 %v1607
  %1890 = vmatprep.subr.mxu0 0.0
  %1891 = vmatpush1.msra.mxu0 %v1610
  %1892 = vmatprep.subr.mxu0 0.0
  %1893 = vmatpush1.msra.mxu0 %v1613
  %1894 = vmatprep.subr.mxu0 0.0
  %1895 = vmatpush1.msra.mxu0 %v1616
  %1896 = vmatprep.subr.mxu0 0.0
  %1897 = vmatpush1.msra.mxu0 0.0
  %1898 = vmatprep.subr.mxu0 0.0
  %1899 = vmatpush1.msra.mxu0 0.0
  %1900 = vmatprep.subr.mxu0 0.0
  %1901 = vmatpush1.msra.mxu0 0.0
  %1902 = vmatprep.subr.mxu0 0.0
  %1903 = vmatpush1.msra.mxu0 0.0
  %1904 = vmatprep.subr.mxu0 0.0
  %1905 = vmatpush1.msra.mxu0 0.0
  %1906 = vmatprep.subr.mxu0 0.0
  %1907 = vmatpush1.msra.mxu0 0.0
  %1908 = vmatprep.subr.mxu0 0.0
  %1909 = vmatpush1.msra.mxu0 0.0
  %1910 = vmatprep.subr.mxu0 0.0
  %1911 = vmatpush1.msra.mxu0 0.0
  %1912 = vmatprep.subr.mxu0 0.0
  %1913 = vmatpush1.msra.mxu0 0.0
  %1914 = vmatprep.subr.mxu0 0.0
  %1915 = vmatpush1.msra.mxu0 0.0
  %1916 = vmatprep.subr.mxu0 0.0
  %1917 = vmatpush1.msra.mxu0 0.0
  %1918 = vmatprep.subr.mxu0 0.0
  %1919 = vmatpush1.msra.mxu0 0.0
  %1920 = vmatprep.subr.mxu0 0.0
  %1921 = vmatpush1.msra.mxu0 0.0
  %1922 = vmatprep.subr.mxu0 0.0
  %1923 = vmatpush1.msra.mxu0 0.0
  %1924 = vmatprep.subr.mxu0 0.0
  %1925 = vmatpush1.msra.mxu0 0.0
  %1926 = vmatprep.subr.mxu0 0.0
  %1927 = vmatpush1.msra.mxu0 0.0
  %1928 = vmatprep.subr.mxu0 0.0
  %1929 = vmatpush1.msra.mxu0 0.0
  %1930 = vmatprep.subr.mxu0 0.0
  %1931 = vmatpush1.msra.mxu0 0.0
  %1932 = vmatprep.subr.mxu0 0.0
  %1933 = vmatpush1.msra.mxu0 0.0
  %1934 = vmatprep.subr.mxu0 0.0
  %1935 = vmatpush1.msra.mxu0 0.0
  %1936 = vmatprep.subr.mxu0 0.0
  %1937 = vmatpush1.msra.mxu0 0.0
  %1938 = vmatprep.subr.mxu0 0.0
  %1939 = vmatpush1.msra.mxu0 0.0
  %1940 = vmatprep.subr.mxu0 0.0
  %1941 = vmatpush1.msra.mxu0 0.0
  %1942 = vmatprep.subr.mxu0 0.0
  %1943 = vmatpush1.msra.mxu0 0.0
  %1944 = vmatprep.subr.mxu0 0.0
  %1945 = vmatpush1.msra.mxu0 0.0
  %1946 = vmatprep.subr.mxu0 0.0
  %1947 = vmatpush1.msra.mxu0 0.0
  %1948 = vmatprep.subr.mxu0 0.0
  %1949 = vmatpush1.msra.mxu0 0.0
  %1950 = vmatprep.subr.mxu0 0.0
  %1951 = vmatpush1.msra.mxu0 0.0
  %1952 = vmatprep.mubr.f32.mxu0 0.0
  %1953 = vmatmul.mubr.f32.gmra.mrb[0].mxu0 %v1617
  %v1954 = vpop.f32.mrb[0].mxu0
  %v1955 = vadd.f32 %v1870, %v1954
  %v1956 = vpop.f32.mrb[0].mxu0
  %1957 = vmatprep.mubr.f32.mxu0 0.0
  %1958 = vmatmul.mubr.f32.gmra.mrb[0].mxu0 %v1619
  %v1959 = vpop.f32.mrb[0].mxu0
  %v1960 = vadd.f32 %v1875, %v1959
  %v1961 = vpop.f32.mrb[0].mxu0
  %1962 = vmatprep.mubr.f32.mxu0 0.0
  %1963 = vmatmul.mubr.f32.gmra.mrb[0].mxu0 %v1621
  %v1964 = vpop.f32.mrb[0].mxu0
  %v1965 = vadd.f32 %v1880, %v1964
  %v1966 = vpop.f32.mrb[0].mxu0
  %1967 = vmatprep.mubr.f32.mxu0 0.0
  %1968 = vmatmul.mubr.f32.gmra.mrb[0].mxu0 %v1623
  %v1969 = vpop.f32.mrb[0].mxu0
  %v1970 = vadd.f32 %v1885, %v1969
  %v1971 = vpop.f32.mrb[0].mxu0
  %1972 = vdwg.mxu0
  %v1973 = vsel %vm786, %v1328, 0
  %v1975 = vsel %vm786, %v1331, 0
  %v1977 = vsel %vm786, %v1337, 0
  %v1979 = vsel %vm786, %v1340, 0
  %1981 = vmatprep.subr.mxu0 %v1345
  %1982 = vmatpush1.msra.mxu0 %v1344
  %1983 = vmatprep.subr.mxu0 %v1348
  %1984 = vmatpush1.msra.mxu0 %v1347
  %1985 = vmatprep.subr.mxu0 %v1351
  %1986 = vmatpush1.msra.mxu0 %v1350
  %1987 = vmatprep.subr.mxu0 %v1354
  %1988 = vmatpush1.msra.mxu0 %v1353
  %1989 = vmatprep.subr.mxu0 %v1357
  %1990 = vmatpush1.msra.mxu0 %v1356
  %1991 = vmatprep.subr.mxu0 %v1360
  %1992 = vmatpush1.msra.mxu0 %v1359
  %1993 = vmatprep.subr.mxu0 %v1363
  %1994 = vmatpush1.msra.mxu0 %v1362
  %1995 = vmatprep.subr.mxu0 %v1366
  %1996 = vmatpush1.msra.mxu0 %v1365
  %1997 = vmatprep.subr.mxu0 %v1369
  %1998 = vmatpush1.msra.mxu0 %v1368
  %1999 = vmatprep.subr.mxu0 %v1372
  %2000 = vmatpush1.msra.mxu0 %v1371
  %2001 = vmatprep.subr.mxu0 %v1375
  %2002 = vmatpush1.msra.mxu0 %v1374
  %2003 = vmatprep.subr.mxu0 %v1378
  %2004 = vmatpush1.msra.mxu0 %v1377
  %2005 = vmatprep.subr.mxu0 %v1381
  %2006 = vmatpush1.msra.mxu0 %v1380
  %2007 = vmatprep.subr.mxu0 %v1384
  %2008 = vmatpush1.msra.mxu0 %v1383
  %2009 = vmatprep.subr.mxu0 %v1387
  %2010 = vmatpush1.msra.mxu0 %v1386
  %2011 = vmatprep.subr.mxu0 %v1390
  %2012 = vmatpush1.msra.mxu0 %v1389
  %2013 = vmatprep.subr.mxu0 %v1393
  %2014 = vmatpush1.msra.mxu0 %v1392
  %2015 = vmatprep.subr.mxu0 %v1396
  %2016 = vmatpush1.msra.mxu0 %v1395
  %2017 = vmatprep.subr.mxu0 %v1399
  %2018 = vmatpush1.msra.mxu0 %v1398
  %2019 = vmatprep.subr.mxu0 %v1402
  %2020 = vmatpush1.msra.mxu0 %v1401
  %2021 = vmatprep.subr.mxu0 %v1405
  %2022 = vmatpush1.msra.mxu0 %v1404
  %2023 = vmatprep.subr.mxu0 %v1408
  %2024 = vmatpush1.msra.mxu0 %v1407
  %2025 = vmatprep.subr.mxu0 %v1411
  %2026 = vmatpush1.msra.mxu0 %v1410
  %2027 = vmatprep.subr.mxu0 %v1414
  %2028 = vmatpush1.msra.mxu0 %v1413
  %2029 = vmatprep.subr.mxu0 %v1417
  %2030 = vmatpush1.msra.mxu0 %v1416
  %2031 = vmatprep.subr.mxu0 %v1420
  %2032 = vmatpush1.msra.mxu0 %v1419
  %2033 = vmatprep.subr.mxu0 %v1423
  %2034 = vmatpush1.msra.mxu0 %v1422
  %2035 = vmatprep.subr.mxu0 %v1426
  %2036 = vmatpush1.msra.mxu0 %v1425
  %2037 = vmatprep.subr.mxu0 %v1429
  %2038 = vmatpush1.msra.mxu0 %v1428
  %2039 = vmatprep.subr.mxu0 %v1432
  %2040 = vmatpush1.msra.mxu0 %v1431
  %2041 = vmatprep.subr.mxu0 %v1435
  %2042 = vmatpush1.msra.mxu0 %v1434
  %2043 = vmatprep.subr.mxu0 %v1438
  %2044 = vmatpush1.msra.mxu0 %v1437
  %2045 = vmatprep.mubr.f32.mxu0 %v1327
  %2046 = vmatmul.mubr.f32.gmra.mrb[0].mxu0 %v1326
  %v2047 = vpop.f32.mrb[0].mxu0
  %v2048 = vadd.f32 %v1781, %v2047
  %v2049 = vpop.f32.mrb[0].mxu0
  %v2050 = vadd.f32 %v1783, %v2049
  %2051 = vmatprep.mubr.f32.mxu0 %v1330
  %2052 = vmatmul.mubr.f32.gmra.mrb[0].mxu0 %v1329
  %v2053 = vpop.f32.mrb[0].mxu0
  %v2054 = vadd.f32 %v1787, %v2053
  %v2055 = vpop.f32.mrb[0].mxu0
  %v2056 = vadd.f32 %v1789, %v2055
  %2057 = vmatprep.mubr.f32.mxu0 %v1336
  %2058 = vmatmul.mubr.f32.gmra.mrb[0].mxu0 %v1335
  %v2059 = vpop.f32.mrb[0].mxu0
  %v2060 = vadd.f32 %v1793, %v2059
  %v2061 = vpop.f32.mrb[0].mxu0
  %v2062 = vadd.f32 %v1795, %v2061
  %2063 = vmatprep.mubr.f32.mxu0 %v1339
  %2064 = vmatmul.mubr.f32.gmra.mrb[0].mxu0 %v1338
  %v2065 = vpop.f32.mrb[0].mxu0
  %v2066 = vadd.f32 %v1799, %v2065
  %v2067 = vpop.f32.mrb[0].mxu0
  %v2068 = vadd.f32 %v1801, %v2067
  %2069 = vdwg.mxu0
  %2070 = vmatprep.subr.mxu0 %v1441
  %2071 = vmatpush1.msra.mxu0 %v1440
  %2072 = vmatprep.subr.mxu0 %v1444
  %2073 = vmatpush1.msra.mxu0 %v1443
  %2074 = vmatprep.subr.mxu0 %v1447
  %2075 = vmatpush1.msra.mxu0 %v1446
  %2076 = vmatprep.subr.mxu0 %v1450
  %2077 = vmatpush1.msra.mxu0 %v1449
  %2078 = vmatprep.subr.mxu0 0.0
  %2079 = vmatpush1.msra.mxu0 0.0
  %2080 = vmatprep.subr.mxu0 0.0
  %2081 = vmatpush1.msra.mxu0 0.0
  %2082 = vmatprep.subr.mxu0 0.0
  %2083 = vmatpush1.msra.mxu0 0.0
  %2084 = vmatprep.subr.mxu0 0.0
  %2085 = vmatpush1.msra.mxu0 0.0
  %2086 = vmatprep.subr.mxu0 0.0
  %2087 = vmatpush1.msra.mxu0 0.0
  %2088 = vmatprep.subr.mxu0 0.0
  %2089 = vmatpush1.msra.mxu0 0.0
  %2090 = vmatprep.subr.mxu0 0.0
  %2091 = vmatpush1.msra.mxu0 0.0
  %2092 = vmatprep.subr.mxu0 0.0
  %2093 = vmatpush1.msra.mxu0 0.0
  %2094 = vmatprep.subr.mxu0 0.0
  %2095 = vmatpush1.msra.mxu0 0.0
  %2096 = vmatprep.subr.mxu0 0.0
  %2097 = vmatpush1.msra.mxu0 0.0
  %2098 = vmatprep.subr.mxu0 0.0
  %2099 = vmatpush1.msra.mxu0 0.0
  %2100 = vmatprep.subr.mxu0 0.0
  %2101 = vmatpush1.msra.mxu0 0.0
  %2102 = vmatprep.subr.mxu0 0.0
  %2103 = vmatpush1.msra.mxu0 0.0
  %2104 = vmatprep.subr.mxu0 0.0
  %2105 = vmatpush1.msra.mxu0 0.0
  %2106 = vmatprep.subr.mxu0 0.0
  %2107 = vmatpush1.msra.mxu0 0.0
  %2108 = vmatprep.subr.mxu0 0.0
  %2109 = vmatpush1.msra.mxu0 0.0
  %2110 = vmatprep.subr.mxu0 0.0
  %2111 = vmatpush1.msra.mxu0 0.0
  %2112 = vmatprep.subr.mxu0 0.0
  %2113 = vmatpush1.msra.mxu0 0.0
  %2114 = vmatprep.subr.mxu0 0.0
  %2115 = vmatpush1.msra.mxu0 0.0
  %2116 = vmatprep.subr.mxu0 0.0
  %2117 = vmatpush1.msra.mxu0 0.0
  %2118 = vmatprep.subr.mxu0 0.0
  %2119 = vmatpush1.msra.mxu0 0.0
  %2120 = vmatprep.subr.mxu0 0.0
  %2121 = vmatpush1.msra.mxu0 0.0
  %2122 = vmatprep.subr.mxu0 0.0
  %2123 = vmatpush1.msra.mxu0 0.0
  %2124 = vmatprep.subr.mxu0 0.0
  %2125 = vmatpush1.msra.mxu0 0.0
  %2126 = vmatprep.subr.mxu0 0.0
  %2127 = vmatpush1.msra.mxu0 0.0
  %2128 = vmatprep.subr.mxu0 0.0
  %2129 = vmatpush1.msra.mxu0 0.0
  %2130 = vmatprep.subr.mxu0 0.0
  %2131 = vmatpush1.msra.mxu0 0.0
  %2132 = vmatprep.subr.mxu0 0.0
  %2133 = vmatpush1.msra.mxu0 0.0
  %2134 = vmatprep.mubr.f32.mxu0 0.0
  %2135 = vmatmul.mubr.f32.gmra.mrb[0].mxu0 %v1973
  %v2136 = vpop.f32.mrb[0].mxu0
  %v2137 = vadd.f32 %v2048, %v2136
  %v2138 = vpop.f32.mrb[0].mxu0
  %v2139 = vadd.f32 %v2050, %v2138
  %2140 = vmatprep.mubr.f32.mxu0 0.0
  %2141 = vmatmul.mubr.f32.gmra.mrb[0].mxu0 %v1975
  %v2142 = vpop.f32.mrb[0].mxu0
  %v2143 = vadd.f32 %v2054, %v2142
  %v2144 = vpop.f32.mrb[0].mxu0
  %v2145 = vadd.f32 %v2056, %v2144
  %2146 = vmatprep.mubr.f32.mxu0 0.0
  %2147 = vmatmul.mubr.f32.gmra.mrb[0].mxu0 %v1977
  %v2148 = vpop.f32.mrb[0].mxu0
  %v2149 = vadd.f32 %v2060, %v2148
  %v2150 = vpop.f32.mrb[0].mxu0
  %v2151 = vadd.f32 %v2062, %v2150
  %2152 = vmatprep.mubr.f32.mxu0 0.0
  %2153 = vmatmul.mubr.f32.gmra.mrb[0].mxu0 %v1979
  %v2154 = vpop.f32.mrb[0].mxu0
  %v2155 = vadd.f32 %v2066, %v2154
  %v2156 = vpop.f32.mrb[0].mxu0
  %v2157 = vadd.f32 %v2068, %v2156
  %2158 = vdwg.mxu0
  %2159 = vmatprep.subr.mxu0 0.0
  %2160 = vmatpush1.msra.mxu0 %v1346
  %2161 = vmatprep.subr.mxu0 0.0
  %2162 = vmatpush1.msra.mxu0 %v1349
  %2163 = vmatprep.subr.mxu0 0.0
  %2164 = vmatpush1.msra.mxu0 %v1352
  %2165 = vmatprep.subr.mxu0 0.0
  %2166 = vmatpush1.msra.mxu0 %v1355
  %2167 = vmatprep.subr.mxu0 0.0
  %2168 = vmatpush1.msra.mxu0 %v1358
  %2169 = vmatprep.subr.mxu0 0.0
  %2170 = vmatpush1.msra.mxu0 %v1361
  %2171 = vmatprep.subr.mxu0 0.0
  %2172 = vmatpush1.msra.mxu0 %v1364
  %2173 = vmatprep.subr.mxu0 0.0
  %2174 = vmatpush1.msra.mxu0 %v1367
  %2175 = vmatprep.subr.mxu0 0.0
  %2176 = vmatpush1.msra.mxu0 %v1370
  %2177 = vmatprep.subr.mxu0 0.0
  %2178 = vmatpush1.msra.mxu0 %v1373
  %2179 = vmatprep.subr.mxu0 0.0
  %2180 = vmatpush1.msra.mxu0 %v1376
  %2181 = vmatprep.subr.mxu0 0.0
  %2182 = vmatpush1.msra.mxu0 %v1379
  %2183 = vmatprep.subr.mxu0 0.0
  %2184 = vmatpush1.msra.mxu0 %v1382
  %2185 = vmatprep.subr.mxu0 0.0
  %2186 = vmatpush1.msra.mxu0 %v1385
  %2187 = vmatprep.subr.mxu0 0.0
  %2188 = vmatpush1.msra.mxu0 %v1388
  %2189 = vmatprep.subr.mxu0 0.0
  %2190 = vmatpush1.msra.mxu0 %v1391
  %2191 = vmatprep.subr.mxu0 0.0
  %2192 = vmatpush1.msra.mxu0 %v1394
  %2193 = vmatprep.subr.mxu0 0.0
  %2194 = vmatpush1.msra.mxu0 %v1397
  %2195 = vmatprep.subr.mxu0 0.0
  %2196 = vmatpush1.msra.mxu0 %v1400
  %2197 = vmatprep.subr.mxu0 0.0
  %2198 = vmatpush1.msra.mxu0 %v1403
  %2199 = vmatprep.subr.mxu0 0.0
  %2200 = vmatpush1.msra.mxu0 %v1406
  %2201 = vmatprep.subr.mxu0 0.0
  %2202 = vmatpush1.msra.mxu0 %v1409
  %2203 = vmatprep.subr.mxu0 0.0
  %2204 = vmatpush1.msra.mxu0 %v1412
  %2205 = vmatprep.subr.mxu0 0.0
  %2206 = vmatpush1.msra.mxu0 %v1415
  %2207 = vmatprep.subr.mxu0 0.0
  %2208 = vmatpush1.msra.mxu0 %v1418
  %2209 = vmatprep.subr.mxu0 0.0
  %2210 = vmatpush1.msra.mxu0 %v1421
  %2211 = vmatprep.subr.mxu0 0.0
  %2212 = vmatpush1.msra.mxu0 %v1424
  %2213 = vmatprep.subr.mxu0 0.0
  %2214 = vmatpush1.msra.mxu0 %v1427
  %2215 = vmatprep.subr.mxu0 0.0
  %2216 = vmatpush1.msra.mxu0 %v1430
  %2217 = vmatprep.subr.mxu0 0.0
  %2218 = vmatpush1.msra.mxu0 %v1433
  %2219 = vmatprep.subr.mxu0 0.0
  %2220 = vmatpush1.msra.mxu0 %v1436
  %2221 = vmatprep.subr.mxu0 0.0
  %2222 = vmatpush1.msra.mxu0 %v1439
  %2223 = vmatprep.mubr.f32.mxu0 %v1327
  %2224 = vmatmul.mubr.f32.gmra.mrb[0].mxu0 %v1326
  %v2225 = vpop.f32.mrb[0].mxu0
  %v2226 = vadd.f32 %v1955, %v2225
  %v2227 = vpop.f32.mrb[0].mxu0
  %2228 = vmatprep.mubr.f32.mxu0 %v1330
  %2229 = vmatmul.mubr.f32.gmra.mrb[0].mxu0 %v1329
  %v2230 = vpop.f32.mrb[0].mxu0
  %v2231 = vadd.f32 %v1960, %v2230
  %v2232 = vpop.f32.mrb[0].mxu0
  %2233 = vmatprep.mubr.f32.mxu0 %v1336
  %2234 = vmatmul.mubr.f32.gmra.mrb[0].mxu0 %v1335
  %v2235 = vpop.f32.mrb[0].mxu0
  %v2236 = vadd.f32 %v1965, %v2235
  %v2237 = vpop.f32.mrb[0].mxu0
  %2238 = vmatprep.mubr.f32.mxu0 %v1339
  %2239 = vmatmul.mubr.f32.gmra.mrb[0].mxu0 %v1338
  %v2240 = vpop.f32.mrb[0].mxu0
  %v2241 = vadd.f32 %v1970, %v2240
  %v2242 = vpop.f32.mrb[0].mxu0
  %2243 = vdwg.mxu0
  %2244 = vmatprep.subr.mxu0 0.0
  %2245 = vmatpush1.msra.mxu0 %v1442
  %2246 = vmatprep.subr.mxu0 0.0
  %2247 = vmatpush1.msra.mxu0 %v1445
  %2248 = vmatprep.subr.mxu0 0.0
  %2249 = vmatpush1.msra.mxu0 %v1448
  %2250 = vmatprep.subr.mxu0 0.0
  %2251 = vmatpush1.msra.mxu0 %v1451
  %2252 = vmatprep.subr.mxu0 0.0
  %2253 = vmatpush1.msra.mxu0 0.0
  %2254 = vmatprep.subr.mxu0 0.0
  %2255 = vmatpush1.msra.mxu0 0.0
  %2256 = vmatprep.subr.mxu0 0.0
  %2257 = vmatpush1.msra.mxu0 0.0
  %2258 = vmatprep.subr.mxu0 0.0
  %2259 = vmatpush1.msra.mxu0 0.0
  %2260 = vmatprep.subr.mxu0 0.0
  %2261 = vmatpush1.msra.mxu0 0.0
  %2262 = vmatprep.subr.mxu0 0.0
  %2263 = vmatpush1.msra.mxu0 0.0
  %2264 = vmatprep.subr.mxu0 0.0
  %2265 = vmatpush1.msra.mxu0 0.0
  %2266 = vmatprep.subr.mxu0 0.0
  %2267 = vmatpush1.msra.mxu0 0.0
  %2268 = vmatprep.subr.mxu0 0.0
  %2269 = vmatpush1.msra.mxu0 0.0
  %2270 = vmatprep.subr.mxu0 0.0
  %2271 = vmatpush1.msra.mxu0 0.0
  %2272 = vmatprep.subr.mxu0 0.0
  %2273 = vmatpush1.msra.mxu0 0.0
  %2274 = vmatprep.subr.mxu0 0.0
  %2275 = vmatpush1.msra.mxu0 0.0
  %2276 = vmatprep.subr.mxu0 0.0
  %2277 = vmatpush1.msra.mxu0 0.0
  %2278 = vmatprep.subr.mxu0 0.0
  %2279 = vmatpush1.msra.mxu0 0.0
  %2280 = vmatprep.subr.mxu0 0.0
  %2281 = vmatpush1.msra.mxu0 0.0
  %2282 = vmatprep.subr.mxu0 0.0
  %2283 = vmatpush1.msra.mxu0 0.0
  %2284 = vmatprep.subr.mxu0 0.0
  %2285 = vmatpush1.msra.mxu0 0.0
  %2286 = vmatprep.subr.mxu0 0.0
  %2287 = vmatpush1.msra.mxu0 0.0
  %2288 = vmatprep.subr.mxu0 0.0
  %2289 = vmatpush1.msra.mxu0 0.0
  %2290 = vmatprep.subr.mxu0 0.0
  %2291 = vmatpush1.msra.mxu0 0.0
  %2292 = vmatprep.subr.mxu0 0.0
  %2293 = vmatpush1.msra.mxu0 0.0
  %2294 = vmatprep.subr.mxu0 0.0
  %2295 = vmatpush1.msra.mxu0 0.0
  %2296 = vmatprep.subr.mxu0 0.0
  %2297 = vmatpush1.msra.mxu0 0.0
  %2298 = vmatprep.subr.mxu0 0.0
  %2299 = vmatpush1.msra.mxu0 0.0
  %2300 = vmatprep.subr.mxu0 0.0
  %2301 = vmatpush1.msra.mxu0 0.0
  %2302 = vmatprep.subr.mxu0 0.0
  %2303 = vmatpush1.msra.mxu0 0.0
  %2304 = vmatprep.subr.mxu0 0.0
  %2305 = vmatpush1.msra.mxu0 0.0
  %2306 = vmatprep.subr.mxu0 0.0
  %2307 = vmatpush1.msra.mxu0 0.0
  %2308 = vmatprep.mubr.f32.mxu0 0.0
  %2309 = vmatmul.mubr.f32.gmra.mrb[0].mxu0 %v1973
  %v2310 = vpop.f32.mrb[0].mxu0
  %v2311 = vadd.f32 %v2226, %v2310
  %v2312 = vpop.f32.mrb[0].mxu0
  %2313 = vmatprep.mubr.f32.mxu0 0.0
  %2314 = vmatmul.mubr.f32.gmra.mrb[0].mxu0 %v1975
  %v2315 = vpop.f32.mrb[0].mxu0
  %v2316 = vadd.f32 %v2231, %v2315
  %v2317 = vpop.f32.mrb[0].mxu0
  %2318 = vmatprep.mubr.f32.mxu0 0.0
  %2319 = vmatmul.mubr.f32.gmra.mrb[0].mxu0 %v1977
  %v2320 = vpop.f32.mrb[0].mxu0
  %v2321 = vadd.f32 %v2236, %v2320
  %v2322 = vpop.f32.mrb[0].mxu0
  %2323 = vmatprep.mubr.f32.mxu0 0.0
  %2324 = vmatmul.mubr.f32.gmra.mrb[0].mxu0 %v1979
  %v2325 = vpop.f32.mrb[0].mxu0
  %v2326 = vadd.f32 %v2241, %v2325
  %v2327 = vpop.f32.mrb[0].mxu0
  %2328 = vdwg.mxu0
  %v2329 = vrot.slane %v1326, 2
  %v2330 = vrot.slane %v1329, 2
  %v2331 = vsel %vm535, %v2329, %v2330
  %v2332 = vrot.slane %v1327, 2
  %v2333 = vrot.slane %v1330, 2
  %v2334 = vsel %vm535, %v2332, %v2333
  %v2335 = vrot.slane %v1328, 2
  %v2336 = vrot.slane %v1331, 2
  %v2337 = vsel %vm535, %v2335, %v2336
  %v2338 = vrot.slane %v1332, 2
  %v2339 = vsel %vm535, %v2330, %v2338
  %v2340 = vrot.slane %v1333, 2
  %v2341 = vsel %vm535, %v2333, %v2340
  %v2342 = vrot.slane %v1334, 2
  %v2343 = vsel %vm535, %v2336, %v2342
  %v2344 = vrot.slane %v1335, 2
  %v2345 = vrot.slane %v1338, 2
  %v2346 = vsel %vm535, %v2344, %v2345
  %v2347 = vrot.slane %v1336, 2
  %v2348 = vrot.slane %v1339, 2
  %v2349 = vsel %vm535, %v2347, %v2348
  %v2350 = vrot.slane %v1337, 2
  %v2351 = vrot.slane %v1340, 2
  %v2352 = vsel %vm535, %v2350, %v2351
  %v2353 = vrot.slane %v1341, 2
  %v2354 = vsel %vm535, %v2345, %v2353
  %v2355 = vrot.slane %v1342, 2
  %v2356 = vsel %vm535, %v2348, %v2355
  %v2357 = vrot.slane %v1343, 2
  %v2358 = vsel %vm535, %v2351, %v2357
  %s2367 = scalar_lea.vmem %s4, 1728
  %v2368 = vld [vmem:[%s2367] sm:$0xff]
  %v2369 = vld [vmem:[%s2367 + $0x8] sm:$0xff]
  %v2370 = vld [vmem:[%s2367 + $0x10] sm:$0xff]
  %v2371 = vld [vmem:[%s2367 + $0x18] sm:$0xff]
  %v2372 = vld [vmem:[%s2367 + $0x20] sm:$0xff]
  %v2373 = vld [vmem:[%s2367 + $0x28] sm:$0xff]
  %v2374 = vld [vmem:[%s2367 + $0x30] sm:$0xff]
  %v2375 = vld [vmem:[%s2367 + $0x38] sm:$0xff]
  %v2376 = vld [vmem:[%s2367 + $0x40] sm:$0xff]
  %v2377 = vld [vmem:[%s2367 + $0x48] sm:$0xff]
  %v2378 = vld [vmem:[%s2367 + $0x50] sm:$0xff]
  %v2379 = vld [vmem:[%s2367 + $0x58] sm:$0xff]
  %v2380 = vld [vmem:[%s2367 + $0x60] sm:$0xff]
  %v2381 = vld [vmem:[%s2367 + $0x68] sm:$0xff]
  %v2382 = vld [vmem:[%s2367 + $0x70] sm:$0xff]
  %v2383 = vld [vmem:[%s2367 + $0x78] sm:$0xff]
  %v2384 = vld [vmem:[%s2367 + $0x80] sm:$0xff]
  %v2385 = vld [vmem:[%s2367 + $0x88] sm:$0xff]
  %v2386 = vld [vmem:[%s2367 + $0x90] sm:$0xff]
  %v2387 = vld [vmem:[%s2367 + $0x98] sm:$0xff]
  %v2388 = vld [vmem:[%s2367 + $0xa0] sm:$0xff]
  %v2389 = vld [vmem:[%s2367 + $0xa8] sm:$0xff]
  %v2390 = vld [vmem:[%s2367 + $0xb0] sm:$0xff]
  %v2391 = vld [vmem:[%s2367 + $0xb8] sm:$0xff]
  %v2392 = vld [vmem:[%s2367 + $0xc0] sm:$0xff]
  %v2393 = vld [vmem:[%s2367 + $0xc8] sm:$0xff]
  %v2394 = vld [vmem:[%s2367 + $0xd0] sm:$0xff]
  %v2395 = vld [vmem:[%s2367 + $0xd8] sm:$0xff]
  %v2396 = vld [vmem:[%s2367 + $0xe0] sm:$0xff]
  %v2397 = vld [vmem:[%s2367 + $0xe8] sm:$0xff]
  %v2398 = vld [vmem:[%s2367 + $0xf0] sm:$0xff]
  %v2399 = vld [vmem:[%s2367 + $0xf8] sm:$0xff]
  %v2400 = vld [vmem:[%s2367 + $0x100] sm:$0xff]
  %v2401 = vld [vmem:[%s2367 + $0x108] sm:$0xff]
  %v2402 = vld [vmem:[%s2367 + $0x110] sm:$0xff]
  %v2403 = vld [vmem:[%s2367 + $0x118] sm:$0xff]
  %v2404 = vld [vmem:[%s2367 + $0x120] sm:$0xff]
  %v2405 = vld [vmem:[%s2367 + $0x128] sm:$0xff]
  %v2406 = vld [vmem:[%s2367 + $0x130] sm:$0xff]
  %v2407 = vld [vmem:[%s2367 + $0x138] sm:$0xff]
  %v2408 = vld [vmem:[%s2367 + $0x140] sm:$0xff]
  %v2409 = vld [vmem:[%s2367 + $0x148] sm:$0xff]
  %v2410 = vld [vmem:[%s2367 + $0x150] sm:$0xff]
  %v2411 = vld [vmem:[%s2367 + $0x158] sm:$0xff]
  %v2412 = vld [vmem:[%s2367 + $0x160] sm:$0xff]
  %v2413 = vld [vmem:[%s2367 + $0x168] sm:$0xff]
  %v2414 = vld [vmem:[%s2367 + $0x170] sm:$0xff]
  %v2415 = vld [vmem:[%s2367 + $0x178] sm:$0xff]
  %v2416 = vld [vmem:[%s2367 + $0x180] sm:$0xff]
  %v2417 = vld [vmem:[%s2367 + $0x188] sm:$0xff]
  %v2418 = vld [vmem:[%s2367 + $0x190] sm:$0xff]
  %v2419 = vld [vmem:[%s2367 + $0x198] sm:$0xff]
  %v2420 = vld [vmem:[%s2367 + $0x1a0] sm:$0xff]
  %v2421 = vld [vmem:[%s2367 + $0x1a8] sm:$0xff]
  %v2422 = vld [vmem:[%s2367 + $0x1b0] sm:$0xff]
  %v2423 = vld [vmem:[%s2367 + $0x1b8] sm:$0xff]
  %v2424 = vld [vmem:[%s2367 + $0x1c0] sm:$0xff]
  %v2425 = vld [vmem:[%s2367 + $0x1c8] sm:$0xff]
  %v2426 = vld [vmem:[%s2367 + $0x1d0] sm:$0xff]
  %v2427 = vld [vmem:[%s2367 + $0x1d8] sm:$0xff]
  %v2428 = vld [vmem:[%s2367 + $0x1e0] sm:$0xff]
  %v2429 = vld [vmem:[%s2367 + $0x1e8] sm:$0xff]
  %v2430 = vld [vmem:[%s2367 + $0x1f0] sm:$0xff]
  %v2431 = vld [vmem:[%s2367 + $0x1f8] sm:$0xff]
  %v2432 = vld [vmem:[%s2367 + $0x200] sm:$0xff]
  %v2433 = vld [vmem:[%s2367 + $0x208] sm:$0xff]
  %v2434 = vld [vmem:[%s2367 + $0x210] sm:$0xff]
  %v2435 = vld [vmem:[%s2367 + $0x218] sm:$0xff]
  %v2436 = vld [vmem:[%s2367 + $0x220] sm:$0xff]
  %v2437 = vld [vmem:[%s2367 + $0x228] sm:$0xff]
  %v2438 = vld [vmem:[%s2367 + $0x230] sm:$0xff]
  %v2439 = vld [vmem:[%s2367 + $0x238] sm:$0xff]
  %v2440 = vld [vmem:[%s2367 + $0x240] sm:$0xff]
  %v2441 = vld [vmem:[%s2367 + $0x248] sm:$0xff]
  %v2442 = vld [vmem:[%s2367 + $0x250] sm:$0xff]
  %v2443 = vld [vmem:[%s2367 + $0x258] sm:$0xff]
  %v2444 = vld [vmem:[%s2367 + $0x260] sm:$0xff]
  %v2445 = vld [vmem:[%s2367 + $0x268] sm:$0xff]
  %v2446 = vld [vmem:[%s2367 + $0x270] sm:$0xff]
  %v2447 = vld [vmem:[%s2367 + $0x278] sm:$0xff]
  %v2448 = vld [vmem:[%s2367 + $0x280] sm:$0xff]
  %v2449 = vld [vmem:[%s2367 + $0x288] sm:$0xff]
  %v2450 = vld [vmem:[%s2367 + $0x290] sm:$0xff]
  %v2451 = vld [vmem:[%s2367 + $0x298] sm:$0xff]
  %v2452 = vld [vmem:[%s2367 + $0x2a0] sm:$0xff]
  %v2453 = vld [vmem:[%s2367 + $0x2a8] sm:$0xff]
  %v2454 = vld [vmem:[%s2367 + $0x2b0] sm:$0xff]
  %v2455 = vld [vmem:[%s2367 + $0x2b8] sm:$0xff]
  %v2456 = vld [vmem:[%s2367 + $0x2c0] sm:$0xff]
  %v2457 = vld [vmem:[%s2367 + $0x2c8] sm:$0xff]
  %v2458 = vld [vmem:[%s2367 + $0x2d0] sm:$0xff]
  %v2459 = vld [vmem:[%s2367 + $0x2d8] sm:$0xff]
  %v2460 = vld [vmem:[%s2367 + $0x2e0] sm:$0xff]
  %v2461 = vld [vmem:[%s2367 + $0x2e8] sm:$0xff]
  %v2462 = vld [vmem:[%s2367 + $0x2f0] sm:$0xff]
  %v2463 = vld [vmem:[%s2367 + $0x2f8] sm:$0xff]
  %v2464 = vld [vmem:[%s2367 + $0x300] sm:$0xff]
  %v2465 = vld [vmem:[%s2367 + $0x308] sm:$0xff]
  %v2466 = vld [vmem:[%s2367 + $0x310] sm:$0xff]
  %v2467 = vld [vmem:[%s2367 + $0x318] sm:$0xff]
  %v2468 = vld [vmem:[%s2367 + $0x320] sm:$0xff]
  %v2469 = vld [vmem:[%s2367 + $0x328] sm:$0xff]
  %v2470 = vld [vmem:[%s2367 + $0x330] sm:$0xff]
  %v2471 = vld [vmem:[%s2367 + $0x338] sm:$0xff]
  %v2472 = vld [vmem:[%s2367 + $0x340] sm:$0xff]
  %v2473 = vld [vmem:[%s2367 + $0x348] sm:$0xff]
  %v2474 = vld [vmem:[%s2367 + $0x350] sm:$0xff]
  %v2475 = vld [vmem:[%s2367 + $0x358] sm:$0xff]
  %v2476 = vsel %vm786, %v2337, 0
  %v2478 = vsel %vm786, %v2343, 0
  %v2480 = vsel %vm786, %v2352, 0
  %v2482 = vsel %vm786, %v2358, 0
  %2484 = vmatprep.subr.mxu0 %v2369
  %2485 = vmatpush1.msra.mxu0 %v2368
  %2486 = vmatprep.subr.mxu0 %v2372
  %2487 = vmatpush1.msra.mxu0 %v2371
  %2488 = vmatprep.subr.mxu0 %v2375
  %2489 = vmatpush1.msra.mxu0 %v2374
  %2490 = vmatprep.subr.mxu0 %v2378
  %2491 = vmatpush1.msra.mxu0 %v2377
  %2492 = vmatprep.subr.mxu0 %v2381
  %2493 = vmatpush1.msra.mxu0 %v2380
  %2494 = vmatprep.subr.mxu0 %v2384
  %2495 = vmatpush1.msra.mxu0 %v2383
  %2496 = vmatprep.subr.mxu0 %v2387
  %2497 = vmatpush1.msra.mxu0 %v2386
  %2498 = vmatprep.subr.mxu0 %v2390
  %2499 = vmatpush1.msra.mxu0 %v2389
  %2500 = vmatprep.subr.mxu0 %v2393
  %2501 = vmatpush1.msra.mxu0 %v2392
  %2502 = vmatprep.subr.mxu0 %v2396
  %2503 = vmatpush1.msra.mxu0 %v2395
  %2504 = vmatprep.subr.mxu0 %v2399
  %2505 = vmatpush1.msra.mxu0 %v2398
  %2506 = vmatprep.subr.mxu0 %v2402
  %2507 = vmatpush1.msra.mxu0 %v2401
  %2508 = vmatprep.subr.mxu0 %v2405
  %2509 = vmatpush1.msra.mxu0 %v2404
  %2510 = vmatprep.subr.mxu0 %v2408
  %2511 = vmatpush1.msra.mxu0 %v2407
  %2512 = vmatprep.subr.mxu0 %v2411
  %2513 = vmatpush1.msra.mxu0 %v2410
  %2514 = vmatprep.subr.mxu0 %v2414
  %2515 = vmatpush1.msra.mxu0 %v2413
  %2516 = vmatprep.subr.mxu0 %v2417
  %2517 = vmatpush1.msra.mxu0 %v2416
  %2518 = vmatprep.subr.mxu0 %v2420
  %2519 = vmatpush1.msra.mxu0 %v2419
  %2520 = vmatprep.subr.mxu0 %v2423
  %2521 = vmatpush1.msra.mxu0 %v2422
  %2522 = vmatprep.subr.mxu0 %v2426
  %2523 = vmatpush1.msra.mxu0 %v2425
  %2524 = vmatprep.subr.mxu0 %v2429
  %2525 = vmatpush1.msra.mxu0 %v2428
  %2526 = vmatprep.subr.mxu0 %v2432
  %2527 = vmatpush1.msra.mxu0 %v2431
  %2528 = vmatprep.subr.mxu0 %v2435
  %2529 = vmatpush1.msra.mxu0 %v2434
  %2530 = vmatprep.subr.mxu0 %v2438
  %2531 = vmatpush1.msra.mxu0 %v2437
  %2532 = vmatprep.subr.mxu0 %v2441
  %2533 = vmatpush1.msra.mxu0 %v2440
  %2534 = vmatprep.subr.mxu0 %v2444
  %2535 = vmatpush1.msra.mxu0 %v2443
  %2536 = vmatprep.subr.mxu0 %v2447
  %2537 = vmatpush1.msra.mxu0 %v2446
  %2538 = vmatprep.subr.mxu0 %v2450
  %2539 = vmatpush1.msra.mxu0 %v2449
  %2540 = vmatprep.subr.mxu0 %v2453
  %2541 = vmatpush1.msra.mxu0 %v2452
  %2542 = vmatprep.subr.mxu0 %v2456
  %2543 = vmatpush1.msra.mxu0 %v2455
  %2544 = vmatprep.subr.mxu0 %v2459
  %2545 = vmatpush1.msra.mxu0 %v2458
  %2546 = vmatprep.subr.mxu0 %v2462
  %2547 = vmatpush1.msra.mxu0 %v2461
  %2548 = vmatprep.mubr.f32.mxu0 %v2334
  %2549 = vmatmul.mubr.f32.gmra.mrb[0].mxu0 %v2331
  %v2550 = vpop.f32.mrb[0].mxu0
  %v2551 = vadd.f32 0.0, %v2550
  %v2552 = vpop.f32.mrb[0].mxu0
  %v2553 = vadd.f32 0.0, %v2552
  %2554 = vmatprep.mubr.f32.mxu0 %v2341
  %2555 = vmatmul.mubr.f32.gmra.mrb[0].mxu0 %v2339
  %v2556 = vpop.f32.mrb[0].mxu0
  %v2557 = vadd.f32 0.0, %v2556
  %v2558 = vpop.f32.mrb[0].mxu0
  %v2559 = vadd.f32 0.0, %v2558
  %2560 = vmatprep.mubr.f32.mxu0 %v2349
  %2561 = vmatmul.mubr.f32.gmra.mrb[0].mxu0 %v2346
  %v2562 = vpop.f32.mrb[0].mxu0
  %v2563 = vadd.f32 0.0, %v2562
  %v2564 = vpop.f32.mrb[0].mxu0
  %v2565 = vadd.f32 0.0, %v2564
  %2566 = vmatprep.mubr.f32.mxu0 %v2356
  %2567 = vmatmul.mubr.f32.gmra.mrb[0].mxu0 %v2354
  %v2568 = vpop.f32.mrb[0].mxu0
  %v2569 = vadd.f32 0.0, %v2568
  %v2570 = vpop.f32.mrb[0].mxu0
  %v2571 = vadd.f32 0.0, %v2570
  %2572 = vdwg.mxu0
  %2573 = vmatprep.subr.mxu0 %v2465
  %2574 = vmatpush1.msra.mxu0 %v2464
  %2575 = vmatprep.subr.mxu0 %v2468
  %2576 = vmatpush1.msra.mxu0 %v2467
  %2577 = vmatprep.subr.mxu0 %v2471
  %2578 = vmatpush1.msra.mxu0 %v2470
  %2579 = vmatprep.subr.mxu0 %v2474
  %2580 = vmatpush1.msra.mxu0 %v2473
  %2581 = vmatprep.subr.mxu0 0.0
  %2582 = vmatpush1.msra.mxu0 0.0
  %2583 = vmatprep.subr.mxu0 0.0
  %2584 = vmatpush1.msra.mxu0 0.0
  %2585 = vmatprep.subr.mxu0 0.0
  %2586 = vmatpush1.msra.mxu0 0.0
  %2587 = vmatprep.subr.mxu0 0.0
  %2588 = vmatpush1.msra.mxu0 0.0
  %2589 = vmatprep.subr.mxu0 0.0
  %2590 = vmatpush1.msra.mxu0 0.0
  %2591 = vmatprep.subr.mxu0 0.0
  %2592 = vmatpush1.msra.mxu0 0.0
  %2593 = vmatprep.subr.mxu0 0.0
  %2594 = vmatpush1.msra.mxu0 0.0
  %2595 = vmatprep.subr.mxu0 0.0
  %2596 = vmatpush1.msra.mxu0 0.0
  %2597 = vmatprep.subr.mxu0 0.0
  %2598 = vmatpush1.msra.mxu0 0.0
  %2599 = vmatprep.subr.mxu0 0.0
  %2600 = vmatpush1.msra.mxu0 0.0
  %2601 = vmatprep.subr.mxu0 0.0
  %2602 = vmatpush1.msra.mxu0 0.0
  %2603 = vmatprep.subr.mxu0 0.0
  %2604 = vmatpush1.msra.mxu0 0.0
  %2605 = vmatprep.subr.mxu0 0.0
  %2606 = vmatpush1.msra.mxu0 0.0
  %2607 = vmatprep.subr.mxu0 0.0
  %2608 = vmatpush1.msra.mxu0 0.0
  %2609 = vmatprep.subr.mxu0 0.0
  %2610 = vmatpush1.msra.mxu0 0.0
  %2611 = vmatprep.subr.mxu0 0.0
  %2612 = vmatpush1.msra.mxu0 0.0
  %2613 = vmatprep.subr.mxu0 0.0
  %2614 = vmatpush1.msra.mxu0 0.0
  %2615 = vmatprep.subr.mxu0 0.0
  %2616 = vmatpush1.msra.mxu0 0.0
  %2617 = vmatprep.subr.mxu0 0.0
  %2618 = vmatpush1.msra.mxu0 0.0
  %2619 = vmatprep.subr.mxu0 0.0
  %2620 = vmatpush1.msra.mxu0 0.0
  %2621 = vmatprep.subr.mxu0 0.0
  %2622 = vmatpush1.msra.mxu0 0.0
  %2623 = vmatprep.subr.mxu0 0.0
  %2624 = vmatpush1.msra.mxu0 0.0
  %2625 = vmatprep.subr.mxu0 0.0
  %2626 = vmatpush1.msra.mxu0 0.0
  %2627 = vmatprep.subr.mxu0 0.0
  %2628 = vmatpush1.msra.mxu0 0.0
  %2629 = vmatprep.subr.mxu0 0.0
  %2630 = vmatpush1.msra.mxu0 0.0
  %2631 = vmatprep.subr.mxu0 0.0
  %2632 = vmatpush1.msra.mxu0 0.0
  %2633 = vmatprep.subr.mxu0 0.0
  %2634 = vmatpush1.msra.mxu0 0.0
  %2635 = vmatprep.subr.mxu0 0.0
  %2636 = vmatpush1.msra.mxu0 0.0
  %2637 = vmatprep.mubr.f32.mxu0 0.0
  %2638 = vmatmul.mubr.f32.gmra.mrb[0].mxu0 %v2476
  %v2639 = vpop.f32.mrb[0].mxu0
  %v2640 = vadd.f32 %v2551, %v2639
  %v2641 = vpop.f32.mrb[0].mxu0
  %v2642 = vadd.f32 %v2553, %v2641
  %2643 = vmatprep.mubr.f32.mxu0 0.0
  %2644 = vmatmul.mubr.f32.gmra.mrb[0].mxu0 %v2478
  %v2645 = vpop.f32.mrb[0].mxu0
  %v2646 = vadd.f32 %v2557, %v2645
  %v2647 = vpop.f32.mrb[0].mxu0
  %v2648 = vadd.f32 %v2559, %v2647
  %2649 = vmatprep.mubr.f32.mxu0 0.0
  %2650 = vmatmul.mubr.f32.gmra.mrb[0].mxu0 %v2480
  %v2651 = vpop.f32.mrb[0].mxu0
  %v2652 = vadd.f32 %v2563, %v2651
  %v2653 = vpop.f32.mrb[0].mxu0
  %v2654 = vadd.f32 %v2565, %v2653
  %2655 = vmatprep.mubr.f32.mxu0 0.0
  %2656 = vmatmul.mubr.f32.gmra.mrb[0].mxu0 %v2482
  %v2657 = vpop.f32.mrb[0].mxu0
  %v2658 = vadd.f32 %v2569, %v2657
  %v2659 = vpop.f32.mrb[0].mxu0
  %v2660 = vadd.f32 %v2571, %v2659
  %2661 = vdwg.mxu0
  %2662 = vmatprep.subr.mxu0 0.0
  %2663 = vmatpush1.msra.mxu0 %v2370
  %2664 = vmatprep.subr.mxu0 0.0
  %2665 = vmatpush1.msra.mxu0 %v2373
  %2666 = vmatprep.subr.mxu0 0.0
  %2667 = vmatpush1.msra.mxu0 %v2376
  %2668 = vmatprep.subr.mxu0 0.0
  %2669 = vmatpush1.msra.mxu0 %v2379
  %2670 = vmatprep.subr.mxu0 0.0
  %2671 = vmatpush1.msra.mxu0 %v2382
  %2672 = vmatprep.subr.mxu0 0.0
  %2673 = vmatpush1.msra.mxu0 %v2385
  %2674 = vmatprep.subr.mxu0 0.0
  %2675 = vmatpush1.msra.mxu0 %v2388
  %2676 = vmatprep.subr.mxu0 0.0
  %2677 = vmatpush1.msra.mxu0 %v2391
  %2678 = vmatprep.subr.mxu0 0.0
  %2679 = vmatpush1.msra.mxu0 %v2394
  %2680 = vmatprep.subr.mxu0 0.0
  %2681 = vmatpush1.msra.mxu0 %v2397
  %2682 = vmatprep.subr.mxu0 0.0
  %2683 = vmatpush1.msra.mxu0 %v2400
  %2684 = vmatprep.subr.mxu0 0.0
  %2685 = vmatpush1.msra.mxu0 %v2403
  %2686 = vmatprep.subr.mxu0 0.0
  %2687 = vmatpush1.msra.mxu0 %v2406
  %2688 = vmatprep.subr.mxu0 0.0
  %2689 = vmatpush1.msra.mxu0 %v2409
  %2690 = vmatprep.subr.mxu0 0.0
  %2691 = vmatpush1.msra.mxu0 %v2412
  %2692 = vmatprep.subr.mxu0 0.0
  %2693 = vmatpush1.msra.mxu0 %v2415
  %2694 = vmatprep.subr.mxu0 0.0
  %2695 = vmatpush1.msra.mxu0 %v2418
  %2696 = vmatprep.subr.mxu0 0.0
  %2697 = vmatpush1.msra.mxu0 %v2421
  %2698 = vmatprep.subr.mxu0 0.0
  %2699 = vmatpush1.msra.mxu0 %v2424
  %2700 = vmatprep.subr.mxu0 0.0
  %2701 = vmatpush1.msra.mxu0 %v2427
  %2702 = vmatprep.subr.mxu0 0.0
  %2703 = vmatpush1.msra.mxu0 %v2430
  %2704 = vmatprep.subr.mxu0 0.0
  %2705 = vmatpush1.msra.mxu0 %v2433
  %2706 = vmatprep.subr.mxu0 0.0
  %2707 = vmatpush1.msra.mxu0 %v2436
  %2708 = vmatprep.subr.mxu0 0.0
  %2709 = vmatpush1.msra.mxu0 %v2439
  %2710 = vmatprep.subr.mxu0 0.0
  %2711 = vmatpush1.msra.mxu0 %v2442
  %2712 = vmatprep.subr.mxu0 0.0
  %2713 = vmatpush1.msra.mxu0 %v2445
  %2714 = vmatprep.subr.mxu0 0.0
  %2715 = vmatpush1.msra.mxu0 %v2448
  %2716 = vmatprep.subr.mxu0 0.0
  %2717 = vmatpush1.msra.mxu0 %v2451
  %2718 = vmatprep.subr.mxu0 0.0
  %2719 = vmatpush1.msra.mxu0 %v2454
  %2720 = vmatprep.subr.mxu0 0.0
  %2721 = vmatpush1.msra.mxu0 %v2457
  %2722 = vmatprep.subr.mxu0 0.0
  %2723 = vmatpush1.msra.mxu0 %v2460
  %2724 = vmatprep.subr.mxu0 0.0
  %2725 = vmatpush1.msra.mxu0 %v2463
  %2726 = vmatprep.mubr.f32.mxu0 %v2334
  %2727 = vmatmul.mubr.f32.gmra.mrb[0].mxu0 %v2331
  %v2728 = vpop.f32.mrb[0].mxu0
  %v2729 = vadd.f32 0.0, %v2728
  %v2730 = vpop.f32.mrb[0].mxu0
  %2731 = vmatprep.mubr.f32.mxu0 %v2341
  %2732 = vmatmul.mubr.f32.gmra.mrb[0].mxu0 %v2339
  %v2733 = vpop.f32.mrb[0].mxu0
  %v2734 = vadd.f32 0.0, %v2733
  %v2735 = vpop.f32.mrb[0].mxu0
  %2736 = vmatprep.mubr.f32.mxu0 %v2349
  %2737 = vmatmul.mubr.f32.gmra.mrb[0].mxu0 %v2346
  %v2738 = vpop.f32.mrb[0].mxu0
  %v2739 = vadd.f32 0.0, %v2738
  %v2740 = vpop.f32.mrb[0].mxu0
  %2741 = vmatprep.mubr.f32.mxu0 %v2356
  %2742 = vmatmul.mubr.f32.gmra.mrb[0].mxu0 %v2354
  %v2743 = vpop.f32.mrb[0].mxu0
  %v2744 = vadd.f32 0.0, %v2743
  %v2745 = vpop.f32.mrb[0].mxu0
  %2746 = vdwg.mxu0
  %2747 = vmatprep.subr.mxu0 0.0
  %2748 = vmatpush1.msra.mxu0 %v2466
  %2749 = vmatprep.subr.mxu0 0.0
  %2750 = vmatpush1.msra.mxu0 %v2469
  %2751 = vmatprep.subr.mxu0 0.0
  %2752 = vmatpush1.msra.mxu0 %v2472
  %2753 = vmatprep.subr.mxu0 0.0
  %2754 = vmatpush1.msra.mxu0 %v2475
  %2755 = vmatprep.subr.mxu0 0.0
  %2756 = vmatpush1.msra.mxu0 0.0
  %2757 = vmatprep.subr.mxu0 0.0
  %2758 = vmatpush1.msra.mxu0 0.0
  %2759 = vmatprep.subr.mxu0 0.0
  %2760 = vmatpush1.msra.mxu0 0.0
  %2761 = vmatprep.subr.mxu0 0.0
  %2762 = vmatpush1.msra.mxu0 0.0
  %2763 = vmatprep.subr.mxu0 0.0
  %2764 = vmatpush1.msra.mxu0 0.0
  %2765 = vmatprep.subr.mxu0 0.0
  %2766 = vmatpush1.msra.mxu0 0.0
  %2767 = vmatprep.subr.mxu0 0.0
  %2768 = vmatpush1.msra.mxu0 0.0
  %2769 = vmatprep.subr.mxu0 0.0
  %2770 = vmatpush1.msra.mxu0 0.0
  %2771 = vmatprep.subr.mxu0 0.0
  %2772 = vmatpush1.msra.mxu0 0.0
  %2773 = vmatprep.subr.mxu0 0.0
  %2774 = vmatpush1.msra.mxu0 0.0
  %2775 = vmatprep.subr.mxu0 0.0
  %2776 = vmatpush1.msra.mxu0 0.0
  %2777 = vmatprep.subr.mxu0 0.0
  %2778 = vmatpush1.msra.mxu0 0.0
  %2779 = vmatprep.subr.mxu0 0.0
  %2780 = vmatpush1.msra.mxu0 0.0
  %2781 = vmatprep.subr.mxu0 0.0
  %2782 = vmatpush1.msra.mxu0 0.0
  %2783 = vmatprep.subr.mxu0 0.0
  %2784 = vmatpush1.msra.mxu0 0.0
  %2785 = vmatprep.subr.mxu0 0.0
  %2786 = vmatpush1.msra.mxu0 0.0
  %2787 = vmatprep.subr.mxu0 0.0
  %2788 = vmatpush1.msra.mxu0 0.0
  %2789 = vmatprep.subr.mxu0 0.0
  %2790 = vmatpush1.msra.mxu0 0.0
  %2791 = vmatprep.subr.mxu0 0.0
  %2792 = vmatpush1.msra.mxu0 0.0
  %2793 = vmatprep.subr.mxu0 0.0
  %2794 = vmatpush1.msra.mxu0 0.0
  %2795 = vmatprep.subr.mxu0 0.0
  %2796 = vmatpush1.msra.mxu0 0.0
  %2797 = vmatprep.subr.mxu0 0.0
  %2798 = vmatpush1.msra.mxu0 0.0
  %2799 = vmatprep.subr.mxu0 0.0
  %2800 = vmatpush1.msra.mxu0 0.0
  %2801 = vmatprep.subr.mxu0 0.0
  %2802 = vmatpush1.msra.mxu0 0.0
  %2803 = vmatprep.subr.mxu0 0.0
  %2804 = vmatpush1.msra.mxu0 0.0
  %2805 = vmatprep.subr.mxu0 0.0
  %2806 = vmatpush1.msra.mxu0 0.0
  %2807 = vmatprep.subr.mxu0 0.0
  %2808 = vmatpush1.msra.mxu0 0.0
  %2809 = vmatprep.subr.mxu0 0.0
  %2810 = vmatpush1.msra.mxu0 0.0
  %2811 = vmatprep.mubr.f32.mxu0 0.0
  %2812 = vmatmul.mubr.f32.gmra.mrb[0].mxu0 %v2476
  %v2813 = vpop.f32.mrb[0].mxu0
  %v2814 = vadd.f32 %v2729, %v2813
  %v2815 = vpop.f32.mrb[0].mxu0
  %2816 = vmatprep.mubr.f32.mxu0 0.0
  %2817 = vmatmul.mubr.f32.gmra.mrb[0].mxu0 %v2478
  %v2818 = vpop.f32.mrb[0].mxu0
  %v2819 = vadd.f32 %v2734, %v2818
  %v2820 = vpop.f32.mrb[0].mxu0
  %2821 = vmatprep.mubr.f32.mxu0 0.0
  %2822 = vmatmul.mubr.f32.gmra.mrb[0].mxu0 %v2480
  %v2823 = vpop.f32.mrb[0].mxu0
  %v2824 = vadd.f32 %v2739, %v2823
  %v2825 = vpop.f32.mrb[0].mxu0
  %2826 = vmatprep.mubr.f32.mxu0 0.0
  %2827 = vmatmul.mubr.f32.gmra.mrb[0].mxu0 %v2482
  %v2828 = vpop.f32.mrb[0].mxu0
  %v2829 = vadd.f32 %v2744, %v2828
  %v2830 = vpop.f32.mrb[0].mxu0
  %2831 = vdwg.mxu0
  %v2832 = vadd.f32 %v2137, %v2640
  %v2833 = vadd.f32 %v2139, %v2642
  %v2834 = vadd.f32 %v2311, %v2814
  %v2835 = vadd.f32 %v2143, %v2646
  %v2836 = vadd.f32 %v2145, %v2648
  %v2837 = vadd.f32 %v2316, %v2819
  %v2838 = vadd.f32 %v2149, %v2652
  %v2839 = vadd.f32 %v2151, %v2654
  %v2840 = vadd.f32 %v2321, %v2824
  %v2841 = vadd.f32 %v2155, %v2658
  %v2842 = vadd.f32 %v2157, %v2660
  %v2843 = vadd.f32 %v2326, %v2829
  %v2844 = vadd.f32 %v2832, %v2835
  %v2845 = vadd.f32 %v2844, %v2838
  %v2846 = vadd.f32 %v2845, %v2841
  %v2847 = vrot.slane %v2846, 4
  %v2848 = vadd.f32 %v2846, %v2847
  %v2849 = vrot.slane %v2848, 2
  %v2850 = vadd.f32 %v2848, %v2849
  %v2851 = vrot.slane %v2850, 1
  %v2852 = vadd.f32 %v2850, %v2851
  %v2853 = vadd.f32 %v2833, %v2836
  %v2854 = vadd.f32 %v2853, %v2839
  %v2855 = vadd.f32 %v2854, %v2842
  %v2856 = vrot.slane %v2855, 4
  %v2857 = vadd.f32 %v2855, %v2856
  %v2858 = vrot.slane %v2857, 2
  %v2859 = vadd.f32 %v2857, %v2858
  %v2860 = vrot.slane %v2859, 1
  %v2861 = vadd.f32 %v2859, %v2860
  %v2862 = vsel %vm786, %v2834, 0.0
  %v2863 = vsel %vm786, %v2837, 0.0
  %v2864 = vadd.f32 %v2862, %v2863
  %v2865 = vsel %vm786, %v2840, 0.0
  %v2866 = vadd.f32 %v2864, %v2865
  %v2867 = vsel %vm786, %v2843, 0.0
  %v2868 = vadd.f32 %v2866, %v2867
  %v2869 = vrot.slane %v2868, 4
  %v2870 = vadd.f32 %v2868, %v2869
  %v2871 = vrot.slane %v2870, 2
  %v2872 = vadd.f32 %v2870, %v2871
  %v2873 = vrot.slane %v2872, 1
  %v2874 = vadd.f32 %v2872, %v2873
  %v2875 = vmul.f32 %v2832, %v2832
  %v2876 = vmul.f32 %v2833, %v2833
  %v2877 = vmul.f32 %v2834, %v2834
  %v2878 = vmul.f32 %v2835, %v2835
  %v2879 = vmul.f32 %v2836, %v2836
  %v2880 = vmul.f32 %v2837, %v2837
  %v2881 = vmul.f32 %v2838, %v2838
  %v2882 = vmul.f32 %v2839, %v2839
  %v2883 = vmul.f32 %v2840, %v2840
  %v2884 = vmul.f32 %v2841, %v2841
  %v2885 = vmul.f32 %v2842, %v2842
  %v2886 = vmul.f32 %v2843, %v2843
  %v2887 = vadd.f32 %v2875, %v2878
  %v2888 = vadd.f32 %v2887, %v2881
  %v2889 = vadd.f32 %v2888, %v2884
  %v2890 = vrot.slane %v2889, 4
  %v2891 = vadd.f32 %v2889, %v2890
  %v2892 = vrot.slane %v2891, 2
  %v2893 = vadd.f32 %v2891, %v2892
  %v2894 = vrot.slane %v2893, 1
  %v2895 = vadd.f32 %v2893, %v2894
  %v2896 = vadd.f32 %v2876, %v2879
  %v2897 = vadd.f32 %v2896, %v2882
  %v2898 = vadd.f32 %v2897, %v2885
  %v2899 = vrot.slane %v2898, 4
  %v2900 = vadd.f32 %v2898, %v2899
  %v2901 = vrot.slane %v2900, 2
  %v2902 = vadd.f32 %v2900, %v2901
  %v2903 = vrot.slane %v2902, 1
  %v2904 = vadd.f32 %v2902, %v2903
  %v2905 = vsel %vm786, %v2877, 0.0
  %v2906 = vsel %vm786, %v2880, 0.0
  %v2907 = vadd.f32 %v2905, %v2906
  %v2908 = vsel %vm786, %v2883, 0.0
  %v2909 = vadd.f32 %v2907, %v2908
  %v2910 = vsel %vm786, %v2886, 0.0
  %v2911 = vadd.f32 %v2909, %v2910
  %v2912 = vrot.slane %v2911, 4
  %v2913 = vadd.f32 %v2911, %v2912
  %v2914 = vrot.slane %v2913, 2
  %v2915 = vadd.f32 %v2913, %v2914
  %v2916 = vrot.slane %v2915, 1
  %v2917 = vadd.f32 %v2915, %v2916
  %v2918 = vsel %vm843, %v2852, %v2895
  %v2919 = vsel %vm843, %v2861, %v2904
  %v2920 = vsel %vm843, %v2874, %v2917
  %v2921 = vld [vmem:[%s9] sm:$0xff]
  %v2922 = vld [vmem:[%s9 + $0x8] sm:$0xff]
  %v2923 = vld [vmem:[%s9 + $0x10] sm:$0xff]
  %v2924 = vld [vmem:[%s9 + $0x18] sm:$0xff]
  %v2925 = vld [vmem:[%s9 + $0x20] sm:$0xff]
  %v2926 = vld [vmem:[%s9 + $0x28] sm:$0xff]
  %v2927 = vld [vmem:[%s9 + $0x30] sm:$0xff]
  %v2928 = vld [vmem:[%s9 + $0x38] sm:$0xff]
  %v2929 = vld [vmem:[%s9 + $0x40] sm:$0xff]
  %v2930 = vld [vmem:[%s9 + $0x48] sm:$0xff]
  %v2931 = vld [vmem:[%s9 + $0x50] sm:$0xff]
  %v2932 = vld [vmem:[%s9 + $0x58] sm:$0xff]
  %v2933 = vld [vmem:[%s9 + $0x60] sm:$0xff]
  %v2934 = vld [vmem:[%s9 + $0x68] sm:$0xff]
  %v2935 = vld [vmem:[%s9 + $0x70] sm:$0xff]
  %v2936 = vld [vmem:[%s9 + $0x78] sm:$0xff]
  %v2937 = vld [vmem:[%s9 + $0x80] sm:$0xff]
  %v2938 = vld [vmem:[%s9 + $0x88] sm:$0xff]
  %v2939 = vld [vmem:[%s9 + $0x90] sm:$0xff]
  %v2940 = vld [vmem:[%s9 + $0x98] sm:$0xff]
  %v2941 = vld [vmem:[%s9 + $0xa0] sm:$0xff]
  %v2942 = vld [vmem:[%s9 + $0xa8] sm:$0xff]
  %v2943 = vld [vmem:[%s9 + $0xb0] sm:$0xff]
  %v2944 = vld [vmem:[%s9 + $0xb8] sm:$0xff]
  %v2945 = vld [vmem:[%s9 + $0xc0] sm:$0xff]
  %v2946 = vld [vmem:[%s9 + $0xc8] sm:$0xff]
  %v2947 = vld [vmem:[%s9 + $0xd0] sm:$0xff]
  %v2948 = vld [vmem:[%s9 + $0xd8] sm:$0xff]
  %v2949 = vld [vmem:[%s9 + $0xe0] sm:$0xff]
  %v2950 = vld [vmem:[%s9 + $0xe8] sm:$0xff]
  %v2951 = vld [vmem:[%s9 + $0xf0] sm:$0xff]
  %v2952 = vld [vmem:[%s9 + $0xf8] sm:$0xff]
  %v2953 = vld [vmem:[%s9 + $0x100] sm:$0xff]
  %v2954 = vld [vmem:[%s9 + $0x108] sm:$0xff]
  %v2955 = vld [vmem:[%s9 + $0x110] sm:$0xff]
  %v2956 = vld [vmem:[%s9 + $0x118] sm:$0xff]
  %v2958 = vsel %vm786, %v2920, 0
  %2960 = vmatprep.subr.mxu0 0.0
  %2961 = vmatpush1.msra.mxu0 %v2921
  %2962 = vmatprep.subr.mxu0 0.0
  %2963 = vmatpush1.msra.mxu0 %v2922
  %2964 = vmatprep.subr.mxu0 0.0
  %2965 = vmatpush1.msra.mxu0 %v2923
  %2966 = vmatprep.subr.mxu0 0.0
  %2967 = vmatpush1.msra.mxu0 %v2924
  %2968 = vmatprep.subr.mxu0 0.0
  %2969 = vmatpush1.msra.mxu0 %v2925
  %2970 = vmatprep.subr.mxu0 0.0
  %2971 = vmatpush1.msra.mxu0 %v2926
  %2972 = vmatprep.subr.mxu0 0.0
  %2973 = vmatpush1.msra.mxu0 %v2927
  %2974 = vmatprep.subr.mxu0 0.0
  %2975 = vmatpush1.msra.mxu0 %v2928
  %2976 = vmatprep.subr.mxu0 0.0
  %2977 = vmatpush1.msra.mxu0 %v2929
  %2978 = vmatprep.subr.mxu0 0.0
  %2979 = vmatpush1.msra.mxu0 %v2930
  %2980 = vmatprep.subr.mxu0 0.0
  %2981 = vmatpush1.msra.mxu0 %v2931
  %2982 = vmatprep.subr.mxu0 0.0
  %2983 = vmatpush1.msra.mxu0 %v2932
  %2984 = vmatprep.subr.mxu0 0.0
  %2985 = vmatpush1.msra.mxu0 %v2933
  %2986 = vmatprep.subr.mxu0 0.0
  %2987 = vmatpush1.msra.mxu0 %v2934
  %2988 = vmatprep.subr.mxu0 0.0
  %2989 = vmatpush1.msra.mxu0 %v2935
  %2990 = vmatprep.subr.mxu0 0.0
  %2991 = vmatpush1.msra.mxu0 %v2936
  %2992 = vmatprep.subr.mxu0 0.0
  %2993 = vmatpush1.msra.mxu0 %v2937
  %2994 = vmatprep.subr.mxu0 0.0
  %2995 = vmatpush1.msra.mxu0 %v2938
  %2996 = vmatprep.subr.mxu0 0.0
  %2997 = vmatpush1.msra.mxu0 %v2939
  %2998 = vmatprep.subr.mxu0 0.0
  %2999 = vmatpush1.msra.mxu0 %v2940
  %3000 = vmatprep.subr.mxu0 0.0
  %3001 = vmatpush1.msra.mxu0 %v2941
  %3002 = vmatprep.subr.mxu0 0.0
  %3003 = vmatpush1.msra.mxu0 %v2942
  %3004 = vmatprep.subr.mxu0 0.0
  %3005 = vmatpush1.msra.mxu0 %v2943
  %3006 = vmatprep.subr.mxu0 0.0
  %3007 = vmatpush1.msra.mxu0 %v2944
  %3008 = vmatprep.subr.mxu0 0.0
  %3009 = vmatpush1.msra.mxu0 %v2945
  %3010 = vmatprep.subr.mxu0 0.0
  %3011 = vmatpush1.msra.mxu0 %v2946
  %3012 = vmatprep.subr.mxu0 0.0
  %3013 = vmatpush1.msra.mxu0 %v2947
  %3014 = vmatprep.subr.mxu0 0.0
  %3015 = vmatpush1.msra.mxu0 %v2948
  %3016 = vmatprep.subr.mxu0 0.0
  %3017 = vmatpush1.msra.mxu0 %v2949
  %3018 = vmatprep.subr.mxu0 0.0
  %3019 = vmatpush1.msra.mxu0 %v2950
  %3020 = vmatprep.subr.mxu0 0.0
  %3021 = vmatpush1.msra.mxu0 %v2951
  %3022 = vmatprep.subr.mxu0 0.0
  %3023 = vmatpush1.msra.mxu0 %v2952
  %3024 = vmatprep.mubr.f32.mxu0 %v2919
  %3025 = vmatmul.mubr.f32.gmra.mrb[0].mxu0 %v2918
  %v3026 = vpop.f32.mrb[0].mxu0
  %v3027 = vadd.f32 0.0, %v3026
  %v3028 = vpop.f32.mrb[0].mxu0
  %3029 = vdwg.mxu0
  %3030 = vmatprep.subr.mxu0 0.0
  %3031 = vmatpush1.msra.mxu0 %v2953
  %3032 = vmatprep.subr.mxu0 0.0
  %3033 = vmatpush1.msra.mxu0 %v2954
  %3034 = vmatprep.subr.mxu0 0.0
  %3035 = vmatpush1.msra.mxu0 %v2955
  %3036 = vmatprep.subr.mxu0 0.0
  %3037 = vmatpush1.msra.mxu0 %v2956
  %3038 = vmatprep.subr.mxu0 0.0
  %3039 = vmatpush1.msra.mxu0 0.0
  %3040 = vmatprep.subr.mxu0 0.0
  %3041 = vmatpush1.msra.mxu0 0.0
  %3042 = vmatprep.subr.mxu0 0.0
  %3043 = vmatpush1.msra.mxu0 0.0
  %3044 = vmatprep.subr.mxu0 0.0
  %3045 = vmatpush1.msra.mxu0 0.0
  %3046 = vmatprep.subr.mxu0 0.0
  %3047 = vmatpush1.msra.mxu0 0.0
  %3048 = vmatprep.subr.mxu0 0.0
  %3049 = vmatpush1.msra.mxu0 0.0
  %3050 = vmatprep.subr.mxu0 0.0
  %3051 = vmatpush1.msra.mxu0 0.0
  %3052 = vmatprep.subr.mxu0 0.0
  %3053 = vmatpush1.msra.mxu0 0.0
  %3054 = vmatprep.subr.mxu0 0.0
  %3055 = vmatpush1.msra.mxu0 0.0
  %3056 = vmatprep.subr.mxu0 0.0
  %3057 = vmatpush1.msra.mxu0 0.0
  %3058 = vmatprep.subr.mxu0 0.0
  %3059 = vmatpush1.msra.mxu0 0.0
  %3060 = vmatprep.subr.mxu0 0.0
  %3061 = vmatpush1.msra.mxu0 0.0
  %3062 = vmatprep.subr.mxu0 0.0
  %3063 = vmatpush1.msra.mxu0 0.0
  %3064 = vmatprep.subr.mxu0 0.0
  %3065 = vmatpush1.msra.mxu0 0.0
  %3066 = vmatprep.subr.mxu0 0.0
  %3067 = vmatpush1.msra.mxu0 0.0
  %3068 = vmatprep.subr.mxu0 0.0
  %3069 = vmatpush1.msra.mxu0 0.0
  %3070 = vmatprep.subr.mxu0 0.0
  %3071 = vmatpush1.msra.mxu0 0.0
  %3072 = vmatprep.subr.mxu0 0.0
  %3073 = vmatpush1.msra.mxu0 0.0
  %3074 = vmatprep.subr.mxu0 0.0
  %3075 = vmatpush1.msra.mxu0 0.0
  %3076 = vmatprep.subr.mxu0 0.0
  %3077 = vmatpush1.msra.mxu0 0.0
  %3078 = vmatprep.subr.mxu0 0.0
  %3079 = vmatpush1.msra.mxu0 0.0
  %3080 = vmatprep.subr.mxu0 0.0
  %3081 = vmatpush1.msra.mxu0 0.0
  %3082 = vmatprep.subr.mxu0 0.0
  %3083 = vmatpush1.msra.mxu0 0.0
  %3084 = vmatprep.subr.mxu0 0.0
  %3085 = vmatpush1.msra.mxu0 0.0
  %3086 = vmatprep.subr.mxu0 0.0
  %3087 = vmatpush1.msra.mxu0 0.0
  %3088 = vmatprep.subr.mxu0 0.0
  %3089 = vmatpush1.msra.mxu0 0.0
  %3090 = vmatprep.subr.mxu0 0.0
  %3091 = vmatpush1.msra.mxu0 0.0
  %3092 = vmatprep.subr.mxu0 0.0
  %3093 = vmatpush1.msra.mxu0 0.0
  %3094 = vmatprep.mubr.f32.mxu0 0.0
  %3095 = vmatmul.mubr.f32.gmra.mrb[0].mxu0 %v2958
  %v3096 = vpop.f32.mrb[0].mxu0
  %v3097 = vadd.f32 %v3027, %v3096
  %v3098 = vpop.f32.mrb[0].mxu0
  %3099 = vdwg.mxu0
  %v3100 = vmul.f32 %v3097, 0.001953125
  %v3101 = vmul.f32 %v3100, %v3100
  %v3103 = vrot.slane %v3101, 7
  %v3105 = vsub.f32 %v3100, %v3103
  %v3106 = vmax.f32 %v3105, 0.0
  %v3107 = vld [vmem:[%s1 + $0x1] sm:$0x1]
  %v3108 = vld [vmem:[%s2 + $0x1] sm:$0x1]
  %v3109 = vadd.f32 %v3106, 1e-05
  %v3110 = vrsqrt.pop %v3109
  %v3112 = vrot.slane %v3110, 1
  %v3114 = vmul.f32 %v3107, %v3112
  %v3115 = vmul.f32 %v3100, %v3114
  %v3116 = vsub.f32 %v3108, %v3115
  %v3118 = vrot.slane %v3116, 7
  %v3120 = vsel %vm843, %v3114, %v3118
  %v3121 = vld [vmem:[%s12] sm:$0xff]
  %v3122 = vld [vmem:[%s12 + $0x8] sm:$0xff]
  %v3123 = vld [vmem:[%s12 + $0x10] sm:$0xff]
  %v3124 = vld [vmem:[%s12 + $0x18] sm:$0xff]
  %v3125 = vld [vmem:[%s12 + $0x20] sm:$0xff]
  %v3126 = vld [vmem:[%s12 + $0x28] sm:$0xff]
  %v3128 = vsel %vm1053, %v3120, 0
  %3130 = vmatprep.subr.mxu0 %v3122
  %3131 = vmatpush1.msra.mxu0 %v3121
  %3132 = vmatprep.subr.mxu0 %v3125
  %3133 = vmatpush1.msra.mxu0 %v3124
  %3134 = vmatprep.subr.mxu0 0.0
  %3135 = vmatpush1.msra.mxu0 0.0
  %3136 = vmatprep.subr.mxu0 0.0
  %3137 = vmatpush1.msra.mxu0 0.0
  %3138 = vmatprep.subr.mxu0 0.0
  %3139 = vmatpush1.msra.mxu0 0.0
  %3140 = vmatprep.subr.mxu0 0.0
  %3141 = vmatpush1.msra.mxu0 0.0
  %3142 = vmatprep.subr.mxu0 0.0
  %3143 = vmatpush1.msra.mxu0 0.0
  %3144 = vmatprep.subr.mxu0 0.0
  %3145 = vmatpush1.msra.mxu0 0.0
  %3146 = vmatprep.subr.mxu0 0.0
  %3147 = vmatpush1.msra.mxu0 0.0
  %3148 = vmatprep.subr.mxu0 0.0
  %3149 = vmatpush1.msra.mxu0 0.0
  %3150 = vmatprep.subr.mxu0 0.0
  %3151 = vmatpush1.msra.mxu0 0.0
  %3152 = vmatprep.subr.mxu0 0.0
  %3153 = vmatpush1.msra.mxu0 0.0
  %3154 = vmatprep.subr.mxu0 0.0
  %3155 = vmatpush1.msra.mxu0 0.0
  %3156 = vmatprep.subr.mxu0 0.0
  %3157 = vmatpush1.msra.mxu0 0.0
  %3158 = vmatprep.subr.mxu0 0.0
  %3159 = vmatpush1.msra.mxu0 0.0
  %3160 = vmatprep.subr.mxu0 0.0
  %3161 = vmatpush1.msra.mxu0 0.0
  %3162 = vmatprep.subr.mxu0 0.0
  %3163 = vmatpush1.msra.mxu0 0.0
  %3164 = vmatprep.subr.mxu0 0.0
  %3165 = vmatpush1.msra.mxu0 0.0
  %3166 = vmatprep.subr.mxu0 0.0
  %3167 = vmatpush1.msra.mxu0 0.0
  %3168 = vmatprep.subr.mxu0 0.0
  %3169 = vmatpush1.msra.mxu0 0.0
  %3170 = vmatprep.subr.mxu0 0.0
  %3171 = vmatpush1.msra.mxu0 0.0
  %3172 = vmatprep.subr.mxu0 0.0
  %3173 = vmatpush1.msra.mxu0 0.0
  %3174 = vmatprep.subr.mxu0 0.0
  %3175 = vmatpush1.msra.mxu0 0.0
  %3176 = vmatprep.subr.mxu0 0.0
  %3177 = vmatpush1.msra.mxu0 0.0
  %3178 = vmatprep.subr.mxu0 0.0
  %3179 = vmatpush1.msra.mxu0 0.0
  %3180 = vmatprep.subr.mxu0 0.0
  %3181 = vmatpush1.msra.mxu0 0.0
  %3182 = vmatprep.subr.mxu0 0.0
  %3183 = vmatpush1.msra.mxu0 0.0
  %3184 = vmatprep.subr.mxu0 0.0
  %3185 = vmatpush1.msra.mxu0 0.0
  %3186 = vmatprep.subr.mxu0 0.0
  %3187 = vmatpush1.msra.mxu0 0.0
  %3188 = vmatprep.subr.mxu0 0.0
  %3189 = vmatpush1.msra.mxu0 0.0
  %3190 = vmatprep.subr.mxu0 0.0
  %3191 = vmatpush1.msra.mxu0 0.0
  %3192 = vmatprep.subr.mxu0 0.0
  %3193 = vmatpush1.msra.mxu0 0.0
  %3194 = vmatprep.mubr.f32.mxu0 0.0
  %3195 = vmatmul.mubr.f32.gmra.mrb[0].mxu0 %v3128
  %v3196 = vpop.f32.mrb[0].mxu0
  %v3197 = vadd.f32 0.0, %v3196
  %v3198 = vpop.f32.mrb[0].mxu0
  %v3199 = vadd.f32 0.0, %v3198
  %3200 = vdwg.mxu0
  %3201 = vmatprep.subr.mxu0 0.0
  %3202 = vmatpush1.msra.mxu0 %v3123
  %3203 = vmatprep.subr.mxu0 0.0
  %3204 = vmatpush1.msra.mxu0 %v3126
  %3205 = vmatprep.subr.mxu0 0.0
  %3206 = vmatpush1.msra.mxu0 0.0
  %3207 = vmatprep.subr.mxu0 0.0
  %3208 = vmatpush1.msra.mxu0 0.0
  %3209 = vmatprep.subr.mxu0 0.0
  %3210 = vmatpush1.msra.mxu0 0.0
  %3211 = vmatprep.subr.mxu0 0.0
  %3212 = vmatpush1.msra.mxu0 0.0
  %3213 = vmatprep.subr.mxu0 0.0
  %3214 = vmatpush1.msra.mxu0 0.0
  %3215 = vmatprep.subr.mxu0 0.0
  %3216 = vmatpush1.msra.mxu0 0.0
  %3217 = vmatprep.subr.mxu0 0.0
  %3218 = vmatpush1.msra.mxu0 0.0
  %3219 = vmatprep.subr.mxu0 0.0
  %3220 = vmatpush1.msra.mxu0 0.0
  %3221 = vmatprep.subr.mxu0 0.0
  %3222 = vmatpush1.msra.mxu0 0.0
  %3223 = vmatprep.subr.mxu0 0.0
  %3224 = vmatpush1.msra.mxu0 0.0
  %3225 = vmatprep.subr.mxu0 0.0
  %3226 = vmatpush1.msra.mxu0 0.0
  %3227 = vmatprep.subr.mxu0 0.0
  %3228 = vmatpush1.msra.mxu0 0.0
  %3229 = vmatprep.subr.mxu0 0.0
  %3230 = vmatpush1.msra.mxu0 0.0
  %3231 = vmatprep.subr.mxu0 0.0
  %3232 = vmatpush1.msra.mxu0 0.0
  %3233 = vmatprep.subr.mxu0 0.0
  %3234 = vmatpush1.msra.mxu0 0.0
  %3235 = vmatprep.subr.mxu0 0.0
  %3236 = vmatpush1.msra.mxu0 0.0
  %3237 = vmatprep.subr.mxu0 0.0
  %3238 = vmatpush1.msra.mxu0 0.0
  %3239 = vmatprep.subr.mxu0 0.0
  %3240 = vmatpush1.msra.mxu0 0.0
  %3241 = vmatprep.subr.mxu0 0.0
  %3242 = vmatpush1.msra.mxu0 0.0
  %3243 = vmatprep.subr.mxu0 0.0
  %3244 = vmatpush1.msra.mxu0 0.0
  %3245 = vmatprep.subr.mxu0 0.0
  %3246 = vmatpush1.msra.mxu0 0.0
  %3247 = vmatprep.subr.mxu0 0.0
  %3248 = vmatpush1.msra.mxu0 0.0
  %3249 = vmatprep.subr.mxu0 0.0
  %3250 = vmatpush1.msra.mxu0 0.0
  %3251 = vmatprep.subr.mxu0 0.0
  %3252 = vmatpush1.msra.mxu0 0.0
  %3253 = vmatprep.subr.mxu0 0.0
  %3254 = vmatpush1.msra.mxu0 0.0
  %3255 = vmatprep.subr.mxu0 0.0
  %3256 = vmatpush1.msra.mxu0 0.0
  %3257 = vmatprep.subr.mxu0 0.0
  %3258 = vmatpush1.msra.mxu0 0.0
  %3259 = vmatprep.subr.mxu0 0.0
  %3260 = vmatpush1.msra.mxu0 0.0
  %3261 = vmatprep.subr.mxu0 0.0
  %3262 = vmatpush1.msra.mxu0 0.0
  %3263 = vmatprep.subr.mxu0 0.0
  %3264 = vmatpush1.msra.mxu0 0.0
  %3265 = vmatprep.mubr.f32.mxu0 0.0
  %3266 = vmatmul.mubr.f32.gmra.mrb[0].mxu0 %v3128
  %v3267 = vpop.f32.mrb[0].mxu0
  %v3268 = vadd.f32 0.0, %v3267
  %v3269 = vpop.f32.mrb[0].mxu0
  %3270 = vdwg.mxu0
  %v3271 = vlaneseq
  %v3272 = vshrl.u32 %v3271, 7
  %v3273 = vsub.s32 0, %v3272
  %v3274 = vrot.slane %v3197, %v3273
  %v3275 = vlaneseq
  %v3276 = vshrl.u32 %v3275, 7
  %v3277 = vsub.s32 0, %v3276
  %v3278 = vrot.slane %v3199, %v3277
  %v3279 = vlaneseq
  %v3280 = vshrl.u32 %v3279, 7
  %v3281 = vsub.s32 0, %v3280
  %v3282 = vrot.slane %v3268, %v3281
  %v3283 = vmul.f32 %v2832, %v3274
  %v3284 = vmul.f32 %v2833, %v3278
  %v3285 = vmul.f32 %v2834, %v3282
  %v3286 = vmul.f32 %v2835, %v3274
  %v3287 = vmul.f32 %v2836, %v3278
  %v3288 = vmul.f32 %v2837, %v3282
  %v3289 = vmul.f32 %v2838, %v3274
  %v3290 = vmul.f32 %v2839, %v3278
  %v3291 = vmul.f32 %v2840, %v3282
  %v3292 = vmul.f32 %v2841, %v3274
  %v3293 = vmul.f32 %v2842, %v3278
  %v3294 = vmul.f32 %v2843, %v3282
  %v3295 = vlaneseq
  %v3296 = vshrl.u32 %v3295, 7
  %v3297 = vsub.s32 1, %v3296
  %v3298 = vrot.slane %v3197, %v3297
  %v3299 = vlaneseq
  %v3300 = vshrl.u32 %v3299, 7
  %v3301 = vsub.s32 1, %v3300
  %v3302 = vrot.slane %v3199, %v3301
  %v3303 = vlaneseq
  %v3304 = vshrl.u32 %v3303, 7
  %v3305 = vsub.s32 1, %v3304
  %v3306 = vrot.slane %v3268, %v3305
  %v3307 = vadd.f32 %v3283, %v3298
  %v3308 = vadd.f32 %v3284, %v3302
  %v3309 = vadd.f32 %v3285, %v3306
  %v3310 = vadd.f32 %v3286, %v3298
  %v3311 = vadd.f32 %v3287, %v3302
  %v3312 = vadd.f32 %v3288, %v3306
  %v3313 = vadd.f32 %v3289, %v3298
  %v3314 = vadd.f32 %v3290, %v3302
  %v3315 = vadd.f32 %v3291, %v3306
  %v3316 = vadd.f32 %v3292, %v3298
  %v3317 = vadd.f32 %v3293, %v3302
  %v3318 = vadd.f32 %v3294, %v3306
  %v3319 = vmax.f32 %v3307, 0.0
  %v3320 = vmax.f32 %v3308, 0.0
  %v3321 = vmax.f32 %v3309, 0.0
  %v3322 = vmax.f32 %v3310, 0.0
  %v3323 = vmax.f32 %v3311, 0.0
  %v3324 = vmax.f32 %v3312, 0.0
  %v3325 = vmax.f32 %v3313, 0.0
  %v3326 = vmax.f32 %v3314, 0.0
  %v3327 = vmax.f32 %v3315, 0.0
  %v3328 = vmax.f32 %v3316, 0.0
  %v3329 = vmax.f32 %v3317, 0.0
  %v3330 = vmax.f32 %v3318, 0.0
  %3331 = vst [vmem:[%s17] sm:$0xff] %v3319
  %3332 = vst [vmem:[%s17 + $0x8] sm:$0xff] %v3320
  %3333 = vst.msk [vmem:[%s17 + $0x10] sm:$0xff] %vm786, %v3321
  %3334 = vst [vmem:[%s17 + $0x18] sm:$0xff] %v3322
  %3335 = vst [vmem:[%s17 + $0x20] sm:$0xff] %v3323
  %3336 = vst.msk [vmem:[%s17 + $0x28] sm:$0xff] %vm786, %v3324
  %3337 = vst [vmem:[%s17 + $0x30] sm:$0xff] %v3325
  %3338 = vst [vmem:[%s17 + $0x38] sm:$0xff] %v3326
  %3339 = vst.msk [vmem:[%s17 + $0x40] sm:$0xff] %vm786, %v3327
  %3340 = vst [vmem:[%s17 + $0x48] sm:$0xff] %v3328
  %3341 = vst [vmem:[%s17 + $0x50] sm:$0xff] %v3329
  %3342 = vst.msk [vmem:[%s17 + $0x58] sm:$0xff] %vm786, %v3330
  %v3355 = vrot.slane %v3319, 7
  %v3356 = vrot.slane %v3320, 7
  %v3357 = vrot.slane %v3321, 7
  %v3358 = vrot.slane %v3322, 7
  %v3359 = vsel %vm843, %v3355, %v3358
  %v3360 = vrot.slane %v3323, 7
  %v3361 = vsel %vm843, %v3356, %v3360
  %v3362 = vrot.slane %v3324, 7
  %v3363 = vsel %vm843, %v3357, %v3362
  %v3364 = vrot.slane %v3325, 7
  %v3365 = vrot.slane %v3326, 7
  %v3366 = vrot.slane %v3327, 7
  %v3367 = vrot.slane %v3328, 7
  %v3368 = vsel %vm843, %v3364, %v3367
  %v3369 = vrot.slane %v3329, 7
  %v3370 = vsel %vm843, %v3365, %v3369
  %v3371 = vrot.slane %v3330, 7
  %v3372 = vsel %vm843, %v3366, %v3371
  %3391 = vst [vmem:[#allocation2] sm:$0xfe] %v3355
  %3392 = vst [vmem:[#allocation2 + $0x8] sm:$0xfe] %v3356
  %3393 = vst.msk [vmem:[#allocation2 + $0x10] sm:$0xfe] %vm1308, %v3357
  %3394 = vst [vmem:[#allocation2 + $0x18] sm:$0xff] %v3359
  %3395 = vst [vmem:[#allocation2 + $0x20] sm:$0xff] %v3361
  %3396 = vst.msk [vmem:[#allocation2 + $0x28] sm:$0xff] %vm786, %v3363
  %3397 = vst [vmem:[#allocation2 + $0x30] sm:$0x1] %v3358
  %3398 = vst [vmem:[#allocation2 + $0x38] sm:$0x1] %v3360
  %3399 = vst.msk [vmem:[#allocation2 + $0x40] sm:$0x1] %vm1315, %v3362
  %3400 = vst [vmem:[#allocation2 + $0x48] sm:$0xfe] %v3364
  %3401 = vst [vmem:[#allocation2 + $0x50] sm:$0xfe] %v3365
  %3402 = vst.msk [vmem:[#allocation2 + $0x58] sm:$0xfe] %vm1308, %v3366
  %3403 = vst [vmem:[#allocation2 + $0x60] sm:$0xff] %v3368
  %3404 = vst [vmem:[#allocation2 + $0x68] sm:$0xff] %v3370
  %3405 = vst.msk [vmem:[#allocation2 + $0x70] sm:$0xff] %vm786, %v3372
  %3406 = vst [vmem:[#allocation2 + $0x78] sm:$0x1] %v3367
  %3407 = vst [vmem:[#allocation2 + $0x80] sm:$0x1] %v3369
  %3408 = vst.msk [vmem:[#allocation2 + $0x88] sm:$0x1] %vm1315, %v3371
  %v3409 = vld [vmem:[#allocation2] sm:$0xff]
  %v3410 = vld [vmem:[#allocation2 + $0x8] sm:$0xff]
  %v3411 = vld [vmem:[#allocation2 + $0x10] sm:$0xff]
  %v3412 = vld [vmem:[#allocation2 + $0x18] sm:$0xff]
  %v3413 = vld [vmem:[#allocation2 + $0x20] sm:$0xff]
  %v3414 = vld [vmem:[#allocation2 + $0x28] sm:$0xff]
  %v3415 = vld [vmem:[#allocation2 + $0x30] sm:$0x3]
  %v3416 = vld [vmem:[#allocation2 + $0x38] sm:$0x3]
  %v3417 = vld [vmem:[#allocation2 + $0x40] sm:$0x3]
  %v3418 = vld [vmem:[#allocation2 + $0x48] sm:$0xff]
  %v3419 = vld [vmem:[#allocation2 + $0x50] sm:$0xff]
  %v3420 = vld [vmem:[#allocation2 + $0x58] sm:$0xff]
  %v3421 = vld [vmem:[#allocation2 + $0x60] sm:$0xff]
  %v3422 = vld [vmem:[#allocation2 + $0x68] sm:$0xff]
  %v3423 = vld [vmem:[#allocation2 + $0x70] sm:$0xff]
  %v3424 = vld [vmem:[#allocation2 + $0x78] sm:$0x3]
  %v3425 = vld [vmem:[#allocation2 + $0x80] sm:$0x3]
  %v3426 = vld [vmem:[#allocation2 + $0x88] sm:$0x3]
  %v3445 = vrot.slane %v3409, 1
  %v3446 = vrot.slane %v3412, 1
  %v3447 = vsel %vm131, %v3445, %v3446
  %v3448 = vrot.slane %v3410, 1
  %v3449 = vrot.slane %v3413, 1
  %v3450 = vsel %vm131, %v3448, %v3449
  %v3451 = vrot.slane %v3411, 1
  %v3452 = vrot.slane %v3414, 1
  %v3453 = vsel %vm131, %v3451, %v3452
  %v3454 = vrot.slane %v3415, 1
  %v3455 = vsel %vm131, %v3446, %v3454
  %v3456 = vrot.slane %v3416, 1
  %v3457 = vsel %vm131, %v3449, %v3456
  %v3458 = vrot.slane %v3417, 1
  %v3459 = vsel %vm131, %v3452, %v3458
  %v3460 = vrot.slane %v3418, 1
  %v3461 = vrot.slane %v3421, 1
  %v3462 = vsel %vm131, %v3460, %v3461
  %v3463 = vrot.slane %v3419, 1
  %v3464 = vrot.slane %v3422, 1
  %v3465 = vsel %vm131, %v3463, %v3464
  %v3466 = vrot.slane %v3420, 1
  %v3467 = vrot.slane %v3423, 1
  %v3468 = vsel %vm131, %v3466, %v3467
  %v3469 = vrot.slane %v3424, 1
  %v3470 = vsel %vm131, %v3461, %v3469
  %v3471 = vrot.slane %v3425, 1
  %v3472 = vsel %vm131, %v3464, %v3471
  %v3473 = vrot.slane %v3426, 1
  %v3474 = vsel %vm131, %v3467, %v3473
  %v3487 = vmax.f32 %v3409, %v3447
  %v3488 = vmax.f32 %v3410, %v3450
  %v3489 = vmax.f32 %v3411, %v3453
  %v3490 = vmax.f32 %v3412, %v3455
  %v3491 = vmax.f32 %v3413, %v3457
  %v3492 = vmax.f32 %v3414, %v3459
  %v3493 = vmax.f32 %v3418, %v3462
  %v3494 = vmax.f32 %v3419, %v3465
  %v3495 = vmax.f32 %v3420, %v3468
  %v3496 = vmax.f32 %v3421, %v3470
  %v3497 = vmax.f32 %v3422, %v3472
  %v3498 = vmax.f32 %v3423, %v3474
  %v3511 = vcombine.low %v3487, %v3488
  %v3512 = vcombine.high %v3487, %v3488
  %v3513 = vcombine.high %v3489, %v3489
  %v3515 = vunpack.c.l.s4 1983009808
  %v3516 = vunpack.c.0.s8 %v3515
  %v3517 = vlaneseq
  %v3518 = vshrl.u32 %v3517, 7
  %v3519 = vsub.s32 %v3516, %v3518
  %v3520 = vrot.slane %v3511, %v3519
  %v3522 = vunpack.c.l.s4 1983009808
  %v3523 = vunpack.c.0.s8 %v3522
  %v3524 = vlaneseq
  %v3525 = vshrl.u32 %v3524, 7
  %v3526 = vsub.s32 %v3523, %v3525
  %v3527 = vrot.slane %v3512, %v3526
  %v3529 = vunpack.c.l.s4 1983009808
  %v3530 = vunpack.c.0.s8 %v3529
  %v3531 = vlaneseq
  %v3532 = vshrl.u32 %v3531, 7
  %v3533 = vsub.s32 %v3530, %v3532
  %v3534 = vrot.slane %v3489, %v3533
  %v3536 = vunpack.c.l.s4 1983009808
  %v3537 = vunpack.c.0.s8 %v3536
  %v3538 = vlaneseq
  %v3539 = vshrl.u32 %v3538, 7
  %v3540 = vsub.s32 %v3537, %v3539
  %v3541 = vrot.slane %v3513, %v3540
  %v3542 = vcombine.low %v3520, %v3534
  %v3543 = vcombine.high %v3520, %v3534
  %v3544 = vcombine.low %v3527, %v3541
  %v3545 = vcombine.high %v3527, %v3541
  %v3546 = vcombine.low %v3490, %v3491
  %v3547 = vcombine.high %v3490, %v3491
  %v3548 = vcombine.high %v3492, %v3492
  %v3550 = vunpack.c.l.s4 1983009808
  %v3551 = vunpack.c.0.s8 %v3550
  %v3552 = vlaneseq
  %v3553 = vshrl.u32 %v3552, 7
  %v3554 = vsub.s32 %v3551, %v3553
  %v3555 = vrot.slane %v3546, %v3554
  %v3557 = vunpack.c.l.s4 1983009808
  %v3558 = vunpack.c.0.s8 %v3557
  %v3559 = vlaneseq
  %v3560 = vshrl.u32 %v3559, 7
  %v3561 = vsub.s32 %v3558, %v3560
  %v3562 = vrot.slane %v3547, %v3561
  %v3564 = vunpack.c.l.s4 1983009808
  %v3565 = vunpack.c.0.s8 %v3564
  %v3566 = vlaneseq
  %v3567 = vshrl.u32 %v3566, 7
  %v3568 = vsub.s32 %v3565, %v3567
  %v3569 = vrot.slane %v3492, %v3568
  %v3571 = vunpack.c.l.s4 1983009808
  %v3572 = vunpack.c.0.s8 %v3571
  %v3573 = vlaneseq
  %v3574 = vshrl.u32 %v3573, 7
  %v3575 = vsub.s32 %v3572, %v3574
  %v3576 = vrot.slane %v3548, %v3575
  %v3577 = vcombine.low %v3555, %v3569
  %v3578 = vcombine.high %v3555, %v3569
  %v3579 = vcombine.low %v3562, %v3576
  %v3580 = vcombine.high %v3562, %v3576
  %v3581 = vcombine.low %v3493, %v3494
  %v3582 = vcombine.high %v3493, %v3494
  %v3583 = vcombine.high %v3495, %v3495
  %v3585 = vunpack.c.l.s4 1983009808
  %v3586 = vunpack.c.0.s8 %v3585
  %v3587 = vlaneseq
  %v3588 = vshrl.u32 %v3587, 7
  %v3589 = vsub.s32 %v3586, %v3588
  %v3590 = vrot.slane %v3581, %v3589
  %v3592 = vunpack.c.l.s4 1983009808
  %v3593 = vunpack.c.0.s8 %v3592
  %v3594 = vlaneseq
  %v3595 = vshrl.u32 %v3594, 7
  %v3596 = vsub.s32 %v3593, %v3595
  %v3597 = vrot.slane %v3582, %v3596
  %v3599 = vunpack.c.l.s4 1983009808
  %v3600 = vunpack.c.0.s8 %v3599
  %v3601 = vlaneseq
  %v3602 = vshrl.u32 %v3601, 7
  %v3603 = vsub.s32 %v3600, %v3602
  %v3604 = vrot.slane %v3495, %v3603
  %v3606 = vunpack.c.l.s4 1983009808
  %v3607 = vunpack.c.0.s8 %v3606
  %v3608 = vlaneseq
  %v3609 = vshrl.u32 %v3608, 7
  %v3610 = vsub.s32 %v3607, %v3609
  %v3611 = vrot.slane %v3583, %v3610
  %v3612 = vcombine.low %v3590, %v3604
  %v3613 = vcombine.high %v3590, %v3604
  %v3614 = vcombine.low %v3597, %v3611
  %v3615 = vcombine.high %v3597, %v3611
  %v3616 = vcombine.low %v3496, %v3497
  %v3617 = vcombine.high %v3496, %v3497
  %v3618 = vcombine.high %v3498, %v3498
  %v3620 = vunpack.c.l.s4 1983009808
  %v3621 = vunpack.c.0.s8 %v3620
  %v3622 = vlaneseq
  %v3623 = vshrl.u32 %v3622, 7
  %v3624 = vsub.s32 %v3621, %v3623
  %v3625 = vrot.slane %v3616, %v3624
  %v3627 = vunpack.c.l.s4 1983009808
  %v3628 = vunpack.c.0.s8 %v3627
  %v3629 = vlaneseq
  %v3630 = vshrl.u32 %v3629, 7
  %v3631 = vsub.s32 %v3628, %v3630
  %v3632 = vrot.slane %v3617, %v3631
  %v3634 = vunpack.c.l.s4 1983009808
  %v3635 = vunpack.c.0.s8 %v3634
  %v3636 = vlaneseq
  %v3637 = vshrl.u32 %v3636, 7
  %v3638 = vsub.s32 %v3635, %v3637
  %v3639 = vrot.slane %v3498, %v3638
  %v3641 = vunpack.c.l.s4 1983009808
  %v3642 = vunpack.c.0.s8 %v3641
  %v3643 = vlaneseq
  %v3644 = vshrl.u32 %v3643, 7
  %v3645 = vsub.s32 %v3642, %v3644
  %v3646 = vrot.slane %v3618, %v3645
  %v3647 = vcombine.low %v3625, %v3639
  %v3648 = vcombine.high %v3625, %v3639
  %v3649 = vcombine.low %v3632, %v3646
  %v3650 = vcombine.high %v3632, %v3646
  %v3667 = vrot.slane %v3542, 7
  %v3668 = vrot.slane %v3667, 2
  %v3669 = vrot.slane %v3543, 7
  %v3670 = vrot.slane %v3669, 2
  %v3671 = vrot.slane %v3544, 7
  %v3672 = vrot.slane %v3671, 2
  %v3673 = vrot.slane %v3545, 7
  %v3674 = vrot.slane %v3673, 2
  %v3675 = vrot.slane %v3577, 7
  %v3676 = vrot.slane %v3675, 2
  %v3677 = vrot.slane %v3578, 7
  %v3678 = vrot.slane %v3677, 2
  %v3679 = vrot.slane %v3579, 7
  %v3680 = vrot.slane %v3679, 2
  %v3681 = vrot.slane %v3580, 7
  %v3682 = vrot.slane %v3681, 2
  %v3683 = vrot.slane %v3612, 7
  %v3684 = vrot.slane %v3683, 2
  %v3685 = vrot.slane %v3613, 7
  %v3686 = vrot.slane %v3685, 2
  %v3687 = vrot.slane %v3614, 7
  %v3688 = vrot.slane %v3687, 2
  %v3689 = vrot.slane %v3615, 7
  %v3690 = vrot.slane %v3689, 2
  %v3691 = vrot.slane %v3647, 7
  %v3692 = vrot.slane %v3691, 2
  %v3693 = vrot.slane %v3648, 7
  %v3694 = vrot.slane %v3693, 2
  %v3695 = vrot.slane %v3649, 7
  %v3696 = vrot.slane %v3695, 2
  %v3697 = vrot.slane %v3650, 7
  %v3698 = vrot.slane %v3697, 2
  %v3715 = vmax.f32 %v3542, %v3668
  %v3716 = vmax.f32 %v3543, %v3670
  %v3717 = vmax.f32 %v3544, %v3672
  %v3718 = vmax.f32 %v3545, %v3674
  %v3719 = vmax.f32 %v3577, %v3676
  %v3720 = vmax.f32 %v3578, %v3678
  %v3721 = vmax.f32 %v3579, %v3680
  %v3722 = vmax.f32 %v3580, %v3682
  %v3723 = vmax.f32 %v3612, %v3684
  %v3724 = vmax.f32 %v3613, %v3686
  %v3725 = vmax.f32 %v3614, %v3688
  %v3726 = vmax.f32 %v3615, %v3690
  %v3727 = vmax.f32 %v3647, %v3692
  %v3728 = vmax.f32 %v3648, %v3694
  %v3729 = vmax.f32 %v3649, %v3696
  %v3730 = vmax.f32 %v3650, %v3698
  %3747 = vrot.lane.b32.xlu0 %v3715, 112
  %v3748 = vpop.permute.xlu0 %3747
  %3749 = vrot.lane.b32.xlu0 %v3716, 112
  %v3750 = vpop.permute.xlu0 %3749
  %3751 = vrot.lane.b32.xlu0 %v3717, 112
  %v3752 = vpop.permute.xlu0 %3751
  %3753 = vrot.lane.b32.xlu0 %v3718, 112
  %v3754 = vpop.permute.xlu0 %3753
  %3755 = vrot.lane.b32.xlu0 %v3719, 112
  %v3756 = vpop.permute.xlu0 %3755
  %3757 = vrot.lane.b32.xlu0 %v3720, 112
  %v3758 = vpop.permute.xlu0 %3757
  %3759 = vrot.lane.b32.xlu0 %v3721, 112
  %v3760 = vpop.permute.xlu0 %3759
  %3761 = vrot.lane.b32.xlu0 %v3722, 112
  %v3762 = vpop.permute.xlu0 %3761
  %3763 = vrot.lane.b32.xlu0 %v3723, 112
  %v3764 = vpop.permute.xlu0 %3763
  %3765 = vrot.lane.b32.xlu0 %v3724, 112
  %v3766 = vpop.permute.xlu0 %3765
  %3767 = vrot.lane.b32.xlu0 %v3725, 112
  %v3768 = vpop.permute.xlu0 %3767
  %3769 = vrot.lane.b32.xlu0 %v3726, 112
  %v3770 = vpop.permute.xlu0 %3769
  %3771 = vrot.lane.b32.xlu0 %v3727, 112
  %v3772 = vpop.permute.xlu0 %3771
  %3773 = vrot.lane.b32.xlu0 %v3728, 112
  %v3774 = vpop.permute.xlu0 %3773
  %3775 = vrot.lane.b32.xlu0 %v3729, 112
  %v3776 = vpop.permute.xlu0 %3775
  %3777 = vrot.lane.b32.xlu0 %v3730, 112
  %v3778 = vpop.permute.xlu0 %3777
  %v3779 = vrot.slane %v3748, 2
  %v3780 = vrot.slane %v3750, 2
  %v3781 = vrot.slane %v3752, 2
  %v3782 = vrot.slane %v3754, 2
  %v3783 = vrot.slane %v3756, 2
  %v3784 = vrot.slane %v3758, 2
  %v3785 = vrot.slane %v3760, 2
  %v3786 = vrot.slane %v3762, 2
  %v3787 = vrot.slane %v3764, 2
  %v3788 = vrot.slane %v3766, 2
  %v3789 = vrot.slane %v3768, 2
  %v3790 = vrot.slane %v3770, 2
  %v3791 = vrot.slane %v3772, 2
  %v3792 = vrot.slane %v3774, 2
  %v3793 = vrot.slane %v3776, 2
  %v3794 = vrot.slane %v3778, 2
  %vm3795 = vcmask 916480
  %v3796 = vsel %vm3795, %v3748, %v3779
  %v3797 = vsel %vm3795, %v3750, %v3780
  %v3798 = vsel %vm3795, %v3752, %v3781
  %v3799 = vsel %vm3795, %v3754, %v3782
  %v3800 = vsel %vm3795, %v3756, %v3783
  %v3801 = vsel %vm3795, %v3758, %v3784
  %v3802 = vsel %vm3795, %v3760, %v3785
  %v3803 = vsel %vm3795, %v3762, %v3786
  %v3804 = vsel %vm3795, %v3764, %v3787
  %v3805 = vsel %vm3795, %v3766, %v3788
  %v3806 = vsel %vm3795, %v3768, %v3789
  %v3807 = vsel %vm3795, %v3770, %v3790
  %v3808 = vsel %vm3795, %v3772, %v3791
  %v3809 = vsel %vm3795, %v3774, %v3792
  %v3810 = vsel %vm3795, %v3776, %v3793
  %v3811 = vsel %vm3795, %v3778, %v3794
  %v3828 = vmax.f32 %v3715, %v3796
  %v3829 = vmax.f32 %v3716, %v3797
  %v3830 = vmax.f32 %v3717, %v3798
  %v3831 = vmax.f32 %v3718, %v3799
  %v3832 = vmax.f32 %v3719, %v3800
  %v3833 = vmax.f32 %v3720, %v3801
  %v3834 = vmax.f32 %v3721, %v3802
  %v3835 = vmax.f32 %v3722, %v3803
  %v3836 = vmax.f32 %v3723, %v3804
  %v3837 = vmax.f32 %v3724, %v3805
  %v3838 = vmax.f32 %v3725, %v3806
  %v3839 = vmax.f32 %v3726, %v3807
  %v3840 = vmax.f32 %v3727, %v3808
  %v3841 = vmax.f32 %v3728, %v3809
  %v3842 = vmax.f32 %v3729, %v3810
  %v3843 = vmax.f32 %v3730, %v3811
  %3844 = vrot.lane.b32.xlu0 %v3715, 96
  %v3845 = vpop.permute.xlu0 %3844
  %3846 = vrot.lane.b32.xlu0 %v3716, 96
  %v3847 = vpop.permute.xlu0 %3846
  %3848 = vrot.lane.b32.xlu0 %v3717, 96
  %v3849 = vpop.permute.xlu0 %3848
  %3850 = vrot.lane.b32.xlu0 %v3718, 96
  %v3851 = vpop.permute.xlu0 %3850
  %3852 = vrot.lane.b32.xlu0 %v3719, 96
  %v3853 = vpop.permute.xlu0 %3852
  %3854 = vrot.lane.b32.xlu0 %v3720, 96
  %v3855 = vpop.permute.xlu0 %3854
  %3856 = vrot.lane.b32.xlu0 %v3721, 96
  %v3857 = vpop.permute.xlu0 %3856
  %3858 = vrot.lane.b32.xlu0 %v3722, 96
  %v3859 = vpop.permute.xlu0 %3858
  %3860 = vrot.lane.b32.xlu0 %v3723, 96
  %v3861 = vpop.permute.xlu0 %3860
  %3862 = vrot.lane.b32.xlu0 %v3724, 96
  %v3863 = vpop.permute.xlu0 %3862
  %3864 = vrot.lane.b32.xlu0 %v3725, 96
  %v3865 = vpop.permute.xlu0 %3864
  %3866 = vrot.lane.b32.xlu0 %v3726, 96
  %v3867 = vpop.permute.xlu0 %3866
  %3868 = vrot.lane.b32.xlu0 %v3727, 96
  %v3869 = vpop.permute.xlu0 %3868
  %3870 = vrot.lane.b32.xlu0 %v3728, 96
  %v3871 = vpop.permute.xlu0 %3870
  %3872 = vrot.lane.b32.xlu0 %v3729, 96
  %v3873 = vpop.permute.xlu0 %3872
  %3874 = vrot.lane.b32.xlu0 %v3730, 96
  %v3875 = vpop.permute.xlu0 %3874
  %v3876 = vrot.slane %v3845, 2
  %v3877 = vrot.slane %v3847, 2
  %v3878 = vrot.slane %v3849, 2
  %v3879 = vrot.slane %v3851, 2
  %v3880 = vrot.slane %v3853, 2
  %v3881 = vrot.slane %v3855, 2
  %v3882 = vrot.slane %v3857, 2
  %v3883 = vrot.slane %v3859, 2
  %v3884 = vrot.slane %v3861, 2
  %v3885 = vrot.slane %v3863, 2
  %v3886 = vrot.slane %v3865, 2
  %v3887 = vrot.slane %v3867, 2
  %v3888 = vrot.slane %v3869, 2
  %v3889 = vrot.slane %v3871, 2
  %v3890 = vrot.slane %v3873, 2
  %v3891 = vrot.slane %v3875, 2
  %vm3892 = vcmask 785408
  %v3893 = vsel %vm3892, %v3845, %v3876
  %v3894 = vsel %vm3892, %v3847, %v3877
  %v3895 = vsel %vm3892, %v3849, %v3878
  %v3896 = vsel %vm3892, %v3851, %v3879
  %v3897 = vsel %vm3892, %v3853, %v3880
  %v3898 = vsel %vm3892, %v3855, %v3881
  %v3899 = vsel %vm3892, %v3857, %v3882
  %v3900 = vsel %vm3892, %v3859, %v3883
  %v3901 = vsel %vm3892, %v3861, %v3884
  %v3902 = vsel %vm3892, %v3863, %v3885
  %v3903 = vsel %vm3892, %v3865, %v3886
  %v3904 = vsel %vm3892, %v3867, %v3887
  %v3905 = vsel %vm3892, %v3869, %v3888
  %v3906 = vsel %vm3892, %v3871, %v3889
  %v3907 = vsel %vm3892, %v3873, %v3890
  %v3908 = vsel %vm3892, %v3875, %v3891
  %v3925 = vmax.f32 %v3828, %v3893
  %v3926 = vmax.f32 %v3829, %v3894
  %v3927 = vmax.f32 %v3830, %v3895
  %v3928 = vmax.f32 %v3831, %v3896
  %v3929 = vmax.f32 %v3832, %v3897
  %v3930 = vmax.f32 %v3833, %v3898
  %v3931 = vmax.f32 %v3834, %v3899
  %v3932 = vmax.f32 %v3835, %v3900
  %v3933 = vmax.f32 %v3836, %v3901
  %v3934 = vmax.f32 %v3837, %v3902
  %v3935 = vmax.f32 %v3838, %v3903
  %v3936 = vmax.f32 %v3839, %v3904
  %v3937 = vmax.f32 %v3840, %v3905
  %v3938 = vmax.f32 %v3841, %v3906
  %v3939 = vmax.f32 %v3842, %v3907
  %v3940 = vmax.f32 %v3843, %v3908
  %v3941 = vld [vmem:[%s15] sm:$0xff]
  %v3942 = vld [vmem:[%s15 + $0x8] sm:$0xff]
  %v3943 = vld [vmem:[%s15 + $0x10] sm:$0xff]
  %v3944 = vld [vmem:[%s15 + $0x18] sm:$0xff]
  %v3945 = vld [vmem:[%s15 + $0x20] sm:$0xff]
  %v3946 = vld [vmem:[%s15 + $0x28] sm:$0xff]
  %v3947 = vld [vmem:[%s15 + $0x30] sm:$0xff]
  %v3948 = vld [vmem:[%s15 + $0x38] sm:$0xff]
  %v3949 = vld [vmem:[%s15 + $0x40] sm:$0xff]
  %v3950 = vld [vmem:[%s15 + $0x48] sm:$0xff]
  %v3951 = vld [vmem:[%s15 + $0x50] sm:$0xff]
  %v3952 = vld [vmem:[%s15 + $0x58] sm:$0xff]
  %v3953 = vld [vmem:[%s15 + $0x60] sm:$0xff]
  %v3954 = vld [vmem:[%s15 + $0x68] sm:$0xff]
  %v3955 = vld [vmem:[%s15 + $0x70] sm:$0xff]
  %v3956 = vld [vmem:[%s15 + $0x78] sm:$0xff]
  %v3957 = vld [vmem:[%s15 + $0x80] sm:$0xff]
  %v3958 = vld [vmem:[%s15 + $0x88] sm:$0xff]
  %v3959 = vld [vmem:[%s15 + $0x90] sm:$0xff]
  %v3960 = vld [vmem:[%s15 + $0x98] sm:$0xff]
  %v3961 = vld [vmem:[%s15 + $0xa0] sm:$0xff]
  %v3962 = vld [vmem:[%s15 + $0xa8] sm:$0xff]
  %v3963 = vld [vmem:[%s15 + $0xb0] sm:$0xff]
  %v3964 = vld [vmem:[%s15 + $0xb8] sm:$0xff]
  %v3965 = vld [vmem:[%s15 + $0xc0] sm:$0xff]
  %v3966 = vld [vmem:[%s15 + $0xc8] sm:$0xff]
  %v3967 = vld [vmem:[%s15 + $0xd0] sm:$0xff]
  %v3968 = vld [vmem:[%s15 + $0xd8] sm:$0xff]
  %v3969 = vld [vmem:[%s15 + $0xe0] sm:$0xff]
  %v3970 = vld [vmem:[%s15 + $0xe8] sm:$0xff]
  %v3971 = vld [vmem:[%s15 + $0xf0] sm:$0xff]
  %v3972 = vld [vmem:[%s15 + $0xf8] sm:$0xff]
  %v3973 = vld [vmem:[%s15 + $0x100] sm:$0xff]
  %v3974 = vld [vmem:[%s15 + $0x108] sm:$0xff]
  %v3975 = vld [vmem:[%s15 + $0x110] sm:$0xff]
  %v3976 = vld [vmem:[%s15 + $0x118] sm:$0xff]
  %v3977 = vld [vmem:[%s15 + $0x120] sm:$0xff]
  %v3978 = vld [vmem:[%s15 + $0x128] sm:$0xff]
  %v3979 = vld [vmem:[%s15 + $0x130] sm:$0xff]
  %v3980 = vld [vmem:[%s15 + $0x138] sm:$0xff]
  %v3981 = vld [vmem:[%s15 + $0x140] sm:$0xff]
  %v3982 = vld [vmem:[%s15 + $0x148] sm:$0xff]
  %v3983 = vld [vmem:[%s15 + $0x150] sm:$0xff]
  %v3984 = vld [vmem:[%s15 + $0x158] sm:$0xff]
  %v3985 = vld [vmem:[%s15 + $0x160] sm:$0xff]
  %v3986 = vld [vmem:[%s15 + $0x168] sm:$0xff]
  %v3987 = vld [vmem:[%s15 + $0x170] sm:$0xff]
  %v3988 = vld [vmem:[%s15 + $0x178] sm:$0xff]
  %v3989 = vld [vmem:[%s15 + $0x180] sm:$0xff]
  %v3990 = vld [vmem:[%s15 + $0x188] sm:$0xff]
  %v3991 = vld [vmem:[%s15 + $0x190] sm:$0xff]
  %v3992 = vld [vmem:[%s15 + $0x198] sm:$0xff]
  %v3993 = vld [vmem:[%s15 + $0x1a0] sm:$0xff]
  %v3994 = vld [vmem:[%s15 + $0x1a8] sm:$0xff]
  %v3995 = vld [vmem:[%s15 + $0x1b0] sm:$0xff]
  %v3996 = vld [vmem:[%s15 + $0x1b8] sm:$0xff]
  %v3997 = vld [vmem:[%s15 + $0x1c0] sm:$0xff]
  %v3998 = vld [vmem:[%s15 + $0x1c8] sm:$0xff]
  %v3999 = vld [vmem:[%s15 + $0x1d0] sm:$0xff]
  %v4000 = vld [vmem:[%s15 + $0x1d8] sm:$0xff]
  %v4001 = vld [vmem:[%s15 + $0x1e0] sm:$0xff]
  %v4002 = vld [vmem:[%s15 + $0x1e8] sm:$0xff]
  %v4003 = vld [vmem:[%s15 + $0x1f0] sm:$0xff]
  %v4004 = vld [vmem:[%s15 + $0x1f8] sm:$0xff]
  %v4021 = vlaneseq
  %v4022 = vshrl.u32 %v4021, 7
  %v4023 = vsub.s32 0, %v4022
  %v4024 = vrot.slane %v3925, %v4023
  %v4025 = vlaneseq
  %v4026 = vshrl.u32 %v4025, 7
  %v4027 = vsub.s32 2, %v4026
  %v4028 = vrot.slane %v3925, %v4027
  %v4029 = vlaneseq
  %v4030 = vshrl.u32 %v4029, 7
  %v4031 = vsub.s32 0, %v4030
  %v4032 = vrot.slane %v3926, %v4031
  %v4033 = vlaneseq
  %v4034 = vshrl.u32 %v4033, 7
  %v4035 = vsub.s32 2, %v4034
  %v4036 = vrot.slane %v3926, %v4035
  %v4037 = vlaneseq
  %v4038 = vshrl.u32 %v4037, 7
  %v4039 = vsub.s32 0, %v4038
  %v4040 = vrot.slane %v3927, %v4039
  %v4041 = vlaneseq
  %v4042 = vshrl.u32 %v4041, 7
  %v4043 = vsub.s32 2, %v4042
  %v4044 = vrot.slane %v3927, %v4043
  %v4045 = vlaneseq
  %v4046 = vshrl.u32 %v4045, 7
  %v4047 = vsub.s32 0, %v4046
  %v4048 = vrot.slane %v3928, %v4047
  %v4049 = vlaneseq
  %v4050 = vshrl.u32 %v4049, 7
  %v4051 = vsub.s32 2, %v4050
  %v4052 = vrot.slane %v3928, %v4051
  %v4053 = vlaneseq
  %v4054 = vshrl.u32 %v4053, 7
  %v4055 = vsub.s32 0, %v4054
  %v4056 = vrot.slane %v3929, %v4055
  %v4057 = vlaneseq
  %v4058 = vshrl.u32 %v4057, 7
  %v4059 = vsub.s32 2, %v4058
  %v4060 = vrot.slane %v3929, %v4059
  %v4061 = vlaneseq
  %v4062 = vshrl.u32 %v4061, 7
  %v4063 = vsub.s32 0, %v4062
  %v4064 = vrot.slane %v3930, %v4063
  %v4065 = vlaneseq
  %v4066 = vshrl.u32 %v4065, 7
  %v4067 = vsub.s32 2, %v4066
  %v4068 = vrot.slane %v3930, %v4067
  %v4069 = vlaneseq
  %v4070 = vshrl.u32 %v4069, 7
  %v4071 = vsub.s32 0, %v4070
  %v4072 = vrot.slane %v3931, %v4071
  %v4073 = vlaneseq
  %v4074 = vshrl.u32 %v4073, 7
  %v4075 = vsub.s32 2, %v4074
  %v4076 = vrot.slane %v3931, %v4075
  %v4077 = vlaneseq
  %v4078 = vshrl.u32 %v4077, 7
  %v4079 = vsub.s32 0, %v4078
  %v4080 = vrot.slane %v3932, %v4079
  %v4081 = vlaneseq
  %v4082 = vshrl.u32 %v4081, 7
  %v4083 = vsub.s32 2, %v4082
  %v4084 = vrot.slane %v3932, %v4083
  %v4085 = vlaneseq
  %v4086 = vshrl.u32 %v4085, 7
  %v4087 = vsub.s32 0, %v4086
  %v4088 = vrot.slane %v3933, %v4087
  %v4089 = vlaneseq
  %v4090 = vshrl.u32 %v4089, 7
  %v4091 = vsub.s32 2, %v4090
  %v4092 = vrot.slane %v3933, %v4091
  %v4093 = vlaneseq
  %v4094 = vshrl.u32 %v4093, 7
  %v4095 = vsub.s32 0, %v4094
  %v4096 = vrot.slane %v3934, %v4095
  %v4097 = vlaneseq
  %v4098 = vshrl.u32 %v4097, 7
  %v4099 = vsub.s32 2, %v4098
  %v4100 = vrot.slane %v3934, %v4099
  %v4101 = vlaneseq
  %v4102 = vshrl.u32 %v4101, 7
  %v4103 = vsub.s32 0, %v4102
  %v4104 = vrot.slane %v3935, %v4103
  %v4105 = vlaneseq
  %v4106 = vshrl.u32 %v4105, 7
  %v4107 = vsub.s32 2, %v4106
  %v4108 = vrot.slane %v3935, %v4107
  %v4109 = vlaneseq
  %v4110 = vshrl.u32 %v4109, 7
  %v4111 = vsub.s32 0, %v4110
  %v4112 = vrot.slane %v3936, %v4111
  %v4113 = vlaneseq
  %v4114 = vshrl.u32 %v4113, 7
  %v4115 = vsub.s32 2, %v4114
  %v4116 = vrot.slane %v3936, %v4115
  %v4117 = vlaneseq
  %v4118 = vshrl.u32 %v4117, 7
  %v4119 = vsub.s32 0, %v4118
  %v4120 = vrot.slane %v3937, %v4119
  %v4121 = vlaneseq
  %v4122 = vshrl.u32 %v4121, 7
  %v4123 = vsub.s32 2, %v4122
  %v4124 = vrot.slane %v3937, %v4123
  %v4125 = vlaneseq
  %v4126 = vshrl.u32 %v4125, 7
  %v4127 = vsub.s32 0, %v4126
  %v4128 = vrot.slane %v3938, %v4127
  %v4129 = vlaneseq
  %v4130 = vshrl.u32 %v4129, 7
  %v4131 = vsub.s32 2, %v4130
  %v4132 = vrot.slane %v3938, %v4131
  %v4133 = vlaneseq
  %v4134 = vshrl.u32 %v4133, 7
  %v4135 = vsub.s32 0, %v4134
  %v4136 = vrot.slane %v3939, %v4135
  %v4137 = vlaneseq
  %v4138 = vshrl.u32 %v4137, 7
  %v4139 = vsub.s32 2, %v4138
  %v4140 = vrot.slane %v3939, %v4139
  %v4141 = vlaneseq
  %v4142 = vshrl.u32 %v4141, 7
  %v4143 = vsub.s32 0, %v4142
  %v4144 = vrot.slane %v3940, %v4143
  %v4145 = vlaneseq
  %v4146 = vshrl.u32 %v4145, 7
  %v4147 = vsub.s32 2, %v4146
  %v4148 = vrot.slane %v3940, %v4147
  %vm4149 = vcmask 1041409
  %v4150 = vsel %vm4149, %v4032, %v4024
  %vm4151 = vcmask 1042434
  %v4152 = vsel %vm4151, %v4040, %v4150
  %vm4153 = vcmask 1043459
  %v4154 = vsel %vm4153, %v4048, %v4152
  %vm4155 = vcmask 1044484
  %v4156 = vsel %vm4155, %v4056, %v4154
  %vm4157 = vcmask 1045509
  %v4158 = vsel %vm4157, %v4064, %v4156
  %vm4159 = vcmask 1046534
  %v4160 = vsel %vm4159, %v4072, %v4158
  %vm4161 = vcmask 1047559
  %v4162 = vsel %vm4161, %v4080, %v4160
  %v4163 = vsel %vm4149, %v4036, %v4028
  %v4164 = vsel %vm4151, %v4044, %v4163
  %v4165 = vsel %vm4153, %v4052, %v4164
  %v4166 = vsel %vm4155, %v4060, %v4165
  %v4167 = vsel %vm4157, %v4068, %v4166
  %v4168 = vsel %vm4159, %v4076, %v4167
  %v4169 = vsel %vm4161, %v4084, %v4168
  %v4170 = vsel %vm4149, %v4096, %v4088
  %v4171 = vsel %vm4151, %v4104, %v4170
  %v4172 = vsel %vm4153, %v4112, %v4171
  %v4173 = vsel %vm4155, %v4120, %v4172
  %v4174 = vsel %vm4157, %v4128, %v4173
  %v4175 = vsel %vm4159, %v4136, %v4174
  %v4176 = vsel %vm4161, %v4144, %v4175
  %v4177 = vsel %vm4149, %v4100, %v4092
  %v4178 = vsel %vm4151, %v4108, %v4177
  %v4179 = vsel %vm4153, %v4116, %v4178
  %v4180 = vsel %vm4155, %v4124, %v4179
  %v4181 = vsel %vm4157, %v4132, %v4180
  %v4182 = vsel %vm4159, %v4140, %v4181
  %v4183 = vsel %vm4161, %v4148, %v4182
  %4188 = vmatprep.subr.mxu0 %v3942
  %4189 = vmatpush1.msra.mxu0 %v3941
  %4190 = vmatprep.subr.mxu0 %v3944
  %4191 = vmatpush1.msra.mxu0 %v3943
  %4192 = vmatprep.subr.mxu0 %v3946
  %4193 = vmatpush1.msra.mxu0 %v3945
  %4194 = vmatprep.subr.mxu0 %v3948
  %4195 = vmatpush1.msra.mxu0 %v3947
  %4196 = vmatprep.subr.mxu0 %v3950
  %4197 = vmatpush1.msra.mxu0 %v3949
  %4198 = vmatprep.subr.mxu0 %v3952
  %4199 = vmatpush1.msra.mxu0 %v3951
  %4200 = vmatprep.subr.mxu0 %v3954
  %4201 = vmatpush1.msra.mxu0 %v3953
  %4202 = vmatprep.subr.mxu0 %v3956
  %4203 = vmatpush1.msra.mxu0 %v3955
  %4204 = vmatprep.subr.mxu0 %v3958
  %4205 = vmatpush1.msra.mxu0 %v3957
  %4206 = vmatprep.subr.mxu0 %v3960
  %4207 = vmatpush1.msra.mxu0 %v3959
  %4208 = vmatprep.subr.mxu0 %v3962
  %4209 = vmatpush1.msra.mxu0 %v3961
  %4210 = vmatprep.subr.mxu0 %v3964
  %4211 = vmatpush1.msra.mxu0 %v3963
  %4212 = vmatprep.subr.mxu0 %v3966
  %4213 = vmatpush1.msra.mxu0 %v3965
  %4214 = vmatprep.subr.mxu0 %v3968
  %4215 = vmatpush1.msra.mxu0 %v3967
  %4216 = vmatprep.subr.mxu0 %v3970
  %4217 = vmatpush1.msra.mxu0 %v3969
  %4218 = vmatprep.subr.mxu0 %v3972
  %4219 = vmatpush1.msra.mxu0 %v3971
  %4220 = vmatprep.subr.mxu0 %v3974
  %4221 = vmatpush1.msra.mxu0 %v3973
  %4222 = vmatprep.subr.mxu0 %v3976
  %4223 = vmatpush1.msra.mxu0 %v3975
  %4224 = vmatprep.subr.mxu0 %v3978
  %4225 = vmatpush1.msra.mxu0 %v3977
  %4226 = vmatprep.subr.mxu0 %v3980
  %4227 = vmatpush1.msra.mxu0 %v3979
  %4228 = vmatprep.subr.mxu0 %v3982
  %4229 = vmatpush1.msra.mxu0 %v3981
  %4230 = vmatprep.subr.mxu0 %v3984
  %4231 = vmatpush1.msra.mxu0 %v3983
  %4232 = vmatprep.subr.mxu0 %v3986
  %4233 = vmatpush1.msra.mxu0 %v3985
  %4234 = vmatprep.subr.mxu0 %v3988
  %4235 = vmatpush1.msra.mxu0 %v3987
  %4236 = vmatprep.subr.mxu0 %v3990
  %4237 = vmatpush1.msra.mxu0 %v3989
  %4238 = vmatprep.subr.mxu0 %v3992
  %4239 = vmatpush1.msra.mxu0 %v3991
  %4240 = vmatprep.subr.mxu0 %v3994
  %4241 = vmatpush1.msra.mxu0 %v3993
  %4242 = vmatprep.subr.mxu0 %v3996
  %4243 = vmatpush1.msra.mxu0 %v3995
  %4244 = vmatprep.subr.mxu0 %v3998
  %4245 = vmatpush1.msra.mxu0 %v3997
  %4246 = vmatprep.subr.mxu0 %v4000
  %4247 = vmatpush1.msra.mxu0 %v3999
  %4248 = vmatprep.subr.mxu0 %v4002
  %4249 = vmatpush1.msra.mxu0 %v4001
  %4250 = vmatprep.subr.mxu0 %v4004
  %4251 = vmatpush1.msra.mxu0 %v4003
  %4252 = vmatprep.mubr.f32.mxu0 %v4169
  %4253 = vmatmul.mubr.f32.gmra.mrb[0].mxu0 %v4162
  %v4254 = vpop.f32.mrb[0].mxu0
  %v4255 = vadd.f32 0.0, %v4254
  %v4256 = vpop.f32.mrb[0].mxu0
  %v4257 = vadd.f32 0.0, %v4256
  %4258 = vmatprep.mubr.f32.mxu0 %v4183
  %4259 = vmatmul.mubr.f32.gmra.mrb[0].mxu0 %v4176
  %v4260 = vpop.f32.mrb[0].mxu0
  %v4261 = vadd.f32 0.0, %v4260
  %v4262 = vpop.f32.mrb[0].mxu0
  %v4263 = vadd.f32 0.0, %v4262
  %4264 = vdwg.mxu0
  %v4269 = vrot.slane %v4255, 7
  %v4270 = vrot.slane %v4257, 7
  %v4271 = vrot.slane %v4261, 7
  %v4272 = vrot.slane %v4263, 7
  %4277 = vst [vmem:[#allocation3] sm:$0xfe] %v4269
  %4278 = vst.msk [vmem:[#allocation3 + $0x8] sm:$0xfe] %vm1308, %v4270
  %4279 = vst [vmem:[#allocation3 + $0x10] sm:$0x1] %v4269
  %4280 = vst.msk [vmem:[#allocation3 + $0x18] sm:$0x1] %vm1315, %v4270
  %4281 = vst [vmem:[#allocation3 + $0x20] sm:$0xfe] %v4271
  %4282 = vst.msk [vmem:[#allocation3 + $0x28] sm:$0xfe] %vm1308, %v4272
  %4283 = vst [vmem:[#allocation3 + $0x30] sm:$0x1] %v4271
  %4284 = vst.msk [vmem:[#allocation3 + $0x38] sm:$0x1] %vm1315, %v4272
  %v4285 = vld [vmem:[#allocation3] sm:$0xff]
  %v4286 = vld [vmem:[#allocation3 + $0x8] sm:$0xff]
  %v4287 = vld [vmem:[#allocation3 + $0x10] sm:$0x3]
  %v4288 = vld [vmem:[#allocation3 + $0x18] sm:$0x3]
  %v4289 = vld [vmem:[#allocation3 + $0x20] sm:$0xff]
  %v4290 = vld [vmem:[#allocation3 + $0x28] sm:$0xff]
  %v4291 = vld [vmem:[#allocation3 + $0x30] sm:$0x3]
  %v4292 = vld [vmem:[#allocation3 + $0x38] sm:$0x3]
  %v4293 = vld [vmem:[%s5] sm:$0xff]
  %v4294 = vld [vmem:[%s5 + $0x8] sm:$0xff]
  %v4295 = vld [vmem:[%s5 + $0x10] sm:$0xff]
  %v4296 = vld [vmem:[%s5 + $0x18] sm:$0xff]
  %v4297 = vld [vmem:[%s5 + $0x20] sm:$0xff]
  %v4298 = vld [vmem:[%s5 + $0x28] sm:$0xff]
  %v4299 = vld [vmem:[%s5 + $0x30] sm:$0xff]
  %v4300 = vld [vmem:[%s5 + $0x38] sm:$0xff]
  %v4301 = vld [vmem:[%s5 + $0x40] sm:$0xff]
  %v4302 = vld [vmem:[%s5 + $0x48] sm:$0xff]
  %v4303 = vld [vmem:[%s5 + $0x50] sm:$0xff]
  %v4304 = vld [vmem:[%s5 + $0x58] sm:$0xff]
  %v4305 = vld [vmem:[%s5 + $0x60] sm:$0xff]
  %v4306 = vld [vmem:[%s5 + $0x68] sm:$0xff]
  %v4307 = vld [vmem:[%s5 + $0x70] sm:$0xff]
  %v4308 = vld [vmem:[%s5 + $0x78] sm:$0xff]
  %v4309 = vld [vmem:[%s5 + $0x80] sm:$0xff]
  %v4310 = vld [vmem:[%s5 + $0x88] sm:$0xff]
  %v4311 = vld [vmem:[%s5 + $0x90] sm:$0xff]
  %v4312 = vld [vmem:[%s5 + $0x98] sm:$0xff]
  %v4313 = vld [vmem:[%s5 + $0xa0] sm:$0xff]
  %v4314 = vld [vmem:[%s5 + $0xa8] sm:$0xff]
  %v4315 = vld [vmem:[%s5 + $0xb0] sm:$0xff]
  %v4316 = vld [vmem:[%s5 + $0xb8] sm:$0xff]
  %v4317 = vld [vmem:[%s5 + $0xc0] sm:$0xff]
  %v4318 = vld [vmem:[%s5 + $0xc8] sm:$0xff]
  %v4319 = vld [vmem:[%s5 + $0xd0] sm:$0xff]
  %v4320 = vld [vmem:[%s5 + $0xd8] sm:$0xff]
  %v4321 = vld [vmem:[%s5 + $0xe0] sm:$0xff]
  %v4322 = vld [vmem:[%s5 + $0xe8] sm:$0xff]
  %v4323 = vld [vmem:[%s5 + $0xf0] sm:$0xff]
  %v4324 = vld [vmem:[%s5 + $0xf8] sm:$0xff]
  %v4325 = vld [vmem:[%s5 + $0x100] sm:$0xff]
  %v4326 = vld [vmem:[%s5 + $0x108] sm:$0xff]
  %v4327 = vld [vmem:[%s5 + $0x110] sm:$0xff]
  %v4328 = vld [vmem:[%s5 + $0x118] sm:$0xff]
  %v4329 = vld [vmem:[%s5 + $0x120] sm:$0xff]
  %v4330 = vld [vmem:[%s5 + $0x128] sm:$0xff]
  %v4331 = vld [vmem:[%s5 + $0x130] sm:$0xff]
  %v4332 = vld [vmem:[%s5 + $0x138] sm:$0xff]
  %v4341 = vrot.slane %v4285, 1
  %v4342 = vrot.slane %v4287, 1
  %v4343 = vsel %vm131, %v4341, %v4342
  %v4344 = vrot.slane %v4286, 1
  %v4345 = vrot.slane %v4288, 1
  %v4346 = vsel %vm131, %v4344, %v4345
  %v4347 = vrot.slane %v4289, 1
  %v4348 = vrot.slane %v4291, 1
  %v4349 = vsel %vm131, %v4347, %v4348
  %v4350 = vrot.slane %v4290, 1
  %v4351 = vrot.slane %v4292, 1
  %v4352 = vsel %vm131, %v4350, %v4351
  %s4355 = scalar_lea.vmem %s5, 320
  %v4356 = vld [vmem:[%s4355] sm:$0xff]
  %v4357 = vld [vmem:[%s4355 + $0x8] sm:$0xff]
  %v4358 = vld [vmem:[%s4355 + $0x10] sm:$0xff]
  %v4359 = vld [vmem:[%s4355 + $0x18] sm:$0xff]
  %v4360 = vld [vmem:[%s4355 + $0x20] sm:$0xff]
  %v4361 = vld [vmem:[%s4355 + $0x28] sm:$0xff]
  %v4362 = vld [vmem:[%s4355 + $0x30] sm:$0xff]
  %v4363 = vld [vmem:[%s4355 + $0x38] sm:$0xff]
  %v4364 = vld [vmem:[%s4355 + $0x40] sm:$0xff]
  %v4365 = vld [vmem:[%s4355 + $0x48] sm:$0xff]
  %v4366 = vld [vmem:[%s4355 + $0x50] sm:$0xff]
  %v4367 = vld [vmem:[%s4355 + $0x58] sm:$0xff]
  %v4368 = vld [vmem:[%s4355 + $0x60] sm:$0xff]
  %v4369 = vld [vmem:[%s4355 + $0x68] sm:$0xff]
  %v4370 = vld [vmem:[%s4355 + $0x70] sm:$0xff]
  %v4371 = vld [vmem:[%s4355 + $0x78] sm:$0xff]
  %v4372 = vld [vmem:[%s4355 + $0x80] sm:$0xff]
  %v4373 = vld [vmem:[%s4355 + $0x88] sm:$0xff]
  %v4374 = vld [vmem:[%s4355 + $0x90] sm:$0xff]
  %v4375 = vld [vmem:[%s4355 + $0x98] sm:$0xff]
  %v4376 = vld [vmem:[%s4355 + $0xa0] sm:$0xff]
  %v4377 = vld [vmem:[%s4355 + $0xa8] sm:$0xff]
  %v4378 = vld [vmem:[%s4355 + $0xb0] sm:$0xff]
  %v4379 = vld [vmem:[%s4355 + $0xb8] sm:$0xff]
  %v4380 = vld [vmem:[%s4355 + $0xc0] sm:$0xff]
  %v4381 = vld [vmem:[%s4355 + $0xc8] sm:$0xff]
  %v4382 = vld [vmem:[%s4355 + $0xd0] sm:$0xff]
  %v4383 = vld [vmem:[%s4355 + $0xd8] sm:$0xff]
  %v4384 = vld [vmem:[%s4355 + $0xe0] sm:$0xff]
  %v4385 = vld [vmem:[%s4355 + $0xe8] sm:$0xff]
  %v4386 = vld [vmem:[%s4355 + $0xf0] sm:$0xff]
  %v4387 = vld [vmem:[%s4355 + $0xf8] sm:$0xff]
  %v4388 = vld [vmem:[%s4355 + $0x100] sm:$0xff]
  %v4389 = vld [vmem:[%s4355 + $0x108] sm:$0xff]
  %v4390 = vld [vmem:[%s4355 + $0x110] sm:$0xff]
  %v4391 = vld [vmem:[%s4355 + $0x118] sm:$0xff]
  %v4392 = vld [vmem:[%s4355 + $0x120] sm:$0xff]
  %v4393 = vld [vmem:[%s4355 + $0x128] sm:$0xff]
  %v4394 = vld [vmem:[%s4355 + $0x130] sm:$0xff]
  %v4395 = vld [vmem:[%s4355 + $0x138] sm:$0xff]
  %v4396 = vsel %vm786, %v4346, 0
  %v4398 = vsel %vm786, %v4352, 0
  %4400 = vmatprep.subr.mxu0 %v4357
  %4401 = vmatpush1.msra.mxu0 %v4356
  %4402 = vmatprep.subr.mxu0 %v4359
  %4403 = vmatpush1.msra.mxu0 %v4358
  %4404 = vmatprep.subr.mxu0 %v4361
  %4405 = vmatpush1.msra.mxu0 %v4360
  %4406 = vmatprep.subr.mxu0 %v4363
  %4407 = vmatpush1.msra.mxu0 %v4362
  %4408 = vmatprep.subr.mxu0 %v4365
  %4409 = vmatpush1.msra.mxu0 %v4364
  %4410 = vmatprep.subr.mxu0 %v4367
  %4411 = vmatpush1.msra.mxu0 %v4366
  %4412 = vmatprep.subr.mxu0 %v4369
  %4413 = vmatpush1.msra.mxu0 %v4368
  %4414 = vmatprep.subr.mxu0 %v4371
  %4415 = vmatpush1.msra.mxu0 %v4370
  %4416 = vmatprep.subr.mxu0 %v4373
  %4417 = vmatpush1.msra.mxu0 %v4372
  %4418 = vmatprep.subr.mxu0 %v4375
  %4419 = vmatpush1.msra.mxu0 %v4374
  %4420 = vmatprep.subr.mxu0 %v4377
  %4421 = vmatpush1.msra.mxu0 %v4376
  %4422 = vmatprep.subr.mxu0 %v4379
  %4423 = vmatpush1.msra.mxu0 %v4378
  %4424 = vmatprep.subr.mxu0 %v4381
  %4425 = vmatpush1.msra.mxu0 %v4380
  %4426 = vmatprep.subr.mxu0 %v4383
  %4427 = vmatpush1.msra.mxu0 %v4382
  %4428 = vmatprep.subr.mxu0 %v4385
  %4429 = vmatpush1.msra.mxu0 %v4384
  %4430 = vmatprep.subr.mxu0 %v4387
  %4431 = vmatpush1.msra.mxu0 %v4386
  %4432 = vmatprep.subr.mxu0 %v4389
  %4433 = vmatpush1.msra.mxu0 %v4388
  %4434 = vmatprep.subr.mxu0 %v4391
  %4435 = vmatpush1.msra.mxu0 %v4390
  %4436 = vmatprep.subr.mxu0 %v4393
  %4437 = vmatpush1.msra.mxu0 %v4392
  %4438 = vmatprep.subr.mxu0 %v4395
  %4439 = vmatpush1.msra.mxu0 %v4394
  %4440 = vmatprep.subr.mxu0 0.0
  %4441 = vmatpush1.msra.mxu0 0.0
  %4442 = vmatprep.subr.mxu0 0.0
  %4443 = vmatpush1.msra.mxu0 0.0
  %4444 = vmatprep.subr.mxu0 0.0
  %4445 = vmatpush1.msra.mxu0 0.0
  %4446 = vmatprep.subr.mxu0 0.0
  %4447 = vmatpush1.msra.mxu0 0.0
  %4448 = vmatprep.subr.mxu0 0.0
  %4449 = vmatpush1.msra.mxu0 0.0
  %4450 = vmatprep.subr.mxu0 0.0
  %4451 = vmatpush1.msra.mxu0 0.0
  %4452 = vmatprep.subr.mxu0 0.0
  %4453 = vmatpush1.msra.mxu0 0.0
  %4454 = vmatprep.subr.mxu0 0.0
  %4455 = vmatpush1.msra.mxu0 0.0
  %4456 = vmatprep.subr.mxu0 0.0
  %4457 = vmatpush1.msra.mxu0 0.0
  %4458 = vmatprep.subr.mxu0 0.0
  %4459 = vmatpush1.msra.mxu0 0.0
  %4460 = vmatprep.subr.mxu0 0.0
  %4461 = vmatpush1.msra.mxu0 0.0
  %4462 = vmatprep.subr.mxu0 0.0
  %4463 = vmatpush1.msra.mxu0 0.0
  %4464 = vmatprep.mubr.f32.mxu0 %v4396
  %4465 = vmatmul.mubr.f32.gmra.mrb[0].mxu0 %v4343
  %v4466 = vpop.f32.mrb[0].mxu0
  %v4467 = vadd.f32 0.0, %v4466
  %v4468 = vpop.f32.mrb[0].mxu0
  %v4469 = vadd.f32 0.0, %v4468
  %4470 = vmatprep.mubr.f32.mxu0 %v4398
  %4471 = vmatmul.mubr.f32.gmra.mrb[0].mxu0 %v4349
  %v4472 = vpop.f32.mrb[0].mxu0
  %v4473 = vadd.f32 0.0, %v4472
  %v4474 = vpop.f32.mrb[0].mxu0
  %v4475 = vadd.f32 0.0, %v4474
  %4476 = vdwg.mxu0
  %v4477 = vsel %vm786, %v4286, 0
  %v4479 = vsel %vm786, %v4290, 0
  %4481 = vmatprep.subr.mxu0 %v4294
  %4482 = vmatpush1.msra.mxu0 %v4293
  %4483 = vmatprep.subr.mxu0 %v4296
  %4484 = vmatpush1.msra.mxu0 %v4295
  %4485 = vmatprep.subr.mxu0 %v4298
  %4486 = vmatpush1.msra.mxu0 %v4297
  %4487 = vmatprep.subr.mxu0 %v4300
  %4488 = vmatpush1.msra.mxu0 %v4299
  %4489 = vmatprep.subr.mxu0 %v4302
  %4490 = vmatpush1.msra.mxu0 %v4301
  %4491 = vmatprep.subr.mxu0 %v4304
  %4492 = vmatpush1.msra.mxu0 %v4303
  %4493 = vmatprep.subr.mxu0 %v4306
  %4494 = vmatpush1.msra.mxu0 %v4305
  %4495 = vmatprep.subr.mxu0 %v4308
  %4496 = vmatpush1.msra.mxu0 %v4307
  %4497 = vmatprep.subr.mxu0 %v4310
  %4498 = vmatpush1.msra.mxu0 %v4309
  %4499 = vmatprep.subr.mxu0 %v4312
  %4500 = vmatpush1.msra.mxu0 %v4311
  %4501 = vmatprep.subr.mxu0 %v4314
  %4502 = vmatpush1.msra.mxu0 %v4313
  %4503 = vmatprep.subr.mxu0 %v4316
  %4504 = vmatpush1.msra.mxu0 %v4315
  %4505 = vmatprep.subr.mxu0 %v4318
  %4506 = vmatpush1.msra.mxu0 %v4317
  %4507 = vmatprep.subr.mxu0 %v4320
  %4508 = vmatpush1.msra.mxu0 %v4319
  %4509 = vmatprep.subr.mxu0 %v4322
  %4510 = vmatpush1.msra.mxu0 %v4321
  %4511 = vmatprep.subr.mxu0 %v4324
  %4512 = vmatpush1.msra.mxu0 %v4323
  %4513 = vmatprep.subr.mxu0 %v4326
  %4514 = vmatpush1.msra.mxu0 %v4325
  %4515 = vmatprep.subr.mxu0 %v4328
  %4516 = vmatpush1.msra.mxu0 %v4327
  %4517 = vmatprep.subr.mxu0 %v4330
  %4518 = vmatpush1.msra.mxu0 %v4329
  %4519 = vmatprep.subr.mxu0 %v4332
  %4520 = vmatpush1.msra.mxu0 %v4331
  %4521 = vmatprep.subr.mxu0 0.0
  %4522 = vmatpush1.msra.mxu0 0.0
  %4523 = vmatprep.subr.mxu0 0.0
  %4524 = vmatpush1.msra.mxu0 0.0
  %4525 = vmatprep.subr.mxu0 0.0
  %4526 = vmatpush1.msra.mxu0 0.0
  %4527 = vmatprep.subr.mxu0 0.0
  %4528 = vmatpush1.msra.mxu0 0.0
  %4529 = vmatprep.subr.mxu0 0.0
  %4530 = vmatpush1.msra.mxu0 0.0
  %4531 = vmatprep.subr.mxu0 0.0
  %4532 = vmatpush1.msra.mxu0 0.0
  %4533 = vmatprep.subr.mxu0 0.0
  %4534 = vmatpush1.msra.mxu0 0.0
  %4535 = vmatprep.subr.mxu0 0.0
  %4536 = vmatpush1.msra.mxu0 0.0
  %4537 = vmatprep.subr.mxu0 0.0
  %4538 = vmatpush1.msra.mxu0 0.0
  %4539 = vmatprep.subr.mxu0 0.0
  %4540 = vmatpush1.msra.mxu0 0.0
  %4541 = vmatprep.subr.mxu0 0.0
  %4542 = vmatpush1.msra.mxu0 0.0
  %4543 = vmatprep.subr.mxu0 0.0
  %4544 = vmatpush1.msra.mxu0 0.0
  %4545 = vmatprep.mubr.f32.mxu0 %v4477
  %4546 = vmatmul.mubr.f32.gmra.mrb[0].mxu0 %v4285
  %v4547 = vpop.f32.mrb[0].mxu0
  %v4548 = vadd.f32 %v4467, %v4547
  %v4549 = vpop.f32.mrb[0].mxu0
  %v4550 = vadd.f32 %v4469, %v4549
  %4551 = vmatprep.mubr.f32.mxu0 %v4479
  %4552 = vmatmul.mubr.f32.gmra.mrb[0].mxu0 %v4289
  %v4553 = vpop.f32.mrb[0].mxu0
  %v4554 = vadd.f32 %v4473, %v4553
  %v4555 = vpop.f32.mrb[0].mxu0
  %v4556 = vadd.f32 %v4475, %v4555
  %4557 = vdwg.mxu0
  %v4558 = vrot.slane %v4285, 2
  %v4559 = vrot.slane %v4287, 2
  %v4560 = vsel %vm535, %v4558, %v4559
  %v4561 = vrot.slane %v4286, 2
  %v4562 = vrot.slane %v4288, 2
  %v4563 = vsel %vm535, %v4561, %v4562
  %v4564 = vrot.slane %v4289, 2
  %v4565 = vrot.slane %v4291, 2
  %v4566 = vsel %vm535, %v4564, %v4565
  %v4567 = vrot.slane %v4290, 2
  %v4568 = vrot.slane %v4292, 2
  %v4569 = vsel %vm535, %v4567, %v4568
  %s4572 = scalar_lea.vmem %s5, 640
  %v4573 = vld [vmem:[%s4572] sm:$0xff]
  %v4574 = vld [vmem:[%s4572 + $0x8] sm:$0xff]
  %v4575 = vld [vmem:[%s4572 + $0x10] sm:$0xff]
  %v4576 = vld [vmem:[%s4572 + $0x18] sm:$0xff]
  %v4577 = vld [vmem:[%s4572 + $0x20] sm:$0xff]
  %v4578 = vld [vmem:[%s4572 + $0x28] sm:$0xff]
  %v4579 = vld [vmem:[%s4572 + $0x30] sm:$0xff]
  %v4580 = vld [vmem:[%s4572 + $0x38] sm:$0xff]
  %v4581 = vld [vmem:[%s4572 + $0x40] sm:$0xff]
  %v4582 = vld [vmem:[%s4572 + $0x48] sm:$0xff]
  %v4583 = vld [vmem:[%s4572 + $0x50] sm:$0xff]
  %v4584 = vld [vmem:[%s4572 + $0x58] sm:$0xff]
  %v4585 = vld [vmem:[%s4572 + $0x60] sm:$0xff]
  %v4586 = vld [vmem:[%s4572 + $0x68] sm:$0xff]
  %v4587 = vld [vmem:[%s4572 + $0x70] sm:$0xff]
  %v4588 = vld [vmem:[%s4572 + $0x78] sm:$0xff]
  %v4589 = vld [vmem:[%s4572 + $0x80] sm:$0xff]
  %v4590 = vld [vmem:[%s4572 + $0x88] sm:$0xff]
  %v4591 = vld [vmem:[%s4572 + $0x90] sm:$0xff]
  %v4592 = vld [vmem:[%s4572 + $0x98] sm:$0xff]
  %v4593 = vld [vmem:[%s4572 + $0xa0] sm:$0xff]
  %v4594 = vld [vmem:[%s4572 + $0xa8] sm:$0xff]
  %v4595 = vld [vmem:[%s4572 + $0xb0] sm:$0xff]
  %v4596 = vld [vmem:[%s4572 + $0xb8] sm:$0xff]
  %v4597 = vld [vmem:[%s4572 + $0xc0] sm:$0xff]
  %v4598 = vld [vmem:[%s4572 + $0xc8] sm:$0xff]
  %v4599 = vld [vmem:[%s4572 + $0xd0] sm:$0xff]
  %v4600 = vld [vmem:[%s4572 + $0xd8] sm:$0xff]
  %v4601 = vld [vmem:[%s4572 + $0xe0] sm:$0xff]
  %v4602 = vld [vmem:[%s4572 + $0xe8] sm:$0xff]
  %v4603 = vld [vmem:[%s4572 + $0xf0] sm:$0xff]
  %v4604 = vld [vmem:[%s4572 + $0xf8] sm:$0xff]
  %v4605 = vld [vmem:[%s4572 + $0x100] sm:$0xff]
  %v4606 = vld [vmem:[%s4572 + $0x108] sm:$0xff]
  %v4607 = vld [vmem:[%s4572 + $0x110] sm:$0xff]
  %v4608 = vld [vmem:[%s4572 + $0x118] sm:$0xff]
  %v4609 = vld [vmem:[%s4572 + $0x120] sm:$0xff]
  %v4610 = vld [vmem:[%s4572 + $0x128] sm:$0xff]
  %v4611 = vld [vmem:[%s4572 + $0x130] sm:$0xff]
  %v4612 = vld [vmem:[%s4572 + $0x138] sm:$0xff]
  %v4613 = vsel %vm786, %v4563, 0
  %v4615 = vsel %vm786, %v4569, 0
  %4617 = vmatprep.subr.mxu0 %v4574
  %4618 = vmatpush1.msra.mxu0 %v4573
  %4619 = vmatprep.subr.mxu0 %v4576
  %4620 = vmatpush1.msra.mxu0 %v4575
  %4621 = vmatprep.subr.mxu0 %v4578
  %4622 = vmatpush1.msra.mxu0 %v4577
  %4623 = vmatprep.subr.mxu0 %v4580
  %4624 = vmatpush1.msra.mxu0 %v4579
  %4625 = vmatprep.subr.mxu0 %v4582
  %4626 = vmatpush1.msra.mxu0 %v4581
  %4627 = vmatprep.subr.mxu0 %v4584
  %4628 = vmatpush1.msra.mxu0 %v4583
  %4629 = vmatprep.subr.mxu0 %v4586
  %4630 = vmatpush1.msra.mxu0 %v4585
  %4631 = vmatprep.subr.mxu0 %v4588
  %4632 = vmatpush1.msra.mxu0 %v4587
  %4633 = vmatprep.subr.mxu0 %v4590
  %4634 = vmatpush1.msra.mxu0 %v4589
  %4635 = vmatprep.subr.mxu0 %v4592
  %4636 = vmatpush1.msra.mxu0 %v4591
  %4637 = vmatprep.subr.mxu0 %v4594
  %4638 = vmatpush1.msra.mxu0 %v4593
  %4639 = vmatprep.subr.mxu0 %v4596
  %4640 = vmatpush1.msra.mxu0 %v4595
  %4641 = vmatprep.subr.mxu0 %v4598
  %4642 = vmatpush1.msra.mxu0 %v4597
  %4643 = vmatprep.subr.mxu0 %v4600
  %4644 = vmatpush1.msra.mxu0 %v4599
  %4645 = vmatprep.subr.mxu0 %v4602
  %4646 = vmatpush1.msra.mxu0 %v4601
  %4647 = vmatprep.subr.mxu0 %v4604
  %4648 = vmatpush1.msra.mxu0 %v4603
  %4649 = vmatprep.subr.mxu0 %v4606
  %4650 = vmatpush1.msra.mxu0 %v4605
  %4651 = vmatprep.subr.mxu0 %v4608
  %4652 = vmatpush1.msra.mxu0 %v4607
  %4653 = vmatprep.subr.mxu0 %v4610
  %4654 = vmatpush1.msra.mxu0 %v4609
  %4655 = vmatprep.subr.mxu0 %v4612
  %4656 = vmatpush1.msra.mxu0 %v4611
  %4657 = vmatprep.subr.mxu0 0.0
  %4658 = vmatpush1.msra.mxu0 0.0
  %4659 = vmatprep.subr.mxu0 0.0
  %4660 = vmatpush1.msra.mxu0 0.0
  %4661 = vmatprep.subr.mxu0 0.0
  %4662 = vmatpush1.msra.mxu0 0.0
  %4663 = vmatprep.subr.mxu0 0.0
  %4664 = vmatpush1.msra.mxu0 0.0
  %4665 = vmatprep.subr.mxu0 0.0
  %4666 = vmatpush1.msra.mxu0 0.0
  %4667 = vmatprep.subr.mxu0 0.0
  %4668 = vmatpush1.msra.mxu0 0.0
  %4669 = vmatprep.subr.mxu0 0.0
  %4670 = vmatpush1.msra.mxu0 0.0
  %4671 = vmatprep.subr.mxu0 0.0
  %4672 = vmatpush1.msra.mxu0 0.0
  %4673 = vmatprep.subr.mxu0 0.0
  %4674 = vmatpush1.msra.mxu0 0.0
  %4675 = vmatprep.subr.mxu0 0.0
  %4676 = vmatpush1.msra.mxu0 0.0
  %4677 = vmatprep.subr.mxu0 0.0
  %4678 = vmatpush1.msra.mxu0 0.0
  %4679 = vmatprep.subr.mxu0 0.0
  %4680 = vmatpush1.msra.mxu0 0.0
  %4681 = vmatprep.mubr.f32.mxu0 %v4613
  %4682 = vmatmul.mubr.f32.gmra.mrb[0].mxu0 %v4560
  %v4683 = vpop.f32.mrb[0].mxu0
  %v4684 = vadd.f32 0.0, %v4683
  %v4685 = vpop.f32.mrb[0].mxu0
  %v4686 = vadd.f32 0.0, %v4685
  %4687 = vmatprep.mubr.f32.mxu0 %v4615
  %4688 = vmatmul.mubr.f32.gmra.mrb[0].mxu0 %v4566
  %v4689 = vpop.f32.mrb[0].mxu0
  %v4690 = vadd.f32 0.0, %v4689
  %v4691 = vpop.f32.mrb[0].mxu0
  %v4692 = vadd.f32 0.0, %v4691
  %4693 = vdwg.mxu0
  %v4694 = vadd.f32 %v4548, %v4684
  %v4695 = vadd.f32 %v4550, %v4686
  %v4696 = vadd.f32 %v4554, %v4690
  %v4697 = vadd.f32 %v4556, %v4692
  %v4698 = vadd.f32 %v4694, %v4696
  %v4699 = vrot.slane %v4698, 4
  %v4700 = vadd.f32 %v4698, %v4699
  %v4701 = vrot.slane %v4700, 2
  %v4702 = vadd.f32 %v4700, %v4701
  %v4703 = vrot.slane %v4702, 1
  %v4704 = vadd.f32 %v4702, %v4703
  %v4705 = vsel %vm786, %v4695, 0.0
  %v4706 = vsel %vm786, %v4697, 0.0
  %v4707 = vadd.f32 %v4705, %v4706
  %v4708 = vrot.slane %v4707, 4
  %v4709 = vadd.f32 %v4707, %v4708
  %v4710 = vrot.slane %v4709, 2
  %v4711 = vadd.f32 %v4709, %v4710
  %v4712 = vrot.slane %v4711, 1
  %v4713 = vadd.f32 %v4711, %v4712
  %v4714 = vmul.f32 %v4694, %v4694
  %v4715 = vmul.f32 %v4695, %v4695
  %v4716 = vmul.f32 %v4696, %v4696
  %v4717 = vmul.f32 %v4697, %v4697
  %v4718 = vadd.f32 %v4714, %v4716
  %v4719 = vrot.slane %v4718, 4
  %v4720 = vadd.f32 %v4718, %v4719
  %v4721 = vrot.slane %v4720, 2
  %v4722 = vadd.f32 %v4720, %v4721
  %v4723 = vrot.slane %v4722, 1
  %v4724 = vadd.f32 %v4722, %v4723
  %v4725 = vsel %vm786, %v4715, 0.0
  %v4726 = vsel %vm786, %v4717, 0.0
  %v4727 = vadd.f32 %v4725, %v4726
  %v4728 = vrot.slane %v4727, 4
  %v4729 = vadd.f32 %v4727, %v4728
  %v4730 = vrot.slane %v4729, 2
  %v4731 = vadd.f32 %v4729, %v4730
  %v4732 = vrot.slane %v4731, 1
  %v4733 = vadd.f32 %v4731, %v4732
  %v4734 = vsel %vm843, %v4704, %v4724
  %v4735 = vsel %vm843, %v4713, %v4733
  %v4736 = vld [vmem:[%s10] sm:$0xff]
  %v4737 = vld [vmem:[%s10 + $0x8] sm:$0xff]
  %v4738 = vld [vmem:[%s10 + $0x10] sm:$0xff]
  %v4739 = vld [vmem:[%s10 + $0x18] sm:$0xff]
  %v4740 = vld [vmem:[%s10 + $0x20] sm:$0xff]
  %v4741 = vld [vmem:[%s10 + $0x28] sm:$0xff]
  %v4742 = vld [vmem:[%s10 + $0x30] sm:$0xff]
  %v4743 = vld [vmem:[%s10 + $0x38] sm:$0xff]
  %v4744 = vld [vmem:[%s10 + $0x40] sm:$0xff]
  %v4745 = vld [vmem:[%s10 + $0x48] sm:$0xff]
  %v4746 = vld [vmem:[%s10 + $0x50] sm:$0xff]
  %v4747 = vld [vmem:[%s10 + $0x58] sm:$0xff]
  %v4748 = vld [vmem:[%s10 + $0x60] sm:$0xff]
  %v4749 = vld [vmem:[%s10 + $0x68] sm:$0xff]
  %v4750 = vld [vmem:[%s10 + $0x70] sm:$0xff]
  %v4751 = vld [vmem:[%s10 + $0x78] sm:$0xff]
  %v4752 = vld [vmem:[%s10 + $0x80] sm:$0xff]
  %v4753 = vld [vmem:[%s10 + $0x88] sm:$0xff]
  %v4754 = vld [vmem:[%s10 + $0x90] sm:$0xff]
  %v4755 = vld [vmem:[%s10 + $0x98] sm:$0xff]
  %v4757 = vsel %vm786, %v4735, 0
  %4759 = vmatprep.subr.mxu0 0.0
  %4760 = vmatpush1.msra.mxu0 %v4736
  %4761 = vmatprep.subr.mxu0 0.0
  %4762 = vmatpush1.msra.mxu0 %v4737
  %4763 = vmatprep.subr.mxu0 0.0
  %4764 = vmatpush1.msra.mxu0 %v4738
  %4765 = vmatprep.subr.mxu0 0.0
  %4766 = vmatpush1.msra.mxu0 %v4739
  %4767 = vmatprep.subr.mxu0 0.0
  %4768 = vmatpush1.msra.mxu0 %v4740
  %4769 = vmatprep.subr.mxu0 0.0
  %4770 = vmatpush1.msra.mxu0 %v4741
  %4771 = vmatprep.subr.mxu0 0.0
  %4772 = vmatpush1.msra.mxu0 %v4742
  %4773 = vmatprep.subr.mxu0 0.0
  %4774 = vmatpush1.msra.mxu0 %v4743
  %4775 = vmatprep.subr.mxu0 0.0
  %4776 = vmatpush1.msra.mxu0 %v4744
  %4777 = vmatprep.subr.mxu0 0.0
  %4778 = vmatpush1.msra.mxu0 %v4745
  %4779 = vmatprep.subr.mxu0 0.0
  %4780 = vmatpush1.msra.mxu0 %v4746
  %4781 = vmatprep.subr.mxu0 0.0
  %4782 = vmatpush1.msra.mxu0 %v4747
  %4783 = vmatprep.subr.mxu0 0.0
  %4784 = vmatpush1.msra.mxu0 %v4748
  %4785 = vmatprep.subr.mxu0 0.0
  %4786 = vmatpush1.msra.mxu0 %v4749
  %4787 = vmatprep.subr.mxu0 0.0
  %4788 = vmatpush1.msra.mxu0 %v4750
  %4789 = vmatprep.subr.mxu0 0.0
  %4790 = vmatpush1.msra.mxu0 %v4751
  %4791 = vmatprep.subr.mxu0 0.0
  %4792 = vmatpush1.msra.mxu0 %v4752
  %4793 = vmatprep.subr.mxu0 0.0
  %4794 = vmatpush1.msra.mxu0 %v4753
  %4795 = vmatprep.subr.mxu0 0.0
  %4796 = vmatpush1.msra.mxu0 %v4754
  %4797 = vmatprep.subr.mxu0 0.0
  %4798 = vmatpush1.msra.mxu0 %v4755
  %4799 = vmatprep.subr.mxu0 0.0
  %4800 = vmatpush1.msra.mxu0 0.0
  %4801 = vmatprep.subr.mxu0 0.0
  %4802 = vmatpush1.msra.mxu0 0.0
  %4803 = vmatprep.subr.mxu0 0.0
  %4804 = vmatpush1.msra.mxu0 0.0
  %4805 = vmatprep.subr.mxu0 0.0
  %4806 = vmatpush1.msra.mxu0 0.0
  %4807 = vmatprep.subr.mxu0 0.0
  %4808 = vmatpush1.msra.mxu0 0.0
  %4809 = vmatprep.subr.mxu0 0.0
  %4810 = vmatpush1.msra.mxu0 0.0
  %4811 = vmatprep.subr.mxu0 0.0
  %4812 = vmatpush1.msra.mxu0 0.0
  %4813 = vmatprep.subr.mxu0 0.0
  %4814 = vmatpush1.msra.mxu0 0.0
  %4815 = vmatprep.subr.mxu0 0.0
  %4816 = vmatpush1.msra.mxu0 0.0
  %4817 = vmatprep.subr.mxu0 0.0
  %4818 = vmatpush1.msra.mxu0 0.0
  %4819 = vmatprep.subr.mxu0 0.0
  %4820 = vmatpush1.msra.mxu0 0.0
  %4821 = vmatprep.subr.mxu0 0.0
  %4822 = vmatpush1.msra.mxu0 0.0
  %4823 = vmatprep.mubr.f32.mxu0 %v4757
  %4824 = vmatmul.mubr.f32.gmra.mrb[0].mxu0 %v4734
  %v4825 = vpop.f32.mrb[0].mxu0
  %v4826 = vadd.f32 0.0, %v4825
  %v4827 = vpop.f32.mrb[0].mxu0
  %4828 = vdwg.mxu0
  %v4829 = vmul.f32 %v4826, 0.0078125
  %v4830 = vmul.f32 %v4829, %v4829
  %v4832 = vrot.slane %v4830, 7
  %v4834 = vsub.f32 %v4829, %v4832
  %v4835 = vmax.f32 %v4834, 0.0
  %v4836 = vld [vmem:[%s1 + $0x2] sm:$0x1]
  %v4837 = vld [vmem:[%s2 + $0x2] sm:$0x1]
  %v4838 = vadd.f32 %v4835, 1e-05
  %v4839 = vrsqrt.pop %v4838
  %v4841 = vrot.slane %v4839, 1
  %v4843 = vmul.f32 %v4836, %v4841
  %v4844 = vmul.f32 %v4829, %v4843
  %v4845 = vsub.f32 %v4837, %v4844
  %v4847 = vrot.slane %v4845, 7
  %v4849 = vsel %vm843, %v4843, %v4847
  %v4850 = vld [vmem:[%s13] sm:$0xff]
  %v4851 = vld [vmem:[%s13 + $0x8] sm:$0xff]
  %v4852 = vld [vmem:[%s13 + $0x10] sm:$0xff]
  %v4853 = vld [vmem:[%s13 + $0x18] sm:$0xff]
  %v4855 = vsel %vm1053, %v4849, 0
  %4857 = vmatprep.subr.mxu0 %v4851
  %4858 = vmatpush1.msra.mxu0 %v4850
  %4859 = vmatprep.subr.mxu0 %v4853
  %4860 = vmatpush1.msra.mxu0 %v4852
  %4861 = vmatprep.subr.mxu0 0.0
  %4862 = vmatpush1.msra.mxu0 0.0
  %4863 = vmatprep.subr.mxu0 0.0
  %4864 = vmatpush1.msra.mxu0 0.0
  %4865 = vmatprep.subr.mxu0 0.0
  %4866 = vmatpush1.msra.mxu0 0.0
  %4867 = vmatprep.subr.mxu0 0.0
  %4868 = vmatpush1.msra.mxu0 0.0
  %4869 = vmatprep.subr.mxu0 0.0
  %4870 = vmatpush1.msra.mxu0 0.0
  %4871 = vmatprep.subr.mxu0 0.0
  %4872 = vmatpush1.msra.mxu0 0.0
  %4873 = vmatprep.subr.mxu0 0.0
  %4874 = vmatpush1.msra.mxu0 0.0
  %4875 = vmatprep.subr.mxu0 0.0
  %4876 = vmatpush1.msra.mxu0 0.0
  %4877 = vmatprep.subr.mxu0 0.0
  %4878 = vmatpush1.msra.mxu0 0.0
  %4879 = vmatprep.subr.mxu0 0.0
  %4880 = vmatpush1.msra.mxu0 0.0
  %4881 = vmatprep.subr.mxu0 0.0
  %4882 = vmatpush1.msra.mxu0 0.0
  %4883 = vmatprep.subr.mxu0 0.0
  %4884 = vmatpush1.msra.mxu0 0.0
  %4885 = vmatprep.subr.mxu0 0.0
  %4886 = vmatpush1.msra.mxu0 0.0
  %4887 = vmatprep.subr.mxu0 0.0
  %4888 = vmatpush1.msra.mxu0 0.0
  %4889 = vmatprep.subr.mxu0 0.0
  %4890 = vmatpush1.msra.mxu0 0.0
  %4891 = vmatprep.subr.mxu0 0.0
  %4892 = vmatpush1.msra.mxu0 0.0
  %4893 = vmatprep.subr.mxu0 0.0
  %4894 = vmatpush1.msra.mxu0 0.0
  %4895 = vmatprep.subr.mxu0 0.0
  %4896 = vmatpush1.msra.mxu0 0.0
  %4897 = vmatprep.subr.mxu0 0.0
  %4898 = vmatpush1.msra.mxu0 0.0
  %4899 = vmatprep.subr.mxu0 0.0
  %4900 = vmatpush1.msra.mxu0 0.0
  %4901 = vmatprep.subr.mxu0 0.0
  %4902 = vmatpush1.msra.mxu0 0.0
  %4903 = vmatprep.subr.mxu0 0.0
  %4904 = vmatpush1.msra.mxu0 0.0
  %4905 = vmatprep.subr.mxu0 0.0
  %4906 = vmatpush1.msra.mxu0 0.0
  %4907 = vmatprep.subr.mxu0 0.0
  %4908 = vmatpush1.msra.mxu0 0.0
  %4909 = vmatprep.subr.mxu0 0.0
  %4910 = vmatpush1.msra.mxu0 0.0
  %4911 = vmatprep.subr.mxu0 0.0
  %4912 = vmatpush1.msra.mxu0 0.0
  %4913 = vmatprep.subr.mxu0 0.0
  %4914 = vmatpush1.msra.mxu0 0.0
  %4915 = vmatprep.subr.mxu0 0.0
  %4916 = vmatpush1.msra.mxu0 0.0
  %4917 = vmatprep.subr.mxu0 0.0
  %4918 = vmatpush1.msra.mxu0 0.0
  %4919 = vmatprep.subr.mxu0 0.0
  %4920 = vmatpush1.msra.mxu0 0.0
  %4921 = vmatprep.mubr.f32.mxu0 0.0
  %4922 = vmatmul.mubr.f32.gmra.mrb[0].mxu0 %v4855
  %v4923 = vpop.f32.mrb[0].mxu0
  %v4924 = vadd.f32 0.0, %v4923
  %v4925 = vpop.f32.mrb[0].mxu0
  %v4926 = vadd.f32 0.0, %v4925
  %4927 = vdwg.mxu0
  %v4928 = vlaneseq
  %v4929 = vshrl.u32 %v4928, 7
  %v4930 = vsub.s32 0, %v4929
  %v4931 = vrot.slane %v4924, %v4930
  %v4932 = vlaneseq
  %v4933 = vshrl.u32 %v4932, 7
  %v4934 = vsub.s32 0, %v4933
  %v4935 = vrot.slane %v4926, %v4934
  %v4936 = vmul.f32 %v4694, %v4931
  %v4937 = vmul.f32 %v4695, %v4935
  %v4938 = vmul.f32 %v4696, %v4931
  %v4939 = vmul.f32 %v4697, %v4935
  %v4940 = vlaneseq
  %v4941 = vshrl.u32 %v4940, 7
  %v4942 = vsub.s32 1, %v4941
  %v4943 = vrot.slane %v4924, %v4942
  %v4944 = vlaneseq
  %v4945 = vshrl.u32 %v4944, 7
  %v4946 = vsub.s32 1, %v4945
  %v4947 = vrot.slane %v4926, %v4946
  %v4948 = vadd.f32 %v4936, %v4943
  %v4949 = vadd.f32 %v4937, %v4947
  %v4950 = vadd.f32 %v4938, %v4943
  %v4951 = vadd.f32 %v4939, %v4947
  %v4952 = vmax.f32 %v4948, 0.0
  %v4953 = vmax.f32 %v4949, 0.0
  %v4954 = vmax.f32 %v4950, 0.0
  %v4955 = vmax.f32 %v4951, 0.0
  %v4960 = vrot.slane %v4952, 7
  %v4961 = vrot.slane %v4953, 7
  %v4962 = vrot.slane %v4954, 7
  %v4963 = vrot.slane %v4955, 7
  %4968 = vst [vmem:[#allocation3] sm:$0xfe] %v4960
  %4969 = vst.msk [vmem:[#allocation3 + $0x8] sm:$0xfe] %vm1308, %v4961
  %4970 = vst [vmem:[#allocation3 + $0x10] sm:$0x1] %v4960
  %4971 = vst.msk [vmem:[#allocation3 + $0x18] sm:$0x1] %vm1315, %v4961
  %4972 = vst [vmem:[#allocation3 + $0x20] sm:$0xfe] %v4962
  %4973 = vst.msk [vmem:[#allocation3 + $0x28] sm:$0xfe] %vm1308, %v4963
  %4974 = vst [vmem:[#allocation3 + $0x30] sm:$0x1] %v4962
  %4975 = vst.msk [vmem:[#allocation3 + $0x38] sm:$0x1] %vm1315, %v4963
  %v4976 = vld [vmem:[#allocation3] sm:$0xff]
  %v4977 = vld [vmem:[#allocation3 + $0x8] sm:$0xff]
  %v4978 = vld [vmem:[#allocation3 + $0x10] sm:$0x3]
  %v4979 = vld [vmem:[#allocation3 + $0x18] sm:$0x3]
  %v4980 = vld [vmem:[#allocation3 + $0x20] sm:$0xff]
  %v4981 = vld [vmem:[#allocation3 + $0x28] sm:$0xff]
  %v4982 = vld [vmem:[#allocation3 + $0x30] sm:$0x3]
  %v4983 = vld [vmem:[#allocation3 + $0x38] sm:$0x3]
  %v4984 = vld [vmem:[%s6] sm:$0xff]
  %v4985 = vld [vmem:[%s6 + $0x8] sm:$0xff]
  %v4986 = vld [vmem:[%s6 + $0x10] sm:$0xff]
  %v4987 = vld [vmem:[%s6 + $0x18] sm:$0xff]
  %v4988 = vld [vmem:[%s6 + $0x20] sm:$0xff]
  %v4989 = vld [vmem:[%s6 + $0x28] sm:$0xff]
  %v4990 = vld [vmem:[%s6 + $0x30] sm:$0xff]
  %v4991 = vld [vmem:[%s6 + $0x38] sm:$0xff]
  %v4992 = vld [vmem:[%s6 + $0x40] sm:$0xff]
  %v4993 = vld [vmem:[%s6 + $0x48] sm:$0xff]
  %v4994 = vld [vmem:[%s6 + $0x50] sm:$0xff]
  %v4995 = vld [vmem:[%s6 + $0x58] sm:$0xff]
  %v4996 = vld [vmem:[%s6 + $0x60] sm:$0xff]
  %v4997 = vld [vmem:[%s6 + $0x68] sm:$0xff]
  %v4998 = vld [vmem:[%s6 + $0x70] sm:$0xff]
  %v4999 = vld [vmem:[%s6 + $0x78] sm:$0xff]
  %v5000 = vld [vmem:[%s6 + $0x80] sm:$0xff]
  %v5001 = vld [vmem:[%s6 + $0x88] sm:$0xff]
  %v5002 = vld [vmem:[%s6 + $0x90] sm:$0xff]
  %v5003 = vld [vmem:[%s6 + $0x98] sm:$0xff]
  %v5004 = vld [vmem:[%s6 + $0xa0] sm:$0xff]
  %v5005 = vld [vmem:[%s6 + $0xa8] sm:$0xff]
  %v5006 = vld [vmem:[%s6 + $0xb0] sm:$0xff]
  %v5007 = vld [vmem:[%s6 + $0xb8] sm:$0xff]
  %v5008 = vld [vmem:[%s6 + $0xc0] sm:$0xff]
  %v5009 = vld [vmem:[%s6 + $0xc8] sm:$0xff]
  %v5010 = vld [vmem:[%s6 + $0xd0] sm:$0xff]
  %v5011 = vld [vmem:[%s6 + $0xd8] sm:$0xff]
  %v5012 = vld [vmem:[%s6 + $0xe0] sm:$0xff]
  %v5013 = vld [vmem:[%s6 + $0xe8] sm:$0xff]
  %v5014 = vld [vmem:[%s6 + $0xf0] sm:$0xff]
  %v5015 = vld [vmem:[%s6 + $0xf8] sm:$0xff]
  %v5016 = vld [vmem:[%s6 + $0x100] sm:$0xff]
  %v5017 = vld [vmem:[%s6 + $0x108] sm:$0xff]
  %v5018 = vld [vmem:[%s6 + $0x110] sm:$0xff]
  %v5019 = vld [vmem:[%s6 + $0x118] sm:$0xff]
  %v5020 = vld [vmem:[%s6 + $0x120] sm:$0xff]
  %v5021 = vld [vmem:[%s6 + $0x128] sm:$0xff]
  %v5022 = vld [vmem:[%s6 + $0x130] sm:$0xff]
  %v5023 = vld [vmem:[%s6 + $0x138] sm:$0xff]
  %v5032 = vrot.slane %v4976, 1
  %v5033 = vrot.slane %v4978, 1
  %v5034 = vsel %vm131, %v5032, %v5033
  %v5035 = vrot.slane %v4977, 1
  %v5036 = vrot.slane %v4979, 1
  %v5037 = vsel %vm131, %v5035, %v5036
  %v5038 = vrot.slane %v4980, 1
  %v5039 = vrot.slane %v4982, 1
  %v5040 = vsel %vm131, %v5038, %v5039
  %v5041 = vrot.slane %v4981, 1
  %v5042 = vrot.slane %v4983, 1
  %v5043 = vsel %vm131, %v5041, %v5042
  %s5046 = scalar_lea.vmem %s6, 320
  %v5047 = vld [vmem:[%s5046] sm:$0xff]
  %v5048 = vld [vmem:[%s5046 + $0x8] sm:$0xff]
  %v5049 = vld [vmem:[%s5046 + $0x10] sm:$0xff]
  %v5050 = vld [vmem:[%s5046 + $0x18] sm:$0xff]
  %v5051 = vld [vmem:[%s5046 + $0x20] sm:$0xff]
  %v5052 = vld [vmem:[%s5046 + $0x28] sm:$0xff]
  %v5053 = vld [vmem:[%s5046 + $0x30] sm:$0xff]
  %v5054 = vld [vmem:[%s5046 + $0x38] sm:$0xff]
  %v5055 = vld [vmem:[%s5046 + $0x40] sm:$0xff]
  %v5056 = vld [vmem:[%s5046 + $0x48] sm:$0xff]
  %v5057 = vld [vmem:[%s5046 + $0x50] sm:$0xff]
  %v5058 = vld [vmem:[%s5046 + $0x58] sm:$0xff]
  %v5059 = vld [vmem:[%s5046 + $0x60] sm:$0xff]
  %v5060 = vld [vmem:[%s5046 + $0x68] sm:$0xff]
  %v5061 = vld [vmem:[%s5046 + $0x70] sm:$0xff]
  %v5062 = vld [vmem:[%s5046 + $0x78] sm:$0xff]
  %v5063 = vld [vmem:[%s5046 + $0x80] sm:$0xff]
  %v5064 = vld [vmem:[%s5046 + $0x88] sm:$0xff]
  %v5065 = vld [vmem:[%s5046 + $0x90] sm:$0xff]
  %v5066 = vld [vmem:[%s5046 + $0x98] sm:$0xff]
  %v5067 = vld [vmem:[%s5046 + $0xa0] sm:$0xff]
  %v5068 = vld [vmem:[%s5046 + $0xa8] sm:$0xff]
  %v5069 = vld [vmem:[%s5046 + $0xb0] sm:$0xff]
  %v5070 = vld [vmem:[%s5046 + $0xb8] sm:$0xff]
  %v5071 = vld [vmem:[%s5046 + $0xc0] sm:$0xff]
  %v5072 = vld [vmem:[%s5046 + $0xc8] sm:$0xff]
  %v5073 = vld [vmem:[%s5046 + $0xd0] sm:$0xff]
  %v5074 = vld [vmem:[%s5046 + $0xd8] sm:$0xff]
  %v5075 = vld [vmem:[%s5046 + $0xe0] sm:$0xff]
  %v5076 = vld [vmem:[%s5046 + $0xe8] sm:$0xff]
  %v5077 = vld [vmem:[%s5046 + $0xf0] sm:$0xff]
  %v5078 = vld [vmem:[%s5046 + $0xf8] sm:$0xff]
  %v5079 = vld [vmem:[%s5046 + $0x100] sm:$0xff]
  %v5080 = vld [vmem:[%s5046 + $0x108] sm:$0xff]
  %v5081 = vld [vmem:[%s5046 + $0x110] sm:$0xff]
  %v5082 = vld [vmem:[%s5046 + $0x118] sm:$0xff]
  %v5083 = vld [vmem:[%s5046 + $0x120] sm:$0xff]
  %v5084 = vld [vmem:[%s5046 + $0x128] sm:$0xff]
  %v5085 = vld [vmem:[%s5046 + $0x130] sm:$0xff]
  %v5086 = vld [vmem:[%s5046 + $0x138] sm:$0xff]
  %v5087 = vsel %vm786, %v5037, 0
  %v5089 = vsel %vm786, %v5043, 0
  %5091 = vmatprep.subr.mxu0 %v5048
  %5092 = vmatpush1.msra.mxu0 %v5047
  %5093 = vmatprep.subr.mxu0 %v5050
  %5094 = vmatpush1.msra.mxu0 %v5049
  %5095 = vmatprep.subr.mxu0 %v5052
  %5096 = vmatpush1.msra.mxu0 %v5051
  %5097 = vmatprep.subr.mxu0 %v5054
  %5098 = vmatpush1.msra.mxu0 %v5053
  %5099 = vmatprep.subr.mxu0 %v5056
  %5100 = vmatpush1.msra.mxu0 %v5055
  %5101 = vmatprep.subr.mxu0 %v5058
  %5102 = vmatpush1.msra.mxu0 %v5057
  %5103 = vmatprep.subr.mxu0 %v5060
  %5104 = vmatpush1.msra.mxu0 %v5059
  %5105 = vmatprep.subr.mxu0 %v5062
  %5106 = vmatpush1.msra.mxu0 %v5061
  %5107 = vmatprep.subr.mxu0 %v5064
  %5108 = vmatpush1.msra.mxu0 %v5063
  %5109 = vmatprep.subr.mxu0 %v5066
  %5110 = vmatpush1.msra.mxu0 %v5065
  %5111 = vmatprep.subr.mxu0 %v5068
  %5112 = vmatpush1.msra.mxu0 %v5067
  %5113 = vmatprep.subr.mxu0 %v5070
  %5114 = vmatpush1.msra.mxu0 %v5069
  %5115 = vmatprep.subr.mxu0 %v5072
  %5116 = vmatpush1.msra.mxu0 %v5071
  %5117 = vmatprep.subr.mxu0 %v5074
  %5118 = vmatpush1.msra.mxu0 %v5073
  %5119 = vmatprep.subr.mxu0 %v5076
  %5120 = vmatpush1.msra.mxu0 %v5075
  %5121 = vmatprep.subr.mxu0 %v5078
  %5122 = vmatpush1.msra.mxu0 %v5077
  %5123 = vmatprep.subr.mxu0 %v5080
  %5124 = vmatpush1.msra.mxu0 %v5079
  %5125 = vmatprep.subr.mxu0 %v5082
  %5126 = vmatpush1.msra.mxu0 %v5081
  %5127 = vmatprep.subr.mxu0 %v5084
  %5128 = vmatpush1.msra.mxu0 %v5083
  %5129 = vmatprep.subr.mxu0 %v5086
  %5130 = vmatpush1.msra.mxu0 %v5085
  %5131 = vmatprep.subr.mxu0 0.0
  %5132 = vmatpush1.msra.mxu0 0.0
  %5133 = vmatprep.subr.mxu0 0.0
  %5134 = vmatpush1.msra.mxu0 0.0
  %5135 = vmatprep.subr.mxu0 0.0
  %5136 = vmatpush1.msra.mxu0 0.0
  %5137 = vmatprep.subr.mxu0 0.0
  %5138 = vmatpush1.msra.mxu0 0.0
  %5139 = vmatprep.subr.mxu0 0.0
  %5140 = vmatpush1.msra.mxu0 0.0
  %5141 = vmatprep.subr.mxu0 0.0
  %5142 = vmatpush1.msra.mxu0 0.0
  %5143 = vmatprep.subr.mxu0 0.0
  %5144 = vmatpush1.msra.mxu0 0.0
  %5145 = vmatprep.subr.mxu0 0.0
  %5146 = vmatpush1.msra.mxu0 0.0
  %5147 = vmatprep.subr.mxu0 0.0
  %5148 = vmatpush1.msra.mxu0 0.0
  %5149 = vmatprep.subr.mxu0 0.0
  %5150 = vmatpush1.msra.mxu0 0.0
  %5151 = vmatprep.subr.mxu0 0.0
  %5152 = vmatpush1.msra.mxu0 0.0
  %5153 = vmatprep.subr.mxu0 0.0
  %5154 = vmatpush1.msra.mxu0 0.0
  %5155 = vmatprep.mubr.f32.mxu0 %v5087
  %5156 = vmatmul.mubr.f32.gmra.mrb[0].mxu0 %v5034
  %v5157 = vpop.f32.mrb[0].mxu0
  %v5158 = vadd.f32 0.0, %v5157
  %v5159 = vpop.f32.mrb[0].mxu0
  %v5160 = vadd.f32 0.0, %v5159
  %5161 = vmatprep.mubr.f32.mxu0 %v5089
  %5162 = vmatmul.mubr.f32.gmra.mrb[0].mxu0 %v5040
  %v5163 = vpop.f32.mrb[0].mxu0
  %v5164 = vadd.f32 0.0, %v5163
  %v5165 = vpop.f32.mrb[0].mxu0
  %v5166 = vadd.f32 0.0, %v5165
  %5167 = vdwg.mxu0
  %v5168 = vsel %vm786, %v4977, 0
  %v5170 = vsel %vm786, %v4981, 0
  %5172 = vmatprep.subr.mxu0 %v4985
  %5173 = vmatpush1.msra.mxu0 %v4984
  %5174 = vmatprep.subr.mxu0 %v4987
  %5175 = vmatpush1.msra.mxu0 %v4986
  %5176 = vmatprep.subr.mxu0 %v4989
  %5177 = vmatpush1.msra.mxu0 %v4988
  %5178 = vmatprep.subr.mxu0 %v4991
  %5179 = vmatpush1.msra.mxu0 %v4990
  %5180 = vmatprep.subr.mxu0 %v4993
  %5181 = vmatpush1.msra.mxu0 %v4992
  %5182 = vmatprep.subr.mxu0 %v4995
  %5183 = vmatpush1.msra.mxu0 %v4994
  %5184 = vmatprep.subr.mxu0 %v4997
  %5185 = vmatpush1.msra.mxu0 %v4996
  %5186 = vmatprep.subr.mxu0 %v4999
  %5187 = vmatpush1.msra.mxu0 %v4998
  %5188 = vmatprep.subr.mxu0 %v5001
  %5189 = vmatpush1.msra.mxu0 %v5000
  %5190 = vmatprep.subr.mxu0 %v5003
  %5191 = vmatpush1.msra.mxu0 %v5002
  %5192 = vmatprep.subr.mxu0 %v5005
  %5193 = vmatpush1.msra.mxu0 %v5004
  %5194 = vmatprep.subr.mxu0 %v5007
  %5195 = vmatpush1.msra.mxu0 %v5006
  %5196 = vmatprep.subr.mxu0 %v5009
  %5197 = vmatpush1.msra.mxu0 %v5008
  %5198 = vmatprep.subr.mxu0 %v5011
  %5199 = vmatpush1.msra.mxu0 %v5010
  %5200 = vmatprep.subr.mxu0 %v5013
  %5201 = vmatpush1.msra.mxu0 %v5012
  %5202 = vmatprep.subr.mxu0 %v5015
  %5203 = vmatpush1.msra.mxu0 %v5014
  %5204 = vmatprep.subr.mxu0 %v5017
  %5205 = vmatpush1.msra.mxu0 %v5016
  %5206 = vmatprep.subr.mxu0 %v5019
  %5207 = vmatpush1.msra.mxu0 %v5018
  %5208 = vmatprep.subr.mxu0 %v5021
  %5209 = vmatpush1.msra.mxu0 %v5020
  %5210 = vmatprep.subr.mxu0 %v5023
  %5211 = vmatpush1.msra.mxu0 %v5022
  %5212 = vmatprep.subr.mxu0 0.0
  %5213 = vmatpush1.msra.mxu0 0.0
  %5214 = vmatprep.subr.mxu0 0.0
  %5215 = vmatpush1.msra.mxu0 0.0
  %5216 = vmatprep.subr.mxu0 0.0
  %5217 = vmatpush1.msra.mxu0 0.0
  %5218 = vmatprep.subr.mxu0 0.0
  %5219 = vmatpush1.msra.mxu0 0.0
  %5220 = vmatprep.subr.mxu0 0.0
  %5221 = vmatpush1.msra.mxu0 0.0
  %5222 = vmatprep.subr.mxu0 0.0
  %5223 = vmatpush1.msra.mxu0 0.0
  %5224 = vmatprep.subr.mxu0 0.0
  %5225 = vmatpush1.msra.mxu0 0.0
  %5226 = vmatprep.subr.mxu0 0.0
  %5227 = vmatpush1.msra.mxu0 0.0
  %5228 = vmatprep.subr.mxu0 0.0
  %5229 = vmatpush1.msra.mxu0 0.0
  %5230 = vmatprep.subr.mxu0 0.0
  %5231 = vmatpush1.msra.mxu0 0.0
  %5232 = vmatprep.subr.mxu0 0.0
  %5233 = vmatpush1.msra.mxu0 0.0
  %5234 = vmatprep.subr.mxu0 0.0
  %5235 = vmatpush1.msra.mxu0 0.0
  %5236 = vmatprep.mubr.f32.mxu0 %v5168
  %5237 = vmatmul.mubr.f32.gmra.mrb[0].mxu0 %v4976
  %v5238 = vpop.f32.mrb[0].mxu0
  %v5239 = vadd.f32 %v5158, %v5238
  %v5240 = vpop.f32.mrb[0].mxu0
  %v5241 = vadd.f32 %v5160, %v5240
  %5242 = vmatprep.mubr.f32.mxu0 %v5170
  %5243 = vmatmul.mubr.f32.gmra.mrb[0].mxu0 %v4980
  %v5244 = vpop.f32.mrb[0].mxu0
  %v5245 = vadd.f32 %v5164, %v5244
  %v5246 = vpop.f32.mrb[0].mxu0
  %v5247 = vadd.f32 %v5166, %v5246
  %5248 = vdwg.mxu0
  %v5249 = vrot.slane %v4976, 2
  %v5250 = vrot.slane %v4978, 2
  %v5251 = vsel %vm535, %v5249, %v5250
  %v5252 = vrot.slane %v4977, 2
  %v5253 = vrot.slane %v4979, 2
  %v5254 = vsel %vm535, %v5252, %v5253
  %v5255 = vrot.slane %v4980, 2
  %v5256 = vrot.slane %v4982, 2
  %v5257 = vsel %vm535, %v5255, %v5256
  %v5258 = vrot.slane %v4981, 2
  %v5259 = vrot.slane %v4983, 2
  %v5260 = vsel %vm535, %v5258, %v5259
  %s5263 = scalar_lea.vmem %s6, 640
  %v5264 = vld [vmem:[%s5263] sm:$0xff]
  %v5265 = vld [vmem:[%s5263 + $0x8] sm:$0xff]
  %v5266 = vld [vmem:[%s5263 + $0x10] sm:$0xff]
  %v5267 = vld [vmem:[%s5263 + $0x18] sm:$0xff]
  %v5268 = vld [vmem:[%s5263 + $0x20] sm:$0xff]
  %v5269 = vld [vmem:[%s5263 + $0x28] sm:$0xff]
  %v5270 = vld [vmem:[%s5263 + $0x30] sm:$0xff]
  %v5271 = vld [vmem:[%s5263 + $0x38] sm:$0xff]
  %v5272 = vld [vmem:[%s5263 + $0x40] sm:$0xff]
  %v5273 = vld [vmem:[%s5263 + $0x48] sm:$0xff]
  %v5274 = vld [vmem:[%s5263 + $0x50] sm:$0xff]
  %v5275 = vld [vmem:[%s5263 + $0x58] sm:$0xff]
  %v5276 = vld [vmem:[%s5263 + $0x60] sm:$0xff]
  %v5277 = vld [vmem:[%s5263 + $0x68] sm:$0xff]
  %v5278 = vld [vmem:[%s5263 + $0x70] sm:$0xff]
  %v5279 = vld [vmem:[%s5263 + $0x78] sm:$0xff]
  %v5280 = vld [vmem:[%s5263 + $0x80] sm:$0xff]
  %v5281 = vld [vmem:[%s5263 + $0x88] sm:$0xff]
  %v5282 = vld [vmem:[%s5263 + $0x90] sm:$0xff]
  %v5283 = vld [vmem:[%s5263 + $0x98] sm:$0xff]
  %v5284 = vld [vmem:[%s5263 + $0xa0] sm:$0xff]
  %v5285 = vld [vmem:[%s5263 + $0xa8] sm:$0xff]
  %v5286 = vld [vmem:[%s5263 + $0xb0] sm:$0xff]
  %v5287 = vld [vmem:[%s5263 + $0xb8] sm:$0xff]
  %v5288 = vld [vmem:[%s5263 + $0xc0] sm:$0xff]
  %v5289 = vld [vmem:[%s5263 + $0xc8] sm:$0xff]
  %v5290 = vld [vmem:[%s5263 + $0xd0] sm:$0xff]
  %v5291 = vld [vmem:[%s5263 + $0xd8] sm:$0xff]
  %v5292 = vld [vmem:[%s5263 + $0xe0] sm:$0xff]
  %v5293 = vld [vmem:[%s5263 + $0xe8] sm:$0xff]
  %v5294 = vld [vmem:[%s5263 + $0xf0] sm:$0xff]
  %v5295 = vld [vmem:[%s5263 + $0xf8] sm:$0xff]
  %v5296 = vld [vmem:[%s5263 + $0x100] sm:$0xff]
  %v5297 = vld [vmem:[%s5263 + $0x108] sm:$0xff]
  %v5298 = vld [vmem:[%s5263 + $0x110] sm:$0xff]
  %v5299 = vld [vmem:[%s5263 + $0x118] sm:$0xff]
  %v5300 = vld [vmem:[%s5263 + $0x120] sm:$0xff]
  %v5301 = vld [vmem:[%s5263 + $0x128] sm:$0xff]
  %v5302 = vld [vmem:[%s5263 + $0x130] sm:$0xff]
  %v5303 = vld [vmem:[%s5263 + $0x138] sm:$0xff]
  %v5304 = vsel %vm786, %v5254, 0
  %v5306 = vsel %vm786, %v5260, 0
  %5308 = vmatprep.subr.mxu0 %v5265
  %5309 = vmatpush1.msra.mxu0 %v5264
  %5310 = vmatprep.subr.mxu0 %v5267
  %5311 = vmatpush1.msra.mxu0 %v5266
  %5312 = vmatprep.subr.mxu0 %v5269
  %5313 = vmatpush1.msra.mxu0 %v5268
  %5314 = vmatprep.subr.mxu0 %v5271
  %5315 = vmatpush1.msra.mxu0 %v5270
  %5316 = vmatprep.subr.mxu0 %v5273
  %5317 = vmatpush1.msra.mxu0 %v5272
  %5318 = vmatprep.subr.mxu0 %v5275
  %5319 = vmatpush1.msra.mxu0 %v5274
  %5320 = vmatprep.subr.mxu0 %v5277
  %5321 = vmatpush1.msra.mxu0 %v5276
  %5322 = vmatprep.subr.mxu0 %v5279
  %5323 = vmatpush1.msra.mxu0 %v5278
  %5324 = vmatprep.subr.mxu0 %v5281
  %5325 = vmatpush1.msra.mxu0 %v5280
  %5326 = vmatprep.subr.mxu0 %v5283
  %5327 = vmatpush1.msra.mxu0 %v5282
  %5328 = vmatprep.subr.mxu0 %v5285
  %5329 = vmatpush1.msra.mxu0 %v5284
  %5330 = vmatprep.subr.mxu0 %v5287
  %5331 = vmatpush1.msra.mxu0 %v5286
  %5332 = vmatprep.subr.mxu0 %v5289
  %5333 = vmatpush1.msra.mxu0 %v5288
  %5334 = vmatprep.subr.mxu0 %v5291
  %5335 = vmatpush1.msra.mxu0 %v5290
  %5336 = vmatprep.subr.mxu0 %v5293
  %5337 = vmatpush1.msra.mxu0 %v5292
  %5338 = vmatprep.subr.mxu0 %v5295
  %5339 = vmatpush1.msra.mxu0 %v5294
  %5340 = vmatprep.subr.mxu0 %v5297
  %5341 = vmatpush1.msra.mxu0 %v5296
  %5342 = vmatprep.subr.mxu0 %v5299
  %5343 = vmatpush1.msra.mxu0 %v5298
  %5344 = vmatprep.subr.mxu0 %v5301
  %5345 = vmatpush1.msra.mxu0 %v5300
  %5346 = vmatprep.subr.mxu0 %v5303
  %5347 = vmatpush1.msra.mxu0 %v5302
  %5348 = vmatprep.subr.mxu0 0.0
  %5349 = vmatpush1.msra.mxu0 0.0
  %5350 = vmatprep.subr.mxu0 0.0
  %5351 = vmatpush1.msra.mxu0 0.0
  %5352 = vmatprep.subr.mxu0 0.0
  %5353 = vmatpush1.msra.mxu0 0.0
  %5354 = vmatprep.subr.mxu0 0.0
  %5355 = vmatpush1.msra.mxu0 0.0
  %5356 = vmatprep.subr.mxu0 0.0
  %5357 = vmatpush1.msra.mxu0 0.0
  %5358 = vmatprep.subr.mxu0 0.0
  %5359 = vmatpush1.msra.mxu0 0.0
  %5360 = vmatprep.subr.mxu0 0.0
  %5361 = vmatpush1.msra.mxu0 0.0
  %5362 = vmatprep.subr.mxu0 0.0
  %5363 = vmatpush1.msra.mxu0 0.0
  %5364 = vmatprep.subr.mxu0 0.0
  %5365 = vmatpush1.msra.mxu0 0.0
  %5366 = vmatprep.subr.mxu0 0.0
  %5367 = vmatpush1.msra.mxu0 0.0
  %5368 = vmatprep.subr.mxu0 0.0
  %5369 = vmatpush1.msra.mxu0 0.0
  %5370 = vmatprep.subr.mxu0 0.0
  %5371 = vmatpush1.msra.mxu0 0.0
  %5372 = vmatprep.mubr.f32.mxu0 %v5304
  %5373 = vmatmul.mubr.f32.gmra.mrb[0].mxu0 %v5251
  %v5374 = vpop.f32.mrb[0].mxu0
  %v5375 = vadd.f32 0.0, %v5374
  %v5376 = vpop.f32.mrb[0].mxu0
  %v5377 = vadd.f32 0.0, %v5376
  %5378 = vmatprep.mubr.f32.mxu0 %v5306
  %5379 = vmatmul.mubr.f32.gmra.mrb[0].mxu0 %v5257
  %v5380 = vpop.f32.mrb[0].mxu0
  %v5381 = vadd.f32 0.0, %v5380
  %v5382 = vpop.f32.mrb[0].mxu0
  %v5383 = vadd.f32 0.0, %v5382
  %5384 = vdwg.mxu0
  %v5385 = vadd.f32 %v5239, %v5375
  %v5386 = vadd.f32 %v5241, %v5377
  %v5387 = vadd.f32 %v5245, %v5381
  %v5388 = vadd.f32 %v5247, %v5383
  %v5389 = vadd.f32 %v5385, %v5387
  %v5390 = vrot.slane %v5389, 4
  %v5391 = vadd.f32 %v5389, %v5390
  %v5392 = vrot.slane %v5391, 2
  %v5393 = vadd.f32 %v5391, %v5392
  %v5394 = vrot.slane %v5393, 1
  %v5395 = vadd.f32 %v5393, %v5394
  %v5396 = vsel %vm786, %v5386, 0.0
  %v5397 = vsel %vm786, %v5388, 0.0
  %v5398 = vadd.f32 %v5396, %v5397
  %v5399 = vrot.slane %v5398, 4
  %v5400 = vadd.f32 %v5398, %v5399
  %v5401 = vrot.slane %v5400, 2
  %v5402 = vadd.f32 %v5400, %v5401
  %v5403 = vrot.slane %v5402, 1
  %v5404 = vadd.f32 %v5402, %v5403
  %v5405 = vmul.f32 %v5385, %v5385
  %v5406 = vmul.f32 %v5386, %v5386
  %v5407 = vmul.f32 %v5387, %v5387
  %v5408 = vmul.f32 %v5388, %v5388
  %v5409 = vadd.f32 %v5405, %v5407
  %v5410 = vrot.slane %v5409, 4
  %v5411 = vadd.f32 %v5409, %v5410
  %v5412 = vrot.slane %v5411, 2
  %v5413 = vadd.f32 %v5411, %v5412
  %v5414 = vrot.slane %v5413, 1
  %v5415 = vadd.f32 %v5413, %v5414
  %v5416 = vsel %vm786, %v5406, 0.0
  %v5417 = vsel %vm786, %v5408, 0.0
  %v5418 = vadd.f32 %v5416, %v5417
  %v5419 = vrot.slane %v5418, 4
  %v5420 = vadd.f32 %v5418, %v5419
  %v5421 = vrot.slane %v5420, 2
  %v5422 = vadd.f32 %v5420, %v5421
  %v5423 = vrot.slane %v5422, 1
  %v5424 = vadd.f32 %v5422, %v5423
  %v5425 = vsel %vm843, %v5395, %v5415
  %v5426 = vsel %vm843, %v5404, %v5424
  %v5427 = vld [vmem:[%s10] sm:$0xff]
  %v5428 = vld [vmem:[%s10 + $0x8] sm:$0xff]
  %v5429 = vld [vmem:[%s10 + $0x10] sm:$0xff]
  %v5430 = vld [vmem:[%s10 + $0x18] sm:$0xff]
  %v5431 = vld [vmem:[%s10 + $0x20] sm:$0xff]
  %v5432 = vld [vmem:[%s10 + $0x28] sm:$0xff]
  %v5433 = vld [vmem:[%s10 + $0x30] sm:$0xff]
  %v5434 = vld [vmem:[%s10 + $0x38] sm:$0xff]
  %v5435 = vld [vmem:[%s10 + $0x40] sm:$0xff]
  %v5436 = vld [vmem:[%s10 + $0x48] sm:$0xff]
  %v5437 = vld [vmem:[%s10 + $0x50] sm:$0xff]
  %v5438 = vld [vmem:[%s10 + $0x58] sm:$0xff]
  %v5439 = vld [vmem:[%s10 + $0x60] sm:$0xff]
  %v5440 = vld [vmem:[%s10 + $0x68] sm:$0xff]
  %v5441 = vld [vmem:[%s10 + $0x70] sm:$0xff]
  %v5442 = vld [vmem:[%s10 + $0x78] sm:$0xff]
  %v5443 = vld [vmem:[%s10 + $0x80] sm:$0xff]
  %v5444 = vld [vmem:[%s10 + $0x88] sm:$0xff]
  %v5445 = vld [vmem:[%s10 + $0x90] sm:$0xff]
  %v5446 = vld [vmem:[%s10 + $0x98] sm:$0xff]
  %v5448 = vsel %vm786, %v5426, 0
  %5450 = vmatprep.subr.mxu0 0.0
  %5451 = vmatpush1.msra.mxu0 %v5427
  %5452 = vmatprep.subr.mxu0 0.0
  %5453 = vmatpush1.msra.mxu0 %v5428
  %5454 = vmatprep.subr.mxu0 0.0
  %5455 = vmatpush1.msra.mxu0 %v5429
  %5456 = vmatprep.subr.mxu0 0.0
  %5457 = vmatpush1.msra.mxu0 %v5430
  %5458 = vmatprep.subr.mxu0 0.0
  %5459 = vmatpush1.msra.mxu0 %v5431
  %5460 = vmatprep.subr.mxu0 0.0
  %5461 = vmatpush1.msra.mxu0 %v5432
  %5462 = vmatprep.subr.mxu0 0.0
  %5463 = vmatpush1.msra.mxu0 %v5433
  %5464 = vmatprep.subr.mxu0 0.0
  %5465 = vmatpush1.msra.mxu0 %v5434
  %5466 = vmatprep.subr.mxu0 0.0
  %5467 = vmatpush1.msra.mxu0 %v5435
  %5468 = vmatprep.subr.mxu0 0.0
  %5469 = vmatpush1.msra.mxu0 %v5436
  %5470 = vmatprep.subr.mxu0 0.0
  %5471 = vmatpush1.msra.mxu0 %v5437
  %5472 = vmatprep.subr.mxu0 0.0
  %5473 = vmatpush1.msra.mxu0 %v5438
  %5474 = vmatprep.subr.mxu0 0.0
  %5475 = vmatpush1.msra.mxu0 %v5439
  %5476 = vmatprep.subr.mxu0 0.0
  %5477 = vmatpush1.msra.mxu0 %v5440
  %5478 = vmatprep.subr.mxu0 0.0
  %5479 = vmatpush1.msra.mxu0 %v5441
  %5480 = vmatprep.subr.mxu0 0.0
  %5481 = vmatpush1.msra.mxu0 %v5442
  %5482 = vmatprep.subr.mxu0 0.0
  %5483 = vmatpush1.msra.mxu0 %v5443
  %5484 = vmatprep.subr.mxu0 0.0
  %5485 = vmatpush1.msra.mxu0 %v5444
  %5486 = vmatprep.subr.mxu0 0.0
  %5487 = vmatpush1.msra.mxu0 %v5445
  %5488 = vmatprep.subr.mxu0 0.0
  %5489 = vmatpush1.msra.mxu0 %v5446
  %5490 = vmatprep.subr.mxu0 0.0
  %5491 = vmatpush1.msra.mxu0 0.0
  %5492 = vmatprep.subr.mxu0 0.0
  %5493 = vmatpush1.msra.mxu0 0.0
  %5494 = vmatprep.subr.mxu0 0.0
  %5495 = vmatpush1.msra.mxu0 0.0
  %5496 = vmatprep.subr.mxu0 0.0
  %5497 = vmatpush1.msra.mxu0 0.0
  %5498 = vmatprep.subr.mxu0 0.0
  %5499 = vmatpush1.msra.mxu0 0.0
  %5500 = vmatprep.subr.mxu0 0.0
  %5501 = vmatpush1.msra.mxu0 0.0
  %5502 = vmatprep.subr.mxu0 0.0
  %5503 = vmatpush1.msra.mxu0 0.0
  %5504 = vmatprep.subr.mxu0 0.0
  %5505 = vmatpush1.msra.mxu0 0.0
  %5506 = vmatprep.subr.mxu0 0.0
  %5507 = vmatpush1.msra.mxu0 0.0
  %5508 = vmatprep.subr.mxu0 0.0
  %5509 = vmatpush1.msra.mxu0 0.0
  %5510 = vmatprep.subr.mxu0 0.0
  %5511 = vmatpush1.msra.mxu0 0.0
  %5512 = vmatprep.subr.mxu0 0.0
  %5513 = vmatpush1.msra.mxu0 0.0
  %5514 = vmatprep.mubr.f32.mxu0 %v5448
  %5515 = vmatmul.mubr.f32.gmra.mrb[0].mxu0 %v5425
  %v5516 = vpop.f32.mrb[0].mxu0
  %v5517 = vadd.f32 0.0, %v5516
  %v5518 = vpop.f32.mrb[0].mxu0
  %5519 = vdwg.mxu0
  %v5520 = vmul.f32 %v5517, 0.0078125
  %v5521 = vmul.f32 %v5520, %v5520
  %v5523 = vrot.slane %v5521, 7
  %v5525 = vsub.f32 %v5520, %v5523
  %v5526 = vmax.f32 %v5525, 0.0
  %v5527 = vld [vmem:[%s1 + $0x3] sm:$0x1]
  %v5528 = vld [vmem:[%s2 + $0x3] sm:$0x1]
  %v5529 = vadd.f32 %v5526, 1e-05
  %v5530 = vrsqrt.pop %v5529
  %v5532 = vrot.slane %v5530, 1
  %v5534 = vmul.f32 %v5527, %v5532
  %v5535 = vmul.f32 %v5520, %v5534
  %v5536 = vsub.f32 %v5528, %v5535
  %v5538 = vrot.slane %v5536, 7
  %v5540 = vsel %vm843, %v5534, %v5538
  %v5541 = vld [vmem:[%s13] sm:$0xff]
  %v5542 = vld [vmem:[%s13 + $0x8] sm:$0xff]
  %v5543 = vld [vmem:[%s13 + $0x10] sm:$0xff]
  %v5544 = vld [vmem:[%s13 + $0x18] sm:$0xff]
  %v5546 = vsel %vm1053, %v5540, 0
  %5548 = vmatprep.subr.mxu0 %v5542
  %5549 = vmatpush1.msra.mxu0 %v5541
  %5550 = vmatprep.subr.mxu0 %v5544
  %5551 = vmatpush1.msra.mxu0 %v5543
  %5552 = vmatprep.subr.mxu0 0.0
  %5553 = vmatpush1.msra.mxu0 0.0
  %5554 = vmatprep.subr.mxu0 0.0
  %5555 = vmatpush1.msra.mxu0 0.0
  %5556 = vmatprep.subr.mxu0 0.0
  %5557 = vmatpush1.msra.mxu0 0.0
  %5558 = vmatprep.subr.mxu0 0.0
  %5559 = vmatpush1.msra.mxu0 0.0
  %5560 = vmatprep.subr.mxu0 0.0
  %5561 = vmatpush1.msra.mxu0 0.0
  %5562 = vmatprep.subr.mxu0 0.0
  %5563 = vmatpush1.msra.mxu0 0.0
  %5564 = vmatprep.subr.mxu0 0.0
  %5565 = vmatpush1.msra.mxu0 0.0
  %5566 = vmatprep.subr.mxu0 0.0
  %5567 = vmatpush1.msra.mxu0 0.0
  %5568 = vmatprep.subr.mxu0 0.0
  %5569 = vmatpush1.msra.mxu0 0.0
  %5570 = vmatprep.subr.mxu0 0.0
  %5571 = vmatpush1.msra.mxu0 0.0
  %5572 = vmatprep.subr.mxu0 0.0
  %5573 = vmatpush1.msra.mxu0 0.0
  %5574 = vmatprep.subr.mxu0 0.0
  %5575 = vmatpush1.msra.mxu0 0.0
  %5576 = vmatprep.subr.mxu0 0.0
  %5577 = vmatpush1.msra.mxu0 0.0
  %5578 = vmatprep.subr.mxu0 0.0
  %5579 = vmatpush1.msra.mxu0 0.0
  %5580 = vmatprep.subr.mxu0 0.0
  %5581 = vmatpush1.msra.mxu0 0.0
  %5582 = vmatprep.subr.mxu0 0.0
  %5583 = vmatpush1.msra.mxu0 0.0
  %5584 = vmatprep.subr.mxu0 0.0
  %5585 = vmatpush1.msra.mxu0 0.0
  %5586 = vmatprep.subr.mxu0 0.0
  %5587 = vmatpush1.msra.mxu0 0.0
  %5588 = vmatprep.subr.mxu0 0.0
  %5589 = vmatpush1.msra.mxu0 0.0
  %5590 = vmatprep.subr.mxu0 0.0
  %5591 = vmatpush1.msra.mxu0 0.0
  %5592 = vmatprep.subr.mxu0 0.0
  %5593 = vmatpush1.msra.mxu0 0.0
  %5594 = vmatprep.subr.mxu0 0.0
  %5595 = vmatpush1.msra.mxu0 0.0
  %5596 = vmatprep.subr.mxu0 0.0
  %5597 = vmatpush1.msra.mxu0 0.0
  %5598 = vmatprep.subr.mxu0 0.0
  %5599 = vmatpush1.msra.mxu0 0.0
  %5600 = vmatprep.subr.mxu0 0.0
  %5601 = vmatpush1.msra.mxu0 0.0
  %5602 = vmatprep.subr.mxu0 0.0
  %5603 = vmatpush1.msra.mxu0 0.0
  %5604 = vmatprep.subr.mxu0 0.0
  %5605 = vmatpush1.msra.mxu0 0.0
  %5606 = vmatprep.subr.mxu0 0.0
  %5607 = vmatpush1.msra.mxu0 0.0
  %5608 = vmatprep.subr.mxu0 0.0
  %5609 = vmatpush1.msra.mxu0 0.0
  %5610 = vmatprep.subr.mxu0 0.0
  %5611 = vmatpush1.msra.mxu0 0.0
  %5612 = vmatprep.mubr.f32.mxu0 0.0
  %5613 = vmatmul.mubr.f32.gmra.mrb[0].mxu0 %v5546
  %v5614 = vpop.f32.mrb[0].mxu0
  %v5615 = vadd.f32 0.0, %v5614
  %v5616 = vpop.f32.mrb[0].mxu0
  %v5617 = vadd.f32 0.0, %v5616
  %5618 = vdwg.mxu0
  %v5619 = vlaneseq
  %v5620 = vshrl.u32 %v5619, 7
  %v5621 = vsub.s32 0, %v5620
  %v5622 = vrot.slane %v5615, %v5621
  %v5623 = vlaneseq
  %v5624 = vshrl.u32 %v5623, 7
  %v5625 = vsub.s32 0, %v5624
  %v5626 = vrot.slane %v5617, %v5625
  %v5627 = vmul.f32 %v5385, %v5622
  %v5628 = vmul.f32 %v5386, %v5626
  %v5629 = vmul.f32 %v5387, %v5622
  %v5630 = vmul.f32 %v5388, %v5626
  %v5631 = vlaneseq
  %v5632 = vshrl.u32 %v5631, 7
  %v5633 = vsub.s32 1, %v5632
  %v5634 = vrot.slane %v5615, %v5633
  %v5635 = vlaneseq
  %v5636 = vshrl.u32 %v5635, 7
  %v5637 = vsub.s32 1, %v5636
  %v5638 = vrot.slane %v5617, %v5637
  %v5639 = vadd.f32 %v5627, %v5634
  %v5640 = vadd.f32 %v5628, %v5638
  %v5641 = vadd.f32 %v5629, %v5634
  %v5642 = vadd.f32 %v5630, %v5638
  %v5643 = vmax.f32 %v5639, 0.0
  %v5644 = vmax.f32 %v5640, 0.0
  %v5645 = vmax.f32 %v5641, 0.0
  %v5646 = vmax.f32 %v5642, 0.0
  %5647 = vst [vmem:[%s18] sm:$0xff] %v5643
  %5648 = vst.msk [vmem:[%s18 + $0x8] sm:$0xff] %vm786, %v5644
  %5649 = vst [vmem:[%s18 + $0x10] sm:$0xff] %v5645
  %5650 = vst.msk [vmem:[%s18 + $0x18] sm:$0xff] %vm786, %v5646
  %v5655 = vrot.slane %v5643, 7
  %v5656 = vrot.slane %v5644, 7
  %v5657 = vrot.slane %v5645, 7
  %v5658 = vrot.slane %v5646, 7
  %5663 = vst [vmem:[#allocation3] sm:$0xfe] %v5655
  %5664 = vst.msk [vmem:[#allocation3 + $0x8] sm:$0xfe] %vm1308, %v5656
  %5665 = vst [vmem:[#allocation3 + $0x10] sm:$0x1] %v5655
  %5666 = vst.msk [vmem:[#allocation3 + $0x18] sm:$0x1] %vm1315, %v5656
  %5667 = vst [vmem:[#allocation3 + $0x20] sm:$0xfe] %v5657
  %5668 = vst.msk [vmem:[#allocation3 + $0x28] sm:$0xfe] %vm1308, %v5658
  %5669 = vst [vmem:[#allocation3 + $0x30] sm:$0x1] %v5657
  %5670 = vst.msk [vmem:[#allocation3 + $0x38] sm:$0x1] %vm1315, %v5658
  %v5671 = vld [vmem:[#allocation3] sm:$0xff]
  %v5672 = vld [vmem:[#allocation3 + $0x8] sm:$0xff]
  %v5673 = vld [vmem:[#allocation3 + $0x10] sm:$0x3]
  %v5674 = vld [vmem:[#allocation3 + $0x18] sm:$0x3]
  %v5675 = vld [vmem:[#allocation3 + $0x20] sm:$0xff]
  %v5676 = vld [vmem:[#allocation3 + $0x28] sm:$0xff]
  %v5677 = vld [vmem:[#allocation3 + $0x30] sm:$0x3]
  %v5678 = vld [vmem:[#allocation3 + $0x38] sm:$0x3]
  %v5687 = vrot.slane %v5671, 1
  %v5688 = vrot.slane %v5673, 1
  %v5689 = vsel %vm131, %v5687, %v5688
  %v5690 = vrot.slane %v5672, 1
  %v5691 = vrot.slane %v5674, 1
  %v5692 = vsel %vm131, %v5690, %v5691
  %v5693 = vrot.slane %v5675, 1
  %v5694 = vrot.slane %v5677, 1
  %v5695 = vsel %vm131, %v5693, %v5694
  %v5696 = vrot.slane %v5676, 1
  %v5697 = vrot.slane %v5678, 1
  %v5698 = vsel %vm131, %v5696, %v5697
  %v5703 = vmax.f32 %v5671, %v5689
  %v5704 = vmax.f32 %v5672, %v5692
  %v5705 = vmax.f32 %v5675, %v5695
  %v5706 = vmax.f32 %v5676, %v5698
  %v5711 = vcombine.low %v5703, %v5704
  %v5712 = vcombine.high %v5703, %v5704
  %v5714 = vunpack.c.l.s4 1983009808
  %v5715 = vunpack.c.0.s8 %v5714
  %v5716 = vlaneseq
  %v5717 = vshrl.u32 %v5716, 7
  %v5718 = vsub.s32 %v5715, %v5717
  %v5719 = vrot.slane %v5711, %v5718
  %v5721 = vunpack.c.l.s4 1983009808
  %v5722 = vunpack.c.0.s8 %v5721
  %v5723 = vlaneseq
  %v5724 = vshrl.u32 %v5723, 7
  %v5725 = vsub.s32 %v5722, %v5724
  %v5726 = vrot.slane %v5712, %v5725
  %v5727 = vcombine.high %v5719, %v5719
  %v5728 = vcombine.high %v5726, %v5726
  %v5729 = vcombine.low %v5705, %v5706
  %v5730 = vcombine.high %v5705, %v5706
  %v5732 = vunpack.c.l.s4 1983009808
  %v5733 = vunpack.c.0.s8 %v5732
  %v5734 = vlaneseq
  %v5735 = vshrl.u32 %v5734, 7
  %v5736 = vsub.s32 %v5733, %v5735
  %v5737 = vrot.slane %v5729, %v5736
  %v5739 = vunpack.c.l.s4 1983009808
  %v5740 = vunpack.c.0.s8 %v5739
  %v5741 = vlaneseq
  %v5742 = vshrl.u32 %v5741, 7
  %v5743 = vsub.s32 %v5740, %v5742
  %v5744 = vrot.slane %v5730, %v5743
  %v5745 = vcombine.high %v5737, %v5737
  %v5746 = vcombine.high %v5744, %v5744
  %v5755 = vrot.slane %v5719, 7
  %v5756 = vrot.slane %v5755, 2
  %v5757 = vrot.slane %v5727, 7
  %v5758 = vrot.slane %v5757, 2
  %v5759 = vrot.slane %v5726, 7
  %v5760 = vrot.slane %v5759, 2
  %v5761 = vrot.slane %v5728, 7
  %v5762 = vrot.slane %v5761, 2
  %v5763 = vrot.slane %v5737, 7
  %v5764 = vrot.slane %v5763, 2
  %v5765 = vrot.slane %v5745, 7
  %v5766 = vrot.slane %v5765, 2
  %v5767 = vrot.slane %v5744, 7
  %v5768 = vrot.slane %v5767, 2
  %v5769 = vrot.slane %v5746, 7
  %v5770 = vrot.slane %v5769, 2
  %v5779 = vmax.f32 %v5719, %v5756
  %v5780 = vmax.f32 %v5727, %v5758
  %v5781 = vmax.f32 %v5726, %v5760
  %v5782 = vmax.f32 %v5728, %v5762
  %v5783 = vmax.f32 %v5737, %v5764
  %v5784 = vmax.f32 %v5745, %v5766
  %v5785 = vmax.f32 %v5744, %v5768
  %v5786 = vmax.f32 %v5746, %v5770
  %5795 = vrot.lane.b32.xlu0 %v5779, 112
  %v5796 = vpop.permute.xlu0 %5795
  %5797 = vrot.lane.b32.xlu0 %v5780, 112
  %v5798 = vpop.permute.xlu0 %5797
  %5799 = vrot.lane.b32.xlu0 %v5781, 112
  %v5800 = vpop.permute.xlu0 %5799
  %5801 = vrot.lane.b32.xlu0 %v5782, 112
  %v5802 = vpop.permute.xlu0 %5801
  %5803 = vrot.lane.b32.xlu0 %v5783, 112
  %v5804 = vpop.permute.xlu0 %5803
  %5805 = vrot.lane.b32.xlu0 %v5784, 112
  %v5806 = vpop.permute.xlu0 %5805
  %5807 = vrot.lane.b32.xlu0 %v5785, 112
  %v5808 = vpop.permute.xlu0 %5807
  %5809 = vrot.lane.b32.xlu0 %v5786, 112
  %v5810 = vpop.permute.xlu0 %5809
  %v5811 = vrot.slane %v5796, 2
  %v5812 = vrot.slane %v5798, 2
  %v5813 = vrot.slane %v5800, 2
  %v5814 = vrot.slane %v5802, 2
  %v5815 = vrot.slane %v5804, 2
  %v5816 = vrot.slane %v5806, 2
  %v5817 = vrot.slane %v5808, 2
  %v5818 = vrot.slane %v5810, 2
  %v5819 = vsel %vm3795, %v5796, %v5811
  %v5820 = vsel %vm3795, %v5798, %v5812
  %v5821 = vsel %vm3795, %v5800, %v5813
  %v5822 = vsel %vm3795, %v5802, %v5814
  %v5823 = vsel %vm3795, %v5804, %v5815
  %v5824 = vsel %vm3795, %v5806, %v5816
  %v5825 = vsel %vm3795, %v5808, %v5817
  %v5826 = vsel %vm3795, %v5810, %v5818
  %v5835 = vmax.f32 %v5779, %v5819
  %v5836 = vmax.f32 %v5780, %v5820
  %v5837 = vmax.f32 %v5781, %v5821
  %v5838 = vmax.f32 %v5782, %v5822
  %v5839 = vmax.f32 %v5783, %v5823
  %v5840 = vmax.f32 %v5784, %v5824
  %v5841 = vmax.f32 %v5785, %v5825
  %v5842 = vmax.f32 %v5786, %v5826
  %5843 = vrot.lane.b32.xlu0 %v5779, 96
  %v5844 = vpop.permute.xlu0 %5843
  %5845 = vrot.lane.b32.xlu0 %v5780, 96
  %v5846 = vpop.permute.xlu0 %5845
  %5847 = vrot.lane.b32.xlu0 %v5781, 96
  %v5848 = vpop.permute.xlu0 %5847
  %5849 = vrot.lane.b32.xlu0 %v5782, 96
  %v5850 = vpop.permute.xlu0 %5849
  %5851 = vrot.lane.b32.xlu0 %v5783, 96
  %v5852 = vpop.permute.xlu0 %5851
  %5853 = vrot.lane.b32.xlu0 %v5784, 96
  %v5854 = vpop.permute.xlu0 %5853
  %5855 = vrot.lane.b32.xlu0 %v5785, 96
  %v5856 = vpop.permute.xlu0 %5855
  %5857 = vrot.lane.b32.xlu0 %v5786, 96
  %v5858 = vpop.permute.xlu0 %5857
  %v5859 = vrot.slane %v5844, 2
  %v5860 = vrot.slane %v5846, 2
  %v5861 = vrot.slane %v5848, 2
  %v5862 = vrot.slane %v5850, 2
  %v5863 = vrot.slane %v5852, 2
  %v5864 = vrot.slane %v5854, 2
  %v5865 = vrot.slane %v5856, 2
  %v5866 = vrot.slane %v5858, 2
  %v5867 = vsel %vm3892, %v5844, %v5859
  %v5868 = vsel %vm3892, %v5846, %v5860
  %v5869 = vsel %vm3892, %v5848, %v5861
  %v5870 = vsel %vm3892, %v5850, %v5862
  %v5871 = vsel %vm3892, %v5852, %v5863
  %v5872 = vsel %vm3892, %v5854, %v5864
  %v5873 = vsel %vm3892, %v5856, %v5865
  %v5874 = vsel %vm3892, %v5858, %v5866
  %v5883 = vmax.f32 %v5835, %v5867
  %v5884 = vmax.f32 %v5836, %v5868
  %v5885 = vmax.f32 %v5837, %v5869
  %v5886 = vmax.f32 %v5838, %v5870
  %v5887 = vmax.f32 %v5839, %v5871
  %v5888 = vmax.f32 %v5840, %v5872
  %v5889 = vmax.f32 %v5841, %v5873
  %v5890 = vmax.f32 %v5842, %v5874
  %v5891 = vld [vmem:[%s16] sm:$0xff]
  %v5892 = vld [vmem:[%s16 + $0x8] sm:$0xff]
  %v5893 = vld [vmem:[%s16 + $0x10] sm:$0xff]
  %v5894 = vld [vmem:[%s16 + $0x18] sm:$0xff]
  %v5895 = vld [vmem:[%s16 + $0x20] sm:$0xff]
  %v5896 = vld [vmem:[%s16 + $0x28] sm:$0xff]
  %v5897 = vld [vmem:[%s16 + $0x30] sm:$0xff]
  %v5898 = vld [vmem:[%s16 + $0x38] sm:$0xff]
  %v5899 = vld [vmem:[%s16 + $0x40] sm:$0xff]
  %v5900 = vld [vmem:[%s16 + $0x48] sm:$0xff]
  %v5901 = vld [vmem:[%s16 + $0x50] sm:$0xff]
  %v5902 = vld [vmem:[%s16 + $0x58] sm:$0xff]
  %v5903 = vld [vmem:[%s16 + $0x60] sm:$0xff]
  %v5904 = vld [vmem:[%s16 + $0x68] sm:$0xff]
  %v5905 = vld [vmem:[%s16 + $0x70] sm:$0xff]
  %v5906 = vld [vmem:[%s16 + $0x78] sm:$0xff]
  %v5915 = vlaneseq
  %v5916 = vshrl.u32 %v5915, 7
  %v5917 = vsub.s32 0, %v5916
  %v5918 = vrot.slane %v5883, %v5917
  %v5919 = vlaneseq
  %v5920 = vshrl.u32 %v5919, 7
  %v5921 = vsub.s32 0, %v5920
  %v5922 = vrot.slane %v5884, %v5921
  %v5923 = vlaneseq
  %v5924 = vshrl.u32 %v5923, 7
  %v5925 = vsub.s32 0, %v5924
  %v5926 = vrot.slane %v5885, %v5925
  %v5927 = vlaneseq
  %v5928 = vshrl.u32 %v5927, 7
  %v5929 = vsub.s32 0, %v5928
  %v5930 = vrot.slane %v5886, %v5929
  %v5931 = vlaneseq
  %v5932 = vshrl.u32 %v5931, 7
  %v5933 = vsub.s32 0, %v5932
  %v5934 = vrot.slane %v5887, %v5933
  %v5935 = vlaneseq
  %v5936 = vshrl.u32 %v5935, 7
  %v5937 = vsub.s32 0, %v5936
  %v5938 = vrot.slane %v5888, %v5937
  %v5939 = vlaneseq
  %v5940 = vshrl.u32 %v5939, 7
  %v5941 = vsub.s32 0, %v5940
  %v5942 = vrot.slane %v5889, %v5941
  %v5943 = vlaneseq
  %v5944 = vshrl.u32 %v5943, 7
  %v5945 = vsub.s32 0, %v5944
  %v5946 = vrot.slane %v5890, %v5945
  %v5947 = vsel %vm4149, %v5922, %v5918
  %v5948 = vsel %vm4151, %v5926, %v5947
  %v5949 = vsel %vm4153, %v5930, %v5948
  %v5950 = vsel %vm4155, %v5934, %v5949
  %v5951 = vsel %vm4157, %v5938, %v5950
  %v5952 = vsel %vm4159, %v5942, %v5951
  %v5953 = vsel %vm4161, %v5946, %v5952
  %5955 = vmatprep.subr.mxu0 0.0
  %5956 = vmatpush1.msra.mxu0 %v5891
  %5957 = vmatprep.subr.mxu0 0.0
  %5958 = vmatpush1.msra.mxu0 %v5892
  %5959 = vmatprep.subr.mxu0 0.0
  %5960 = vmatpush1.msra.mxu0 %v5893
  %5961 = vmatprep.subr.mxu0 0.0
  %5962 = vmatpush1.msra.mxu0 %v5894
  %5963 = vmatprep.subr.mxu0 0.0
  %5964 = vmatpush1.msra.mxu0 %v5895
  %5965 = vmatprep.subr.mxu0 0.0
  %5966 = vmatpush1.msra.mxu0 %v5896
  %5967 = vmatprep.subr.mxu0 0.0
  %5968 = vmatpush1.msra.mxu0 %v5897
  %5969 = vmatprep.subr.mxu0 0.0
  %5970 = vmatpush1.msra.mxu0 %v5898
  %5971 = vmatprep.subr.mxu0 0.0
  %5972 = vmatpush1.msra.mxu0 %v5899
  %5973 = vmatprep.subr.mxu0 0.0
  %5974 = vmatpush1.msra.mxu0 %v5900
  %5975 = vmatprep.subr.mxu0 0.0
  %5976 = vmatpush1.msra.mxu0 %v5901
  %5977 = vmatprep.subr.mxu0 0.0
  %5978 = vmatpush1.msra.mxu0 %v5902
  %5979 = vmatprep.subr.mxu0 0.0
  %5980 = vmatpush1.msra.mxu0 %v5903
  %5981 = vmatprep.subr.mxu0 0.0
  %5982 = vmatpush1.msra.mxu0 %v5904
  %5983 = vmatprep.subr.mxu0 0.0
  %5984 = vmatpush1.msra.mxu0 %v5905
  %5985 = vmatprep.subr.mxu0 0.0
  %5986 = vmatpush1.msra.mxu0 %v5906
  %5987 = vmatprep.subr.mxu0 0.0
  %5988 = vmatpush1.msra.mxu0 0.0
  %5989 = vmatprep.subr.mxu0 0.0
  %5990 = vmatpush1.msra.mxu0 0.0
  %5991 = vmatprep.subr.mxu0 0.0
  %5992 = vmatpush1.msra.mxu0 0.0
  %5993 = vmatprep.subr.mxu0 0.0
  %5994 = vmatpush1.msra.mxu0 0.0
  %5995 = vmatprep.subr.mxu0 0.0
  %5996 = vmatpush1.msra.mxu0 0.0
  %5997 = vmatprep.subr.mxu0 0.0
  %5998 = vmatpush1.msra.mxu0 0.0
  %5999 = vmatprep.subr.mxu0 0.0
  %6000 = vmatpush1.msra.mxu0 0.0
  %6001 = vmatprep.subr.mxu0 0.0
  %6002 = vmatpush1.msra.mxu0 0.0
  %6003 = vmatprep.subr.mxu0 0.0
  %6004 = vmatpush1.msra.mxu0 0.0
  %6005 = vmatprep.subr.mxu0 0.0
  %6006 = vmatpush1.msra.mxu0 0.0
  %6007 = vmatprep.subr.mxu0 0.0
  %6008 = vmatpush1.msra.mxu0 0.0
  %6009 = vmatprep.subr.mxu0 0.0
  %6010 = vmatpush1.msra.mxu0 0.0
  %6011 = vmatprep.subr.mxu0 0.0
  %6012 = vmatpush1.msra.mxu0 0.0
  %6013 = vmatprep.subr.mxu0 0.0
  %6014 = vmatpush1.msra.mxu0 0.0
  %6015 = vmatprep.subr.mxu0 0.0
  %6016 = vmatpush1.msra.mxu0 0.0
  %6017 = vmatprep.subr.mxu0 0.0
  %6018 = vmatpush1.msra.mxu0 0.0
  %6019 = vmatprep.mubr.f32.mxu0 0.0
  %6020 = vmatmul.mubr.f32.gmra.mrb[0].mxu0 %v5953
  %v6021 = vpop.f32.mrb[0].mxu0
  %v6022 = vadd.f32 0.0, %v6021
  %v6023 = vpop.f32.mrb[0].mxu0
  %6024 = vdwg.mxu0
  %v6026 = vcombine.high %v6022, %v6022
  %vm6028 = vcmask 781312
  %6029 = vst.msk [vmem:[#allocation4 + $0x1] sm:$0xf] %vm6028, %v6022
  %6030 = vst.msk [vmem:[#allocation4 + $0x9] sm:$0xf] %vm6028, %v6026
  %v6031 = vld [vmem:[#allocation4] sm:$0x3f]
  %v6032 = vld [vmem:[#allocation4 + $0x8] sm:$0x3f]
  %v6033 = vld [vmem:[%s7] sm:$0xff]
  %v6034 = vld [vmem:[%s7 + $0x8] sm:$0xff]
  %v6035 = vld [vmem:[%s7 + $0x10] sm:$0xff]
  %v6036 = vld [vmem:[%s7 + $0x18] sm:$0xff]
  %v6037 = vld [vmem:[%s7 + $0x20] sm:$0xff]
  %v6038 = vld [vmem:[%s7 + $0x28] sm:$0xff]
  %v6039 = vld [vmem:[%s7 + $0x30] sm:$0xff]
  %v6040 = vld [vmem:[%s7 + $0x38] sm:$0xff]
  %v6041 = vld [vmem:[%s7 + $0x40] sm:$0xff]
  %v6042 = vld [vmem:[%s7 + $0x48] sm:$0xff]
  %v6043 = vld [vmem:[%s7 + $0x50] sm:$0xff]
  %v6044 = vld [vmem:[%s7 + $0x58] sm:$0xff]
  %v6047 = vcombine.high %v6031, %v6031
  %v6048 = vcombine.high %v6032, %v6032
  %vm6049 = vcmask 1042432
  %vm6050 = vcmask 1046532
  %vm6051 = vmor %vm6049, %vm6050
  %v6052 = vrot.slane %v6031, 5
  %v6053 = vrot.slane %v6052, 4
  %v6054 = vrot.slane %v6047, 5
  %v6055 = vsel %vm6051, %v6053, %v6054
  %v6056 = vrot.slane %v6032, 5
  %v6057 = vrot.slane %v6056, 4
  %v6058 = vrot.slane %v6048, 5
  %v6059 = vsel %vm6051, %v6057, %v6058
  %s6060 = scalar_lea.vmem %s7, 96
  %v6061 = vld [vmem:[%s6060] sm:$0xff]
  %v6062 = vld [vmem:[%s6060 + $0x8] sm:$0xff]
  %v6063 = vld [vmem:[%s6060 + $0x10] sm:$0xff]
  %v6064 = vld [vmem:[%s6060 + $0x18] sm:$0xff]
  %v6065 = vld [vmem:[%s6060 + $0x20] sm:$0xff]
  %v6066 = vld [vmem:[%s6060 + $0x28] sm:$0xff]
  %v6067 = vld [vmem:[%s6060 + $0x30] sm:$0xff]
  %v6068 = vld [vmem:[%s6060 + $0x38] sm:$0xff]
  %v6069 = vld [vmem:[%s6060 + $0x40] sm:$0xff]
  %v6070 = vld [vmem:[%s6060 + $0x48] sm:$0xff]
  %v6071 = vld [vmem:[%s6060 + $0x50] sm:$0xff]
  %v6072 = vld [vmem:[%s6060 + $0x58] sm:$0xff]
  %v6073 = vcombine.low %v6055, %v6059
  %v6074 = vsel %vm3892, %v6073, 0
  %6076 = vmatprep.subr.mxu0 0.0
  %6077 = vmatpush1.msra.mxu0 %v6061
  %6078 = vmatprep.subr.mxu0 0.0
  %6079 = vmatpush1.msra.mxu0 %v6062
  %6080 = vmatprep.subr.mxu0 0.0
  %6081 = vmatpush1.msra.mxu0 %v6063
  %6082 = vmatprep.subr.mxu0 0.0
  %6083 = vmatpush1.msra.mxu0 %v6064
  %6084 = vmatprep.subr.mxu0 0.0
  %6085 = vmatpush1.msra.mxu0 %v6065
  %6086 = vmatprep.subr.mxu0 0.0
  %6087 = vmatpush1.msra.mxu0 %v6066
  %6088 = vmatprep.subr.mxu0 0.0
  %6089 = vmatpush1.msra.mxu0 %v6067
  %6090 = vmatprep.subr.mxu0 0.0
  %6091 = vmatpush1.msra.mxu0 %v6068
  %6092 = vmatprep.subr.mxu0 0.0
  %6093 = vmatpush1.msra.mxu0 %v6069
  %6094 = vmatprep.subr.mxu0 0.0
  %6095 = vmatpush1.msra.mxu0 %v6070
  %6096 = vmatprep.subr.mxu0 0.0
  %6097 = vmatpush1.msra.mxu0 %v6071
  %6098 = vmatprep.subr.mxu0 0.0
  %6099 = vmatpush1.msra.mxu0 %v6072
  %6100 = vmatprep.subr.mxu0 0.0
  %6101 = vmatpush1.msra.mxu0 0.0
  %6102 = vmatprep.subr.mxu0 0.0
  %6103 = vmatpush1.msra.mxu0 0.0
  %6104 = vmatprep.subr.mxu0 0.0
  %6105 = vmatpush1.msra.mxu0 0.0
  %6106 = vmatprep.subr.mxu0 0.0
  %6107 = vmatpush1.msra.mxu0 0.0
  %6108 = vmatprep.subr.mxu0 0.0
  %6109 = vmatpush1.msra.mxu0 0.0
  %6110 = vmatprep.subr.mxu0 0.0
  %6111 = vmatpush1.msra.mxu0 0.0
  %6112 = vmatprep.subr.mxu0 0.0
  %6113 = vmatpush1.msra.mxu0 0.0
  %6114 = vmatprep.subr.mxu0 0.0
  %6115 = vmatpush1.msra.mxu0 0.0
  %6116 = vmatprep.subr.mxu0 0.0
  %6117 = vmatpush1.msra.mxu0 0.0
  %6118 = vmatprep.subr.mxu0 0.0
  %6119 = vmatpush1.msra.mxu0 0.0
  %6120 = vmatprep.subr.mxu0 0.0
  %6121 = vmatpush1.msra.mxu0 0.0
  %6122 = vmatprep.subr.mxu0 0.0
  %6123 = vmatpush1.msra.mxu0 0.0
  %6124 = vmatprep.subr.mxu0 0.0
  %6125 = vmatpush1.msra.mxu0 0.0
  %6126 = vmatprep.subr.mxu0 0.0
  %6127 = vmatpush1.msra.mxu0 0.0
  %6128 = vmatprep.subr.mxu0 0.0
  %6129 = vmatpush1.msra.mxu0 0.0
  %6130 = vmatprep.subr.mxu0 0.0
  %6131 = vmatpush1.msra.mxu0 0.0
  %6132 = vmatprep.subr.mxu0 0.0
  %6133 = vmatpush1.msra.mxu0 0.0
  %6134 = vmatprep.subr.mxu0 0.0
  %6135 = vmatpush1.msra.mxu0 0.0
  %6136 = vmatprep.subr.mxu0 0.0
  %6137 = vmatpush1.msra.mxu0 0.0
  %6138 = vmatprep.subr.mxu0 0.0
  %6139 = vmatpush1.msra.mxu0 0.0
  %6140 = vmatprep.mubr.f32.mxu0 0.0
  %6141 = vmatmul.mubr.f32.gmra.mrb[0].mxu0 %v6074
  %v6142 = vpop.f32.mrb[0].mxu0
  %v6143 = vadd.f32 0.0, %v6142
  %v6144 = vpop.f32.mrb[0].mxu0
  %6145 = vdwg.mxu0
  %v6146 = vcombine.low %v6031, %v6032
  %v6147 = vsel %vm3892, %v6146, 0
  %6149 = vmatprep.subr.mxu0 0.0
  %6150 = vmatpush1.msra.mxu0 %v6033
  %6151 = vmatprep.subr.mxu0 0.0
  %6152 = vmatpush1.msra.mxu0 %v6034
  %6153 = vmatprep.subr.mxu0 0.0
  %6154 = vmatpush1.msra.mxu0 %v6035
  %6155 = vmatprep.subr.mxu0 0.0
  %6156 = vmatpush1.msra.mxu0 %v6036
  %6157 = vmatprep.subr.mxu0 0.0
  %6158 = vmatpush1.msra.mxu0 %v6037
  %6159 = vmatprep.subr.mxu0 0.0
  %6160 = vmatpush1.msra.mxu0 %v6038
  %6161 = vmatprep.subr.mxu0 0.0
  %6162 = vmatpush1.msra.mxu0 %v6039
  %6163 = vmatprep.subr.mxu0 0.0
  %6164 = vmatpush1.msra.mxu0 %v6040
  %6165 = vmatprep.subr.mxu0 0.0
  %6166 = vmatpush1.msra.mxu0 %v6041
  %6167 = vmatprep.subr.mxu0 0.0
  %6168 = vmatpush1.msra.mxu0 %v6042
  %6169 = vmatprep.subr.mxu0 0.0
  %6170 = vmatpush1.msra.mxu0 %v6043
  %6171 = vmatprep.subr.mxu0 0.0
  %6172 = vmatpush1.msra.mxu0 %v6044
  %6173 = vmatprep.subr.mxu0 0.0
  %6174 = vmatpush1.msra.mxu0 0.0
  %6175 = vmatprep.subr.mxu0 0.0
  %6176 = vmatpush1.msra.mxu0 0.0
  %6177 = vmatprep.subr.mxu0 0.0
  %6178 = vmatpush1.msra.mxu0 0.0
  %6179 = vmatprep.subr.mxu0 0.0
  %6180 = vmatpush1.msra.mxu0 0.0
  %6181 = vmatprep.subr.mxu0 0.0
  %6182 = vmatpush1.msra.mxu0 0.0
  %6183 = vmatprep.subr.mxu0 0.0
  %6184 = vmatpush1.msra.mxu0 0.0
  %6185 = vmatprep.subr.mxu0 0.0
  %6186 = vmatpush1.msra.mxu0 0.0
  %6187 = vmatprep.subr.mxu0 0.0
  %6188 = vmatpush1.msra.mxu0 0.0
  %6189 = vmatprep.subr.mxu0 0.0
  %6190 = vmatpush1.msra.mxu0 0.0
  %6191 = vmatprep.subr.mxu0 0.0
  %6192 = vmatpush1.msra.mxu0 0.0
  %6193 = vmatprep.subr.mxu0 0.0
  %6194 = vmatpush1.msra.mxu0 0.0
  %6195 = vmatprep.subr.mxu0 0.0
  %6196 = vmatpush1.msra.mxu0 0.0
  %6197 = vmatprep.subr.mxu0 0.0
  %6198 = vmatpush1.msra.mxu0 0.0
  %6199 = vmatprep.subr.mxu0 0.0
  %6200 = vmatpush1.msra.mxu0 0.0
  %6201 = vmatprep.subr.mxu0 0.0
  %6202 = vmatpush1.msra.mxu0 0.0
  %6203 = vmatprep.subr.mxu0 0.0
  %6204 = vmatpush1.msra.mxu0 0.0
  %6205 = vmatprep.subr.mxu0 0.0
  %6206 = vmatpush1.msra.mxu0 0.0
  %6207 = vmatprep.subr.mxu0 0.0
  %6208 = vmatpush1.msra.mxu0 0.0
  %6209 = vmatprep.subr.mxu0 0.0
  %6210 = vmatpush1.msra.mxu0 0.0
  %6211 = vmatprep.subr.mxu0 0.0
  %6212 = vmatpush1.msra.mxu0 0.0
  %6213 = vmatprep.mubr.f32.mxu0 0.0
  %6214 = vmatmul.mubr.f32.gmra.mrb[0].mxu0 %v6147
  %v6215 = vpop.f32.mrb[0].mxu0
  %v6216 = vadd.f32 %v6143, %v6215
  %v6217 = vpop.f32.mrb[0].mxu0
  %6218 = vdwg.mxu0
  %vm6219 = vcmask 1041408
  %vm6220 = vcmask 1045508
  %vm6221 = vmor %vm6219, %vm6220
  %v6222 = vrot.slane %v6031, 6
  %v6223 = vrot.slane %v6222, 4
  %v6224 = vrot.slane %v6047, 6
  %v6225 = vsel %vm6221, %v6223, %v6224
  %v6226 = vrot.slane %v6032, 6
  %v6227 = vrot.slane %v6226, 4
  %v6228 = vrot.slane %v6048, 6
  %v6229 = vsel %vm6221, %v6227, %v6228
  %s6230 = scalar_lea.vmem %s7, 192
  %v6231 = vld [vmem:[%s6230] sm:$0xff]
  %v6232 = vld [vmem:[%s6230 + $0x8] sm:$0xff]
  %v6233 = vld [vmem:[%s6230 + $0x10] sm:$0xff]
  %v6234 = vld [vmem:[%s6230 + $0x18] sm:$0xff]
  %v6235 = vld [vmem:[%s6230 + $0x20] sm:$0xff]
  %v6236 = vld [vmem:[%s6230 + $0x28] sm:$0xff]
  %v6237 = vld [vmem:[%s6230 + $0x30] sm:$0xff]
  %v6238 = vld [vmem:[%s6230 + $0x38] sm:$0xff]
  %v6239 = vld [vmem:[%s6230 + $0x40] sm:$0xff]
  %v6240 = vld [vmem:[%s6230 + $0x48] sm:$0xff]
  %v6241 = vld [vmem:[%s6230 + $0x50] sm:$0xff]
  %v6242 = vld [vmem:[%s6230 + $0x58] sm:$0xff]
  %v6243 = vcombine.low %v6225, %v6229
  %v6244 = vsel %vm3892, %v6243, 0
  %6246 = vmatprep.subr.mxu0 0.0
  %6247 = vmatpush1.msra.mxu0 %v6231
  %6248 = vmatprep.subr.mxu0 0.0
  %6249 = vmatpush1.msra.mxu0 %v6232
  %6250 = vmatprep.subr.mxu0 0.0
  %6251 = vmatpush1.msra.mxu0 %v6233
  %6252 = vmatprep.subr.mxu0 0.0
  %6253 = vmatpush1.msra.mxu0 %v6234
  %6254 = vmatprep.subr.mxu0 0.0
  %6255 = vmatpush1.msra.mxu0 %v6235
  %6256 = vmatprep.subr.mxu0 0.0
  %6257 = vmatpush1.msra.mxu0 %v6236
  %6258 = vmatprep.subr.mxu0 0.0
  %6259 = vmatpush1.msra.mxu0 %v6237
  %6260 = vmatprep.subr.mxu0 0.0
  %6261 = vmatpush1.msra.mxu0 %v6238
  %6262 = vmatprep.subr.mxu0 0.0
  %6263 = vmatpush1.msra.mxu0 %v6239
  %6264 = vmatprep.subr.mxu0 0.0
  %6265 = vmatpush1.msra.mxu0 %v6240
  %6266 = vmatprep.subr.mxu0 0.0
  %6267 = vmatpush1.msra.mxu0 %v6241
  %6268 = vmatprep.subr.mxu0 0.0
  %6269 = vmatpush1.msra.mxu0 %v6242
  %6270 = vmatprep.subr.mxu0 0.0
  %6271 = vmatpush1.msra.mxu0 0.0
  %6272 = vmatprep.subr.mxu0 0.0
  %6273 = vmatpush1.msra.mxu0 0.0
  %6274 = vmatprep.subr.mxu0 0.0
  %6275 = vmatpush1.msra.mxu0 0.0
  %6276 = vmatprep.subr.mxu0 0.0
  %6277 = vmatpush1.msra.mxu0 0.0
  %6278 = vmatprep.subr.mxu0 0.0
  %6279 = vmatpush1.msra.mxu0 0.0
  %6280 = vmatprep.subr.mxu0 0.0
  %6281 = vmatpush1.msra.mxu0 0.0
  %6282 = vmatprep.subr.mxu0 0.0
  %6283 = vmatpush1.msra.mxu0 0.0
  %6284 = vmatprep.subr.mxu0 0.0
  %6285 = vmatpush1.msra.mxu0 0.0
  %6286 = vmatprep.subr.mxu0 0.0
  %6287 = vmatpush1.msra.mxu0 0.0
  %6288 = vmatprep.subr.mxu0 0.0
  %6289 = vmatpush1.msra.mxu0 0.0
  %6290 = vmatprep.subr.mxu0 0.0
  %6291 = vmatpush1.msra.mxu0 0.0
  %6292 = vmatprep.subr.mxu0 0.0
  %6293 = vmatpush1.msra.mxu0 0.0
  %6294 = vmatprep.subr.mxu0 0.0
  %6295 = vmatpush1.msra.mxu0 0.0
  %6296 = vmatprep.subr.mxu0 0.0
  %6297 = vmatpush1.msra.mxu0 0.0
  %6298 = vmatprep.subr.mxu0 0.0
  %6299 = vmatpush1.msra.mxu0 0.0
  %6300 = vmatprep.subr.mxu0 0.0
  %6301 = vmatpush1.msra.mxu0 0.0
  %6302 = vmatprep.subr.mxu0 0.0
  %6303 = vmatpush1.msra.mxu0 0.0
  %6304 = vmatprep.subr.mxu0 0.0
  %6305 = vmatpush1.msra.mxu0 0.0
  %6306 = vmatprep.subr.mxu0 0.0
  %6307 = vmatpush1.msra.mxu0 0.0
  %6308 = vmatprep.subr.mxu0 0.0
  %6309 = vmatpush1.msra.mxu0 0.0
  %6310 = vmatprep.mubr.f32.mxu0 0.0
  %6311 = vmatmul.mubr.f32.gmra.mrb[0].mxu0 %v6244
  %v6312 = vpop.f32.mrb[0].mxu0
  %v6313 = vadd.f32 0.0, %v6312
  %v6314 = vpop.f32.mrb[0].mxu0
  %6315 = vdwg.mxu0
  %v6316 = vadd.f32 %v6216, %v6313
  %v6317 = vsel %vm3892, %v6316, 0.0
  %v6318 = vrot.slane %v6317, 4
  %v6319 = vadd.f32 %v6317, %v6318
  %v6320 = vrot.slane %v6319, 2
  %v6321 = vadd.f32 %v6319, %v6320
  %v6322 = vrot.slane %v6321, 1
  %v6323 = vadd.f32 %v6321, %v6322
  %v6324 = vmul.f32 %v6316, %v6316
  %v6325 = vsel %vm3892, %v6324, 0.0
  %v6326 = vrot.slane %v6325, 4
  %v6327 = vadd.f32 %v6325, %v6326
  %v6328 = vrot.slane %v6327, 2
  %v6329 = vadd.f32 %v6327, %v6328
  %v6330 = vrot.slane %v6329, 1
  %v6331 = vadd.f32 %v6329, %v6330
  %v6332 = vsel %vm843, %v6323, %v6331
  %v6333 = vld [vmem:[%s11] sm:$0xff]
  %v6334 = vld [vmem:[%s11 + $0x8] sm:$0xff]
  %v6335 = vld [vmem:[%s11 + $0x10] sm:$0xff]
  %v6336 = vld [vmem:[%s11 + $0x18] sm:$0xff]
  %v6337 = vld [vmem:[%s11 + $0x20] sm:$0xff]
  %v6338 = vld [vmem:[%s11 + $0x28] sm:$0xff]
  %v6339 = vld [vmem:[%s11 + $0x30] sm:$0xff]
  %v6340 = vld [vmem:[%s11 + $0x38] sm:$0xff]
  %v6341 = vld [vmem:[%s11 + $0x40] sm:$0xff]
  %v6342 = vld [vmem:[%s11 + $0x48] sm:$0xff]
  %v6343 = vld [vmem:[%s11 + $0x50] sm:$0xff]
  %v6344 = vld [vmem:[%s11 + $0x58] sm:$0xff]
  %v6346 = vsel %vm3892, %v6332, 0
  %6348 = vmatprep.subr.mxu0 0.0
  %6349 = vmatpush1.msra.mxu0 %v6333
  %6350 = vmatprep.subr.mxu0 0.0
  %6351 = vmatpush1.msra.mxu0 %v6334
  %6352 = vmatprep.subr.mxu0 0.0
  %6353 = vmatpush1.msra.mxu0 %v6335
  %6354 = vmatprep.subr.mxu0 0.0
  %6355 = vmatpush1.msra.mxu0 %v6336
  %6356 = vmatprep.subr.mxu0 0.0
  %6357 = vmatpush1.msra.mxu0 %v6337
  %6358 = vmatprep.subr.mxu0 0.0
  %6359 = vmatpush1.msra.mxu0 %v6338
  %6360 = vmatprep.subr.mxu0 0.0
  %6361 = vmatpush1.msra.mxu0 %v6339
  %6362 = vmatprep.subr.mxu0 0.0
  %6363 = vmatpush1.msra.mxu0 %v6340
  %6364 = vmatprep.subr.mxu0 0.0
  %6365 = vmatpush1.msra.mxu0 %v6341
  %6366 = vmatprep.subr.mxu0 0.0
  %6367 = vmatpush1.msra.mxu0 %v6342
  %6368 = vmatprep.subr.mxu0 0.0
  %6369 = vmatpush1.msra.mxu0 %v6343
  %6370 = vmatprep.subr.mxu0 0.0
  %6371 = vmatpush1.msra.mxu0 %v6344
  %6372 = vmatprep.subr.mxu0 0.0
  %6373 = vmatpush1.msra.mxu0 0.0
  %6374 = vmatprep.subr.mxu0 0.0
  %6375 = vmatpush1.msra.mxu0 0.0
  %6376 = vmatprep.subr.mxu0 0.0
  %6377 = vmatpush1.msra.mxu0 0.0
  %6378 = vmatprep.subr.mxu0 0.0
  %6379 = vmatpush1.msra.mxu0 0.0
  %6380 = vmatprep.subr.mxu0 0.0
  %6381 = vmatpush1.msra.mxu0 0.0
  %6382 = vmatprep.subr.mxu0 0.0
  %6383 = vmatpush1.msra.mxu0 0.0
  %6384 = vmatprep.subr.mxu0 0.0
  %6385 = vmatpush1.msra.mxu0 0.0
  %6386 = vmatprep.subr.mxu0 0.0
  %6387 = vmatpush1.msra.mxu0 0.0
  %6388 = vmatprep.subr.mxu0 0.0
  %6389 = vmatpush1.msra.mxu0 0.0
  %6390 = vmatprep.subr.mxu0 0.0
  %6391 = vmatpush1.msra.mxu0 0.0
  %6392 = vmatprep.subr.mxu0 0.0
  %6393 = vmatpush1.msra.mxu0 0.0
  %6394 = vmatprep.subr.mxu0 0.0
  %6395 = vmatpush1.msra.mxu0 0.0
  %6396 = vmatprep.subr.mxu0 0.0
  %6397 = vmatpush1.msra.mxu0 0.0
  %6398 = vmatprep.subr.mxu0 0.0
  %6399 = vmatpush1.msra.mxu0 0.0
  %6400 = vmatprep.subr.mxu0 0.0
  %6401 = vmatpush1.msra.mxu0 0.0
  %6402 = vmatprep.subr.mxu0 0.0
  %6403 = vmatpush1.msra.mxu0 0.0
  %6404 = vmatprep.subr.mxu0 0.0
  %6405 = vmatpush1.msra.mxu0 0.0
  %6406 = vmatprep.subr.mxu0 0.0
  %6407 = vmatpush1.msra.mxu0 0.0
  %6408 = vmatprep.subr.mxu0 0.0
  %6409 = vmatpush1.msra.mxu0 0.0
  %6410 = vmatprep.subr.mxu0 0.0
  %6411 = vmatpush1.msra.mxu0 0.0
  %6412 = vmatprep.mubr.f32.mxu0 0.0
  %6413 = vmatmul.mubr.f32.gmra.mrb[0].mxu0 %v6346
  %v6414 = vpop.f32.mrb[0].mxu0
  %v6415 = vadd.f32 0.0, %v6414
  %v6416 = vpop.f32.mrb[0].mxu0
  %6417 = vdwg.mxu0
  %v6418 = vmul.f32 %v6415, 0.03125
  %v6419 = vmul.f32 %v6418, %v6418
  %v6421 = vrot.slane %v6419, 7
  %v6423 = vsub.f32 %v6418, %v6421
  %v6424 = vmax.f32 %v6423, 0.0
  %v6425 = vld [vmem:[%s1 + $0x4] sm:$0x1]
  %v6426 = vld [vmem:[%s2 + $0x4] sm:$0x1]
  %v6427 = vadd.f32 %v6424, 1e-05
  %v6428 = vrsqrt.pop %v6427
  %v6430 = vrot.slane %v6428, 1
  %v6432 = vmul.f32 %v6425, %v6430
  %v6433 = vmul.f32 %v6418, %v6432
  %v6434 = vsub.f32 %v6426, %v6433
  %v6436 = vrot.slane %v6434, 7
  %v6438 = vsel %vm843, %v6432, %v6436
  %v6439 = vld [vmem:[%s14] sm:$0xff]
  %v6440 = vld [vmem:[%s14 + $0x8] sm:$0xff]
  %v6442 = vsel %vm1053, %v6438, 0
  %6444 = vmatprep.subr.mxu0 0.0
  %6445 = vmatpush1.msra.mxu0 %v6439
  %6446 = vmatprep.subr.mxu0 0.0
  %6447 = vmatpush1.msra.mxu0 %v6440
  %6448 = vmatprep.subr.mxu0 0.0
  %6449 = vmatpush1.msra.mxu0 0.0
  %6450 = vmatprep.subr.mxu0 0.0
  %6451 = vmatpush1.msra.mxu0 0.0
  %6452 = vmatprep.subr.mxu0 0.0
  %6453 = vmatpush1.msra.mxu0 0.0
  %6454 = vmatprep.subr.mxu0 0.0
  %6455 = vmatpush1.msra.mxu0 0.0
  %6456 = vmatprep.subr.mxu0 0.0
  %6457 = vmatpush1.msra.mxu0 0.0
  %6458 = vmatprep.subr.mxu0 0.0
  %6459 = vmatpush1.msra.mxu0 0.0
  %6460 = vmatprep.subr.mxu0 0.0
  %6461 = vmatpush1.msra.mxu0 0.0
  %6462 = vmatprep.subr.mxu0 0.0
  %6463 = vmatpush1.msra.mxu0 0.0
  %6464 = vmatprep.subr.mxu0 0.0
  %6465 = vmatpush1.msra.mxu0 0.0
  %6466 = vmatprep.subr.mxu0 0.0
  %6467 = vmatpush1.msra.mxu0 0.0
  %6468 = vmatprep.subr.mxu0 0.0
  %6469 = vmatpush1.msra.mxu0 0.0
  %6470 = vmatprep.subr.mxu0 0.0
  %6471 = vmatpush1.msra.mxu0 0.0
  %6472 = vmatprep.subr.mxu0 0.0
  %6473 = vmatpush1.msra.mxu0 0.0
  %6474 = vmatprep.subr.mxu0 0.0
  %6475 = vmatpush1.msra.mxu0 0.0
  %6476 = vmatprep.subr.mxu0 0.0
  %6477 = vmatpush1.msra.mxu0 0.0
  %6478 = vmatprep.subr.mxu0 0.0
  %6479 = vmatpush1.msra.mxu0 0.0
  %6480 = vmatprep.subr.mxu0 0.0
  %6481 = vmatpush1.msra.mxu0 0.0
  %6482 = vmatprep.subr.mxu0 0.0
  %6483 = vmatpush1.msra.mxu0 0.0
  %6484 = vmatprep.subr.mxu0 0.0
  %6485 = vmatpush1.msra.mxu0 0.0
  %6486 = vmatprep.subr.mxu0 0.0
  %6487 = vmatpush1.msra.mxu0 0.0
  %6488 = vmatprep.subr.mxu0 0.0
  %6489 = vmatpush1.msra.mxu0 0.0
  %6490 = vmatprep.subr.mxu0 0.0
  %6491 = vmatpush1.msra.mxu0 0.0
  %6492 = vmatprep.subr.mxu0 0.0
  %6493 = vmatpush1.msra.mxu0 0.0
  %6494 = vmatprep.subr.mxu0 0.0
  %6495 = vmatpush1.msra.mxu0 0.0
  %6496 = vmatprep.subr.mxu0 0.0
  %6497 = vmatpush1.msra.mxu0 0.0
  %6498 = vmatprep.subr.mxu0 0.0
  %6499 = vmatpush1.msra.mxu0 0.0
  %6500 = vmatprep.subr.mxu0 0.0
  %6501 = vmatpush1.msra.mxu0 0.0
  %6502 = vmatprep.subr.mxu0 0.0
  %6503 = vmatpush1.msra.mxu0 0.0
  %6504 = vmatprep.subr.mxu0 0.0
  %6505 = vmatpush1.msra.mxu0 0.0
  %6506 = vmatprep.subr.mxu0 0.0
  %6507 = vmatpush1.msra.mxu0 0.0
  %6508 = vmatprep.mubr.f32.mxu0 0.0
  %6509 = vmatmul.mubr.f32.gmra.mrb[0].mxu0 %v6442
  %v6510 = vpop.f32.mrb[0].mxu0
  %v6511 = vadd.f32 0.0, %v6510
  %v6512 = vpop.f32.mrb[0].mxu0
  %6513 = vdwg.mxu0
  %v6514 = vlaneseq
  %v6515 = vshrl.u32 %v6514, 7
  %v6516 = vsub.s32 0, %v6515
  %v6517 = vrot.slane %v6511, %v6516
  %v6518 = vmul.f32 %v6316, %v6517
  %v6519 = vlaneseq
  %v6520 = vshrl.u32 %v6519, 7
  %v6521 = vsub.s32 1, %v6520
  %v6522 = vrot.slane %v6511, %v6521
  %v6523 = vadd.f32 %v6518, %v6522
  %v6524 = vmax.f32 %v6523, 0.0
  %v6526 = vcombine.high %v6524, %v6524
  %6528 = vst.msk [vmem:[#allocation4 + $0x1] sm:$0xf] %vm6028, %v6524
  %6529 = vst.msk [vmem:[#allocation4 + $0x9] sm:$0xf] %vm6028, %v6526
  %v6530 = vld [vmem:[#allocation4] sm:$0x3f]
  %v6531 = vld [vmem:[#allocation4 + $0x8] sm:$0x3f]
  %v6532 = vld [vmem:[%s8] sm:$0xff]
  %v6533 = vld [vmem:[%s8 + $0x8] sm:$0xff]
  %v6534 = vld [vmem:[%s8 + $0x10] sm:$0xff]
  %v6535 = vld [vmem:[%s8 + $0x18] sm:$0xff]
  %v6536 = vld [vmem:[%s8 + $0x20] sm:$0xff]
  %v6537 = vld [vmem:[%s8 + $0x28] sm:$0xff]
  %v6538 = vld [vmem:[%s8 + $0x30] sm:$0xff]
  %v6539 = vld [vmem:[%s8 + $0x38] sm:$0xff]
  %v6540 = vld [vmem:[%s8 + $0x40] sm:$0xff]
  %v6541 = vld [vmem:[%s8 + $0x48] sm:$0xff]
  %v6542 = vld [vmem:[%s8 + $0x50] sm:$0xff]
  %v6543 = vld [vmem:[%s8 + $0x58] sm:$0xff]
  %v6546 = vcombine.high %v6530, %v6530
  %v6547 = vcombine.high %v6531, %v6531
  %v6548 = vrot.slane %v6530, 5
  %v6549 = vrot.slane %v6548, 4
  %v6550 = vrot.slane %v6546, 5
  %v6551 = vsel %vm6051, %v6549, %v6550
  %v6552 = vrot.slane %v6531, 5
  %v6553 = vrot.slane %v6552, 4
  %v6554 = vrot.slane %v6547, 5
  %v6555 = vsel %vm6051, %v6553, %v6554
  %s6556 = scalar_lea.vmem %s8, 96
  %v6557 = vld [vmem:[%s6556] sm:$0xff]
  %v6558 = vld [vmem:[%s6556 + $0x8] sm:$0xff]
  %v6559 = vld [vmem:[%s6556 + $0x10] sm:$0xff]
  %v6560 = vld [vmem:[%s6556 + $0x18] sm:$0xff]
  %v6561 = vld [vmem:[%s6556 + $0x20] sm:$0xff]
  %v6562 = vld [vmem:[%s6556 + $0x28] sm:$0xff]
  %v6563 = vld [vmem:[%s6556 + $0x30] sm:$0xff]
  %v6564 = vld [vmem:[%s6556 + $0x38] sm:$0xff]
  %v6565 = vld [vmem:[%s6556 + $0x40] sm:$0xff]
  %v6566 = vld [vmem:[%s6556 + $0x48] sm:$0xff]
  %v6567 = vld [vmem:[%s6556 + $0x50] sm:$0xff]
  %v6568 = vld [vmem:[%s6556 + $0x58] sm:$0xff]
  %v6569 = vcombine.low %v6551, %v6555
  %v6570 = vsel %vm3892, %v6569, 0
  %6572 = vmatprep.subr.mxu0 0.0
  %6573 = vmatpush1.msra.mxu0 %v6557
  %6574 = vmatprep.subr.mxu0 0.0
  %6575 = vmatpush1.msra.mxu0 %v6558
  %6576 = vmatprep.subr.mxu0 0.0
  %6577 = vmatpush1.msra.mxu0 %v6559
  %6578 = vmatprep.subr.mxu0 0.0
  %6579 = vmatpush1.msra.mxu0 %v6560
  %6580 = vmatprep.subr.mxu0 0.0
  %6581 = vmatpush1.msra.mxu0 %v6561
  %6582 = vmatprep.subr.mxu0 0.0
  %6583 = vmatpush1.msra.mxu0 %v6562
  %6584 = vmatprep.subr.mxu0 0.0
  %6585 = vmatpush1.msra.mxu0 %v6563
  %6586 = vmatprep.subr.mxu0 0.0
  %6587 = vmatpush1.msra.mxu0 %v6564
  %6588 = vmatprep.subr.mxu0 0.0
  %6589 = vmatpush1.msra.mxu0 %v6565
  %6590 = vmatprep.subr.mxu0 0.0
  %6591 = vmatpush1.msra.mxu0 %v6566
  %6592 = vmatprep.subr.mxu0 0.0
  %6593 = vmatpush1.msra.mxu0 %v6567
  %6594 = vmatprep.subr.mxu0 0.0
  %6595 = vmatpush1.msra.mxu0 %v6568
  %6596 = vmatprep.subr.mxu0 0.0
  %6597 = vmatpush1.msra.mxu0 0.0
  %6598 = vmatprep.subr.mxu0 0.0
  %6599 = vmatpush1.msra.mxu0 0.0
  %6600 = vmatprep.subr.mxu0 0.0
  %6601 = vmatpush1.msra.mxu0 0.0
  %6602 = vmatprep.subr.mxu0 0.0
  %6603 = vmatpush1.msra.mxu0 0.0
  %6604 = vmatprep.subr.mxu0 0.0
  %6605 = vmatpush1.msra.mxu0 0.0
  %6606 = vmatprep.subr.mxu0 0.0
  %6607 = vmatpush1.msra.mxu0 0.0
  %6608 = vmatprep.subr.mxu0 0.0
  %6609 = vmatpush1.msra.mxu0 0.0
  %6610 = vmatprep.subr.mxu0 0.0
  %6611 = vmatpush1.msra.mxu0 0.0
  %6612 = vmatprep.subr.mxu0 0.0
  %6613 = vmatpush1.msra.mxu0 0.0
  %6614 = vmatprep.subr.mxu0 0.0
  %6615 = vmatpush1.msra.mxu0 0.0
  %6616 = vmatprep.subr.mxu0 0.0
  %6617 = vmatpush1.msra.mxu0 0.0
  %6618 = vmatprep.subr.mxu0 0.0
  %6619 = vmatpush1.msra.mxu0 0.0
  %6620 = vmatprep.subr.mxu0 0.0
  %6621 = vmatpush1.msra.mxu0 0.0
  %6622 = vmatprep.subr.mxu0 0.0
  %6623 = vmatpush1.msra.mxu0 0.0
  %6624 = vmatprep.subr.mxu0 0.0
  %6625 = vmatpush1.msra.mxu0 0.0
  %6626 = vmatprep.subr.mxu0 0.0
  %6627 = vmatpush1.msra.mxu0 0.0
  %6628 = vmatprep.subr.mxu0 0.0
  %6629 = vmatpush1.msra.mxu0 0.0
  %6630 = vmatprep.subr.mxu0 0.0
  %6631 = vmatpush1.msra.mxu0 0.0
  %6632 = vmatprep.subr.mxu0 0.0
  %6633 = vmatpush1.msra.mxu0 0.0
  %6634 = vmatprep.subr.mxu0 0.0
  %6635 = vmatpush1.msra.mxu0 0.0
  %6636 = vmatprep.mubr.f32.mxu0 0.0
  %6637 = vmatmul.mubr.f32.gmra.mrb[0].mxu0 %v6570
  %v6638 = vpop.f32.mrb[0].mxu0
  %v6639 = vadd.f32 0.0, %v6638
  %v6640 = vpop.f32.mrb[0].mxu0
  %6641 = vdwg.mxu0
  %v6642 = vcombine.low %v6530, %v6531
  %v6643 = vsel %vm3892, %v6642, 0
  %6645 = vmatprep.subr.mxu0 0.0
  %6646 = vmatpush1.msra.mxu0 %v6532
  %6647 = vmatprep.subr.mxu0 0.0
  %6648 = vmatpush1.msra.mxu0 %v6533
  %6649 = vmatprep.subr.mxu0 0.0
  %6650 = vmatpush1.msra.mxu0 %v6534
  %6651 = vmatprep.subr.mxu0 0.0
  %6652 = vmatpush1.msra.mxu0 %v6535
  %6653 = vmatprep.subr.mxu0 0.0
  %6654 = vmatpush1.msra.mxu0 %v6536
  %6655 = vmatprep.subr.mxu0 0.0
  %6656 = vmatpush1.msra.mxu0 %v6537
  %6657 = vmatprep.subr.mxu0 0.0
  %6658 = vmatpush1.msra.mxu0 %v6538
  %6659 = vmatprep.subr.mxu0 0.0
  %6660 = vmatpush1.msra.mxu0 %v6539
  %6661 = vmatprep.subr.mxu0 0.0
  %6662 = vmatpush1.msra.mxu0 %v6540
  %6663 = vmatprep.subr.mxu0 0.0
  %6664 = vmatpush1.msra.mxu0 %v6541
  %6665 = vmatprep.subr.mxu0 0.0
  %6666 = vmatpush1.msra.mxu0 %v6542
  %6667 = vmatprep.subr.mxu0 0.0
  %6668 = vmatpush1.msra.mxu0 %v6543
  %6669 = vmatprep.subr.mxu0 0.0
  %6670 = vmatpush1.msra.mxu0 0.0
  %6671 = vmatprep.subr.mxu0 0.0
  %6672 = vmatpush1.msra.mxu0 0.0
  %6673 = vmatprep.subr.mxu0 0.0
  %6674 = vmatpush1.msra.mxu0 0.0
  %6675 = vmatprep.subr.mxu0 0.0
  %6676 = vmatpush1.msra.mxu0 0.0
  %6677 = vmatprep.subr.mxu0 0.0
  %6678 = vmatpush1.msra.mxu0 0.0
  %6679 = vmatprep.subr.mxu0 0.0
  %6680 = vmatpush1.msra.mxu0 0.0
  %6681 = vmatprep.subr.mxu0 0.0
  %6682 = vmatpush1.msra.mxu0 0.0
  %6683 = vmatprep.subr.mxu0 0.0
  %6684 = vmatpush1.msra.mxu0 0.0
  %6685 = vmatprep.subr.mxu0 0.0
  %6686 = vmatpush1.msra.mxu0 0.0
  %6687 = vmatprep.subr.mxu0 0.0
  %6688 = vmatpush1.msra.mxu0 0.0
  %6689 = vmatprep.subr.mxu0 0.0
  %6690 = vmatpush1.msra.mxu0 0.0
  %6691 = vmatprep.subr.mxu0 0.0
  %6692 = vmatpush1.msra.mxu0 0.0
  %6693 = vmatprep.subr.mxu0 0.0
  %6694 = vmatpush1.msra.mxu0 0.0
  %6695 = vmatprep.subr.mxu0 0.0
  %6696 = vmatpush1.msra.mxu0 0.0
  %6697 = vmatprep.subr.mxu0 0.0
  %6698 = vmatpush1.msra.mxu0 0.0
  %6699 = vmatprep.subr.mxu0 0.0
  %6700 = vmatpush1.msra.mxu0 0.0
  %6701 = vmatprep.subr.mxu0 0.0
  %6702 = vmatpush1.msra.mxu0 0.0
  %6703 = vmatprep.subr.mxu0 0.0
  %6704 = vmatpush1.msra.mxu0 0.0
  %6705 = vmatprep.subr.mxu0 0.0
  %6706 = vmatpush1.msra.mxu0 0.0
  %6707 = vmatprep.subr.mxu0 0.0
  %6708 = vmatpush1.msra.mxu0 0.0
  %6709 = vmatprep.mubr.f32.mxu0 0.0
  %6710 = vmatmul.mubr.f32.gmra.mrb[0].mxu0 %v6643
  %v6711 = vpop.f32.mrb[0].mxu0
  %v6712 = vadd.f32 %v6639, %v6711
  %v6713 = vpop.f32.mrb[0].mxu0
  %6714 = vdwg.mxu0
  %v6715 = vrot.slane %v6530, 6
  %v6716 = vrot.slane %v6715, 4
  %v6717 = vrot.slane %v6546, 6
  %v6718 = vsel %vm6221, %v6716, %v6717
  %v6719 = vrot.slane %v6531, 6
  %v6720 = vrot.slane %v6719, 4
  %v6721 = vrot.slane %v6547, 6
  %v6722 = vsel %vm6221, %v6720, %v6721
  %s6723 = scalar_lea.vmem %s8, 192
  %v6724 = vld [vmem:[%s6723] sm:$0xff]
  %v6725 = vld [vmem:[%s6723 + $0x8] sm:$0xff]
  %v6726 = vld [vmem:[%s6723 + $0x10] sm:$0xff]
  %v6727 = vld [vmem:[%s6723 + $0x18] sm:$0xff]
  %v6728 = vld [vmem:[%s6723 + $0x20] sm:$0xff]
  %v6729 = vld [vmem:[%s6723 + $0x28] sm:$0xff]
  %v6730 = vld [vmem:[%s6723 + $0x30] sm:$0xff]
  %v6731 = vld [vmem:[%s6723 + $0x38] sm:$0xff]
  %v6732 = vld [vmem:[%s6723 + $0x40] sm:$0xff]
  %v6733 = vld [vmem:[%s6723 + $0x48] sm:$0xff]
  %v6734 = vld [vmem:[%s6723 + $0x50] sm:$0xff]
  %v6735 = vld [vmem:[%s6723 + $0x58] sm:$0xff]
  %v6736 = vcombine.low %v6718, %v6722
  %v6737 = vsel %vm3892, %v6736, 0
  %6739 = vmatprep.subr.mxu0 0.0
  %6740 = vmatpush1.msra.mxu0 %v6724
  %6741 = vmatprep.subr.mxu0 0.0
  %6742 = vmatpush1.msra.mxu0 %v6725
  %6743 = vmatprep.subr.mxu0 0.0
  %6744 = vmatpush1.msra.mxu0 %v6726
  %6745 = vmatprep.subr.mxu0 0.0
  %6746 = vmatpush1.msra.mxu0 %v6727
  %6747 = vmatprep.subr.mxu0 0.0
  %6748 = vmatpush1.msra.mxu0 %v6728
  %6749 = vmatprep.subr.mxu0 0.0
  %6750 = vmatpush1.msra.mxu0 %v6729
  %6751 = vmatprep.subr.mxu0 0.0
  %6752 = vmatpush1.msra.mxu0 %v6730
  %6753 = vmatprep.subr.mxu0 0.0
  %6754 = vmatpush1.msra.mxu0 %v6731
  %6755 = vmatprep.subr.mxu0 0.0
  %6756 = vmatpush1.msra.mxu0 %v6732
  %6757 = vmatprep.subr.mxu0 0.0
  %6758 = vmatpush1.msra.mxu0 %v6733
  %6759 = vmatprep.subr.mxu0 0.0
  %6760 = vmatpush1.msra.mxu0 %v6734
  %6761 = vmatprep.subr.mxu0 0.0
  %6762 = vmatpush1.msra.mxu0 %v6735
  %6763 = vmatprep.subr.mxu0 0.0
  %6764 = vmatpush1.msra.mxu0 0.0
  %6765 = vmatprep.subr.mxu0 0.0
  %6766 = vmatpush1.msra.mxu0 0.0
  %6767 = vmatprep.subr.mxu0 0.0
  %6768 = vmatpush1.msra.mxu0 0.0
  %6769 = vmatprep.subr.mxu0 0.0
  %6770 = vmatpush1.msra.mxu0 0.0
  %6771 = vmatprep.subr.mxu0 0.0
  %6772 = vmatpush1.msra.mxu0 0.0
  %6773 = vmatprep.subr.mxu0 0.0
  %6774 = vmatpush1.msra.mxu0 0.0
  %6775 = vmatprep.subr.mxu0 0.0
  %6776 = vmatpush1.msra.mxu0 0.0
  %6777 = vmatprep.subr.mxu0 0.0
  %6778 = vmatpush1.msra.mxu0 0.0
  %6779 = vmatprep.subr.mxu0 0.0
  %6780 = vmatpush1.msra.mxu0 0.0
  %6781 = vmatprep.subr.mxu0 0.0
  %6782 = vmatpush1.msra.mxu0 0.0
  %6783 = vmatprep.subr.mxu0 0.0
  %6784 = vmatpush1.msra.mxu0 0.0
  %6785 = vmatprep.subr.mxu0 0.0
  %6786 = vmatpush1.msra.mxu0 0.0
  %6787 = vmatprep.subr.mxu0 0.0
  %6788 = vmatpush1.msra.mxu0 0.0
  %6789 = vmatprep.subr.mxu0 0.0
  %6790 = vmatpush1.msra.mxu0 0.0
  %6791 = vmatprep.subr.mxu0 0.0
  %6792 = vmatpush1.msra.mxu0 0.0
  %6793 = vmatprep.subr.mxu0 0.0
  %6794 = vmatpush1.msra.mxu0 0.0
  %6795 = vmatprep.subr.mxu0 0.0
  %6796 = vmatpush1.msra.mxu0 0.0
  %6797 = vmatprep.subr.mxu0 0.0
  %6798 = vmatpush1.msra.mxu0 0.0
  %6799 = vmatprep.subr.mxu0 0.0
  %6800 = vmatpush1.msra.mxu0 0.0
  %6801 = vmatprep.subr.mxu0 0.0
  %6802 = vmatpush1.msra.mxu0 0.0
  %6803 = vmatprep.mubr.f32.mxu0 0.0
  %6804 = vmatmul.mubr.f32.gmra.mrb[0].mxu0 %v6737
  %v6805 = vpop.f32.mrb[0].mxu0
  %v6806 = vadd.f32 0.0, %v6805
  %v6807 = vpop.f32.mrb[0].mxu0
  %6808 = vdwg.mxu0
  %v6809 = vadd.f32 %v6712, %v6806
  %v6810 = vsel %vm3892, %v6809, 0.0
  %v6811 = vrot.slane %v6810, 4
  %v6812 = vadd.f32 %v6810, %v6811
  %v6813 = vrot.slane %v6812, 2
  %v6814 = vadd.f32 %v6812, %v6813
  %v6815 = vrot.slane %v6814, 1
  %v6816 = vadd.f32 %v6814, %v6815
  %v6817 = vmul.f32 %v6809, %v6809
  %v6818 = vsel %vm3892, %v6817, 0.0
  %v6819 = vrot.slane %v6818, 4
  %v6820 = vadd.f32 %v6818, %v6819
  %v6821 = vrot.slane %v6820, 2
  %v6822 = vadd.f32 %v6820, %v6821
  %v6823 = vrot.slane %v6822, 1
  %v6824 = vadd.f32 %v6822, %v6823
  %v6825 = vsel %vm843, %v6816, %v6824
  %v6826 = vld [vmem:[%s11] sm:$0xff]
  %v6827 = vld [vmem:[%s11 + $0x8] sm:$0xff]
  %v6828 = vld [vmem:[%s11 + $0x10] sm:$0xff]
  %v6829 = vld [vmem:[%s11 + $0x18] sm:$0xff]
  %v6830 = vld [vmem:[%s11 + $0x20] sm:$0xff]
  %v6831 = vld [vmem:[%s11 + $0x28] sm:$0xff]
  %v6832 = vld [vmem:[%s11 + $0x30] sm:$0xff]
  %v6833 = vld [vmem:[%s11 + $0x38] sm:$0xff]
  %v6834 = vld [vmem:[%s11 + $0x40] sm:$0xff]
  %v6835 = vld [vmem:[%s11 + $0x48] sm:$0xff]
  %v6836 = vld [vmem:[%s11 + $0x50] sm:$0xff]
  %v6837 = vld [vmem:[%s11 + $0x58] sm:$0xff]
  %v6839 = vsel %vm3892, %v6825, 0
  %6841 = vmatprep.subr.mxu0 0.0
  %6842 = vmatpush1.msra.mxu0 %v6826
  %6843 = vmatprep.subr.mxu0 0.0
  %6844 = vmatpush1.msra.mxu0 %v6827
  %6845 = vmatprep.subr.mxu0 0.0
  %6846 = vmatpush1.msra.mxu0 %v6828
  %6847 = vmatprep.subr.mxu0 0.0
  %6848 = vmatpush1.msra.mxu0 %v6829
  %6849 = vmatprep.subr.mxu0 0.0
  %6850 = vmatpush1.msra.mxu0 %v6830
  %6851 = vmatprep.subr.mxu0 0.0
  %6852 = vmatpush1.msra.mxu0 %v6831
  %6853 = vmatprep.subr.mxu0 0.0
  %6854 = vmatpush1.msra.mxu0 %v6832
  %6855 = vmatprep.subr.mxu0 0.0
  %6856 = vmatpush1.msra.mxu0 %v6833
  %6857 = vmatprep.subr.mxu0 0.0
  %6858 = vmatpush1.msra.mxu0 %v6834
  %6859 = vmatprep.subr.mxu0 0.0
  %6860 = vmatpush1.msra.mxu0 %v6835
  %6861 = vmatprep.subr.mxu0 0.0
  %6862 = vmatpush1.msra.mxu0 %v6836
  %6863 = vmatprep.subr.mxu0 0.0
  %6864 = vmatpush1.msra.mxu0 %v6837
  %6865 = vmatprep.subr.mxu0 0.0
  %6866 = vmatpush1.msra.mxu0 0.0
  %6867 = vmatprep.subr.mxu0 0.0
  %6868 = vmatpush1.msra.mxu0 0.0
  %6869 = vmatprep.subr.mxu0 0.0
  %6870 = vmatpush1.msra.mxu0 0.0
  %6871 = vmatprep.subr.mxu0 0.0
  %6872 = vmatpush1.msra.mxu0 0.0
  %6873 = vmatprep.subr.mxu0 0.0
  %6874 = vmatpush1.msra.mxu0 0.0
  %6875 = vmatprep.subr.mxu0 0.0
  %6876 = vmatpush1.msra.mxu0 0.0
  %6877 = vmatprep.subr.mxu0 0.0
  %6878 = vmatpush1.msra.mxu0 0.0
  %6879 = vmatprep.subr.mxu0 0.0
  %6880 = vmatpush1.msra.mxu0 0.0
  %6881 = vmatprep.subr.mxu0 0.0
  %6882 = vmatpush1.msra.mxu0 0.0
  %6883 = vmatprep.subr.mxu0 0.0
  %6884 = vmatpush1.msra.mxu0 0.0
  %6885 = vmatprep.subr.mxu0 0.0
  %6886 = vmatpush1.msra.mxu0 0.0
  %6887 = vmatprep.subr.mxu0 0.0
  %6888 = vmatpush1.msra.mxu0 0.0
  %6889 = vmatprep.subr.mxu0 0.0
  %6890 = vmatpush1.msra.mxu0 0.0
  %6891 = vmatprep.subr.mxu0 0.0
  %6892 = vmatpush1.msra.mxu0 0.0
  %6893 = vmatprep.subr.mxu0 0.0
  %6894 = vmatpush1.msra.mxu0 0.0
  %6895 = vmatprep.subr.mxu0 0.0
  %6896 = vmatpush1.msra.mxu0 0.0
  %6897 = vmatprep.subr.mxu0 0.0
  %6898 = vmatpush1.msra.mxu0 0.0
  %6899 = vmatprep.subr.mxu0 0.0
  %6900 = vmatpush1.msra.mxu0 0.0
  %6901 = vmatprep.subr.mxu0 0.0
  %6902 = vmatpush1.msra.mxu0 0.0
  %6903 = vmatprep.subr.mxu0 0.0
  %6904 = vmatpush1.msra.mxu0 0.0
  %6905 = vmatprep.mubr.f32.mxu0 0.0
  %6906 = vmatmul.mubr.f32.gmra.mrb[0].mxu0 %v6839
  %v6907 = vpop.f32.mrb[0].mxu0
  %v6908 = vadd.f32 0.0, %v6907
  %v6909 = vpop.f32.mrb[0].mxu0
  %6910 = vdwg.mxu0
  %v6911 = vmul.f32 %v6908, 0.03125
  %v6912 = vmul.f32 %v6911, %v6911
  %v6914 = vrot.slane %v6912, 7
  %v6916 = vsub.f32 %v6911, %v6914
  %v6917 = vmax.f32 %v6916, 0.0
  %v6918 = vld [vmem:[%s1 + $0x5] sm:$0x1]
  %v6919 = vld [vmem:[%s2 + $0x5] sm:$0x1]
  %v6920 = vadd.f32 %v6917, 1e-05
  %v6921 = vrsqrt.pop %v6920
  %v6923 = vrot.slane %v6921, 1
  %v6925 = vmul.f32 %v6918, %v6923
  %v6926 = vmul.f32 %v6911, %v6925
  %v6927 = vsub.f32 %v6919, %v6926
  %v6929 = vrot.slane %v6927, 7
  %v6931 = vsel %vm843, %v6925, %v6929
  %v6932 = vld [vmem:[%s14] sm:$0xff]
  %v6933 = vld [vmem:[%s14 + $0x8] sm:$0xff]
  %v6935 = vsel %vm1053, %v6931, 0
  %6937 = vmatprep.subr.mxu0 0.0
  %6938 = vmatpush1.msra.mxu0 %v6932
  %6939 = vmatprep.subr.mxu0 0.0
  %6940 = vmatpush1.msra.mxu0 %v6933
  %6941 = vmatprep.subr.mxu0 0.0
  %6942 = vmatpush1.msra.mxu0 0.0
  %6943 = vmatprep.subr.mxu0 0.0
  %6944 = vmatpush1.msra.mxu0 0.0
  %6945 = vmatprep.subr.mxu0 0.0
  %6946 = vmatpush1.msra.mxu0 0.0
  %6947 = vmatprep.subr.mxu0 0.0
  %6948 = vmatpush1.msra.mxu0 0.0
  %6949 = vmatprep.subr.mxu0 0.0
  %6950 = vmatpush1.msra.mxu0 0.0
  %6951 = vmatprep.subr.mxu0 0.0
  %6952 = vmatpush1.msra.mxu0 0.0
  %6953 = vmatprep.subr.mxu0 0.0
  %6954 = vmatpush1.msra.mxu0 0.0
  %6955 = vmatprep.subr.mxu0 0.0
  %6956 = vmatpush1.msra.mxu0 0.0
  %6957 = vmatprep.subr.mxu0 0.0
  %6958 = vmatpush1.msra.mxu0 0.0
  %6959 = vmatprep.subr.mxu0 0.0
  %6960 = vmatpush1.msra.mxu0 0.0
  %6961 = vmatprep.subr.mxu0 0.0
  %6962 = vmatpush1.msra.mxu0 0.0
  %6963 = vmatprep.subr.mxu0 0.0
  %6964 = vmatpush1.msra.mxu0 0.0
  %6965 = vmatprep.subr.mxu0 0.0
  %6966 = vmatpush1.msra.mxu0 0.0
  %6967 = vmatprep.subr.mxu0 0.0
  %6968 = vmatpush1.msra.mxu0 0.0
  %6969 = vmatprep.subr.mxu0 0.0
  %6970 = vmatpush1.msra.mxu0 0.0
  %6971 = vmatprep.subr.mxu0 0.0
  %6972 = vmatpush1.msra.mxu0 0.0
  %6973 = vmatprep.subr.mxu0 0.0
  %6974 = vmatpush1.msra.mxu0 0.0
  %6975 = vmatprep.subr.mxu0 0.0
  %6976 = vmatpush1.msra.mxu0 0.0
  %6977 = vmatprep.subr.mxu0 0.0
  %6978 = vmatpush1.msra.mxu0 0.0
  %6979 = vmatprep.subr.mxu0 0.0
  %6980 = vmatpush1.msra.mxu0 0.0
  %6981 = vmatprep.subr.mxu0 0.0
  %6982 = vmatpush1.msra.mxu0 0.0
  %6983 = vmatprep.subr.mxu0 0.0
  %6984 = vmatpush1.msra.mxu0 0.0
  %6985 = vmatprep.subr.mxu0 0.0
  %6986 = vmatpush1.msra.mxu0 0.0
  %6987 = vmatprep.subr.mxu0 0.0
  %6988 = vmatpush1.msra.mxu0 0.0
  %6989 = vmatprep.subr.mxu0 0.0
  %6990 = vmatpush1.msra.mxu0 0.0
  %6991 = vmatprep.subr.mxu0 0.0
  %6992 = vmatpush1.msra.mxu0 0.0
  %6993 = vmatprep.subr.mxu0 0.0
  %6994 = vmatpush1.msra.mxu0 0.0
  %6995 = vmatprep.subr.mxu0 0.0
  %6996 = vmatpush1.msra.mxu0 0.0
  %6997 = vmatprep.subr.mxu0 0.0
  %6998 = vmatpush1.msra.mxu0 0.0
  %6999 = vmatprep.subr.mxu0 0.0
  %7000 = vmatpush1.msra.mxu0 0.0
  %7001 = vmatprep.mubr.f32.mxu0 0.0
  %7002 = vmatmul.mubr.f32.gmra.mrb[0].mxu0 %v6935
  %v7003 = vpop.f32.mrb[0].mxu0
  %v7004 = vadd.f32 0.0, %v7003
  %v7005 = vpop.f32.mrb[0].mxu0
  %7006 = vdwg.mxu0
  %v7007 = vlaneseq
  %v7008 = vshrl.u32 %v7007, 7
  %v7009 = vsub.s32 0, %v7008
  %v7010 = vrot.slane %v7004, %v7009
  %v7011 = vmul.f32 %v6809, %v7010
  %v7012 = vlaneseq
  %v7013 = vshrl.u32 %v7012, 7
  %v7014 = vsub.s32 1, %v7013
  %v7015 = vrot.slane %v7004, %v7014
  %v7016 = vadd.f32 %v7011, %v7015
  %v7017 = vmax.f32 %v7016, 0.0
  %v7019 = vcombine.high %v7017, %v7017
  %7021 = vst.msk [vmem:[%s19] sm:$0xf] %vm6028, %v7017
  %7022 = vst.msk [vmem:[%s19 + $0x4] sm:$0xf] %vm6028, %v7019
  // Predicated region
  $region70: #{feature_extraction.1} parent=0 // pred_check
    _
  $region71: #{feature_extraction.1} parent=0 // pred_check_branch
    %7024 = sbr.rel (0) target = $region73
  $region72: #{feature_extraction.1} parent=0 // pred_region
    _
  $region73: #{feature_extraction.1} parent=0 // pred_fallthru
    _
  // Predicated region
  $region74: #{feature_extraction.1} parent=0 // pred_check
    _
  $region75: #{feature_extraction.1} parent=0 // pred_check_branch
    %7026 = sbr.rel (0) target = $region77
  $region76: #{feature_extraction.1} parent=0 // pred_region
    _
  $region77: #{feature_extraction.1} parent=0 // pred_fallthru
    _
  // Predicated region
  $region78: #{feature_extraction.1} parent=0 // pred_check
    _
  $region79: #{feature_extraction.1} parent=0 // pred_check_branch
    %7028 = sbr.rel (0) target = $region81
  $region80: #{feature_extraction.1} parent=0 // pred_region
    _
  $region81: #{feature_extraction.1} parent=0 // pred_fallthru
    _
  // Predicated region
  $region82: #{feature_extraction.1} parent=0 // pred_check
    _
  $region83: #{feature_extraction.1} parent=0 // pred_check_branch
    %7030 = sbr.rel (0) target = $region85
  $region84: #{feature_extraction.1} parent=0 // pred_region
    _
  $region85: #{feature_extraction.1} parent=0 // pred_fallthru
    _
  // Predicated region
  $region86: #{feature_extraction.1} parent=0 // pred_check
    _
  $region87: #{feature_extraction.1} parent=0 // pred_check_branch
    %7032 = sbr.rel (0) target = $region89
  $region88: #{feature_extraction.1} parent=0 // pred_region
    _
  $region89: #{feature_extraction.1} parent=0 // pred_fallthru
    _
  // Predicated region
  $region90: #{feature_extraction.1} parent=0 // pred_check
    _
  $region91: #{feature_extraction.1} parent=0 // pred_check_branch
    %7034 = sbr.rel (0) target = $region93
  $region92: #{feature_extraction.1} parent=0 // pred_region
    _
  $region93: #{feature_extraction.1} parent=0 // pred_fallthru
    _

</llo_original>
